<compile_context>
chip_gen: v7x
topology: tpu7x:2x2x1
jax: 0.10.0
libtpu: 0.0.40
codegen_flags: <defaults>
</compile_context>

<pallas_src>
from functools import partial

import jax
import jax.numpy as jnp
from jax.experimental import pallas as pl
from jax.experimental.pallas import tpu as pltpu

BN_EPS = 1e-5
PAD = 128                      # lane-dense padding for feat_dim / hidden / low_dim
VMEM_LIMIT = 32 * 1024 * 1024  # safe on v5e/v6e/v7x


def _full_vmem_spec():
    return pl.BlockSpec(memory_space=pltpu.MemorySpace.VMEM)


# ----------------------------------------------------------------------------
# conv3x3(pad=1) on one image: 9 shifted windows of the zero-padded NHWC block,
# each a (H*W, Cin) x (Cin, Cpad) MXU matmul accumulated in f32.
# ----------------------------------------------------------------------------
def _conv_block(x_ref, w_ref, b_ref):
    hp2, wp2, cin = x_ref.shape
    h, w = hp2 - 2, wp2 - 2
    cpad = w_ref.shape[-1]
    acc = jnp.zeros((h * w, cpad), jnp.float32)
    for k in range(9):                             # static unroll over 3x3 taps
        kh, kw = divmod(k, 3)
        win = x_ref[kh:kh + h, kw:kw + w, :]       # (H, W, Cin) bf16 window
        patch = win.astype(jnp.float32).reshape(h * w, cin)
        acc = acc + jnp.dot(patch, w_ref[k], preferred_element_type=jnp.float32)
    return acc + b_ref[...]                        # (H*W, Cpad) + (1, Cpad)


# ----------------------------------------------------------------------------
# Kernel 1: per-view channel sum / sum-of-squares of the conv output, reduced
# across the batch grid axis (accumulator output, init at b == 0).
# ----------------------------------------------------------------------------
def _conv_stats_kernel(x_ref, w_ref, b_ref, sum_ref, ssq_ref):
    conv = _conv_block(x_ref, w_ref, b_ref)        # (H*W, Cpad) f32

    @pl.when(pl.program_id(1) == 0)
    def _():
        sum_ref[...] = jnp.zeros_like(sum_ref)
        ssq_ref[...] = jnp.zeros_like(ssq_ref)

    sum_ref[...] += jnp.sum(conv, axis=0, keepdims=True)
    ssq_ref[...] += jnp.sum(conv * conv, axis=0, keepdims=True)


# ----------------------------------------------------------------------------
# Kernel 2: recompute conv, apply BatchNorm2d (full-batch train-mode stats),
# ReLU and global average pool -> one feature row per (view, image).
# ----------------------------------------------------------------------------
def _bn_relu_gap_kernel(x_ref, w_ref, b_ref, g_ref, beta_ref,
                        sum_ref, ssq_ref, feat_ref, *, inv_count):
    conv = _conv_block(x_ref, w_ref, b_ref)        # (H*W, Cpad) f32
    mean = sum_ref[...] * inv_count                # (1, Cpad)
    var = ssq_ref[...] * inv_count - mean * mean
    scale = jax.lax.rsqrt(var + BN_EPS) * g_ref[...]
    y = (conv - mean) * scale + beta_ref[...]
    y = jnp.maximum(y, 0.0)                        # ReLU
    gap = jnp.mean(y, axis=0, keepdims=True)       # (1, Cpad) global average pool
    feat_ref[pl.ds(pl.program_id(1), 1), :] = gap  # row b of the per-view block


def backbone_forward(x_pad, conv_w, conv_b, gamma, beta):
    """x_pad: (V, B, H+2, W+2, Cin) bf16 -> features (V, B, Cpad) f32."""
    V, B, hp2, wp2, cin = x_pad.shape
    H, W = hp2 - 2, wp2 - 2
    cpad = conv_w.shape[-1]

    x_spec = pl.BlockSpec((None, None, hp2, wp2, cin), lambda v, b: (v, b, 0, 0, 0))
    w_spec = pl.BlockSpec((9, cin, cpad), lambda v, b: (0, 0, 0))        # resident
    vec_spec = pl.BlockSpec((1, cpad), lambda v, b: (0, 0))              # resident
    stat_spec = pl.BlockSpec((None, 1, cpad), lambda v, b: (v, 0, 0))    # per-view acc

    # Pass 1: per-view channel statistics over the full (B, H, W) extent.
    csum, cssq = pl.pallas_call(
        _conv_stats_kernel,
        grid=(V, B),
        in_specs=[x_spec, w_spec, vec_spec],
        out_specs=[stat_spec, stat_spec],
        out_shape=[jax.ShapeDtypeStruct((V, 1, cpad), jnp.float32)] * 2,
        compiler_params=pltpu.CompilerParams(
            dimension_semantics=("parallel", "arbitrary"),
            vmem_limit_bytes=VMEM_LIMIT),
    )(x_pad, conv_w, conv_b)

    # Pass 2: recompute conv (memory-bound, cheap) + BN + ReLU + GAP.
    feat_spec = pl.BlockSpec((None, B, cpad), lambda v, b: (v, 0, 0))
    feats = pl.pallas_call(
        partial(_bn_relu_gap_kernel, inv_count=1.0 / float(B * H * W)),
        grid=(V, B),
        in_specs=[x_spec, w_spec, vec_spec, vec_spec, vec_spec, stat_spec, stat_spec],
        out_specs=feat_spec,
        out_shape=jax.ShapeDtypeStruct((V, B, cpad), jnp.float32),
        compiler_params=pltpu.CompilerParams(
            dimension_semantics=("parallel", "arbitrary"),
            vmem_limit_bytes=VMEM_LIMIT),
    )(x_pad, conv_w, conv_b, gamma, beta, csum, cssq)
    return feats


# ----------------------------------------------------------------------------
# Kernel 3: projection head (encoder.fc) + target projections (stacked views,
# one matmul each), online predictor MLP (Linear -> BatchNorm1d -> ReLU ->
# Linear, per view), and the BYOL loss  2 - 2*(x*y).sum(-1), mean over batch.
# ----------------------------------------------------------------------------
def _head_kernel(f_ref, wfc_ref, bfc_ref, wfct_ref, bfct_ref,
                 w1_ref, b1_ref, g1_ref, be1_ref, w2_ref, b2_ref,
                 loss_ref, *, batch):
    f = f_ref[...]                                            # (2B, Cpad)
    proj = jnp.dot(f, wfc_ref[...], preferred_element_type=jnp.float32) + bfc_ref[...]
    tgt = jnp.dot(f, wfct_ref[...], preferred_element_type=jnp.float32) + bfct_ref[...]

    w1 = w1_ref[...]; b1 = b1_ref[...]
    g1 = g1_ref[...]; be1 = be1_ref[...]
    w2 = w2_ref[...]; b2 = b2_ref[...]

    def predictor(p):   # per-view: BatchNorm1d stats are per forward call
        h = jnp.dot(p, w1, preferred_element_type=jnp.float32) + b1
        mu = jnp.mean(h, axis=0, keepdims=True)
        var = jnp.mean((h - mu) * (h - mu), axis=0, keepdims=True)
        h = (h - mu) * jax.lax.rsqrt(var + BN_EPS) * g1 + be1
        h = jnp.maximum(h, 0.0)
        return jnp.dot(h, w2, preferred_element_type=jnp.float32) + b2

    pred1 = predictor(proj[:batch])
    pred2 = predictor(proj[batch:])
    tp1 = tgt[:batch]            # target projections (no-grad / detached in torch)
    tp2 = tgt[batch:]

    l1 = 2.0 - 2.0 * jnp.sum(pred1 * tp2, axis=-1, keepdims=True)   # (B, 1)
    l2 = 2.0 - 2.0 * jnp.sum(pred2 * tp1, axis=-1, keepdims=True)   # (B, 1)
    # Single (1,1) scalar store (kept in VMEM for lowering robustness; one
    # masked store, negligible).
    loss_ref[...] = jnp.sum(l1 + l2, axis=0, keepdims=True) * (1.0 / batch)


def head_forward(f_all, p, batch):
    loss = pl.pallas_call(
        partial(_head_kernel, batch=batch),
        out_shape=jax.ShapeDtypeStruct((1, 1), jnp.float32),
        in_specs=[_full_vmem_spec()] * 11,
        out_specs=_full_vmem_spec(),
        compiler_params=pltpu.CompilerParams(vmem_limit_bytes=VMEM_LIMIT),
    )(f_all,
      p["fc_w"], p["fc_b"], p["fc_w_t"], p["fc_b_t"],
      p["pred_w1"], p["pred_b1"], p["bn1d_g"], p["bn1d_b"],
      p["pred_w2"], p["pred_b2"])
    return loss[0, 0]


# ----------------------------------------------------------------------------
# Plain-JAX glue: NCHW -> zero-padded NHWC bf16, views stacked on a new axis.
# (No im2col / no 9x duplication; only the +1 spatial halo pad.)
# ----------------------------------------------------------------------------
def _stack_and_pad(images_nchw):
    xs = [jnp.pad(jnp.transpose(im, (0, 2, 3, 1)), ((0, 0), (1, 1), (1, 1), (0, 0)))
          for im in images_nchw]
    return jnp.stack(xs, axis=0).astype(jnp.bfloat16)   # (V, B, H+2, W+2, Cin)


# ----------------------------------------------------------------------------
# BYOL forward
# ----------------------------------------------------------------------------
@partial(jax.jit, static_argnames=("return_loss", "feat_dim"))
def byol_forward(params, image_one, image_two=None, return_loss=False, feat_dim=32):
    if not return_loss:
        x = _stack_and_pad([image_one])
        feats = backbone_forward(x, params["conv_w"], params["conv_b"],
                                 params["bn2d_g"], params["bn2d_b"])
        # == online_encoder(image_one)[1]
        return feats[0, :, :feat_dim]

    x = _stack_and_pad([image_one, image_two])
    feats = backbone_forward(x, params["conv_w"], params["conv_b"],
                             params["bn2d_g"], params["bn2d_b"])     # (2, B, Cpad)
    B = image_one.shape[0]
    cpad = feats.shape[-1]

    # TODO(synk): the in-place EMA update of the target encoder mutates module
    # state in PyTorch; target params here are identical copies of the online
    # params, so the update is a numeric no-op and the target backbone reuses
    # the online features.
    loss = head_forward(feats.reshape(2 * B, cpad), params, B)
    feat1 = feats[0, :, :feat_dim]
    feat2 = feats[1, :, :feat_dim]
    return feat1, feat2, loss


# ----------------------------------------------------------------------------
# Deterministic parameter init (channel dims zero-padded to PAD=128)
# ----------------------------------------------------------------------------
def init_params(key, cin=3, feat_dim=32, low_dim=16):
    assert max(feat_dim, low_dim) <= PAD
    ks = jax.random.split(key, 4)

    def lin(k, fan_in, shape):
        return jax.random.normal(k, shape, jnp.float32) / jnp.sqrt(float(fan_in))

    def pad_to(x, target_shape):
        return jnp.pad(x, [(0, t - s) for s, t in zip(x.shape, target_shape)])

    hidden = feat_dim   # predictor hidden = online_encoder.fc[0].in_features

    conv_w = pad_to(lin(ks[0], 9 * cin, (3, 3, cin, feat_dim)),
                    (3, 3, cin, PAD)).reshape(9, cin, PAD)
    conv_b = jnp.zeros((1, PAD), jnp.float32)
    bn2d_g = pad_to(jnp.ones((1, feat_dim), jnp.float32), (1, PAD))
    bn2d_b = jnp.zeros((1, PAD), jnp.float32)

    fc_w = pad_to(lin(ks[1], feat_dim, (feat_dim, low_dim)), (PAD, PAD))
    fc_b = jnp.zeros((1, PAD), jnp.float32)

    pred_w1 = pad_to(lin(ks[2], low_dim, (low_dim, hidden)), (PAD, PAD))
    pred_b1 = jnp.zeros((1, PAD), jnp.float32)
    bn1d_g = pad_to(jnp.ones((1, hidden), jnp.float32), (1, PAD))
    bn1d_b = jnp.zeros((1, PAD), jnp.float32)
    pred_w2 = pad_to(lin(ks[3], hidden, (hidden, low_dim)), (PAD, PAD))
    pred_b2 = jnp.zeros((1, PAD), jnp.float32)

    return dict(
        conv_w=conv_w, conv_b=conv_b, bn2d_g=bn2d_g, bn2d_b=bn2d_b,
        fc_w=fc_w, fc_b=fc_b,
        # target encoder = deepcopy of online encoder (shares values)
        fc_w_t=fc_w, fc_b_t=fc_b,
        pred_w1=pred_w1, pred_b1=pred_b1, bn1d_g=bn1d_g, bn1d_b=bn1d_b,
        pred_w2=pred_w2, pred_b2=pred_b2,
    )


if __name__ == "__main__":
    B, Cin, H, W = 2, 3, 16, 16
    feat_dim, low_dim = 32, 16

    key = jax.random.PRNGKey(0)
    kp, k1, k2 = jax.random.split(key, 3)
    params = init_params(kp, cin=Cin, feat_dim=feat_dim, low_dim=low_dim)

    image_one = jax.random.normal(k1, (B, Cin, H, W), jnp.float32)
    image_two = jax.random.normal(k2, (B, Cin, H, W), jnp.float32)

    # return_loss=False path (== online_encoder(image_one)[1])
    feat_only = byol_forward(params, image_one, return_loss=False, feat_dim=feat_dim)

    # return_loss=True path
    feat1, feat2, loss = byol_forward(params, image_one, image_two,
                                      return_loss=True, feat_dim=feat_dim)

    jax.block_until_ready((feat_only, feat1, feat2, loss))
    assert feat_only.shape == (B, feat_dim)
    assert feat1.shape == (B, feat_dim) and feat2.shape == (B, feat_dim)
    assert loss.shape == ()
    print("KERNEL_OK")
</pallas_src>

<mosaic_0001>
module attributes {stable_mosaic.version = 11 : i64} {
  func.func @_conv_stats_kernel(%arg0: i32, %arg1: i32, %arg2: memref<1x1x18x18x3xbf16, #tpu.memory_space<vmem>>, %arg3: memref<9x3x128xf32, #tpu.memory_space<vmem>>, %arg4: memref<1x128xf32, #tpu.memory_space<vmem>>, %arg5: memref<1x1x128xf32, #tpu.memory_space<vmem>>, %arg6: memref<1x1x128xf32, #tpu.memory_space<vmem>>) attributes {dimension_semantics = [#tpu.dimension_semantics<parallel>, #tpu.dimension_semantics<arbitrary>], iteration_bounds = array<i64: 1, 2>, scalar_prefetch = 0 : i64, scratch_operands = 0 : i64, tpu.core_type = #tpu.core_type<tc>, window_params = [{transform_indices = @transform_0, window_bounds = array<i64: 1, 1, 18, 18, 3>}, {pipeline_mode = #tpu.pipeline_mode<synchronous>, transform_indices = @transform_1, window_bounds = array<i64: 9, 3, 128>}, {pipeline_mode = #tpu.pipeline_mode<synchronous>, transform_indices = @transform_2, window_bounds = array<i64: 1, 128>}, {transform_indices = @transform_3, window_bounds = array<i64: 1, 1, 128>}, {transform_indices = @transform_4, window_bounds = array<i64: 1, 1, 128>}]} {
    %cst = arith.constant 0.000000e+00 : f32
    %0 = vector.broadcast %cst : f32 to vector<256x128xf32>
    %c0 = arith.constant 0 : index
    %c0_0 = arith.constant 0 : index
    %c0_1 = arith.constant 0 : index
    %c0_2 = arith.constant 0 : index
    %c0_3 = arith.constant 0 : index
    %1 = vector.load %arg2[%c0, %c0_0, %c0_1, %c0_2, %c0_3] : memref<1x1x18x18x3xbf16, #tpu.memory_space<vmem>>, vector<1x1x16x16x3xbf16>
    %2 = vector.shape_cast %1 : vector<1x1x16x16x3xbf16> to vector<16x16x3xbf16>
    %3 = arith.extf %2 : vector<16x16x3xbf16> to vector<16x16x3xf32>
    %4 = vector.shape_cast %3 : vector<16x16x3xf32> to vector<256x3xf32>
    %c0_4 = arith.constant 0 : index
    %c0_5 = arith.constant 0 : index
    %c0_6 = arith.constant 0 : index
    %5 = vector.load %arg3[%c0_4, %c0_5, %c0_6] : memref<9x3x128xf32, #tpu.memory_space<vmem>>, vector<1x3x128xf32>
    %6 = vector.shape_cast %5 : vector<1x3x128xf32> to vector<3x128xf32>
    %cst_7 = arith.constant dense<0.000000e+00> : vector<256x128xf32>
    %7 = tpu.matmul %4, %6, %cst_7 {dimension_numbers = #tpu.dot_dimension_numbers<[1], [0], [0], [1], [0, 0, 1, 1], [], []>} : vector<256x3xf32>, vector<3x128xf32>, vector<256x128xf32> -> vector<256x128xf32>
    %8 = arith.addf %0, %7 : vector<256x128xf32>
    %c0_8 = arith.constant 0 : index
    %c0_9 = arith.constant 0 : index
    %c0_10 = arith.constant 0 : index
    %c1 = arith.constant 1 : index
    %c0_11 = arith.constant 0 : index
    %9 = vector.load %arg2[%c0_8, %c0_9, %c0_10, %c1, %c0_11] : memref<1x1x18x18x3xbf16, #tpu.memory_space<vmem>>, vector<1x1x16x16x3xbf16>
    %10 = vector.shape_cast %9 : vector<1x1x16x16x3xbf16> to vector<16x16x3xbf16>
    %11 = arith.extf %10 : vector<16x16x3xbf16> to vector<16x16x3xf32>
    %12 = vector.shape_cast %11 : vector<16x16x3xf32> to vector<256x3xf32>
    %c1_12 = arith.constant 1 : index
    %c0_13 = arith.constant 0 : index
    %c0_14 = arith.constant 0 : index
    %13 = vector.load %arg3[%c1_12, %c0_13, %c0_14] : memref<9x3x128xf32, #tpu.memory_space<vmem>>, vector<1x3x128xf32>
    %14 = vector.shape_cast %13 : vector<1x3x128xf32> to vector<3x128xf32>
    %cst_15 = arith.constant dense<0.000000e+00> : vector<256x128xf32>
    %15 = tpu.matmul %12, %14, %cst_15 {dimension_numbers = #tpu.dot_dimension_numbers<[1], [0], [0], [1], [0, 0, 1, 1], [], []>} : vector<256x3xf32>, vector<3x128xf32>, vector<256x128xf32> -> vector<256x128xf32>
    %16 = arith.addf %8, %15 : vector<256x128xf32>
    %c0_16 = arith.constant 0 : index
    %c0_17 = arith.constant 0 : index
    %c0_18 = arith.constant 0 : index
    %c2 = arith.constant 2 : index
    %c0_19 = arith.constant 0 : index
    %17 = vector.load %arg2[%c0_16, %c0_17, %c0_18, %c2, %c0_19] : memref<1x1x18x18x3xbf16, #tpu.memory_space<vmem>>, vector<1x1x16x16x3xbf16>
    %18 = vector.shape_cast %17 : vector<1x1x16x16x3xbf16> to vector<16x16x3xbf16>
    %19 = arith.extf %18 : vector<16x16x3xbf16> to vector<16x16x3xf32>
    %20 = vector.shape_cast %19 : vector<16x16x3xf32> to vector<256x3xf32>
    %c2_20 = arith.constant 2 : index
    %c0_21 = arith.constant 0 : index
    %c0_22 = arith.constant 0 : index
    %21 = vector.load %arg3[%c2_20, %c0_21, %c0_22] : memref<9x3x128xf32, #tpu.memory_space<vmem>>, vector<1x3x128xf32>
    %22 = vector.shape_cast %21 : vector<1x3x128xf32> to vector<3x128xf32>
    %cst_23 = arith.constant dense<0.000000e+00> : vector<256x128xf32>
    %23 = tpu.matmul %20, %22, %cst_23 {dimension_numbers = #tpu.dot_dimension_numbers<[1], [0], [0], [1], [0, 0, 1, 1], [], []>} : vector<256x3xf32>, vector<3x128xf32>, vector<256x128xf32> -> vector<256x128xf32>
    %24 = arith.addf %16, %23 : vector<256x128xf32>
    %c0_24 = arith.constant 0 : index
    %c0_25 = arith.constant 0 : index
    %c1_26 = arith.constant 1 : index
    %c0_27 = arith.constant 0 : index
    %c0_28 = arith.constant 0 : index
    %25 = vector.load %arg2[%c0_24, %c0_25, %c1_26, %c0_27, %c0_28] : memref<1x1x18x18x3xbf16, #tpu.memory_space<vmem>>, vector<1x1x16x16x3xbf16>
    %26 = vector.shape_cast %25 : vector<1x1x16x16x3xbf16> to vector<16x16x3xbf16>
    %27 = arith.extf %26 : vector<16x16x3xbf16> to vector<16x16x3xf32>
    %28 = vector.shape_cast %27 : vector<16x16x3xf32> to vector<256x3xf32>
    %c3 = arith.constant 3 : index
    %c0_29 = arith.constant 0 : index
    %c0_30 = arith.constant 0 : index
    %29 = vector.load %arg3[%c3, %c0_29, %c0_30] : memref<9x3x128xf32, #tpu.memory_space<vmem>>, vector<1x3x128xf32>
    %30 = vector.shape_cast %29 : vector<1x3x128xf32> to vector<3x128xf32>
    %cst_31 = arith.constant dense<0.000000e+00> : vector<256x128xf32>
    %31 = tpu.matmul %28, %30, %cst_31 {dimension_numbers = #tpu.dot_dimension_numbers<[1], [0], [0], [1], [0, 0, 1, 1], [], []>} : vector<256x3xf32>, vector<3x128xf32>, vector<256x128xf32> -> vector<256x128xf32>
    %32 = arith.addf %24, %31 : vector<256x128xf32>
    %c0_32 = arith.constant 0 : index
    %c0_33 = arith.constant 0 : index
    %c1_34 = arith.constant 1 : index
    %c1_35 = arith.constant 1 : index
    %c0_36 = arith.constant 0 : index
    %33 = vector.load %arg2[%c0_32, %c0_33, %c1_34, %c1_35, %c0_36] : memref<1x1x18x18x3xbf16, #tpu.memory_space<vmem>>, vector<1x1x16x16x3xbf16>
    %34 = vector.shape_cast %33 : vector<1x1x16x16x3xbf16> to vector<16x16x3xbf16>
    %35 = arith.extf %34 : vector<16x16x3xbf16> to vector<16x16x3xf32>
    %36 = vector.shape_cast %35 : vector<16x16x3xf32> to vector<256x3xf32>
    %c4 = arith.constant 4 : index
    %c0_37 = arith.constant 0 : index
    %c0_38 = arith.constant 0 : index
    %37 = vector.load %arg3[%c4, %c0_37, %c0_38] : memref<9x3x128xf32, #tpu.memory_space<vmem>>, vector<1x3x128xf32>
    %38 = vector.shape_cast %37 : vector<1x3x128xf32> to vector<3x128xf32>
    %cst_39 = arith.constant dense<0.000000e+00> : vector<256x128xf32>
    %39 = tpu.matmul %36, %38, %cst_39 {dimension_numbers = #tpu.dot_dimension_numbers<[1], [0], [0], [1], [0, 0, 1, 1], [], []>} : vector<256x3xf32>, vector<3x128xf32>, vector<256x128xf32> -> vector<256x128xf32>
    %40 = arith.addf %32, %39 : vector<256x128xf32>
    %c0_40 = arith.constant 0 : index
    %c0_41 = arith.constant 0 : index
    %c1_42 = arith.constant 1 : index
    %c2_43 = arith.constant 2 : index
    %c0_44 = arith.constant 0 : index
    %41 = vector.load %arg2[%c0_40, %c0_41, %c1_42, %c2_43, %c0_44] : memref<1x1x18x18x3xbf16, #tpu.memory_space<vmem>>, vector<1x1x16x16x3xbf16>
    %42 = vector.shape_cast %41 : vector<1x1x16x16x3xbf16> to vector<16x16x3xbf16>
    %43 = arith.extf %42 : vector<16x16x3xbf16> to vector<16x16x3xf32>
    %44 = vector.shape_cast %43 : vector<16x16x3xf32> to vector<256x3xf32>
    %c5 = arith.constant 5 : index
    %c0_45 = arith.constant 0 : index
    %c0_46 = arith.constant 0 : index
    %45 = vector.load %arg3[%c5, %c0_45, %c0_46] : memref<9x3x128xf32, #tpu.memory_space<vmem>>, vector<1x3x128xf32>
    %46 = vector.shape_cast %45 : vector<1x3x128xf32> to vector<3x128xf32>
    %cst_47 = arith.constant dense<0.000000e+00> : vector<256x128xf32>
    %47 = tpu.matmul %44, %46, %cst_47 {dimension_numbers = #tpu.dot_dimension_numbers<[1], [0], [0], [1], [0, 0, 1, 1], [], []>} : vector<256x3xf32>, vector<3x128xf32>, vector<256x128xf32> -> vector<256x128xf32>
    %48 = arith.addf %40, %47 : vector<256x128xf32>
    %c0_48 = arith.constant 0 : index
    %c0_49 = arith.constant 0 : index
    %c2_50 = arith.constant 2 : index
    %c0_51 = arith.constant 0 : index
    %c0_52 = arith.constant 0 : index
    %49 = vector.load %arg2[%c0_48, %c0_49, %c2_50, %c0_51, %c0_52] : memref<1x1x18x18x3xbf16, #tpu.memory_space<vmem>>, vector<1x1x16x16x3xbf16>
    %50 = vector.shape_cast %49 : vector<1x1x16x16x3xbf16> to vector<16x16x3xbf16>
    %51 = arith.extf %50 : vector<16x16x3xbf16> to vector<16x16x3xf32>
    %52 = vector.shape_cast %51 : vector<16x16x3xf32> to vector<256x3xf32>
    %c6 = arith.constant 6 : index
    %c0_53 = arith.constant 0 : index
    %c0_54 = arith.constant 0 : index
    %53 = vector.load %arg3[%c6, %c0_53, %c0_54] : memref<9x3x128xf32, #tpu.memory_space<vmem>>, vector<1x3x128xf32>
    %54 = vector.shape_cast %53 : vector<1x3x128xf32> to vector<3x128xf32>
    %cst_55 = arith.constant dense<0.000000e+00> : vector<256x128xf32>
    %55 = tpu.matmul %52, %54, %cst_55 {dimension_numbers = #tpu.dot_dimension_numbers<[1], [0], [0], [1], [0, 0, 1, 1], [], []>} : vector<256x3xf32>, vector<3x128xf32>, vector<256x128xf32> -> vector<256x128xf32>
    %56 = arith.addf %48, %55 : vector<256x128xf32>
    %c0_56 = arith.constant 0 : index
    %c0_57 = arith.constant 0 : index
    %c2_58 = arith.constant 2 : index
    %c1_59 = arith.constant 1 : index
    %c0_60 = arith.constant 0 : index
    %57 = vector.load %arg2[%c0_56, %c0_57, %c2_58, %c1_59, %c0_60] : memref<1x1x18x18x3xbf16, #tpu.memory_space<vmem>>, vector<1x1x16x16x3xbf16>
    %58 = vector.shape_cast %57 : vector<1x1x16x16x3xbf16> to vector<16x16x3xbf16>
    %59 = arith.extf %58 : vector<16x16x3xbf16> to vector<16x16x3xf32>
    %60 = vector.shape_cast %59 : vector<16x16x3xf32> to vector<256x3xf32>
    %c7 = arith.constant 7 : index
    %c0_61 = arith.constant 0 : index
    %c0_62 = arith.constant 0 : index
    %61 = vector.load %arg3[%c7, %c0_61, %c0_62] : memref<9x3x128xf32, #tpu.memory_space<vmem>>, vector<1x3x128xf32>
    %62 = vector.shape_cast %61 : vector<1x3x128xf32> to vector<3x128xf32>
    %cst_63 = arith.constant dense<0.000000e+00> : vector<256x128xf32>
    %63 = tpu.matmul %60, %62, %cst_63 {dimension_numbers = #tpu.dot_dimension_numbers<[1], [0], [0], [1], [0, 0, 1, 1], [], []>} : vector<256x3xf32>, vector<3x128xf32>, vector<256x128xf32> -> vector<256x128xf32>
    %64 = arith.addf %56, %63 : vector<256x128xf32>
    %c0_64 = arith.constant 0 : index
    %c0_65 = arith.constant 0 : index
    %c2_66 = arith.constant 2 : index
    %c2_67 = arith.constant 2 : index
    %c0_68 = arith.constant 0 : index
    %65 = vector.load %arg2[%c0_64, %c0_65, %c2_66, %c2_67, %c0_68] : memref<1x1x18x18x3xbf16, #tpu.memory_space<vmem>>, vector<1x1x16x16x3xbf16>
    %66 = vector.shape_cast %65 : vector<1x1x16x16x3xbf16> to vector<16x16x3xbf16>
    %67 = arith.extf %66 : vector<16x16x3xbf16> to vector<16x16x3xf32>
    %68 = vector.shape_cast %67 : vector<16x16x3xf32> to vector<256x3xf32>
    %c8 = arith.constant 8 : index
    %c0_69 = arith.constant 0 : index
    %c0_70 = arith.constant 0 : index
    %69 = vector.load %arg3[%c8, %c0_69, %c0_70] : memref<9x3x128xf32, #tpu.memory_space<vmem>>, vector<1x3x128xf32>
    %70 = vector.shape_cast %69 : vector<1x3x128xf32> to vector<3x128xf32>
    %cst_71 = arith.constant dense<0.000000e+00> : vector<256x128xf32>
    %71 = tpu.matmul %68, %70, %cst_71 {dimension_numbers = #tpu.dot_dimension_numbers<[1], [0], [0], [1], [0, 0, 1, 1], [], []>} : vector<256x3xf32>, vector<3x128xf32>, vector<256x128xf32> -> vector<256x128xf32>
    %72 = arith.addf %64, %71 : vector<256x128xf32>
    %c0_72 = arith.constant 0 : index
    %c0_73 = arith.constant 0 : index
    %73 = vector.load %arg4[%c0_72, %c0_73] : memref<1x128xf32, #tpu.memory_space<vmem>>, vector<1x128xf32>
    %74 = vector.broadcast %73 : vector<1x128xf32> to vector<256x128xf32>
    %75 = arith.addf %72, %74 : vector<256x128xf32>
    %c0_i32 = arith.constant 0 : i32
    %76 = arith.cmpi eq, %arg1, %c0_i32 : i32
    %77 = arith.extui %76 : i1 to i32
    %c0_i32_74 = arith.constant 0 : i32
    %78 = arith.cmpi ne, %77, %c0_i32_74 : i32
    scf.if %78 {
      %cst_89 = arith.constant 0.000000e+00 : f32
      %96 = vector.broadcast %cst_89 : f32 to vector<1x128xf32>
      %c0_90 = arith.constant 0 : index
      %c0_91 = arith.constant 0 : index
      %c0_92 = arith.constant 0 : index
      %97 = vector.load %arg5[%c0_90, %c0_91, %c0_92] : memref<1x1x128xf32, #tpu.memory_space<vmem>>, vector<1x1x128xf32>
      %98 = vector.shape_cast %97 : vector<1x1x128xf32> to vector<1x128xf32>
      %99 = vector.shape_cast %96 : vector<1x128xf32> to vector<1x1x128xf32>
      tpu.vector_store %arg5[%c0_90, %c0_91, %c0_92], %99 {strides = array<i32>} : memref<1x1x128xf32, #tpu.memory_space<vmem>>, vector<1x1x128xf32>,
      %cst_93 = arith.constant 0.000000e+00 : f32
      %100 = vector.broadcast %cst_93 : f32 to vector<1x128xf32>
      %c0_94 = arith.constant 0 : index
      %c0_95 = arith.constant 0 : index
      %c0_96 = arith.constant 0 : index
      %101 = vector.load %arg6[%c0_94, %c0_95, %c0_96] : memref<1x1x128xf32, #tpu.memory_space<vmem>>, vector<1x1x128xf32>
      %102 = vector.shape_cast %101 : vector<1x1x128xf32> to vector<1x128xf32>
      %103 = vector.shape_cast %100 : vector<1x128xf32> to vector<1x1x128xf32>
      tpu.vector_store %arg6[%c0_94, %c0_95, %c0_96], %103 {strides = array<i32>} : memref<1x1x128xf32, #tpu.memory_space<vmem>>, vector<1x1x128xf32>,
    } else {
    }
    %c0_75 = arith.constant 0 : index
    %c0_76 = arith.constant 0 : index
    %c0_77 = arith.constant 0 : index
    %79 = vector.load %arg5[%c0_75, %c0_76, %c0_77] : memref<1x1x128xf32, #tpu.memory_space<vmem>>, vector<1x1x128xf32>
    %80 = vector.shape_cast %79 : vector<1x1x128xf32> to vector<1x128xf32>
    %cst_78 = arith.constant dense<0.000000e+00> : vector<128xf32>
    %81 = vector.multi_reduction <add>, %75, %cst_78 [0] : vector<256x128xf32> to vector<128xf32>
    %82 = vector.shape_cast %81 : vector<128xf32> to vector<1x128xf32>
    %83 = arith.addf %80, %82 : vector<1x128xf32>
    %c0_79 = arith.constant 0 : index
    %c0_80 = arith.constant 0 : index
    %c0_81 = arith.constant 0 : index
    %84 = vector.load %arg5[%c0_79, %c0_80, %c0_81] : memref<1x1x128xf32, #tpu.memory_space<vmem>>, vector<1x1x128xf32>
    %85 = vector.shape_cast %84 : vector<1x1x128xf32> to vector<1x128xf32>
    %86 = vector.shape_cast %83 : vector<1x128xf32> to vector<1x1x128xf32>
    tpu.vector_store %arg5[%c0_79, %c0_80, %c0_81], %86 {strides = array<i32>} : memref<1x1x128xf32, #tpu.memory_space<vmem>>, vector<1x1x128xf32>,
    %c0_82 = arith.constant 0 : index
    %c0_83 = arith.constant 0 : index
    %c0_84 = arith.constant 0 : index
    %87 = vector.load %arg6[%c0_82, %c0_83, %c0_84] : memref<1x1x128xf32, #tpu.memory_space<vmem>>, vector<1x1x128xf32>
    %88 = vector.shape_cast %87 : vector<1x1x128xf32> to vector<1x128xf32>
    %89 = arith.mulf %75, %75 : vector<256x128xf32>
    %cst_85 = arith.constant dense<0.000000e+00> : vector<128xf32>
    %90 = vector.multi_reduction <add>, %89, %cst_85 [0] : vector<256x128xf32> to vector<128xf32>
    %91 = vector.shape_cast %90 : vector<128xf32> to vector<1x128xf32>
    %92 = arith.addf %88, %91 : vector<1x128xf32>
    %c0_86 = arith.constant 0 : index
    %c0_87 = arith.constant 0 : index
    %c0_88 = arith.constant 0 : index
    %93 = vector.load %arg6[%c0_86, %c0_87, %c0_88] : memref<1x1x128xf32, #tpu.memory_space<vmem>>, vector<1x1x128xf32>
    %94 = vector.shape_cast %93 : vector<1x1x128xf32> to vector<1x128xf32>
    %95 = vector.shape_cast %92 : vector<1x128xf32> to vector<1x1x128xf32>
    tpu.vector_store %arg6[%c0_86, %c0_87, %c0_88], %95 {strides = array<i32>} : memref<1x1x128xf32, #tpu.memory_space<vmem>>, vector<1x1x128xf32>,
    return
  }
  func.func @transform_0(%arg0: i32, %arg1: i32) -> (i32, i32, i32, i32, i32) {
    %c0_i32 = arith.constant 0 : i32
    %c0_i32_0 = arith.constant 0 : i32
    %c0_i32_1 = arith.constant 0 : i32
    %c0_i32_2 = arith.constant 0 : i32
    return %arg0, %arg1, %c0_i32, %c0_i32_0, %c0_i32_1 : i32, i32, i32, i32, i32
  }
  func.func @transform_1(%arg0: i32, %arg1: i32) -> (i32, i32, i32) {
    %c0_i32 = arith.constant 0 : i32
    %c0_i32_0 = arith.constant 0 : i32
    %c0_i32_1 = arith.constant 0 : i32
    %c0_i32_2 = arith.constant 0 : i32
    return %c0_i32, %c0_i32_0, %c0_i32_1 : i32, i32, i32
  }
  func.func @transform_2(%arg0: i32, %arg1: i32) -> (i32, i32) {
    %c0_i32 = arith.constant 0 : i32
    %c0_i32_0 = arith.constant 0 : i32
    %c0_i32_1 = arith.constant 0 : i32
    return %c0_i32, %c0_i32_0 : i32, i32
  }
  func.func @transform_3(%arg0: i32, %arg1: i32) -> (i32, i32, i32) {
    %c0_i32 = arith.constant 0 : i32
    %c0_i32_0 = arith.constant 0 : i32
    %c0_i32_1 = arith.constant 0 : i32
    return %arg0, %c0_i32, %c0_i32_0 : i32, i32, i32
  }
  func.func @transform_4(%arg0: i32, %arg1: i32) -> (i32, i32, i32) {
    %c0_i32 = arith.constant 0 : i32
    %c0_i32_0 = arith.constant 0 : i32
    %c0_i32_1 = arith.constant 0 : i32
    return %arg0, %c0_i32, %c0_i32_0 : i32, i32, i32
  }
}

module attributes {stable_mosaic.version = 11 : i64} {
  func.func @_bn_relu_gap_kernel(%arg0: i32, %arg1: i32, %arg2: memref<1x1x18x18x3xbf16, #tpu.memory_space<vmem>>, %arg3: memref<9x3x128xf32, #tpu.memory_space<vmem>>, %arg4: memref<1x128xf32, #tpu.memory_space<vmem>>, %arg5: memref<1x128xf32, #tpu.memory_space<vmem>>, %arg6: memref<1x128xf32, #tpu.memory_space<vmem>>, %arg7: memref<1x1x128xf32, #tpu.memory_space<vmem>>, %arg8: memref<1x1x128xf32, #tpu.memory_space<vmem>>, %arg9: memref<1x2x128xf32, #tpu.memory_space<vmem>>) attributes {dimension_semantics = [#tpu.dimension_semantics<parallel>, #tpu.dimension_semantics<arbitrary>], iteration_bounds = array<i64: 1, 2>, scalar_prefetch = 0 : i64, scratch_operands = 0 : i64, tpu.core_type = #tpu.core_type<tc>, window_params = [{transform_indices = @transform_0, window_bounds = array<i64: 1, 1, 18, 18, 3>}, {pipeline_mode = #tpu.pipeline_mode<synchronous>, transform_indices = @transform_1, window_bounds = array<i64: 9, 3, 128>}, {pipeline_mode = #tpu.pipeline_mode<synchronous>, transform_indices = @transform_2, window_bounds = array<i64: 1, 128>}, {pipeline_mode = #tpu.pipeline_mode<synchronous>, transform_indices = @transform_3, window_bounds = array<i64: 1, 128>}, {pipeline_mode = #tpu.pipeline_mode<synchronous>, transform_indices = @transform_4, window_bounds = array<i64: 1, 128>}, {transform_indices = @transform_5, window_bounds = array<i64: 1, 1, 128>}, {transform_indices = @transform_6, window_bounds = array<i64: 1, 1, 128>}, {transform_indices = @transform_7, window_bounds = array<i64: 1, 2, 128>}]} {
    %cst = arith.constant 0.000000e+00 : f32
    %0 = vector.broadcast %cst : f32 to vector<256x128xf32>
    %c0 = arith.constant 0 : index
    %c0_0 = arith.constant 0 : index
    %c0_1 = arith.constant 0 : index
    %c0_2 = arith.constant 0 : index
    %c0_3 = arith.constant 0 : index
    %1 = vector.load %arg2[%c0, %c0_0, %c0_1, %c0_2, %c0_3] : memref<1x1x18x18x3xbf16, #tpu.memory_space<vmem>>, vector<1x1x16x16x3xbf16>
    %2 = vector.shape_cast %1 : vector<1x1x16x16x3xbf16> to vector<16x16x3xbf16>
    %3 = arith.extf %2 : vector<16x16x3xbf16> to vector<16x16x3xf32>
    %4 = vector.shape_cast %3 : vector<16x16x3xf32> to vector<256x3xf32>
    %c0_4 = arith.constant 0 : index
    %c0_5 = arith.constant 0 : index
    %c0_6 = arith.constant 0 : index
    %5 = vector.load %arg3[%c0_4, %c0_5, %c0_6] : memref<9x3x128xf32, #tpu.memory_space<vmem>>, vector<1x3x128xf32>
    %6 = vector.shape_cast %5 : vector<1x3x128xf32> to vector<3x128xf32>
    %cst_7 = arith.constant dense<0.000000e+00> : vector<256x128xf32>
    %7 = tpu.matmul %4, %6, %cst_7 {dimension_numbers = #tpu.dot_dimension_numbers<[1], [0], [0], [1], [0, 0, 1, 1], [], []>} : vector<256x3xf32>, vector<3x128xf32>, vector<256x128xf32> -> vector<256x128xf32>
    %8 = arith.addf %0, %7 : vector<256x128xf32>
    %c0_8 = arith.constant 0 : index
    %c0_9 = arith.constant 0 : index
    %c0_10 = arith.constant 0 : index
    %c1 = arith.constant 1 : index
    %c0_11 = arith.constant 0 : index
    %9 = vector.load %arg2[%c0_8, %c0_9, %c0_10, %c1, %c0_11] : memref<1x1x18x18x3xbf16, #tpu.memory_space<vmem>>, vector<1x1x16x16x3xbf16>
    %10 = vector.shape_cast %9 : vector<1x1x16x16x3xbf16> to vector<16x16x3xbf16>
    %11 = arith.extf %10 : vector<16x16x3xbf16> to vector<16x16x3xf32>
    %12 = vector.shape_cast %11 : vector<16x16x3xf32> to vector<256x3xf32>
    %c1_12 = arith.constant 1 : index
    %c0_13 = arith.constant 0 : index
    %c0_14 = arith.constant 0 : index
    %13 = vector.load %arg3[%c1_12, %c0_13, %c0_14] : memref<9x3x128xf32, #tpu.memory_space<vmem>>, vector<1x3x128xf32>
    %14 = vector.shape_cast %13 : vector<1x3x128xf32> to vector<3x128xf32>
    %cst_15 = arith.constant dense<0.000000e+00> : vector<256x128xf32>
    %15 = tpu.matmul %12, %14, %cst_15 {dimension_numbers = #tpu.dot_dimension_numbers<[1], [0], [0], [1], [0, 0, 1, 1], [], []>} : vector<256x3xf32>, vector<3x128xf32>, vector<256x128xf32> -> vector<256x128xf32>
    %16 = arith.addf %8, %15 : vector<256x128xf32>
    %c0_16 = arith.constant 0 : index
    %c0_17 = arith.constant 0 : index
    %c0_18 = arith.constant 0 : index
    %c2 = arith.constant 2 : index
    %c0_19 = arith.constant 0 : index
    %17 = vector.load %arg2[%c0_16, %c0_17, %c0_18, %c2, %c0_19] : memref<1x1x18x18x3xbf16, #tpu.memory_space<vmem>>, vector<1x1x16x16x3xbf16>
    %18 = vector.shape_cast %17 : vector<1x1x16x16x3xbf16> to vector<16x16x3xbf16>
    %19 = arith.extf %18 : vector<16x16x3xbf16> to vector<16x16x3xf32>
    %20 = vector.shape_cast %19 : vector<16x16x3xf32> to vector<256x3xf32>
    %c2_20 = arith.constant 2 : index
    %c0_21 = arith.constant 0 : index
    %c0_22 = arith.constant 0 : index
    %21 = vector.load %arg3[%c2_20, %c0_21, %c0_22] : memref<9x3x128xf32, #tpu.memory_space<vmem>>, vector<1x3x128xf32>
    %22 = vector.shape_cast %21 : vector<1x3x128xf32> to vector<3x128xf32>
    %cst_23 = arith.constant dense<0.000000e+00> : vector<256x128xf32>
    %23 = tpu.matmul %20, %22, %cst_23 {dimension_numbers = #tpu.dot_dimension_numbers<[1], [0], [0], [1], [0, 0, 1, 1], [], []>} : vector<256x3xf32>, vector<3x128xf32>, vector<256x128xf32> -> vector<256x128xf32>
    %24 = arith.addf %16, %23 : vector<256x128xf32>
    %c0_24 = arith.constant 0 : index
    %c0_25 = arith.constant 0 : index
    %c1_26 = arith.constant 1 : index
    %c0_27 = arith.constant 0 : index
    %c0_28 = arith.constant 0 : index
    %25 = vector.load %arg2[%c0_24, %c0_25, %c1_26, %c0_27, %c0_28] : memref<1x1x18x18x3xbf16, #tpu.memory_space<vmem>>, vector<1x1x16x16x3xbf16>
    %26 = vector.shape_cast %25 : vector<1x1x16x16x3xbf16> to vector<16x16x3xbf16>
    %27 = arith.extf %26 : vector<16x16x3xbf16> to vector<16x16x3xf32>
    %28 = vector.shape_cast %27 : vector<16x16x3xf32> to vector<256x3xf32>
    %c3 = arith.constant 3 : index
    %c0_29 = arith.constant 0 : index
    %c0_30 = arith.constant 0 : index
    %29 = vector.load %arg3[%c3, %c0_29, %c0_30] : memref<9x3x128xf32, #tpu.memory_space<vmem>>, vector<1x3x128xf32>
    %30 = vector.shape_cast %29 : vector<1x3x128xf32> to vector<3x128xf32>
    %cst_31 = arith.constant dense<0.000000e+00> : vector<256x128xf32>
    %31 = tpu.matmul %28, %30, %cst_31 {dimension_numbers = #tpu.dot_dimension_numbers<[1], [0], [0], [1], [0, 0, 1, 1], [], []>} : vector<256x3xf32>, vector<3x128xf32>, vector<256x128xf32> -> vector<256x128xf32>
    %32 = arith.addf %24, %31 : vector<256x128xf32>
    %c0_32 = arith.constant 0 : index
    %c0_33 = arith.constant 0 : index
    %c1_34 = arith.constant 1 : index
    %c1_35 = arith.constant 1 : index
    %c0_36 = arith.constant 0 : index
    %33 = vector.load %arg2[%c0_32, %c0_33, %c1_34, %c1_35, %c0_36] : memref<1x1x18x18x3xbf16, #tpu.memory_space<vmem>>, vector<1x1x16x16x3xbf16>
    %34 = vector.shape_cast %33 : vector<1x1x16x16x3xbf16> to vector<16x16x3xbf16>
    %35 = arith.extf %34 : vector<16x16x3xbf16> to vector<16x16x3xf32>
    %36 = vector.shape_cast %35 : vector<16x16x3xf32> to vector<256x3xf32>
    %c4 = arith.constant 4 : index
    %c0_37 = arith.constant 0 : index
    %c0_38 = arith.constant 0 : index
    %37 = vector.load %arg3[%c4, %c0_37, %c0_38] : memref<9x3x128xf32, #tpu.memory_space<vmem>>, vector<1x3x128xf32>
    %38 = vector.shape_cast %37 : vector<1x3x128xf32> to vector<3x128xf32>
    %cst_39 = arith.constant dense<0.000000e+00> : vector<256x128xf32>
    %39 = tpu.matmul %36, %38, %cst_39 {dimension_numbers = #tpu.dot_dimension_numbers<[1], [0], [0], [1], [0, 0, 1, 1], [], []>} : vector<256x3xf32>, vector<3x128xf32>, vector<256x128xf32> -> vector<256x128xf32>
    %40 = arith.addf %32, %39 : vector<256x128xf32>
    %c0_40 = arith.constant 0 : index
    %c0_41 = arith.constant 0 : index
    %c1_42 = arith.constant 1 : index
    %c2_43 = arith.constant 2 : index
    %c0_44 = arith.constant 0 : index
    %41 = vector.load %arg2[%c0_40, %c0_41, %c1_42, %c2_43, %c0_44] : memref<1x1x18x18x3xbf16, #tpu.memory_space<vmem>>, vector<1x1x16x16x3xbf16>
    %42 = vector.shape_cast %41 : vector<1x1x16x16x3xbf16> to vector<16x16x3xbf16>
    %43 = arith.extf %42 : vector<16x16x3xbf16> to vector<16x16x3xf32>
    %44 = vector.shape_cast %43 : vector<16x16x3xf32> to vector<256x3xf32>
    %c5 = arith.constant 5 : index
    %c0_45 = arith.constant 0 : index
    %c0_46 = arith.constant 0 : index
    %45 = vector.load %arg3[%c5, %c0_45, %c0_46] : memref<9x3x128xf32, #tpu.memory_space<vmem>>, vector<1x3x128xf32>
    %46 = vector.shape_cast %45 : vector<1x3x128xf32> to vector<3x128xf32>
    %cst_47 = arith.constant dense<0.000000e+00> : vector<256x128xf32>
    %47 = tpu.matmul %44, %46, %cst_47 {dimension_numbers = #tpu.dot_dimension_numbers<[1], [0], [0], [1], [0, 0, 1, 1], [], []>} : vector<256x3xf32>, vector<3x128xf32>, vector<256x128xf32> -> vector<256x128xf32>
    %48 = arith.addf %40, %47 : vector<256x128xf32>
    %c0_48 = arith.constant 0 : index
    %c0_49 = arith.constant 0 : index
    %c2_50 = arith.constant 2 : index
    %c0_51 = arith.constant 0 : index
    %c0_52 = arith.constant 0 : index
    %49 = vector.load %arg2[%c0_48, %c0_49, %c2_50, %c0_51, %c0_52] : memref<1x1x18x18x3xbf16, #tpu.memory_space<vmem>>, vector<1x1x16x16x3xbf16>
    %50 = vector.shape_cast %49 : vector<1x1x16x16x3xbf16> to vector<16x16x3xbf16>
    %51 = arith.extf %50 : vector<16x16x3xbf16> to vector<16x16x3xf32>
    %52 = vector.shape_cast %51 : vector<16x16x3xf32> to vector<256x3xf32>
    %c6 = arith.constant 6 : index
    %c0_53 = arith.constant 0 : index
    %c0_54 = arith.constant 0 : index
    %53 = vector.load %arg3[%c6, %c0_53, %c0_54] : memref<9x3x128xf32, #tpu.memory_space<vmem>>, vector<1x3x128xf32>
    %54 = vector.shape_cast %53 : vector<1x3x128xf32> to vector<3x128xf32>
    %cst_55 = arith.constant dense<0.000000e+00> : vector<256x128xf32>
    %55 = tpu.matmul %52, %54, %cst_55 {dimension_numbers = #tpu.dot_dimension_numbers<[1], [0], [0], [1], [0, 0, 1, 1], [], []>} : vector<256x3xf32>, vector<3x128xf32>, vector<256x128xf32> -> vector<256x128xf32>
    %56 = arith.addf %48, %55 : vector<256x128xf32>
    %c0_56 = arith.constant 0 : index
    %c0_57 = arith.constant 0 : index
    %c2_58 = arith.constant 2 : index
    %c1_59 = arith.constant 1 : index
    %c0_60 = arith.constant 0 : index
    %57 = vector.load %arg2[%c0_56, %c0_57, %c2_58, %c1_59, %c0_60] : memref<1x1x18x18x3xbf16, #tpu.memory_space<vmem>>, vector<1x1x16x16x3xbf16>
    %58 = vector.shape_cast %57 : vector<1x1x16x16x3xbf16> to vector<16x16x3xbf16>
    %59 = arith.extf %58 : vector<16x16x3xbf16> to vector<16x16x3xf32>
    %60 = vector.shape_cast %59 : vector<16x16x3xf32> to vector<256x3xf32>
    %c7 = arith.constant 7 : index
    %c0_61 = arith.constant 0 : index
    %c0_62 = arith.constant 0 : index
    %61 = vector.load %arg3[%c7, %c0_61, %c0_62] : memref<9x3x128xf32, #tpu.memory_space<vmem>>, vector<1x3x128xf32>
    %62 = vector.shape_cast %61 : vector<1x3x128xf32> to vector<3x128xf32>
    %cst_63 = arith.constant dense<0.000000e+00> : vector<256x128xf32>
    %63 = tpu.matmul %60, %62, %cst_63 {dimension_numbers = #tpu.dot_dimension_numbers<[1], [0], [0], [1], [0, 0, 1, 1], [], []>} : vector<256x3xf32>, vector<3x128xf32>, vector<256x128xf32> -> vector<256x128xf32>
    %64 = arith.addf %56, %63 : vector<256x128xf32>
    %c0_64 = arith.constant 0 : index
    %c0_65 = arith.constant 0 : index
    %c2_66 = arith.constant 2 : index
    %c2_67 = arith.constant 2 : index
    %c0_68 = arith.constant 0 : index
    %65 = vector.load %arg2[%c0_64, %c0_65, %c2_66, %c2_67, %c0_68] : memref<1x1x18x18x3xbf16, #tpu.memory_space<vmem>>, vector<1x1x16x16x3xbf16>
    %66 = vector.shape_cast %65 : vector<1x1x16x16x3xbf16> to vector<16x16x3xbf16>
    %67 = arith.extf %66 : vector<16x16x3xbf16> to vector<16x16x3xf32>
    %68 = vector.shape_cast %67 : vector<16x16x3xf32> to vector<256x3xf32>
    %c8 = arith.constant 8 : index
    %c0_69 = arith.constant 0 : index
    %c0_70 = arith.constant 0 : index
    %69 = vector.load %arg3[%c8, %c0_69, %c0_70] : memref<9x3x128xf32, #tpu.memory_space<vmem>>, vector<1x3x128xf32>
    %70 = vector.shape_cast %69 : vector<1x3x128xf32> to vector<3x128xf32>
    %cst_71 = arith.constant dense<0.000000e+00> : vector<256x128xf32>
    %71 = tpu.matmul %68, %70, %cst_71 {dimension_numbers = #tpu.dot_dimension_numbers<[1], [0], [0], [1], [0, 0, 1, 1], [], []>} : vector<256x3xf32>, vector<3x128xf32>, vector<256x128xf32> -> vector<256x128xf32>
    %72 = arith.addf %64, %71 : vector<256x128xf32>
    %c0_72 = arith.constant 0 : index
    %c0_73 = arith.constant 0 : index
    %73 = vector.load %arg4[%c0_72, %c0_73] : memref<1x128xf32, #tpu.memory_space<vmem>>, vector<1x128xf32>
    %74 = vector.broadcast %73 : vector<1x128xf32> to vector<256x128xf32>
    %75 = arith.addf %72, %74 : vector<256x128xf32>
    %c0_74 = arith.constant 0 : index
    %c0_75 = arith.constant 0 : index
    %c0_76 = arith.constant 0 : index
    %76 = vector.load %arg7[%c0_74, %c0_75, %c0_76] : memref<1x1x128xf32, #tpu.memory_space<vmem>>, vector<1x1x128xf32>
    %77 = vector.shape_cast %76 : vector<1x1x128xf32> to vector<1x128xf32>
    %cst_77 = arith.constant 0.001953125 : f32
    %78 = vector.broadcast %cst_77 : f32 to vector<1x128xf32>
    %79 = arith.mulf %77, %78 : vector<1x128xf32>
    %c0_78 = arith.constant 0 : index
    %c0_79 = arith.constant 0 : index
    %c0_80 = arith.constant 0 : index
    %80 = vector.load %arg8[%c0_78, %c0_79, %c0_80] : memref<1x1x128xf32, #tpu.memory_space<vmem>>, vector<1x1x128xf32>
    %81 = vector.shape_cast %80 : vector<1x1x128xf32> to vector<1x128xf32>
    %cst_81 = arith.constant 0.001953125 : f32
    %82 = vector.broadcast %cst_81 : f32 to vector<1x128xf32>
    %83 = arith.mulf %81, %82 : vector<1x128xf32>
    %84 = arith.mulf %79, %79 : vector<1x128xf32>
    %85 = arith.subf %83, %84 : vector<1x128xf32>
    %cst_82 = arith.constant 9.99999974E-6 : f32
    %86 = vector.broadcast %cst_82 : f32 to vector<1x128xf32>
    %87 = arith.addf %85, %86 : vector<1x128xf32>
    %88 = math.rsqrt %87 : vector<1x128xf32>
    %c0_83 = arith.constant 0 : index
    %c0_84 = arith.constant 0 : index
    %89 = vector.load %arg5[%c0_83, %c0_84] : memref<1x128xf32, #tpu.memory_space<vmem>>, vector<1x128xf32>
    %90 = arith.mulf %88, %89 : vector<1x128xf32>
    %91 = vector.broadcast %79 : vector<1x128xf32> to vector<256x128xf32>
    %92 = arith.subf %75, %91 : vector<256x128xf32>
    %93 = vector.broadcast %90 : vector<1x128xf32> to vector<256x128xf32>
    %94 = arith.mulf %92, %93 : vector<256x128xf32>
    %c0_85 = arith.constant 0 : index
    %c0_86 = arith.constant 0 : index
    %95 = vector.load %arg6[%c0_85, %c0_86] : memref<1x128xf32, #tpu.memory_space<vmem>>, vector<1x128xf32>
    %96 = vector.broadcast %95 : vector<1x128xf32> to vector<256x128xf32>
    %97 = arith.addf %94, %96 : vector<256x128xf32>
    %cst_87 = arith.constant 0.000000e+00 : f32
    %98 = vector.broadcast %cst_87 : f32 to vector<256x128xf32>
    %99 = arith.maximumf %97, %98 : vector<256x128xf32>
    %cst_88 = arith.constant dense<0.000000e+00> : vector<128xf32>
    %100 = vector.multi_reduction <add>, %99, %cst_88 [0] : vector<256x128xf32> to vector<128xf32>
    %101 = vector.shape_cast %100 : vector<128xf32> to vector<1x128xf32>
    %cst_89 = arith.constant 2.560000e+02 : f32
    %102 = vector.broadcast %cst_89 : f32 to vector<1x128xf32>
    %103 = arith.divf %101, %102 : vector<1x128xf32>
    %c0_90 = arith.constant 0 : index
    %104 = arith.index_cast %arg1 : i32 to index
    %c0_91 = arith.constant 0 : index
    %105 = vector.load %arg9[%c0_90, %104, %c0_91] : memref<1x2x128xf32, #tpu.memory_space<vmem>>, vector<1x1x128xf32>
    %106 = vector.shape_cast %105 : vector<1x1x128xf32> to vector<1x128xf32>
    %107 = vector.shape_cast %103 : vector<1x128xf32> to vector<1x1x128xf32>
    tpu.vector_store %arg9[%c0_90, %104, %c0_91], %107 {strides = array<i32>} : memref<1x2x128xf32, #tpu.memory_space<vmem>>, vector<1x1x128xf32>,
    return
  }
  func.func @transform_0(%arg0: i32, %arg1: i32) -> (i32, i32, i32, i32, i32) {
    %c0_i32 = arith.constant 0 : i32
    %c0_i32_0 = arith.constant 0 : i32
    %c0_i32_1 = arith.constant 0 : i32
    %c0_i32_2 = arith.constant 0 : i32
    return %arg0, %arg1, %c0_i32, %c0_i32_0, %c0_i32_1 : i32, i32, i32, i32, i32
  }
  func.func @transform_1(%arg0: i32, %arg1: i32) -> (i32, i32, i32) {
    %c0_i32 = arith.constant 0 : i32
    %c0_i32_0 = arith.constant 0 : i32
    %c0_i32_1 = arith.constant 0 : i32
    %c0_i32_2 = arith.constant 0 : i32
    return %c0_i32, %c0_i32_0, %c0_i32_1 : i32, i32, i32
  }
  func.func @transform_2(%arg0: i32, %arg1: i32) -> (i32, i32) {
    %c0_i32 = arith.constant 0 : i32
    %c0_i32_0 = arith.constant 0 : i32
    %c0_i32_1 = arith.constant 0 : i32
    return %c0_i32, %c0_i32_0 : i32, i32
  }
  func.func @transform_3(%arg0: i32, %arg1: i32) -> (i32, i32) {
    %c0_i32 = arith.constant 0 : i32
    %c0_i32_0 = arith.constant 0 : i32
    %c0_i32_1 = arith.constant 0 : i32
    return %c0_i32, %c0_i32_0 : i32, i32
  }
  func.func @transform_4(%arg0: i32, %arg1: i32) -> (i32, i32) {
    %c0_i32 = arith.constant 0 : i32
    %c0_i32_0 = arith.constant 0 : i32
    %c0_i32_1 = arith.constant 0 : i32
    return %c0_i32, %c0_i32_0 : i32, i32
  }
  func.func @transform_5(%arg0: i32, %arg1: i32) -> (i32, i32, i32) {
    %c0_i32 = arith.constant 0 : i32
    %c0_i32_0 = arith.constant 0 : i32
    %c0_i32_1 = arith.constant 0 : i32
    return %arg0, %c0_i32, %c0_i32_0 : i32, i32, i32
  }
  func.func @transform_6(%arg0: i32, %arg1: i32) -> (i32, i32, i32) {
    %c0_i32 = arith.constant 0 : i32
    %c0_i32_0 = arith.constant 0 : i32
    %c0_i32_1 = arith.constant 0 : i32
    return %arg0, %c0_i32, %c0_i32_0 : i32, i32, i32
  }
  func.func @transform_7(%arg0: i32, %arg1: i32) -> (i32, i32, i32) {
    %c0_i32 = arith.constant 0 : i32
    %c0_i32_0 = arith.constant 0 : i32
    %c0_i32_1 = arith.constant 0 : i32
    return %arg0, %c0_i32, %c0_i32_0 : i32, i32, i32
  }
}

</mosaic_0001>

<llo_original>
// kernel: byol_forward.2
$region0: #{byol_forward.2}
  #allocation0 [shape = 'u32[]', space=smem, size = 0x4, offset = 0x4, fixed_abs, tag = 'smem constant byte address 0x4 - core index']
  #allocation1 [shape = 'u32[144,128]{1,0:T(1,128)}', space=vmem, size = 0x12000, scoped, tag = 'internal scratch']
  %s0 = inlined_call_operand.vmem [shape: bf16[1,2,18,18,3], index: 0, kind: input, shape index: {}]
  %s1 = inlined_call_operand.vmem [shape: f32[9,3,128], index: 1, kind: input, shape index: {}]
  %s2 = inlined_call_operand.vmem [shape: f32[1,128], index: 2, kind: input, shape index: {}]
  %s3 = inlined_call_operand.vmem [shape: f32[1,1,128], index: 3, kind: output, shape index: {0}]
  %s4 = inlined_call_operand.vmem [shape: f32[1,1,128], index: 4, kind: output, shape index: {1}]
  %5 = xla_tuple %s3, %s4
  %s6 = sld [smem:[#allocation0]]
  $region57: #{byol_forward.2} parent=0
    _
  %s8 = ssub.s32 1, %s6
  %s9 = scalar_select 0, %s8, %s6
  loop: start=0, step=1, limit=4
  $region2: #{byol_forward.2} parent=0 // loop_pre_header
    _
  $region3: #{byol_forward.2} parent=0 // loop_header
    %s11 = sphi 0, %s15
    %p12 = scmp.ge.s32.totalorder %s11, 4
    %s18 = sphi 0, %s30
    %s19 = sphi 0, %s26
    %s20 = sphi 0, %s18
    %s21 = sphi 0, %s19
    %s22 = sphi 0, %s20
    %s23 = sphi 0, %s21
    %s35 = sphi 0, %s37
    %s38 = sphi 0, %s35
    %s39 = sphi 0, %s38
    %s55 = sphi 0, %s39
    %s59 = sphi 0, %s59
    %s61 = sphi 0, %s59
    %s62 = sphi 0, %s61
    %s76 = sphi 0, %s62
    %s80 = sphi 0, %s80
    %s82 = sphi 0, %s80
    %s83 = sphi 0, %s82
    %s97 = sphi 0, %s83
    %s103 = sphi 0, %s105
    %s106 = sphi 0, %s103
    %s107 = sphi 0, %s106
    %s123 = sphi 0, %s107
    %s129 = sphi 0, %s131
    %s132 = sphi 0, %s129
    %s133 = sphi 0, %s132
    %s149 = sphi 0, %s133
  $region4: #{byol_forward.2} parent=0 // loop_header_branch
    %14 = sbr.rel (%p12) target = $region8
  $region5: #{byol_forward.2} parent=0 // loop_body
    %s16 = ssub.s32 %s11, 1
    %s17 = ssub.s32 %s11, 2
    %s24 = sadd.s32 1, %s19
    %p25 = scmp.ge.s32.totalorder %s24, 2
    %s26 = scalar_select %p25, 0, %s24
    %s27 = sadd.s32 1, %s18
    %s28 = scalar_select %p25, %s27, %s18
    %p29 = scmp.ge.s32.totalorder %s28, 1
    %s30 = scalar_select %p29, 0, %s28
    %s31 = ssub.s32 %s18, %s30
    %s32 = ssub.s32 %s19, %s26
    %s33 = sor.u32 %s31, %s32
    %p34 = scmp.eq.s32.totalorder %s33, 0
    %s36 = sadd.s32 %s35, 1
    %s37 = scalar_select %p34, %s35, %s36
    %p40 = pneg %p34
    %p41 = scmp.eq.s32.totalorder %s11, 1
    %p42 = por %p40, %p41
    %p43 = scmp.ne.s32.totalorder %s35, %s38
    %p44 = scmp.eq.s32.totalorder %s11, 0
    %p45 = por %p43, %p44
    %p46 = scmp.ne.s32.totalorder %s35, %s38
    %p47 = scmp.eq.s32.totalorder %s16, 1
    %p48 = por %p46, %p47
    %p49 = scmp.ne.s32.totalorder %s38, %s39
    %p50 = scmp.eq.s32.totalorder %s16, 0
    %p51 = por %p49, %p50
    %p52 = scmp.ne.s32.totalorder %s38, %s39
    %p53 = scmp.eq.s32.totalorder %s17, 1
    %p54 = por %p52, %p53
    %p56 = scmp.ne.s32.totalorder %s39, %s55
    %p57 = scmp.eq.s32.totalorder %s17, 0
    %p58 = por %p56, %p57
    %s60 = sadd.s32 %s59, 1
    %p63 = scmp.eq.s32.totalorder %s11, 1
    %p64 = scmp.ne.s32.totalorder %s59, %s61
    %p65 = scmp.eq.s32.totalorder %s11, 0
    %p66 = por %p64, %p65
    %p67 = scmp.ne.s32.totalorder %s59, %s61
    %p68 = scmp.eq.s32.totalorder %s16, 1
    %p69 = por %p67, %p68
    %p70 = scmp.ne.s32.totalorder %s61, %s62
    %p71 = scmp.eq.s32.totalorder %s16, 0
    %p72 = por %p70, %p71
    %p73 = scmp.ne.s32.totalorder %s61, %s62
    %p74 = scmp.eq.s32.totalorder %s17, 1
    %p75 = por %p73, %p74
    %p77 = scmp.ne.s32.totalorder %s62, %s76
    %p78 = scmp.eq.s32.totalorder %s17, 0
    %p79 = por %p77, %p78
    %s81 = sadd.s32 %s80, 1
    %p84 = scmp.eq.s32.totalorder %s11, 1
    %p85 = scmp.ne.s32.totalorder %s80, %s82
    %p86 = scmp.eq.s32.totalorder %s11, 0
    %p87 = por %p85, %p86
    %p88 = scmp.ne.s32.totalorder %s80, %s82
    %p89 = scmp.eq.s32.totalorder %s16, 1
    %p90 = por %p88, %p89
    %p91 = scmp.ne.s32.totalorder %s82, %s83
    %p92 = scmp.eq.s32.totalorder %s16, 0
    %p93 = por %p91, %p92
    %p94 = scmp.ne.s32.totalorder %s82, %s83
    %p95 = scmp.eq.s32.totalorder %s17, 1
    %p96 = por %p94, %p95
    %p98 = scmp.ne.s32.totalorder %s83, %s97
    %p99 = scmp.eq.s32.totalorder %s17, 0
    %p100 = por %p98, %p99
    %s101 = ssub.s32 %s18, %s30
    %p102 = scmp.eq.s32.totalorder %s101, 0
    %s104 = sadd.s32 %s103, 1
    %s105 = scalar_select %p102, %s103, %s104
    %p108 = pneg %p102
    %p109 = scmp.eq.s32.totalorder %s11, 1
    %p110 = por %p108, %p109
    %p111 = scmp.ne.s32.totalorder %s103, %s106
    %p112 = scmp.eq.s32.totalorder %s11, 0
    %p113 = por %p111, %p112
    %p114 = scmp.ne.s32.totalorder %s103, %s106
    %p115 = scmp.eq.s32.totalorder %s16, 1
    %p116 = por %p114, %p115
    %p117 = scmp.ne.s32.totalorder %s106, %s107
    %p118 = scmp.eq.s32.totalorder %s16, 0
    %p119 = por %p117, %p118
    %p120 = scmp.ne.s32.totalorder %s106, %s107
    %p121 = scmp.eq.s32.totalorder %s17, 1
    %p122 = por %p120, %p121
    %p124 = scmp.ne.s32.totalorder %s107, %s123
    %p125 = scmp.eq.s32.totalorder %s17, 0
    %p126 = por %p124, %p125
    %s127 = ssub.s32 %s18, %s30
    %p128 = scmp.eq.s32.totalorder %s127, 0
    %s130 = sadd.s32 %s129, 1
    %s131 = scalar_select %p128, %s129, %s130
    %p134 = pneg %p128
    %p135 = scmp.eq.s32.totalorder %s11, 1
    %p136 = por %p134, %p135
    %p137 = scmp.ne.s32.totalorder %s129, %s132
    %p138 = scmp.eq.s32.totalorder %s11, 0
    %p139 = por %p137, %p138
    %p140 = scmp.ne.s32.totalorder %s129, %s132
    %p141 = scmp.eq.s32.totalorder %s16, 1
    %p142 = por %p140, %p141
    %p143 = scmp.ne.s32.totalorder %s132, %s133
    %p144 = scmp.eq.s32.totalorder %s16, 0
    %p145 = por %p143, %p144
    %p146 = scmp.ne.s32.totalorder %s132, %s133
    %p147 = scmp.eq.s32.totalorder %s17, 1
    %p148 = por %p146, %p147
    %p150 = scmp.ne.s32.totalorder %s133, %s149
    %p151 = scmp.eq.s32.totalorder %s17, 0
    %p152 = por %p150, %p151
    %p153 = scmp.le.s32.totalorder 1, %s11
    %p154 = scmp.lt.s32.totalorder %s11, 3
    %p155 = pnand %p153, %p154
    %p156 = pneg %p155
    // Predicated region
    $region9: #{byol_forward.2} parent=5 // pred_check
      _
    $region10: #{byol_forward.2} parent=5 // pred_check_branch
      %158 = sbr.rel (%p155) target = $region12
    $region11: #{byol_forward.2} parent=5 // pred_region
      %s159 = ssub.s32 %s11, 1
      // Predicated region
      $region13: #{byol_forward.2} parent=11 // pred_check
        %p160 = pneg %p72
      $region14: #{byol_forward.2} parent=11 // pred_check_branch
        %162 = sbr.rel (%p160) target = $region16
      $region15: #{byol_forward.2} parent=11 // pred_region
        _
      $region16: #{byol_forward.2} parent=11 // pred_fallthru
        _
      // Predicated region
      $region17: #{byol_forward.2} parent=11 // pred_check
        %p163 = pneg %p93
      $region18: #{byol_forward.2} parent=11 // pred_check_branch
        %165 = sbr.rel (%p163) target = $region20
      $region19: #{byol_forward.2} parent=11 // pred_region
        _
      $region20: #{byol_forward.2} parent=11 // pred_fallthru
        _
    $region12: #{byol_forward.2} parent=5 // pred_fallthru
      _
    %p166 = scmp.lt.s32.totalorder %s11, 2
    // Predicated region
    $region21: #{byol_forward.2} parent=5 // pred_check
      %p167 = pneg %p166
    $region22: #{byol_forward.2} parent=5 // pred_check_branch
      %169 = sbr.rel (%p167) target = $region24
    $region23: #{byol_forward.2} parent=5 // pred_region
      // Predicated region
      $region25: #{byol_forward.2} parent=23 // pred_check
        %p170 = pneg %p45
      $region26: #{byol_forward.2} parent=23 // pred_check_branch
        %172 = sbr.rel (%p170) target = $region28
      $region27: #{byol_forward.2} parent=23 // pred_region
        %p173 = scmp.lt.s32.totalorder %s18, 0
        %s174 = scalar_select %p173, %s18, 0
        %p175 = scmp.lt.s32.totalorder %s19, 1
        %s176 = scalar_select %p175, %s19, 1
        %s177 = smul.addr %s176, 54
        %s178 = smul.addr %s174, 108
        %s179 = sadd.s32 %s177, %s178
        %s180 = smul.addr %s179, 4
        %s181 = scalar_lea.vmem %s0, %s180
      $region28: #{byol_forward.2} parent=23 // pred_fallthru
        _
    $region24: #{byol_forward.2} parent=5 // pred_fallthru
      _
    %p182 = scmp.le.s32.totalorder 1, %s11
    %p183 = scmp.lt.s32.totalorder %s11, 3
    %p184 = pnand %p182, %p183
    %p185 = pneg %p184
    // Predicated region
    $region29: #{byol_forward.2} parent=5 // pred_check
      _
    $region30: #{byol_forward.2} parent=5 // pred_check_branch
      %187 = sbr.rel (%p184) target = $region32
    $region31: #{byol_forward.2} parent=5 // pred_region
      %s188 = ssub.s32 %s11, 1
      %p189 = scmp.lt.s32.totalorder %s20, 0
      %s190 = scalar_select %p189, %s20, 0
      %p191 = scmp.lt.s32.totalorder %s21, 1
      %s192 = scalar_select %p191, %s21, 1
      %s193 = smul.addr %s192, 54
      %s194 = smul.addr %s190, 108
      %s195 = sadd.s32 %s193, %s194
      %s196 = smul.addr %s195, 4
      %s197 = scalar_lea.vmem %s0, %s196
      %p198 = pneg %p51
      %p199 = pneg %p48
      %p200 = pneg %p72
      %p201 = pneg %p69
      %p202 = pneg %p93
      %p203 = pneg %p90
      %p204 = pneg %p119
      %p205 = pneg %p116
      %p206 = scmp.lt.s32.totalorder %s20, 0
      %s207 = scalar_select %p206, %s20, 0
      %s208 = scalar_lea.vmem %s3, %s207
      %p209 = pneg %p145
      %p210 = pneg %p142
      %p211 = scmp.lt.s32.totalorder %s20, 0
      %s212 = scalar_select %p211, %s20, 0
      %s213 = scalar_lea.vmem %s4, %s212
      %p214 = scmp.lt.s32.totalorder %s20, 0
      %s215 = scalar_select %p214, %s20, 0
      %p216 = scmp.lt.s32.totalorder %s21, 1
      %s217 = scalar_select %p216, %s21, 1
      %s218 = smul.addr %s217, 54
      %s219 = smul.addr %s215, 108
      %s220 = sadd.s32 %s218, %s219
      %s221 = smul.addr %s220, 4
      %s222 = scalar_lea.vmem %s0, %s221
      %p223 = scmp.lt.s32.totalorder %s20, 0
      %s224 = scalar_select %p223, %s20, 0
      %s225 = scalar_lea.vmem %s3, %s224
      %p226 = scmp.lt.s32.totalorder %s20, 0
      %s227 = scalar_select %p226, %s20, 0
      %s228 = scalar_lea.vmem %s4, %s227
      %v229 = vld [vmem:[%s222] sm:$0xf]
      %v230 = vld [vmem:[%s222 + $0x4] sm:$0xf]
      %v231 = vld [vmem:[%s222 + $0xc] sm:$0xf]
      %v232 = vld [vmem:[%s222 + $0x10] sm:$0xf]
      %v233 = vld [vmem:[%s222 + $0x18] sm:$0xf]
      %v234 = vld [vmem:[%s222 + $0x1c] sm:$0xf]
      %v235 = vld [vmem:[%s222 + $0x24] sm:$0xf]
      %v236 = vld [vmem:[%s222 + $0x28] sm:$0xf]
      %v237 = vld [vmem:[%s222 + $0x30] sm:$0xf]
      %v238 = vld [vmem:[%s222 + $0x34] sm:$0xf]
      %v239 = vld [vmem:[%s222 + $0x3c] sm:$0xf]
      %v240 = vld [vmem:[%s222 + $0x40] sm:$0xf]
      %v241 = vld [vmem:[%s222 + $0x48] sm:$0xf]
      %v242 = vld [vmem:[%s222 + $0x4c] sm:$0xf]
      %v243 = vld [vmem:[%s222 + $0x54] sm:$0xf]
      %v244 = vld [vmem:[%s222 + $0x58] sm:$0xf]
      %v245 = vld [vmem:[%s222 + $0x60] sm:$0xf]
      %v246 = vld [vmem:[%s222 + $0x64] sm:$0xf]
      %v247 = vld [vmem:[%s222 + $0x6c] sm:$0xf]
      %v248 = vld [vmem:[%s222 + $0x70] sm:$0xf]
      %v249 = vld [vmem:[%s222 + $0x78] sm:$0xf]
      %v250 = vld [vmem:[%s222 + $0x7c] sm:$0xf]
      %v251 = vld [vmem:[%s222 + $0x84] sm:$0xf]
      %v252 = vld [vmem:[%s222 + $0x88] sm:$0xf]
      %v253 = vld [vmem:[%s222 + $0x90] sm:$0xf]
      %v254 = vld [vmem:[%s222 + $0x94] sm:$0xf]
      %v255 = vld [vmem:[%s222 + $0x9c] sm:$0xf]
      %v256 = vld [vmem:[%s222 + $0xa0] sm:$0xf]
      %v257 = vld [vmem:[%s222 + $0xa8] sm:$0xf]
      %v258 = vld [vmem:[%s222 + $0xac] sm:$0xf]
      %v259 = vld [vmem:[%s222 + $0xb4] sm:$0xf]
      %v260 = vld [vmem:[%s222 + $0xb8] sm:$0xf]
      %v261 = vunpack.c.l.bf16 %v229
      %v262 = vunpack.c.l.bf16 %v230
      %v263 = vunpack.c.l.bf16 %v231
      %v264 = vunpack.c.l.bf16 %v232
      %v265 = vunpack.c.l.bf16 %v233
      %v266 = vunpack.c.l.bf16 %v234
      %v267 = vunpack.c.l.bf16 %v235
      %v268 = vunpack.c.l.bf16 %v236
      %v269 = vunpack.c.l.bf16 %v237
      %v270 = vunpack.c.l.bf16 %v238
      %v271 = vunpack.c.l.bf16 %v239
      %v272 = vunpack.c.l.bf16 %v240
      %v273 = vunpack.c.l.bf16 %v241
      %v274 = vunpack.c.l.bf16 %v242
      %v275 = vunpack.c.l.bf16 %v243
      %v276 = vunpack.c.l.bf16 %v244
      %v277 = vunpack.c.l.bf16 %v245
      %v278 = vunpack.c.l.bf16 %v246
      %v279 = vunpack.c.l.bf16 %v247
      %v280 = vunpack.c.l.bf16 %v248
      %v281 = vunpack.c.l.bf16 %v249
      %v282 = vunpack.c.l.bf16 %v250
      %v283 = vunpack.c.l.bf16 %v251
      %v284 = vunpack.c.l.bf16 %v252
      %v285 = vunpack.c.l.bf16 %v253
      %v286 = vunpack.c.l.bf16 %v254
      %v287 = vunpack.c.l.bf16 %v255
      %v288 = vunpack.c.l.bf16 %v256
      %v289 = vunpack.c.l.bf16 %v257
      %v290 = vunpack.c.l.bf16 %v258
      %v291 = vunpack.c.l.bf16 %v259
      %v292 = vunpack.c.l.bf16 %v260
      %v293 = vld [vmem:[%s1] sm:$0x7]
      %v294 = vld [vmem:[%s222 + $0x8] sm:$0x1]
      %v295 = vld [vmem:[%s222 + $0x14] sm:$0x1]
      %v296 = vld [vmem:[%s222 + $0x20] sm:$0x1]
      %v297 = vld [vmem:[%s222 + $0x2c] sm:$0x1]
      %v298 = vld [vmem:[%s222 + $0x38] sm:$0x1]
      %v299 = vld [vmem:[%s222 + $0x44] sm:$0x1]
      %v300 = vld [vmem:[%s222 + $0x50] sm:$0x1]
      %v301 = vld [vmem:[%s222 + $0x5c] sm:$0x1]
      %v302 = vld [vmem:[%s222 + $0x68] sm:$0x1]
      %v303 = vld [vmem:[%s222 + $0x74] sm:$0x1]
      %v304 = vld [vmem:[%s222 + $0x80] sm:$0x1]
      %v305 = vld [vmem:[%s222 + $0x8c] sm:$0x1]
      %v306 = vld [vmem:[%s222 + $0x98] sm:$0x1]
      %v307 = vld [vmem:[%s222 + $0xa4] sm:$0x1]
      %v308 = vld [vmem:[%s222 + $0xb0] sm:$0x1]
      %v309 = vld [vmem:[%s222 + $0xbc] sm:$0x1]
      %v310 = vunpack.c.l.bf16 %v294
      %v311 = vunpack.c.l.bf16 %v295
      %v312 = vunpack.c.l.bf16 %v296
      %v313 = vunpack.c.l.bf16 %v297
      %v314 = vunpack.c.l.bf16 %v298
      %v315 = vunpack.c.l.bf16 %v299
      %v316 = vunpack.c.l.bf16 %v300
      %v317 = vunpack.c.l.bf16 %v301
      %v318 = vunpack.c.l.bf16 %v302
      %v319 = vunpack.c.l.bf16 %v303
      %v320 = vunpack.c.l.bf16 %v304
      %v321 = vunpack.c.l.bf16 %v305
      %v322 = vunpack.c.l.bf16 %v306
      %v323 = vunpack.c.l.bf16 %v307
      %v324 = vunpack.c.l.bf16 %v308
      %v325 = vunpack.c.l.bf16 %v309
      %vm374 = vcmask 1046528
      %v375 = vrot.slane %v261, 1
      %v376 = vrot.slane %v262, 1
      %v377 = vsel %vm374, %v375, %v376
      %v378 = vrot.slane %v310, 1
      %v379 = vsel %vm374, %v376, %v378
      %v380 = vrot.slane %v263, 1
      %v381 = vrot.slane %v264, 1
      %v382 = vsel %vm374, %v380, %v381
      %v383 = vrot.slane %v311, 1
      %v384 = vsel %vm374, %v381, %v383
      %v385 = vrot.slane %v265, 1
      %v386 = vrot.slane %v266, 1
      %v387 = vsel %vm374, %v385, %v386
      %v388 = vrot.slane %v312, 1
      %v389 = vsel %vm374, %v386, %v388
      %v390 = vrot.slane %v267, 1
      %v391 = vrot.slane %v268, 1
      %v392 = vsel %vm374, %v390, %v391
      %v393 = vrot.slane %v313, 1
      %v394 = vsel %vm374, %v391, %v393
      %v395 = vrot.slane %v269, 1
      %v396 = vrot.slane %v270, 1
      %v397 = vsel %vm374, %v395, %v396
      %v398 = vrot.slane %v314, 1
      %v399 = vsel %vm374, %v396, %v398
      %v400 = vrot.slane %v271, 1
      %v401 = vrot.slane %v272, 1
      %v402 = vsel %vm374, %v400, %v401
      %v403 = vrot.slane %v315, 1
      %v404 = vsel %vm374, %v401, %v403
      %v405 = vrot.slane %v273, 1
      %v406 = vrot.slane %v274, 1
      %v407 = vsel %vm374, %v405, %v406
      %v408 = vrot.slane %v316, 1
      %v409 = vsel %vm374, %v406, %v408
      %v410 = vrot.slane %v275, 1
      %v411 = vrot.slane %v276, 1
      %v412 = vsel %vm374, %v410, %v411
      %v413 = vrot.slane %v317, 1
      %v414 = vsel %vm374, %v411, %v413
      %v415 = vrot.slane %v277, 1
      %v416 = vrot.slane %v278, 1
      %v417 = vsel %vm374, %v415, %v416
      %v418 = vrot.slane %v318, 1
      %v419 = vsel %vm374, %v416, %v418
      %v420 = vrot.slane %v279, 1
      %v421 = vrot.slane %v280, 1
      %v422 = vsel %vm374, %v420, %v421
      %v423 = vrot.slane %v319, 1
      %v424 = vsel %vm374, %v421, %v423
      %v425 = vrot.slane %v281, 1
      %v426 = vrot.slane %v282, 1
      %v427 = vsel %vm374, %v425, %v426
      %v428 = vrot.slane %v320, 1
      %v429 = vsel %vm374, %v426, %v428
      %v430 = vrot.slane %v283, 1
      %v431 = vrot.slane %v284, 1
      %v432 = vsel %vm374, %v430, %v431
      %v433 = vrot.slane %v321, 1
      %v434 = vsel %vm374, %v431, %v433
      %v435 = vrot.slane %v285, 1
      %v436 = vrot.slane %v286, 1
      %v437 = vsel %vm374, %v435, %v436
      %v438 = vrot.slane %v322, 1
      %v439 = vsel %vm374, %v436, %v438
      %v440 = vrot.slane %v287, 1
      %v441 = vrot.slane %v288, 1
      %v442 = vsel %vm374, %v440, %v441
      %v443 = vrot.slane %v323, 1
      %v444 = vsel %vm374, %v441, %v443
      %v445 = vrot.slane %v289, 1
      %v446 = vrot.slane %v290, 1
      %v447 = vsel %vm374, %v445, %v446
      %v448 = vrot.slane %v324, 1
      %v449 = vsel %vm374, %v446, %v448
      %v450 = vrot.slane %v291, 1
      %v451 = vrot.slane %v292, 1
      %v452 = vsel %vm374, %v450, %v451
      %v453 = vrot.slane %v325, 1
      %v454 = vsel %vm374, %v451, %v453
      %s455 = scalar_lea.vmem %s1, 4
      %v456 = vld [vmem:[%s455] sm:$0x7]
      %vm457 = vcmask 23552
      %v458 = vsel %vm457, %v377, 0
      %v460 = vsel %vm457, %v379, 0
      %v462 = vsel %vm457, %v382, 0
      %v464 = vsel %vm457, %v384, 0
      %v466 = vsel %vm457, %v387, 0
      %v468 = vsel %vm457, %v389, 0
      %v470 = vsel %vm457, %v392, 0
      %v472 = vsel %vm457, %v394, 0
      %v474 = vsel %vm457, %v397, 0
      %v476 = vsel %vm457, %v399, 0
      %v478 = vsel %vm457, %v402, 0
      %v480 = vsel %vm457, %v404, 0
      %v482 = vsel %vm457, %v407, 0
      %v484 = vsel %vm457, %v409, 0
      %v486 = vsel %vm457, %v412, 0
      %v488 = vsel %vm457, %v414, 0
      %v490 = vsel %vm457, %v417, 0
      %v492 = vsel %vm457, %v419, 0
      %v494 = vsel %vm457, %v422, 0
      %v496 = vsel %vm457, %v424, 0
      %v498 = vsel %vm457, %v427, 0
      %v500 = vsel %vm457, %v429, 0
      %v502 = vsel %vm457, %v432, 0
      %v504 = vsel %vm457, %v434, 0
      %v506 = vsel %vm457, %v437, 0
      %v508 = vsel %vm457, %v439, 0
      %v510 = vsel %vm457, %v442, 0
      %v512 = vsel %vm457, %v444, 0
      %v514 = vsel %vm457, %v447, 0
      %v516 = vsel %vm457, %v449, 0
      %v518 = vsel %vm457, %v452, 0
      %v520 = vsel %vm457, %v454, 0
      %vm522 = vcmask 1042432
      %v524 = vsel %vm522, %v456, 0
      %526 = vmatprep.subr.mxu0 0.0
      %527 = vmatpush1.msra.mxu0 %v524
      %528 = vmatprep.subr.mxu0 0.0
      %529 = vmatpush1.msra.mxu0 0.0
      %530 = vmatprep.subr.mxu0 0.0
      %531 = vmatpush1.msra.mxu0 0.0
      %532 = vmatprep.subr.mxu0 0.0
      %533 = vmatpush1.msra.mxu0 0.0
      %534 = vmatprep.subr.mxu0 0.0
      %535 = vmatpush1.msra.mxu0 0.0
      %536 = vmatprep.subr.mxu0 0.0
      %537 = vmatpush1.msra.mxu0 0.0
      %538 = vmatprep.subr.mxu0 0.0
      %539 = vmatpush1.msra.mxu0 0.0
      %540 = vmatprep.subr.mxu0 0.0
      %541 = vmatpush1.msra.mxu0 0.0
      %542 = vmatprep.subr.mxu0 0.0
      %543 = vmatpush1.msra.mxu0 0.0
      %544 = vmatprep.subr.mxu0 0.0
      %545 = vmatpush1.msra.mxu0 0.0
      %546 = vmatprep.subr.mxu0 0.0
      %547 = vmatpush1.msra.mxu0 0.0
      %548 = vmatprep.subr.mxu0 0.0
      %549 = vmatpush1.msra.mxu0 0.0
      %550 = vmatprep.subr.mxu0 0.0
      %551 = vmatpush1.msra.mxu0 0.0
      %552 = vmatprep.subr.mxu0 0.0
      %553 = vmatpush1.msra.mxu0 0.0
      %554 = vmatprep.subr.mxu0 0.0
      %555 = vmatpush1.msra.mxu0 0.0
      %556 = vmatprep.subr.mxu0 0.0
      %557 = vmatpush1.msra.mxu0 0.0
      %558 = vmatprep.subr.mxu0 0.0
      %559 = vmatpush1.msra.mxu0 0.0
      %560 = vmatprep.subr.mxu0 0.0
      %561 = vmatpush1.msra.mxu0 0.0
      %562 = vmatprep.subr.mxu0 0.0
      %563 = vmatpush1.msra.mxu0 0.0
      %564 = vmatprep.subr.mxu0 0.0
      %565 = vmatpush1.msra.mxu0 0.0
      %566 = vmatprep.subr.mxu0 0.0
      %567 = vmatpush1.msra.mxu0 0.0
      %568 = vmatprep.subr.mxu0 0.0
      %569 = vmatpush1.msra.mxu0 0.0
      %570 = vmatprep.subr.mxu0 0.0
      %571 = vmatpush1.msra.mxu0 0.0
      %572 = vmatprep.subr.mxu0 0.0
      %573 = vmatpush1.msra.mxu0 0.0
      %574 = vmatprep.subr.mxu0 0.0
      %575 = vmatpush1.msra.mxu0 0.0
      %576 = vmatprep.subr.mxu0 0.0
      %577 = vmatpush1.msra.mxu0 0.0
      %578 = vmatprep.subr.mxu0 0.0
      %579 = vmatpush1.msra.mxu0 0.0
      %580 = vmatprep.subr.mxu0 0.0
      %581 = vmatpush1.msra.mxu0 0.0
      %582 = vmatprep.subr.mxu0 0.0
      %583 = vmatpush1.msra.mxu0 0.0
      %584 = vmatprep.subr.mxu0 0.0
      %585 = vmatpush1.msra.mxu0 0.0
      %586 = vmatprep.subr.mxu0 0.0
      %587 = vmatpush1.msra.mxu0 0.0
      %588 = vmatprep.subr.mxu0 0.0
      %589 = vmatpush1.msra.mxu0 0.0
      %590 = vmatprep.mubr.f32.mxu0 0.0
      %591 = vmatmul.mubr.f32.gmra.mrb[0].mxu0 %v458
      %v592 = vpop.f32.mrb[0].mxu0
      %v593 = vadd.f32 0.0, %v592
      %v594 = vpop.f32.mrb[0].mxu0
      %595 = vmatprep.mubr.f32.mxu0 0.0
      %596 = vmatmul.mubr.f32.gmra.mrb[0].mxu0 %v460
      %v597 = vpop.f32.mrb[0].mxu0
      %v598 = vadd.f32 0.0, %v597
      %v599 = vpop.f32.mrb[0].mxu0
      %600 = vmatprep.mubr.f32.mxu0 0.0
      %601 = vmatmul.mubr.f32.gmra.mrb[0].mxu0 %v462
      %v602 = vpop.f32.mrb[0].mxu0
      %v603 = vadd.f32 0.0, %v602
      %v604 = vpop.f32.mrb[0].mxu0
      %605 = vmatprep.mubr.f32.mxu0 0.0
      %606 = vmatmul.mubr.f32.gmra.mrb[0].mxu0 %v464
      %v607 = vpop.f32.mrb[0].mxu0
      %v608 = vadd.f32 0.0, %v607
      %v609 = vpop.f32.mrb[0].mxu0
      %610 = vmatprep.mubr.f32.mxu0 0.0
      %611 = vmatmul.mubr.f32.gmra.mrb[0].mxu0 %v466
      %v612 = vpop.f32.mrb[0].mxu0
      %v613 = vadd.f32 0.0, %v612
      %v614 = vpop.f32.mrb[0].mxu0
      %615 = vmatprep.mubr.f32.mxu0 0.0
      %616 = vmatmul.mubr.f32.gmra.mrb[0].mxu0 %v468
      %v617 = vpop.f32.mrb[0].mxu0
      %v618 = vadd.f32 0.0, %v617
      %v619 = vpop.f32.mrb[0].mxu0
      %620 = vmatprep.mubr.f32.mxu0 0.0
      %621 = vmatmul.mubr.f32.gmra.mrb[0].mxu0 %v470
      %v622 = vpop.f32.mrb[0].mxu0
      %v623 = vadd.f32 0.0, %v622
      %v624 = vpop.f32.mrb[0].mxu0
      %625 = vmatprep.mubr.f32.mxu0 0.0
      %626 = vmatmul.mubr.f32.gmra.mrb[0].mxu0 %v472
      %v627 = vpop.f32.mrb[0].mxu0
      %v628 = vadd.f32 0.0, %v627
      %v629 = vpop.f32.mrb[0].mxu0
      %630 = vmatprep.mubr.f32.mxu0 0.0
      %631 = vmatmul.mubr.f32.gmra.mrb[0].mxu0 %v474
      %v632 = vpop.f32.mrb[0].mxu0
      %v633 = vadd.f32 0.0, %v632
      %v634 = vpop.f32.mrb[0].mxu0
      %635 = vmatprep.mubr.f32.mxu0 0.0
      %636 = vmatmul.mubr.f32.gmra.mrb[0].mxu0 %v476
      %v637 = vpop.f32.mrb[0].mxu0
      %v638 = vadd.f32 0.0, %v637
      %v639 = vpop.f32.mrb[0].mxu0
      %640 = vmatprep.mubr.f32.mxu0 0.0
      %641 = vmatmul.mubr.f32.gmra.mrb[0].mxu0 %v478
      %v642 = vpop.f32.mrb[0].mxu0
      %v643 = vadd.f32 0.0, %v642
      %v644 = vpop.f32.mrb[0].mxu0
      %645 = vmatprep.mubr.f32.mxu0 0.0
      %646 = vmatmul.mubr.f32.gmra.mrb[0].mxu0 %v480
      %v647 = vpop.f32.mrb[0].mxu0
      %v648 = vadd.f32 0.0, %v647
      %v649 = vpop.f32.mrb[0].mxu0
      %650 = vmatprep.mubr.f32.mxu0 0.0
      %651 = vmatmul.mubr.f32.gmra.mrb[0].mxu0 %v482
      %v652 = vpop.f32.mrb[0].mxu0
      %v653 = vadd.f32 0.0, %v652
      %v654 = vpop.f32.mrb[0].mxu0
      %655 = vmatprep.mubr.f32.mxu0 0.0
      %656 = vmatmul.mubr.f32.gmra.mrb[0].mxu0 %v484
      %v657 = vpop.f32.mrb[0].mxu0
      %v658 = vadd.f32 0.0, %v657
      %v659 = vpop.f32.mrb[0].mxu0
      %660 = vmatprep.mubr.f32.mxu0 0.0
      %661 = vmatmul.mubr.f32.gmra.mrb[0].mxu0 %v486
      %v662 = vpop.f32.mrb[0].mxu0
      %v663 = vadd.f32 0.0, %v662
      %v664 = vpop.f32.mrb[0].mxu0
      %665 = vmatprep.mubr.f32.mxu0 0.0
      %666 = vmatmul.mubr.f32.gmra.mrb[0].mxu0 %v488
      %v667 = vpop.f32.mrb[0].mxu0
      %v668 = vadd.f32 0.0, %v667
      %v669 = vpop.f32.mrb[0].mxu0
      %670 = vmatprep.mubr.f32.mxu0 0.0
      %671 = vmatmul.mubr.f32.gmra.mrb[0].mxu0 %v490
      %v672 = vpop.f32.mrb[0].mxu0
      %v673 = vadd.f32 0.0, %v672
      %v674 = vpop.f32.mrb[0].mxu0
      %675 = vmatprep.mubr.f32.mxu0 0.0
      %676 = vmatmul.mubr.f32.gmra.mrb[0].mxu0 %v492
      %v677 = vpop.f32.mrb[0].mxu0
      %v678 = vadd.f32 0.0, %v677
      %v679 = vpop.f32.mrb[0].mxu0
      %680 = vmatprep.mubr.f32.mxu0 0.0
      %681 = vmatmul.mubr.f32.gmra.mrb[0].mxu0 %v494
      %v682 = vpop.f32.mrb[0].mxu0
      %v683 = vadd.f32 0.0, %v682
      %v684 = vpop.f32.mrb[0].mxu0
      %685 = vmatprep.mubr.f32.mxu0 0.0
      %686 = vmatmul.mubr.f32.gmra.mrb[0].mxu0 %v496
      %v687 = vpop.f32.mrb[0].mxu0
      %v688 = vadd.f32 0.0, %v687
      %v689 = vpop.f32.mrb[0].mxu0
      %690 = vmatprep.mubr.f32.mxu0 0.0
      %691 = vmatmul.mubr.f32.gmra.mrb[0].mxu0 %v498
      %v692 = vpop.f32.mrb[0].mxu0
      %v693 = vadd.f32 0.0, %v692
      %v694 = vpop.f32.mrb[0].mxu0
      %695 = vmatprep.mubr.f32.mxu0 0.0
      %696 = vmatmul.mubr.f32.gmra.mrb[0].mxu0 %v500
      %v697 = vpop.f32.mrb[0].mxu0
      %v698 = vadd.f32 0.0, %v697
      %v699 = vpop.f32.mrb[0].mxu0
      %700 = vmatprep.mubr.f32.mxu0 0.0
      %701 = vmatmul.mubr.f32.gmra.mrb[0].mxu0 %v502
      %v702 = vpop.f32.mrb[0].mxu0
      %v703 = vadd.f32 0.0, %v702
      %v704 = vpop.f32.mrb[0].mxu0
      %705 = vmatprep.mubr.f32.mxu0 0.0
      %706 = vmatmul.mubr.f32.gmra.mrb[0].mxu0 %v504
      %v707 = vpop.f32.mrb[0].mxu0
      %v708 = vadd.f32 0.0, %v707
      %v709 = vpop.f32.mrb[0].mxu0
      %710 = vmatprep.mubr.f32.mxu0 0.0
      %711 = vmatmul.mubr.f32.gmra.mrb[0].mxu0 %v506
      %v712 = vpop.f32.mrb[0].mxu0
      %v713 = vadd.f32 0.0, %v712
      %v714 = vpop.f32.mrb[0].mxu0
      %715 = vmatprep.mubr.f32.mxu0 0.0
      %716 = vmatmul.mubr.f32.gmra.mrb[0].mxu0 %v508
      %v717 = vpop.f32.mrb[0].mxu0
      %v718 = vadd.f32 0.0, %v717
      %v719 = vpop.f32.mrb[0].mxu0
      %720 = vmatprep.mubr.f32.mxu0 0.0
      %721 = vmatmul.mubr.f32.gmra.mrb[0].mxu0 %v510
      %v722 = vpop.f32.mrb[0].mxu0
      %v723 = vadd.f32 0.0, %v722
      %v724 = vpop.f32.mrb[0].mxu0
      %725 = vmatprep.mubr.f32.mxu0 0.0
      %726 = vmatmul.mubr.f32.gmra.mrb[0].mxu0 %v512
      %v727 = vpop.f32.mrb[0].mxu0
      %v728 = vadd.f32 0.0, %v727
      %v729 = vpop.f32.mrb[0].mxu0
      %730 = vmatprep.mubr.f32.mxu0 0.0
      %731 = vmatmul.mubr.f32.gmra.mrb[0].mxu0 %v514
      %v732 = vpop.f32.mrb[0].mxu0
      %v733 = vadd.f32 0.0, %v732
      %v734 = vpop.f32.mrb[0].mxu0
      %735 = vmatprep.mubr.f32.mxu0 0.0
      %736 = vmatmul.mubr.f32.gmra.mrb[0].mxu0 %v516
      %v737 = vpop.f32.mrb[0].mxu0
      %v738 = vadd.f32 0.0, %v737
      %v739 = vpop.f32.mrb[0].mxu0
      %740 = vmatprep.mubr.f32.mxu0 0.0
      %741 = vmatmul.mubr.f32.gmra.mrb[0].mxu0 %v518
      %v742 = vpop.f32.mrb[0].mxu0
      %v743 = vadd.f32 0.0, %v742
      %v744 = vpop.f32.mrb[0].mxu0
      %745 = vmatprep.mubr.f32.mxu0 0.0
      %746 = vmatmul.mubr.f32.gmra.mrb[0].mxu0 %v520
      %v747 = vpop.f32.mrb[0].mxu0
      %v748 = vadd.f32 0.0, %v747
      %v749 = vpop.f32.mrb[0].mxu0
      %750 = vdwg.mxu0
      %v751 = vsel %vm457, %v261, 0
      %v753 = vsel %vm457, %v262, 0
      %v755 = vsel %vm457, %v263, 0
      %v757 = vsel %vm457, %v264, 0
      %v759 = vsel %vm457, %v265, 0
      %v761 = vsel %vm457, %v266, 0
      %v763 = vsel %vm457, %v267, 0
      %v765 = vsel %vm457, %v268, 0
      %v767 = vsel %vm457, %v269, 0
      %v769 = vsel %vm457, %v270, 0
      %v771 = vsel %vm457, %v271, 0
      %v773 = vsel %vm457, %v272, 0
      %v775 = vsel %vm457, %v273, 0
      %v777 = vsel %vm457, %v274, 0
      %v779 = vsel %vm457, %v275, 0
      %v781 = vsel %vm457, %v276, 0
      %v783 = vsel %vm457, %v277, 0
      %v785 = vsel %vm457, %v278, 0
      %v787 = vsel %vm457, %v279, 0
      %v789 = vsel %vm457, %v280, 0
      %v791 = vsel %vm457, %v281, 0
      %v793 = vsel %vm457, %v282, 0
      %v795 = vsel %vm457, %v283, 0
      %v797 = vsel %vm457, %v284, 0
      %v799 = vsel %vm457, %v285, 0
      %v801 = vsel %vm457, %v286, 0
      %v803 = vsel %vm457, %v287, 0
      %v805 = vsel %vm457, %v288, 0
      %v807 = vsel %vm457, %v289, 0
      %v809 = vsel %vm457, %v290, 0
      %v811 = vsel %vm457, %v291, 0
      %v813 = vsel %vm457, %v292, 0
      %v816 = vsel %vm522, %v293, 0
      %818 = vmatprep.subr.mxu0 0.0
      %819 = vmatpush1.msra.mxu0 %v816
      %820 = vmatprep.subr.mxu0 0.0
      %821 = vmatpush1.msra.mxu0 0.0
      %822 = vmatprep.subr.mxu0 0.0
      %823 = vmatpush1.msra.mxu0 0.0
      %824 = vmatprep.subr.mxu0 0.0
      %825 = vmatpush1.msra.mxu0 0.0
      %826 = vmatprep.subr.mxu0 0.0
      %827 = vmatpush1.msra.mxu0 0.0
      %828 = vmatprep.subr.mxu0 0.0
      %829 = vmatpush1.msra.mxu0 0.0
      %830 = vmatprep.subr.mxu0 0.0
      %831 = vmatpush1.msra.mxu0 0.0
      %832 = vmatprep.subr.mxu0 0.0
      %833 = vmatpush1.msra.mxu0 0.0
      %834 = vmatprep.subr.mxu0 0.0
      %835 = vmatpush1.msra.mxu0 0.0
      %836 = vmatprep.subr.mxu0 0.0
      %837 = vmatpush1.msra.mxu0 0.0
      %838 = vmatprep.subr.mxu0 0.0
      %839 = vmatpush1.msra.mxu0 0.0
      %840 = vmatprep.subr.mxu0 0.0
      %841 = vmatpush1.msra.mxu0 0.0
      %842 = vmatprep.subr.mxu0 0.0
      %843 = vmatpush1.msra.mxu0 0.0
      %844 = vmatprep.subr.mxu0 0.0
      %845 = vmatpush1.msra.mxu0 0.0
      %846 = vmatprep.subr.mxu0 0.0
      %847 = vmatpush1.msra.mxu0 0.0
      %848 = vmatprep.subr.mxu0 0.0
      %849 = vmatpush1.msra.mxu0 0.0
      %850 = vmatprep.subr.mxu0 0.0
      %851 = vmatpush1.msra.mxu0 0.0
      %852 = vmatprep.subr.mxu0 0.0
      %853 = vmatpush1.msra.mxu0 0.0
      %854 = vmatprep.subr.mxu0 0.0
      %855 = vmatpush1.msra.mxu0 0.0
      %856 = vmatprep.subr.mxu0 0.0
      %857 = vmatpush1.msra.mxu0 0.0
      %858 = vmatprep.subr.mxu0 0.0
      %859 = vmatpush1.msra.mxu0 0.0
      %860 = vmatprep.subr.mxu0 0.0
      %861 = vmatpush1.msra.mxu0 0.0
      %862 = vmatprep.subr.mxu0 0.0
      %863 = vmatpush1.msra.mxu0 0.0
      %864 = vmatprep.subr.mxu0 0.0
      %865 = vmatpush1.msra.mxu0 0.0
      %866 = vmatprep.subr.mxu0 0.0
      %867 = vmatpush1.msra.mxu0 0.0
      %868 = vmatprep.subr.mxu0 0.0
      %869 = vmatpush1.msra.mxu0 0.0
      %870 = vmatprep.subr.mxu0 0.0
      %871 = vmatpush1.msra.mxu0 0.0
      %872 = vmatprep.subr.mxu0 0.0
      %873 = vmatpush1.msra.mxu0 0.0
      %874 = vmatprep.subr.mxu0 0.0
      %875 = vmatpush1.msra.mxu0 0.0
      %876 = vmatprep.subr.mxu0 0.0
      %877 = vmatpush1.msra.mxu0 0.0
      %878 = vmatprep.subr.mxu0 0.0
      %879 = vmatpush1.msra.mxu0 0.0
      %880 = vmatprep.subr.mxu0 0.0
      %881 = vmatpush1.msra.mxu0 0.0
      %882 = vmatprep.mubr.f32.mxu0 0.0
      %883 = vmatmul.mubr.f32.gmra.mrb[0].mxu0 %v751
      %v884 = vpop.f32.mrb[0].mxu0
      %v885 = vadd.f32 %v593, %v884
      %v886 = vpop.f32.mrb[0].mxu0
      %887 = vmatprep.mubr.f32.mxu0 0.0
      %888 = vmatmul.mubr.f32.gmra.mrb[0].mxu0 %v753
      %v889 = vpop.f32.mrb[0].mxu0
      %v890 = vadd.f32 %v598, %v889
      %v891 = vpop.f32.mrb[0].mxu0
      %892 = vmatprep.mubr.f32.mxu0 0.0
      %893 = vmatmul.mubr.f32.gmra.mrb[0].mxu0 %v755
      %v894 = vpop.f32.mrb[0].mxu0
      %v895 = vadd.f32 %v603, %v894
      %v896 = vpop.f32.mrb[0].mxu0
      %897 = vmatprep.mubr.f32.mxu0 0.0
      %898 = vmatmul.mubr.f32.gmra.mrb[0].mxu0 %v757
      %v899 = vpop.f32.mrb[0].mxu0
      %v900 = vadd.f32 %v608, %v899
      %v901 = vpop.f32.mrb[0].mxu0
      %902 = vmatprep.mubr.f32.mxu0 0.0
      %903 = vmatmul.mubr.f32.gmra.mrb[0].mxu0 %v759
      %v904 = vpop.f32.mrb[0].mxu0
      %v905 = vadd.f32 %v613, %v904
      %v906 = vpop.f32.mrb[0].mxu0
      %907 = vmatprep.mubr.f32.mxu0 0.0
      %908 = vmatmul.mubr.f32.gmra.mrb[0].mxu0 %v761
      %v909 = vpop.f32.mrb[0].mxu0
      %v910 = vadd.f32 %v618, %v909
      %v911 = vpop.f32.mrb[0].mxu0
      %912 = vmatprep.mubr.f32.mxu0 0.0
      %913 = vmatmul.mubr.f32.gmra.mrb[0].mxu0 %v763
      %v914 = vpop.f32.mrb[0].mxu0
      %v915 = vadd.f32 %v623, %v914
      %v916 = vpop.f32.mrb[0].mxu0
      %917 = vmatprep.mubr.f32.mxu0 0.0
      %918 = vmatmul.mubr.f32.gmra.mrb[0].mxu0 %v765
      %v919 = vpop.f32.mrb[0].mxu0
      %v920 = vadd.f32 %v628, %v919
      %v921 = vpop.f32.mrb[0].mxu0
      %922 = vmatprep.mubr.f32.mxu0 0.0
      %923 = vmatmul.mubr.f32.gmra.mrb[0].mxu0 %v767
      %v924 = vpop.f32.mrb[0].mxu0
      %v925 = vadd.f32 %v633, %v924
      %v926 = vpop.f32.mrb[0].mxu0
      %927 = vmatprep.mubr.f32.mxu0 0.0
      %928 = vmatmul.mubr.f32.gmra.mrb[0].mxu0 %v769
      %v929 = vpop.f32.mrb[0].mxu0
      %v930 = vadd.f32 %v638, %v929
      %v931 = vpop.f32.mrb[0].mxu0
      %932 = vmatprep.mubr.f32.mxu0 0.0
      %933 = vmatmul.mubr.f32.gmra.mrb[0].mxu0 %v771
      %v934 = vpop.f32.mrb[0].mxu0
      %v935 = vadd.f32 %v643, %v934
      %v936 = vpop.f32.mrb[0].mxu0
      %937 = vmatprep.mubr.f32.mxu0 0.0
      %938 = vmatmul.mubr.f32.gmra.mrb[0].mxu0 %v773
      %v939 = vpop.f32.mrb[0].mxu0
      %v940 = vadd.f32 %v648, %v939
      %v941 = vpop.f32.mrb[0].mxu0
      %942 = vmatprep.mubr.f32.mxu0 0.0
      %943 = vmatmul.mubr.f32.gmra.mrb[0].mxu0 %v775
      %v944 = vpop.f32.mrb[0].mxu0
      %v945 = vadd.f32 %v653, %v944
      %v946 = vpop.f32.mrb[0].mxu0
      %947 = vmatprep.mubr.f32.mxu0 0.0
      %948 = vmatmul.mubr.f32.gmra.mrb[0].mxu0 %v777
      %v949 = vpop.f32.mrb[0].mxu0
      %v950 = vadd.f32 %v658, %v949
      %v951 = vpop.f32.mrb[0].mxu0
      %952 = vmatprep.mubr.f32.mxu0 0.0
      %953 = vmatmul.mubr.f32.gmra.mrb[0].mxu0 %v779
      %v954 = vpop.f32.mrb[0].mxu0
      %v955 = vadd.f32 %v663, %v954
      %v956 = vpop.f32.mrb[0].mxu0
      %957 = vmatprep.mubr.f32.mxu0 0.0
      %958 = vmatmul.mubr.f32.gmra.mrb[0].mxu0 %v781
      %v959 = vpop.f32.mrb[0].mxu0
      %v960 = vadd.f32 %v668, %v959
      %v961 = vpop.f32.mrb[0].mxu0
      %962 = vmatprep.mubr.f32.mxu0 0.0
      %963 = vmatmul.mubr.f32.gmra.mrb[0].mxu0 %v783
      %v964 = vpop.f32.mrb[0].mxu0
      %v965 = vadd.f32 %v673, %v964
      %v966 = vpop.f32.mrb[0].mxu0
      %967 = vmatprep.mubr.f32.mxu0 0.0
      %968 = vmatmul.mubr.f32.gmra.mrb[0].mxu0 %v785
      %v969 = vpop.f32.mrb[0].mxu0
      %v970 = vadd.f32 %v678, %v969
      %v971 = vpop.f32.mrb[0].mxu0
      %972 = vmatprep.mubr.f32.mxu0 0.0
      %973 = vmatmul.mubr.f32.gmra.mrb[0].mxu0 %v787
      %v974 = vpop.f32.mrb[0].mxu0
      %v975 = vadd.f32 %v683, %v974
      %v976 = vpop.f32.mrb[0].mxu0
      %977 = vmatprep.mubr.f32.mxu0 0.0
      %978 = vmatmul.mubr.f32.gmra.mrb[0].mxu0 %v789
      %v979 = vpop.f32.mrb[0].mxu0
      %v980 = vadd.f32 %v688, %v979
      %v981 = vpop.f32.mrb[0].mxu0
      %982 = vmatprep.mubr.f32.mxu0 0.0
      %983 = vmatmul.mubr.f32.gmra.mrb[0].mxu0 %v791
      %v984 = vpop.f32.mrb[0].mxu0
      %v985 = vadd.f32 %v693, %v984
      %v986 = vpop.f32.mrb[0].mxu0
      %987 = vmatprep.mubr.f32.mxu0 0.0
      %988 = vmatmul.mubr.f32.gmra.mrb[0].mxu0 %v793
      %v989 = vpop.f32.mrb[0].mxu0
      %v990 = vadd.f32 %v698, %v989
      %v991 = vpop.f32.mrb[0].mxu0
      %992 = vmatprep.mubr.f32.mxu0 0.0
      %993 = vmatmul.mubr.f32.gmra.mrb[0].mxu0 %v795
      %v994 = vpop.f32.mrb[0].mxu0
      %v995 = vadd.f32 %v703, %v994
      %v996 = vpop.f32.mrb[0].mxu0
      %997 = vmatprep.mubr.f32.mxu0 0.0
      %998 = vmatmul.mubr.f32.gmra.mrb[0].mxu0 %v797
      %v999 = vpop.f32.mrb[0].mxu0
      %v1000 = vadd.f32 %v708, %v999
      %v1001 = vpop.f32.mrb[0].mxu0
      %1002 = vmatprep.mubr.f32.mxu0 0.0
      %1003 = vmatmul.mubr.f32.gmra.mrb[0].mxu0 %v799
      %v1004 = vpop.f32.mrb[0].mxu0
      %v1005 = vadd.f32 %v713, %v1004
      %v1006 = vpop.f32.mrb[0].mxu0
      %1007 = vmatprep.mubr.f32.mxu0 0.0
      %1008 = vmatmul.mubr.f32.gmra.mrb[0].mxu0 %v801
      %v1009 = vpop.f32.mrb[0].mxu0
      %v1010 = vadd.f32 %v718, %v1009
      %v1011 = vpop.f32.mrb[0].mxu0
      %1012 = vmatprep.mubr.f32.mxu0 0.0
      %1013 = vmatmul.mubr.f32.gmra.mrb[0].mxu0 %v803
      %v1014 = vpop.f32.mrb[0].mxu0
      %v1015 = vadd.f32 %v723, %v1014
      %v1016 = vpop.f32.mrb[0].mxu0
      %1017 = vmatprep.mubr.f32.mxu0 0.0
      %1018 = vmatmul.mubr.f32.gmra.mrb[0].mxu0 %v805
      %v1019 = vpop.f32.mrb[0].mxu0
      %v1020 = vadd.f32 %v728, %v1019
      %v1021 = vpop.f32.mrb[0].mxu0
      %1022 = vmatprep.mubr.f32.mxu0 0.0
      %1023 = vmatmul.mubr.f32.gmra.mrb[0].mxu0 %v807
      %v1024 = vpop.f32.mrb[0].mxu0
      %v1025 = vadd.f32 %v733, %v1024
      %v1026 = vpop.f32.mrb[0].mxu0
      %1027 = vmatprep.mubr.f32.mxu0 0.0
      %1028 = vmatmul.mubr.f32.gmra.mrb[0].mxu0 %v809
      %v1029 = vpop.f32.mrb[0].mxu0
      %v1030 = vadd.f32 %v738, %v1029
      %v1031 = vpop.f32.mrb[0].mxu0
      %1032 = vmatprep.mubr.f32.mxu0 0.0
      %1033 = vmatmul.mubr.f32.gmra.mrb[0].mxu0 %v811
      %v1034 = vpop.f32.mrb[0].mxu0
      %v1035 = vadd.f32 %v743, %v1034
      %v1036 = vpop.f32.mrb[0].mxu0
      %1037 = vmatprep.mubr.f32.mxu0 0.0
      %1038 = vmatmul.mubr.f32.gmra.mrb[0].mxu0 %v813
      %v1039 = vpop.f32.mrb[0].mxu0
      %v1040 = vadd.f32 %v748, %v1039
      %v1041 = vpop.f32.mrb[0].mxu0
      %1042 = vdwg.mxu0
      %v1043 = vld [vmem:[%s222] sm:$0xe]
      %v1044 = vld [vmem:[%s222 + $0xc] sm:$0xe]
      %v1045 = vld [vmem:[%s222 + $0x18] sm:$0xe]
      %v1046 = vld [vmem:[%s222 + $0x24] sm:$0xe]
      %v1047 = vld [vmem:[%s222 + $0x30] sm:$0xe]
      %v1048 = vld [vmem:[%s222 + $0x3c] sm:$0xe]
      %v1049 = vld [vmem:[%s222 + $0x48] sm:$0xe]
      %v1050 = vld [vmem:[%s222 + $0x54] sm:$0xe]
      %v1051 = vld [vmem:[%s222 + $0x60] sm:$0xe]
      %v1052 = vld [vmem:[%s222 + $0x6c] sm:$0xe]
      %v1053 = vld [vmem:[%s222 + $0x78] sm:$0xe]
      %v1054 = vld [vmem:[%s222 + $0x84] sm:$0xe]
      %v1055 = vld [vmem:[%s222 + $0x90] sm:$0xe]
      %v1056 = vld [vmem:[%s222 + $0x9c] sm:$0xe]
      %v1057 = vld [vmem:[%s222 + $0xa8] sm:$0xe]
      %v1058 = vld [vmem:[%s222 + $0xb4] sm:$0xe]
      %v1059 = vunpack.c.l.bf16 %v1043
      %v1060 = vunpack.c.l.bf16 %v1044
      %v1061 = vunpack.c.l.bf16 %v1045
      %v1062 = vunpack.c.l.bf16 %v1046
      %v1063 = vunpack.c.l.bf16 %v1047
      %v1064 = vunpack.c.l.bf16 %v1048
      %v1065 = vunpack.c.l.bf16 %v1049
      %v1066 = vunpack.c.l.bf16 %v1050
      %v1067 = vunpack.c.l.bf16 %v1051
      %v1068 = vunpack.c.l.bf16 %v1052
      %v1069 = vunpack.c.l.bf16 %v1053
      %v1070 = vunpack.c.l.bf16 %v1054
      %v1071 = vunpack.c.l.bf16 %v1055
      %v1072 = vunpack.c.l.bf16 %v1056
      %v1073 = vunpack.c.l.bf16 %v1057
      %v1074 = vunpack.c.l.bf16 %v1058
      %vm1091 = vcmask 1045504
      %v1092 = vrot.slane %v1059, 2
      %v1093 = vrot.slane %v262, 2
      %v1094 = vsel %vm1091, %v1092, %v1093
      %v1095 = vrot.slane %v310, 2
      %v1096 = vsel %vm1091, %v1093, %v1095
      %v1097 = vrot.slane %v1060, 2
      %v1098 = vrot.slane %v264, 2
      %v1099 = vsel %vm1091, %v1097, %v1098
      %v1100 = vrot.slane %v311, 2
      %v1101 = vsel %vm1091, %v1098, %v1100
      %v1102 = vrot.slane %v1061, 2
      %v1103 = vrot.slane %v266, 2
      %v1104 = vsel %vm1091, %v1102, %v1103
      %v1105 = vrot.slane %v312, 2
      %v1106 = vsel %vm1091, %v1103, %v1105
      %v1107 = vrot.slane %v1062, 2
      %v1108 = vrot.slane %v268, 2
      %v1109 = vsel %vm1091, %v1107, %v1108
      %v1110 = vrot.slane %v313, 2
      %v1111 = vsel %vm1091, %v1108, %v1110
      %v1112 = vrot.slane %v1063, 2
      %v1113 = vrot.slane %v270, 2
      %v1114 = vsel %vm1091, %v1112, %v1113
      %v1115 = vrot.slane %v314, 2
      %v1116 = vsel %vm1091, %v1113, %v1115
      %v1117 = vrot.slane %v1064, 2
      %v1118 = vrot.slane %v272, 2
      %v1119 = vsel %vm1091, %v1117, %v1118
      %v1120 = vrot.slane %v315, 2
      %v1121 = vsel %vm1091, %v1118, %v1120
      %v1122 = vrot.slane %v1065, 2
      %v1123 = vrot.slane %v274, 2
      %v1124 = vsel %vm1091, %v1122, %v1123
      %v1125 = vrot.slane %v316, 2
      %v1126 = vsel %vm1091, %v1123, %v1125
      %v1127 = vrot.slane %v1066, 2
      %v1128 = vrot.slane %v276, 2
      %v1129 = vsel %vm1091, %v1127, %v1128
      %v1130 = vrot.slane %v317, 2
      %v1131 = vsel %vm1091, %v1128, %v1130
      %v1132 = vrot.slane %v1067, 2
      %v1133 = vrot.slane %v278, 2
      %v1134 = vsel %vm1091, %v1132, %v1133
      %v1135 = vrot.slane %v318, 2
      %v1136 = vsel %vm1091, %v1133, %v1135
      %v1137 = vrot.slane %v1068, 2
      %v1138 = vrot.slane %v280, 2
      %v1139 = vsel %vm1091, %v1137, %v1138
      %v1140 = vrot.slane %v319, 2
      %v1141 = vsel %vm1091, %v1138, %v1140
      %v1142 = vrot.slane %v1069, 2
      %v1143 = vrot.slane %v282, 2
      %v1144 = vsel %vm1091, %v1142, %v1143
      %v1145 = vrot.slane %v320, 2
      %v1146 = vsel %vm1091, %v1143, %v1145
      %v1147 = vrot.slane %v1070, 2
      %v1148 = vrot.slane %v284, 2
      %v1149 = vsel %vm1091, %v1147, %v1148
      %v1150 = vrot.slane %v321, 2
      %v1151 = vsel %vm1091, %v1148, %v1150
      %v1152 = vrot.slane %v1071, 2
      %v1153 = vrot.slane %v286, 2
      %v1154 = vsel %vm1091, %v1152, %v1153
      %v1155 = vrot.slane %v322, 2
      %v1156 = vsel %vm1091, %v1153, %v1155
      %v1157 = vrot.slane %v1072, 2
      %v1158 = vrot.slane %v288, 2
      %v1159 = vsel %vm1091, %v1157, %v1158
      %v1160 = vrot.slane %v323, 2
      %v1161 = vsel %vm1091, %v1158, %v1160
      %v1162 = vrot.slane %v1073, 2
      %v1163 = vrot.slane %v290, 2
      %v1164 = vsel %vm1091, %v1162, %v1163
      %v1165 = vrot.slane %v324, 2
      %v1166 = vsel %vm1091, %v1163, %v1165
      %v1167 = vrot.slane %v1074, 2
      %v1168 = vrot.slane %v292, 2
      %v1169 = vsel %vm1091, %v1167, %v1168
      %v1170 = vrot.slane %v325, 2
      %v1171 = vsel %vm1091, %v1168, %v1170
      %s1172 = scalar_lea.vmem %s1, 8
      %v1173 = vld [vmem:[%s1172] sm:$0x7]
      %v1174 = vsel %vm457, %v1094, 0
      %v1176 = vsel %vm457, %v1096, 0
      %v1178 = vsel %vm457, %v1099, 0
      %v1180 = vsel %vm457, %v1101, 0
      %v1182 = vsel %vm457, %v1104, 0
      %v1184 = vsel %vm457, %v1106, 0
      %v1186 = vsel %vm457, %v1109, 0
      %v1188 = vsel %vm457, %v1111, 0
      %v1190 = vsel %vm457, %v1114, 0
      %v1192 = vsel %vm457, %v1116, 0
      %v1194 = vsel %vm457, %v1119, 0
      %v1196 = vsel %vm457, %v1121, 0
      %v1198 = vsel %vm457, %v1124, 0
      %v1200 = vsel %vm457, %v1126, 0
      %v1202 = vsel %vm457, %v1129, 0
      %v1204 = vsel %vm457, %v1131, 0
      %v1206 = vsel %vm457, %v1134, 0
      %v1208 = vsel %vm457, %v1136, 0
      %v1210 = vsel %vm457, %v1139, 0
      %v1212 = vsel %vm457, %v1141, 0
      %v1214 = vsel %vm457, %v1144, 0
      %v1216 = vsel %vm457, %v1146, 0
      %v1218 = vsel %vm457, %v1149, 0
      %v1220 = vsel %vm457, %v1151, 0
      %v1222 = vsel %vm457, %v1154, 0
      %v1224 = vsel %vm457, %v1156, 0
      %v1226 = vsel %vm457, %v1159, 0
      %v1228 = vsel %vm457, %v1161, 0
      %v1230 = vsel %vm457, %v1164, 0
      %v1232 = vsel %vm457, %v1166, 0
      %v1234 = vsel %vm457, %v1169, 0
      %v1236 = vsel %vm457, %v1171, 0
      %v1239 = vsel %vm522, %v1173, 0
      %1241 = vmatprep.subr.mxu0 0.0
      %1242 = vmatpush1.msra.mxu0 %v1239
      %1243 = vmatprep.subr.mxu0 0.0
      %1244 = vmatpush1.msra.mxu0 0.0
      %1245 = vmatprep.subr.mxu0 0.0
      %1246 = vmatpush1.msra.mxu0 0.0
      %1247 = vmatprep.subr.mxu0 0.0
      %1248 = vmatpush1.msra.mxu0 0.0
      %1249 = vmatprep.subr.mxu0 0.0
      %1250 = vmatpush1.msra.mxu0 0.0
      %1251 = vmatprep.subr.mxu0 0.0
      %1252 = vmatpush1.msra.mxu0 0.0
      %1253 = vmatprep.subr.mxu0 0.0
      %1254 = vmatpush1.msra.mxu0 0.0
      %1255 = vmatprep.subr.mxu0 0.0
      %1256 = vmatpush1.msra.mxu0 0.0
      %1257 = vmatprep.subr.mxu0 0.0
      %1258 = vmatpush1.msra.mxu0 0.0
      %1259 = vmatprep.subr.mxu0 0.0
      %1260 = vmatpush1.msra.mxu0 0.0
      %1261 = vmatprep.subr.mxu0 0.0
      %1262 = vmatpush1.msra.mxu0 0.0
      %1263 = vmatprep.subr.mxu0 0.0
      %1264 = vmatpush1.msra.mxu0 0.0
      %1265 = vmatprep.subr.mxu0 0.0
      %1266 = vmatpush1.msra.mxu0 0.0
      %1267 = vmatprep.subr.mxu0 0.0
      %1268 = vmatpush1.msra.mxu0 0.0
      %1269 = vmatprep.subr.mxu0 0.0
      %1270 = vmatpush1.msra.mxu0 0.0
      %1271 = vmatprep.subr.mxu0 0.0
      %1272 = vmatpush1.msra.mxu0 0.0
      %1273 = vmatprep.subr.mxu0 0.0
      %1274 = vmatpush1.msra.mxu0 0.0
      %1275 = vmatprep.subr.mxu0 0.0
      %1276 = vmatpush1.msra.mxu0 0.0
      %1277 = vmatprep.subr.mxu0 0.0
      %1278 = vmatpush1.msra.mxu0 0.0
      %1279 = vmatprep.subr.mxu0 0.0
      %1280 = vmatpush1.msra.mxu0 0.0
      %1281 = vmatprep.subr.mxu0 0.0
      %1282 = vmatpush1.msra.mxu0 0.0
      %1283 = vmatprep.subr.mxu0 0.0
      %1284 = vmatpush1.msra.mxu0 0.0
      %1285 = vmatprep.subr.mxu0 0.0
      %1286 = vmatpush1.msra.mxu0 0.0
      %1287 = vmatprep.subr.mxu0 0.0
      %1288 = vmatpush1.msra.mxu0 0.0
      %1289 = vmatprep.subr.mxu0 0.0
      %1290 = vmatpush1.msra.mxu0 0.0
      %1291 = vmatprep.subr.mxu0 0.0
      %1292 = vmatpush1.msra.mxu0 0.0
      %1293 = vmatprep.subr.mxu0 0.0
      %1294 = vmatpush1.msra.mxu0 0.0
      %1295 = vmatprep.subr.mxu0 0.0
      %1296 = vmatpush1.msra.mxu0 0.0
      %1297 = vmatprep.subr.mxu0 0.0
      %1298 = vmatpush1.msra.mxu0 0.0
      %1299 = vmatprep.subr.mxu0 0.0
      %1300 = vmatpush1.msra.mxu0 0.0
      %1301 = vmatprep.subr.mxu0 0.0
      %1302 = vmatpush1.msra.mxu0 0.0
      %1303 = vmatprep.subr.mxu0 0.0
      %1304 = vmatpush1.msra.mxu0 0.0
      %1305 = vmatprep.mubr.f32.mxu0 0.0
      %1306 = vmatmul.mubr.f32.gmra.mrb[0].mxu0 %v1174
      %v1307 = vpop.f32.mrb[0].mxu0
      %v1308 = vadd.f32 0.0, %v1307
      %v1309 = vpop.f32.mrb[0].mxu0
      %1310 = vmatprep.mubr.f32.mxu0 0.0
      %1311 = vmatmul.mubr.f32.gmra.mrb[0].mxu0 %v1176
      %v1312 = vpop.f32.mrb[0].mxu0
      %v1313 = vadd.f32 0.0, %v1312
      %v1314 = vpop.f32.mrb[0].mxu0
      %1315 = vmatprep.mubr.f32.mxu0 0.0
      %1316 = vmatmul.mubr.f32.gmra.mrb[0].mxu0 %v1178
      %v1317 = vpop.f32.mrb[0].mxu0
      %v1318 = vadd.f32 0.0, %v1317
      %v1319 = vpop.f32.mrb[0].mxu0
      %1320 = vmatprep.mubr.f32.mxu0 0.0
      %1321 = vmatmul.mubr.f32.gmra.mrb[0].mxu0 %v1180
      %v1322 = vpop.f32.mrb[0].mxu0
      %v1323 = vadd.f32 0.0, %v1322
      %v1324 = vpop.f32.mrb[0].mxu0
      %1325 = vmatprep.mubr.f32.mxu0 0.0
      %1326 = vmatmul.mubr.f32.gmra.mrb[0].mxu0 %v1182
      %v1327 = vpop.f32.mrb[0].mxu0
      %v1328 = vadd.f32 0.0, %v1327
      %v1329 = vpop.f32.mrb[0].mxu0
      %1330 = vmatprep.mubr.f32.mxu0 0.0
      %1331 = vmatmul.mubr.f32.gmra.mrb[0].mxu0 %v1184
      %v1332 = vpop.f32.mrb[0].mxu0
      %v1333 = vadd.f32 0.0, %v1332
      %v1334 = vpop.f32.mrb[0].mxu0
      %1335 = vmatprep.mubr.f32.mxu0 0.0
      %1336 = vmatmul.mubr.f32.gmra.mrb[0].mxu0 %v1186
      %v1337 = vpop.f32.mrb[0].mxu0
      %v1338 = vadd.f32 0.0, %v1337
      %v1339 = vpop.f32.mrb[0].mxu0
      %1340 = vmatprep.mubr.f32.mxu0 0.0
      %1341 = vmatmul.mubr.f32.gmra.mrb[0].mxu0 %v1188
      %v1342 = vpop.f32.mrb[0].mxu0
      %v1343 = vadd.f32 0.0, %v1342
      %v1344 = vpop.f32.mrb[0].mxu0
      %1345 = vmatprep.mubr.f32.mxu0 0.0
      %1346 = vmatmul.mubr.f32.gmra.mrb[0].mxu0 %v1190
      %v1347 = vpop.f32.mrb[0].mxu0
      %v1348 = vadd.f32 0.0, %v1347
      %v1349 = vpop.f32.mrb[0].mxu0
      %1350 = vmatprep.mubr.f32.mxu0 0.0
      %1351 = vmatmul.mubr.f32.gmra.mrb[0].mxu0 %v1192
      %v1352 = vpop.f32.mrb[0].mxu0
      %v1353 = vadd.f32 0.0, %v1352
      %v1354 = vpop.f32.mrb[0].mxu0
      %1355 = vmatprep.mubr.f32.mxu0 0.0
      %1356 = vmatmul.mubr.f32.gmra.mrb[0].mxu0 %v1194
      %v1357 = vpop.f32.mrb[0].mxu0
      %v1358 = vadd.f32 0.0, %v1357
      %v1359 = vpop.f32.mrb[0].mxu0
      %1360 = vmatprep.mubr.f32.mxu0 0.0
      %1361 = vmatmul.mubr.f32.gmra.mrb[0].mxu0 %v1196
      %v1362 = vpop.f32.mrb[0].mxu0
      %v1363 = vadd.f32 0.0, %v1362
      %v1364 = vpop.f32.mrb[0].mxu0
      %1365 = vmatprep.mubr.f32.mxu0 0.0
      %1366 = vmatmul.mubr.f32.gmra.mrb[0].mxu0 %v1198
      %v1367 = vpop.f32.mrb[0].mxu0
      %v1368 = vadd.f32 0.0, %v1367
      %v1369 = vpop.f32.mrb[0].mxu0
      %1370 = vmatprep.mubr.f32.mxu0 0.0
      %1371 = vmatmul.mubr.f32.gmra.mrb[0].mxu0 %v1200
      %v1372 = vpop.f32.mrb[0].mxu0
      %v1373 = vadd.f32 0.0, %v1372
      %v1374 = vpop.f32.mrb[0].mxu0
      %1375 = vmatprep.mubr.f32.mxu0 0.0
      %1376 = vmatmul.mubr.f32.gmra.mrb[0].mxu0 %v1202
      %v1377 = vpop.f32.mrb[0].mxu0
      %v1378 = vadd.f32 0.0, %v1377
      %v1379 = vpop.f32.mrb[0].mxu0
      %1380 = vmatprep.mubr.f32.mxu0 0.0
      %1381 = vmatmul.mubr.f32.gmra.mrb[0].mxu0 %v1204
      %v1382 = vpop.f32.mrb[0].mxu0
      %v1383 = vadd.f32 0.0, %v1382
      %v1384 = vpop.f32.mrb[0].mxu0
      %1385 = vmatprep.mubr.f32.mxu0 0.0
      %1386 = vmatmul.mubr.f32.gmra.mrb[0].mxu0 %v1206
      %v1387 = vpop.f32.mrb[0].mxu0
      %v1388 = vadd.f32 0.0, %v1387
      %v1389 = vpop.f32.mrb[0].mxu0
      %1390 = vmatprep.mubr.f32.mxu0 0.0
      %1391 = vmatmul.mubr.f32.gmra.mrb[0].mxu0 %v1208
      %v1392 = vpop.f32.mrb[0].mxu0
      %v1393 = vadd.f32 0.0, %v1392
      %v1394 = vpop.f32.mrb[0].mxu0
      %1395 = vmatprep.mubr.f32.mxu0 0.0
      %1396 = vmatmul.mubr.f32.gmra.mrb[0].mxu0 %v1210
      %v1397 = vpop.f32.mrb[0].mxu0
      %v1398 = vadd.f32 0.0, %v1397
      %v1399 = vpop.f32.mrb[0].mxu0
      %1400 = vmatprep.mubr.f32.mxu0 0.0
      %1401 = vmatmul.mubr.f32.gmra.mrb[0].mxu0 %v1212
      %v1402 = vpop.f32.mrb[0].mxu0
      %v1403 = vadd.f32 0.0, %v1402
      %v1404 = vpop.f32.mrb[0].mxu0
      %1405 = vmatprep.mubr.f32.mxu0 0.0
      %1406 = vmatmul.mubr.f32.gmra.mrb[0].mxu0 %v1214
      %v1407 = vpop.f32.mrb[0].mxu0
      %v1408 = vadd.f32 0.0, %v1407
      %v1409 = vpop.f32.mrb[0].mxu0
      %1410 = vmatprep.mubr.f32.mxu0 0.0
      %1411 = vmatmul.mubr.f32.gmra.mrb[0].mxu0 %v1216
      %v1412 = vpop.f32.mrb[0].mxu0
      %v1413 = vadd.f32 0.0, %v1412
      %v1414 = vpop.f32.mrb[0].mxu0
      %1415 = vmatprep.mubr.f32.mxu0 0.0
      %1416 = vmatmul.mubr.f32.gmra.mrb[0].mxu0 %v1218
      %v1417 = vpop.f32.mrb[0].mxu0
      %v1418 = vadd.f32 0.0, %v1417
      %v1419 = vpop.f32.mrb[0].mxu0
      %1420 = vmatprep.mubr.f32.mxu0 0.0
      %1421 = vmatmul.mubr.f32.gmra.mrb[0].mxu0 %v1220
      %v1422 = vpop.f32.mrb[0].mxu0
      %v1423 = vadd.f32 0.0, %v1422
      %v1424 = vpop.f32.mrb[0].mxu0
      %1425 = vmatprep.mubr.f32.mxu0 0.0
      %1426 = vmatmul.mubr.f32.gmra.mrb[0].mxu0 %v1222
      %v1427 = vpop.f32.mrb[0].mxu0
      %v1428 = vadd.f32 0.0, %v1427
      %v1429 = vpop.f32.mrb[0].mxu0
      %1430 = vmatprep.mubr.f32.mxu0 0.0
      %1431 = vmatmul.mubr.f32.gmra.mrb[0].mxu0 %v1224
      %v1432 = vpop.f32.mrb[0].mxu0
      %v1433 = vadd.f32 0.0, %v1432
      %v1434 = vpop.f32.mrb[0].mxu0
      %1435 = vmatprep.mubr.f32.mxu0 0.0
      %1436 = vmatmul.mubr.f32.gmra.mrb[0].mxu0 %v1226
      %v1437 = vpop.f32.mrb[0].mxu0
      %v1438 = vadd.f32 0.0, %v1437
      %v1439 = vpop.f32.mrb[0].mxu0
      %1440 = vmatprep.mubr.f32.mxu0 0.0
      %1441 = vmatmul.mubr.f32.gmra.mrb[0].mxu0 %v1228
      %v1442 = vpop.f32.mrb[0].mxu0
      %v1443 = vadd.f32 0.0, %v1442
      %v1444 = vpop.f32.mrb[0].mxu0
      %1445 = vmatprep.mubr.f32.mxu0 0.0
      %1446 = vmatmul.mubr.f32.gmra.mrb[0].mxu0 %v1230
      %v1447 = vpop.f32.mrb[0].mxu0
      %v1448 = vadd.f32 0.0, %v1447
      %v1449 = vpop.f32.mrb[0].mxu0
      %1450 = vmatprep.mubr.f32.mxu0 0.0
      %1451 = vmatmul.mubr.f32.gmra.mrb[0].mxu0 %v1232
      %v1452 = vpop.f32.mrb[0].mxu0
      %v1453 = vadd.f32 0.0, %v1452
      %v1454 = vpop.f32.mrb[0].mxu0
      %1455 = vmatprep.mubr.f32.mxu0 0.0
      %1456 = vmatmul.mubr.f32.gmra.mrb[0].mxu0 %v1234
      %v1457 = vpop.f32.mrb[0].mxu0
      %v1458 = vadd.f32 0.0, %v1457
      %v1459 = vpop.f32.mrb[0].mxu0
      %1460 = vmatprep.mubr.f32.mxu0 0.0
      %1461 = vmatmul.mubr.f32.gmra.mrb[0].mxu0 %v1236
      %v1462 = vpop.f32.mrb[0].mxu0
      %v1463 = vadd.f32 0.0, %v1462
      %v1464 = vpop.f32.mrb[0].mxu0
      %1465 = vdwg.mxu0
      %v1466 = vadd.f32 %v885, %v1308
      %v1467 = vadd.f32 %v890, %v1313
      %v1468 = vadd.f32 %v895, %v1318
      %v1469 = vadd.f32 %v900, %v1323
      %v1470 = vadd.f32 %v905, %v1328
      %v1471 = vadd.f32 %v910, %v1333
      %v1472 = vadd.f32 %v915, %v1338
      %v1473 = vadd.f32 %v920, %v1343
      %v1474 = vadd.f32 %v925, %v1348
      %v1475 = vadd.f32 %v930, %v1353
      %v1476 = vadd.f32 %v935, %v1358
      %v1477 = vadd.f32 %v940, %v1363
      %v1478 = vadd.f32 %v945, %v1368
      %v1479 = vadd.f32 %v950, %v1373
      %v1480 = vadd.f32 %v955, %v1378
      %v1481 = vadd.f32 %v960, %v1383
      %v1482 = vadd.f32 %v965, %v1388
      %v1483 = vadd.f32 %v970, %v1393
      %v1484 = vadd.f32 %v975, %v1398
      %v1485 = vadd.f32 %v980, %v1403
      %v1486 = vadd.f32 %v985, %v1408
      %v1487 = vadd.f32 %v990, %v1413
      %v1488 = vadd.f32 %v995, %v1418
      %v1489 = vadd.f32 %v1000, %v1423
      %v1490 = vadd.f32 %v1005, %v1428
      %v1491 = vadd.f32 %v1010, %v1433
      %v1492 = vadd.f32 %v1015, %v1438
      %v1493 = vadd.f32 %v1020, %v1443
      %v1494 = vadd.f32 %v1025, %v1448
      %v1495 = vadd.f32 %v1030, %v1453
      %v1496 = vadd.f32 %v1035, %v1458
      %v1497 = vadd.f32 %v1040, %v1463
      %s1498 = scalar_lea.vmem %s222, 12
      %v1499 = vld [vmem:[%s1498] sm:$0xf]
      %v1500 = vld [vmem:[%s1498 + $0x4] sm:$0xf]
      %v1501 = vld [vmem:[%s1498 + $0xc] sm:$0xf]
      %v1502 = vld [vmem:[%s1498 + $0x10] sm:$0xf]
      %v1503 = vld [vmem:[%s1498 + $0x18] sm:$0xf]
      %v1504 = vld [vmem:[%s1498 + $0x1c] sm:$0xf]
      %v1505 = vld [vmem:[%s1498 + $0x24] sm:$0xf]
      %v1506 = vld [vmem:[%s1498 + $0x28] sm:$0xf]
      %v1507 = vld [vmem:[%s1498 + $0x30] sm:$0xf]
      %v1508 = vld [vmem:[%s1498 + $0x34] sm:$0xf]
      %v1509 = vld [vmem:[%s1498 + $0x3c] sm:$0xf]
      %v1510 = vld [vmem:[%s1498 + $0x40] sm:$0xf]
      %v1511 = vld [vmem:[%s1498 + $0x48] sm:$0xf]
      %v1512 = vld [vmem:[%s1498 + $0x4c] sm:$0xf]
      %v1513 = vld [vmem:[%s1498 + $0x54] sm:$0xf]
      %v1514 = vld [vmem:[%s1498 + $0x58] sm:$0xf]
      %v1515 = vld [vmem:[%s1498 + $0x60] sm:$0xf]
      %v1516 = vld [vmem:[%s1498 + $0x64] sm:$0xf]
      %v1517 = vld [vmem:[%s1498 + $0x6c] sm:$0xf]
      %v1518 = vld [vmem:[%s1498 + $0x70] sm:$0xf]
      %v1519 = vld [vmem:[%s1498 + $0x78] sm:$0xf]
      %v1520 = vld [vmem:[%s1498 + $0x7c] sm:$0xf]
      %v1521 = vld [vmem:[%s1498 + $0x84] sm:$0xf]
      %v1522 = vld [vmem:[%s1498 + $0x88] sm:$0xf]
      %v1523 = vld [vmem:[%s1498 + $0x90] sm:$0xf]
      %v1524 = vld [vmem:[%s1498 + $0x94] sm:$0xf]
      %v1525 = vld [vmem:[%s1498 + $0x9c] sm:$0xf]
      %v1526 = vld [vmem:[%s1498 + $0xa0] sm:$0xf]
      %v1527 = vld [vmem:[%s1498 + $0xa8] sm:$0xf]
      %v1528 = vld [vmem:[%s1498 + $0xac] sm:$0xf]
      %v1529 = vld [vmem:[%s1498 + $0xb4] sm:$0xf]
      %v1530 = vld [vmem:[%s1498 + $0xb8] sm:$0xf]
      %v1531 = vunpack.c.l.bf16 %v1499
      %v1532 = vunpack.c.l.bf16 %v1500
      %v1533 = vunpack.c.l.bf16 %v1501
      %v1534 = vunpack.c.l.bf16 %v1502
      %v1535 = vunpack.c.l.bf16 %v1503
      %v1536 = vunpack.c.l.bf16 %v1504
      %v1537 = vunpack.c.l.bf16 %v1505
      %v1538 = vunpack.c.l.bf16 %v1506
      %v1539 = vunpack.c.l.bf16 %v1507
      %v1540 = vunpack.c.l.bf16 %v1508
      %v1541 = vunpack.c.l.bf16 %v1509
      %v1542 = vunpack.c.l.bf16 %v1510
      %v1543 = vunpack.c.l.bf16 %v1511
      %v1544 = vunpack.c.l.bf16 %v1512
      %v1545 = vunpack.c.l.bf16 %v1513
      %v1546 = vunpack.c.l.bf16 %v1514
      %v1547 = vunpack.c.l.bf16 %v1515
      %v1548 = vunpack.c.l.bf16 %v1516
      %v1549 = vunpack.c.l.bf16 %v1517
      %v1550 = vunpack.c.l.bf16 %v1518
      %v1551 = vunpack.c.l.bf16 %v1519
      %v1552 = vunpack.c.l.bf16 %v1520
      %v1553 = vunpack.c.l.bf16 %v1521
      %v1554 = vunpack.c.l.bf16 %v1522
      %v1555 = vunpack.c.l.bf16 %v1523
      %v1556 = vunpack.c.l.bf16 %v1524
      %v1557 = vunpack.c.l.bf16 %v1525
      %v1558 = vunpack.c.l.bf16 %v1526
      %v1559 = vunpack.c.l.bf16 %v1527
      %v1560 = vunpack.c.l.bf16 %v1528
      %v1561 = vunpack.c.l.bf16 %v1529
      %v1562 = vunpack.c.l.bf16 %v1530
      %s1563 = scalar_lea.vmem %s1, 12
      %v1564 = vld [vmem:[%s1563] sm:$0x7]
      %v1566 = vsel %vm457, %v1531, 0
      %v1569 = vsel %vm457, %v1532, 0
      %v1572 = vsel %vm457, %v1533, 0
      %v1575 = vsel %vm457, %v1534, 0
      %v1578 = vsel %vm457, %v1535, 0
      %v1581 = vsel %vm457, %v1536, 0
      %v1584 = vsel %vm457, %v1537, 0
      %v1587 = vsel %vm457, %v1538, 0
      %v1590 = vsel %vm457, %v1539, 0
      %v1593 = vsel %vm457, %v1540, 0
      %v1596 = vsel %vm457, %v1541, 0
      %v1599 = vsel %vm457, %v1542, 0
      %v1602 = vsel %vm457, %v1543, 0
      %v1605 = vsel %vm457, %v1544, 0
      %v1608 = vsel %vm457, %v1545, 0
      %v1611 = vsel %vm457, %v1546, 0
      %v1614 = vsel %vm457, %v1547, 0
      %v1617 = vsel %vm457, %v1548, 0
      %v1620 = vsel %vm457, %v1549, 0
      %v1623 = vsel %vm457, %v1550, 0
      %v1626 = vsel %vm457, %v1551, 0
      %v1629 = vsel %vm457, %v1552, 0
      %v1632 = vsel %vm457, %v1553, 0
      %v1635 = vsel %vm457, %v1554, 0
      %v1638 = vsel %vm457, %v1555, 0
      %v1641 = vsel %vm457, %v1556, 0
      %v1644 = vsel %vm457, %v1557, 0
      %v1647 = vsel %vm457, %v1558, 0
      %v1650 = vsel %vm457, %v1559, 0
      %v1653 = vsel %vm457, %v1560, 0
      %v1656 = vsel %vm457, %v1561, 0
      %v1659 = vsel %vm457, %v1562, 0
      %v1662 = vsel %vm522, %v1564, 0
      %1664 = vmatprep.subr.mxu0 0.0
      %1665 = vmatpush1.msra.mxu0 %v1662
      %1666 = vmatprep.subr.mxu0 0.0
      %1667 = vmatpush1.msra.mxu0 0.0
      %1668 = vmatprep.subr.mxu0 0.0
      %1669 = vmatpush1.msra.mxu0 0.0
      %1670 = vmatprep.subr.mxu0 0.0
      %1671 = vmatpush1.msra.mxu0 0.0
      %1672 = vmatprep.subr.mxu0 0.0
      %1673 = vmatpush1.msra.mxu0 0.0
      %1674 = vmatprep.subr.mxu0 0.0
      %1675 = vmatpush1.msra.mxu0 0.0
      %1676 = vmatprep.subr.mxu0 0.0
      %1677 = vmatpush1.msra.mxu0 0.0
      %1678 = vmatprep.subr.mxu0 0.0
      %1679 = vmatpush1.msra.mxu0 0.0
      %1680 = vmatprep.subr.mxu0 0.0
      %1681 = vmatpush1.msra.mxu0 0.0
      %1682 = vmatprep.subr.mxu0 0.0
      %1683 = vmatpush1.msra.mxu0 0.0
      %1684 = vmatprep.subr.mxu0 0.0
      %1685 = vmatpush1.msra.mxu0 0.0
      %1686 = vmatprep.subr.mxu0 0.0
      %1687 = vmatpush1.msra.mxu0 0.0
      %1688 = vmatprep.subr.mxu0 0.0
      %1689 = vmatpush1.msra.mxu0 0.0
      %1690 = vmatprep.subr.mxu0 0.0
      %1691 = vmatpush1.msra.mxu0 0.0
      %1692 = vmatprep.subr.mxu0 0.0
      %1693 = vmatpush1.msra.mxu0 0.0
      %1694 = vmatprep.subr.mxu0 0.0
      %1695 = vmatpush1.msra.mxu0 0.0
      %1696 = vmatprep.subr.mxu0 0.0
      %1697 = vmatpush1.msra.mxu0 0.0
      %1698 = vmatprep.subr.mxu0 0.0
      %1699 = vmatpush1.msra.mxu0 0.0
      %1700 = vmatprep.subr.mxu0 0.0
      %1701 = vmatpush1.msra.mxu0 0.0
      %1702 = vmatprep.subr.mxu0 0.0
      %1703 = vmatpush1.msra.mxu0 0.0
      %1704 = vmatprep.subr.mxu0 0.0
      %1705 = vmatpush1.msra.mxu0 0.0
      %1706 = vmatprep.subr.mxu0 0.0
      %1707 = vmatpush1.msra.mxu0 0.0
      %1708 = vmatprep.subr.mxu0 0.0
      %1709 = vmatpush1.msra.mxu0 0.0
      %1710 = vmatprep.subr.mxu0 0.0
      %1711 = vmatpush1.msra.mxu0 0.0
      %1712 = vmatprep.subr.mxu0 0.0
      %1713 = vmatpush1.msra.mxu0 0.0
      %1714 = vmatprep.subr.mxu0 0.0
      %1715 = vmatpush1.msra.mxu0 0.0
      %1716 = vmatprep.subr.mxu0 0.0
      %1717 = vmatpush1.msra.mxu0 0.0
      %1718 = vmatprep.subr.mxu0 0.0
      %1719 = vmatpush1.msra.mxu0 0.0
      %1720 = vmatprep.subr.mxu0 0.0
      %1721 = vmatpush1.msra.mxu0 0.0
      %1722 = vmatprep.subr.mxu0 0.0
      %1723 = vmatpush1.msra.mxu0 0.0
      %1724 = vmatprep.subr.mxu0 0.0
      %1725 = vmatpush1.msra.mxu0 0.0
      %1726 = vmatprep.subr.mxu0 0.0
      %1727 = vmatpush1.msra.mxu0 0.0
      %1728 = vmatprep.mubr.f32.mxu0 0.0
      %1729 = vmatmul.mubr.f32.gmra.mrb[0].mxu0 %v1566
      %v1730 = vpop.f32.mrb[0].mxu0
      %v1731 = vadd.f32 0.0, %v1730
      %v1732 = vpop.f32.mrb[0].mxu0
      %1733 = vmatprep.mubr.f32.mxu0 0.0
      %1734 = vmatmul.mubr.f32.gmra.mrb[0].mxu0 %v1569
      %v1735 = vpop.f32.mrb[0].mxu0
      %v1736 = vadd.f32 0.0, %v1735
      %v1737 = vpop.f32.mrb[0].mxu0
      %1738 = vmatprep.mubr.f32.mxu0 0.0
      %1739 = vmatmul.mubr.f32.gmra.mrb[0].mxu0 %v1572
      %v1740 = vpop.f32.mrb[0].mxu0
      %v1741 = vadd.f32 0.0, %v1740
      %v1742 = vpop.f32.mrb[0].mxu0
      %1743 = vmatprep.mubr.f32.mxu0 0.0
      %1744 = vmatmul.mubr.f32.gmra.mrb[0].mxu0 %v1575
      %v1745 = vpop.f32.mrb[0].mxu0
      %v1746 = vadd.f32 0.0, %v1745
      %v1747 = vpop.f32.mrb[0].mxu0
      %1748 = vmatprep.mubr.f32.mxu0 0.0
      %1749 = vmatmul.mubr.f32.gmra.mrb[0].mxu0 %v1578
      %v1750 = vpop.f32.mrb[0].mxu0
      %v1751 = vadd.f32 0.0, %v1750
      %v1752 = vpop.f32.mrb[0].mxu0
      %1753 = vmatprep.mubr.f32.mxu0 0.0
      %1754 = vmatmul.mubr.f32.gmra.mrb[0].mxu0 %v1581
      %v1755 = vpop.f32.mrb[0].mxu0
      %v1756 = vadd.f32 0.0, %v1755
      %v1757 = vpop.f32.mrb[0].mxu0
      %1758 = vmatprep.mubr.f32.mxu0 0.0
      %1759 = vmatmul.mubr.f32.gmra.mrb[0].mxu0 %v1584
      %v1760 = vpop.f32.mrb[0].mxu0
      %v1761 = vadd.f32 0.0, %v1760
      %v1762 = vpop.f32.mrb[0].mxu0
      %1763 = vmatprep.mubr.f32.mxu0 0.0
      %1764 = vmatmul.mubr.f32.gmra.mrb[0].mxu0 %v1587
      %v1765 = vpop.f32.mrb[0].mxu0
      %v1766 = vadd.f32 0.0, %v1765
      %v1767 = vpop.f32.mrb[0].mxu0
      %1768 = vmatprep.mubr.f32.mxu0 0.0
      %1769 = vmatmul.mubr.f32.gmra.mrb[0].mxu0 %v1590
      %v1770 = vpop.f32.mrb[0].mxu0
      %v1771 = vadd.f32 0.0, %v1770
      %v1772 = vpop.f32.mrb[0].mxu0
      %1773 = vmatprep.mubr.f32.mxu0 0.0
      %1774 = vmatmul.mubr.f32.gmra.mrb[0].mxu0 %v1593
      %v1775 = vpop.f32.mrb[0].mxu0
      %v1776 = vadd.f32 0.0, %v1775
      %v1777 = vpop.f32.mrb[0].mxu0
      %1778 = vmatprep.mubr.f32.mxu0 0.0
      %1779 = vmatmul.mubr.f32.gmra.mrb[0].mxu0 %v1596
      %v1780 = vpop.f32.mrb[0].mxu0
      %v1781 = vadd.f32 0.0, %v1780
      %v1782 = vpop.f32.mrb[0].mxu0
      %1783 = vmatprep.mubr.f32.mxu0 0.0
      %1784 = vmatmul.mubr.f32.gmra.mrb[0].mxu0 %v1599
      %v1785 = vpop.f32.mrb[0].mxu0
      %v1786 = vadd.f32 0.0, %v1785
      %v1787 = vpop.f32.mrb[0].mxu0
      %1788 = vmatprep.mubr.f32.mxu0 0.0
      %1789 = vmatmul.mubr.f32.gmra.mrb[0].mxu0 %v1602
      %v1790 = vpop.f32.mrb[0].mxu0
      %v1791 = vadd.f32 0.0, %v1790
      %v1792 = vpop.f32.mrb[0].mxu0
      %1793 = vmatprep.mubr.f32.mxu0 0.0
      %1794 = vmatmul.mubr.f32.gmra.mrb[0].mxu0 %v1605
      %v1795 = vpop.f32.mrb[0].mxu0
      %v1796 = vadd.f32 0.0, %v1795
      %v1797 = vpop.f32.mrb[0].mxu0
      %1798 = vmatprep.mubr.f32.mxu0 0.0
      %1799 = vmatmul.mubr.f32.gmra.mrb[0].mxu0 %v1608
      %v1800 = vpop.f32.mrb[0].mxu0
      %v1801 = vadd.f32 0.0, %v1800
      %v1802 = vpop.f32.mrb[0].mxu0
      %1803 = vmatprep.mubr.f32.mxu0 0.0
      %1804 = vmatmul.mubr.f32.gmra.mrb[0].mxu0 %v1611
      %v1805 = vpop.f32.mrb[0].mxu0
      %v1806 = vadd.f32 0.0, %v1805
      %v1807 = vpop.f32.mrb[0].mxu0
      %1808 = vmatprep.mubr.f32.mxu0 0.0
      %1809 = vmatmul.mubr.f32.gmra.mrb[0].mxu0 %v1614
      %v1810 = vpop.f32.mrb[0].mxu0
      %v1811 = vadd.f32 0.0, %v1810
      %v1812 = vpop.f32.mrb[0].mxu0
      %1813 = vmatprep.mubr.f32.mxu0 0.0
      %1814 = vmatmul.mubr.f32.gmra.mrb[0].mxu0 %v1617
      %v1815 = vpop.f32.mrb[0].mxu0
      %v1816 = vadd.f32 0.0, %v1815
      %v1817 = vpop.f32.mrb[0].mxu0
      %1818 = vmatprep.mubr.f32.mxu0 0.0
      %1819 = vmatmul.mubr.f32.gmra.mrb[0].mxu0 %v1620
      %v1820 = vpop.f32.mrb[0].mxu0
      %v1821 = vadd.f32 0.0, %v1820
      %v1822 = vpop.f32.mrb[0].mxu0
      %1823 = vmatprep.mubr.f32.mxu0 0.0
      %1824 = vmatmul.mubr.f32.gmra.mrb[0].mxu0 %v1623
      %v1825 = vpop.f32.mrb[0].mxu0
      %v1826 = vadd.f32 0.0, %v1825
      %v1827 = vpop.f32.mrb[0].mxu0
      %1828 = vmatprep.mubr.f32.mxu0 0.0
      %1829 = vmatmul.mubr.f32.gmra.mrb[0].mxu0 %v1626
      %v1830 = vpop.f32.mrb[0].mxu0
      %v1831 = vadd.f32 0.0, %v1830
      %v1832 = vpop.f32.mrb[0].mxu0
      %1833 = vmatprep.mubr.f32.mxu0 0.0
      %1834 = vmatmul.mubr.f32.gmra.mrb[0].mxu0 %v1629
      %v1835 = vpop.f32.mrb[0].mxu0
      %v1836 = vadd.f32 0.0, %v1835
      %v1837 = vpop.f32.mrb[0].mxu0
      %1838 = vmatprep.mubr.f32.mxu0 0.0
      %1839 = vmatmul.mubr.f32.gmra.mrb[0].mxu0 %v1632
      %v1840 = vpop.f32.mrb[0].mxu0
      %v1841 = vadd.f32 0.0, %v1840
      %v1842 = vpop.f32.mrb[0].mxu0
      %1843 = vmatprep.mubr.f32.mxu0 0.0
      %1844 = vmatmul.mubr.f32.gmra.mrb[0].mxu0 %v1635
      %v1845 = vpop.f32.mrb[0].mxu0
      %v1846 = vadd.f32 0.0, %v1845
      %v1847 = vpop.f32.mrb[0].mxu0
      %1848 = vmatprep.mubr.f32.mxu0 0.0
      %1849 = vmatmul.mubr.f32.gmra.mrb[0].mxu0 %v1638
      %v1850 = vpop.f32.mrb[0].mxu0
      %v1851 = vadd.f32 0.0, %v1850
      %v1852 = vpop.f32.mrb[0].mxu0
      %1853 = vmatprep.mubr.f32.mxu0 0.0
      %1854 = vmatmul.mubr.f32.gmra.mrb[0].mxu0 %v1641
      %v1855 = vpop.f32.mrb[0].mxu0
      %v1856 = vadd.f32 0.0, %v1855
      %v1857 = vpop.f32.mrb[0].mxu0
      %1858 = vmatprep.mubr.f32.mxu0 0.0
      %1859 = vmatmul.mubr.f32.gmra.mrb[0].mxu0 %v1644
      %v1860 = vpop.f32.mrb[0].mxu0
      %v1861 = vadd.f32 0.0, %v1860
      %v1862 = vpop.f32.mrb[0].mxu0
      %1863 = vmatprep.mubr.f32.mxu0 0.0
      %1864 = vmatmul.mubr.f32.gmra.mrb[0].mxu0 %v1647
      %v1865 = vpop.f32.mrb[0].mxu0
      %v1866 = vadd.f32 0.0, %v1865
      %v1867 = vpop.f32.mrb[0].mxu0
      %1868 = vmatprep.mubr.f32.mxu0 0.0
      %1869 = vmatmul.mubr.f32.gmra.mrb[0].mxu0 %v1650
      %v1870 = vpop.f32.mrb[0].mxu0
      %v1871 = vadd.f32 0.0, %v1870
      %v1872 = vpop.f32.mrb[0].mxu0
      %1873 = vmatprep.mubr.f32.mxu0 0.0
      %1874 = vmatmul.mubr.f32.gmra.mrb[0].mxu0 %v1653
      %v1875 = vpop.f32.mrb[0].mxu0
      %v1876 = vadd.f32 0.0, %v1875
      %v1877 = vpop.f32.mrb[0].mxu0
      %1878 = vmatprep.mubr.f32.mxu0 0.0
      %1879 = vmatmul.mubr.f32.gmra.mrb[0].mxu0 %v1656
      %v1880 = vpop.f32.mrb[0].mxu0
      %v1881 = vadd.f32 0.0, %v1880
      %v1882 = vpop.f32.mrb[0].mxu0
      %1883 = vmatprep.mubr.f32.mxu0 0.0
      %1884 = vmatmul.mubr.f32.gmra.mrb[0].mxu0 %v1659
      %v1885 = vpop.f32.mrb[0].mxu0
      %v1886 = vadd.f32 0.0, %v1885
      %v1887 = vpop.f32.mrb[0].mxu0
      %1888 = vdwg.mxu0
      %v1889 = vadd.f32 %v1466, %v1731
      %v1890 = vadd.f32 %v1467, %v1736
      %v1891 = vadd.f32 %v1468, %v1741
      %v1892 = vadd.f32 %v1469, %v1746
      %v1893 = vadd.f32 %v1470, %v1751
      %v1894 = vadd.f32 %v1471, %v1756
      %v1895 = vadd.f32 %v1472, %v1761
      %v1896 = vadd.f32 %v1473, %v1766
      %v1897 = vadd.f32 %v1474, %v1771
      %v1898 = vadd.f32 %v1475, %v1776
      %v1899 = vadd.f32 %v1476, %v1781
      %v1900 = vadd.f32 %v1477, %v1786
      %v1901 = vadd.f32 %v1478, %v1791
      %v1902 = vadd.f32 %v1479, %v1796
      %v1903 = vadd.f32 %v1480, %v1801
      %v1904 = vadd.f32 %v1481, %v1806
      %v1905 = vadd.f32 %v1482, %v1811
      %v1906 = vadd.f32 %v1483, %v1816
      %v1907 = vadd.f32 %v1484, %v1821
      %v1908 = vadd.f32 %v1485, %v1826
      %v1909 = vadd.f32 %v1486, %v1831
      %v1910 = vadd.f32 %v1487, %v1836
      %v1911 = vadd.f32 %v1488, %v1841
      %v1912 = vadd.f32 %v1489, %v1846
      %v1913 = vadd.f32 %v1490, %v1851
      %v1914 = vadd.f32 %v1491, %v1856
      %v1915 = vadd.f32 %v1492, %v1861
      %v1916 = vadd.f32 %v1493, %v1866
      %v1917 = vadd.f32 %v1494, %v1871
      %v1918 = vadd.f32 %v1495, %v1876
      %v1919 = vadd.f32 %v1496, %v1881
      %v1920 = vadd.f32 %v1497, %v1886
      %v1921 = vld [vmem:[%s1498] sm:$0xf]
      %v1922 = vld [vmem:[%s1498 + $0x4] sm:$0xf]
      %v1923 = vld [vmem:[%s1498 + $0x8] sm:$0x1]
      %v1924 = vld [vmem:[%s1498 + $0xc] sm:$0xf]
      %v1925 = vld [vmem:[%s1498 + $0x10] sm:$0xf]
      %v1926 = vld [vmem:[%s1498 + $0x14] sm:$0x1]
      %v1927 = vld [vmem:[%s1498 + $0x18] sm:$0xf]
      %v1928 = vld [vmem:[%s1498 + $0x1c] sm:$0xf]
      %v1929 = vld [vmem:[%s1498 + $0x20] sm:$0x1]
      %v1930 = vld [vmem:[%s1498 + $0x24] sm:$0xf]
      %v1931 = vld [vmem:[%s1498 + $0x28] sm:$0xf]
      %v1932 = vld [vmem:[%s1498 + $0x2c] sm:$0x1]
      %v1933 = vld [vmem:[%s1498 + $0x30] sm:$0xf]
      %v1934 = vld [vmem:[%s1498 + $0x34] sm:$0xf]
      %v1935 = vld [vmem:[%s1498 + $0x38] sm:$0x1]
      %v1936 = vld [vmem:[%s1498 + $0x3c] sm:$0xf]
      %v1937 = vld [vmem:[%s1498 + $0x40] sm:$0xf]
      %v1938 = vld [vmem:[%s1498 + $0x44] sm:$0x1]
      %v1939 = vld [vmem:[%s1498 + $0x48] sm:$0xf]
      %v1940 = vld [vmem:[%s1498 + $0x4c] sm:$0xf]
      %v1941 = vld [vmem:[%s1498 + $0x50] sm:$0x1]
      %v1942 = vld [vmem:[%s1498 + $0x54] sm:$0xf]
      %v1943 = vld [vmem:[%s1498 + $0x58] sm:$0xf]
      %v1944 = vld [vmem:[%s1498 + $0x5c] sm:$0x1]
      %v1945 = vld [vmem:[%s1498 + $0x60] sm:$0xf]
      %v1946 = vld [vmem:[%s1498 + $0x64] sm:$0xf]
      %v1947 = vld [vmem:[%s1498 + $0x68] sm:$0x1]
      %v1948 = vld [vmem:[%s1498 + $0x6c] sm:$0xf]
      %v1949 = vld [vmem:[%s1498 + $0x70] sm:$0xf]
      %v1950 = vld [vmem:[%s1498 + $0x74] sm:$0x1]
      %v1951 = vld [vmem:[%s1498 + $0x78] sm:$0xf]
      %v1952 = vld [vmem:[%s1498 + $0x7c] sm:$0xf]
      %v1953 = vld [vmem:[%s1498 + $0x80] sm:$0x1]
      %v1954 = vld [vmem:[%s1498 + $0x84] sm:$0xf]
      %v1955 = vld [vmem:[%s1498 + $0x88] sm:$0xf]
      %v1956 = vld [vmem:[%s1498 + $0x8c] sm:$0x1]
      %v1957 = vld [vmem:[%s1498 + $0x90] sm:$0xf]
      %v1958 = vld [vmem:[%s1498 + $0x94] sm:$0xf]
      %v1959 = vld [vmem:[%s1498 + $0x98] sm:$0x1]
      %v1960 = vld [vmem:[%s1498 + $0x9c] sm:$0xf]
      %v1961 = vld [vmem:[%s1498 + $0xa0] sm:$0xf]
      %v1962 = vld [vmem:[%s1498 + $0xa4] sm:$0x1]
      %v1963 = vld [vmem:[%s1498 + $0xa8] sm:$0xf]
      %v1964 = vld [vmem:[%s1498 + $0xac] sm:$0xf]
      %v1965 = vld [vmem:[%s1498 + $0xb0] sm:$0x1]
      %v1966 = vld [vmem:[%s1498 + $0xb4] sm:$0xf]
      %v1967 = vld [vmem:[%s1498 + $0xb8] sm:$0xf]
      %v1968 = vld [vmem:[%s1498 + $0xbc] sm:$0x1]
      %v1969 = vunpack.c.l.bf16 %v1921
      %v1970 = vunpack.c.l.bf16 %v1922
      %v1971 = vunpack.c.l.bf16 %v1923
      %v1972 = vunpack.c.l.bf16 %v1924
      %v1973 = vunpack.c.l.bf16 %v1925
      %v1974 = vunpack.c.l.bf16 %v1926
      %v1975 = vunpack.c.l.bf16 %v1927
      %v1976 = vunpack.c.l.bf16 %v1928
      %v1977 = vunpack.c.l.bf16 %v1929
      %v1978 = vunpack.c.l.bf16 %v1930
      %v1979 = vunpack.c.l.bf16 %v1931
      %v1980 = vunpack.c.l.bf16 %v1932
      %v1981 = vunpack.c.l.bf16 %v1933
      %v1982 = vunpack.c.l.bf16 %v1934
      %v1983 = vunpack.c.l.bf16 %v1935
      %v1984 = vunpack.c.l.bf16 %v1936
      %v1985 = vunpack.c.l.bf16 %v1937
      %v1986 = vunpack.c.l.bf16 %v1938
      %v1987 = vunpack.c.l.bf16 %v1939
      %v1988 = vunpack.c.l.bf16 %v1940
      %v1989 = vunpack.c.l.bf16 %v1941
      %v1990 = vunpack.c.l.bf16 %v1942
      %v1991 = vunpack.c.l.bf16 %v1943
      %v1992 = vunpack.c.l.bf16 %v1944
      %v1993 = vunpack.c.l.bf16 %v1945
      %v1994 = vunpack.c.l.bf16 %v1946
      %v1995 = vunpack.c.l.bf16 %v1947
      %v1996 = vunpack.c.l.bf16 %v1948
      %v1997 = vunpack.c.l.bf16 %v1949
      %v1998 = vunpack.c.l.bf16 %v1950
      %v1999 = vunpack.c.l.bf16 %v1951
      %v2000 = vunpack.c.l.bf16 %v1952
      %v2001 = vunpack.c.l.bf16 %v1953
      %v2002 = vunpack.c.l.bf16 %v1954
      %v2003 = vunpack.c.l.bf16 %v1955
      %v2004 = vunpack.c.l.bf16 %v1956
      %v2005 = vunpack.c.l.bf16 %v1957
      %v2006 = vunpack.c.l.bf16 %v1958
      %v2007 = vunpack.c.l.bf16 %v1959
      %v2008 = vunpack.c.l.bf16 %v1960
      %v2009 = vunpack.c.l.bf16 %v1961
      %v2010 = vunpack.c.l.bf16 %v1962
      %v2011 = vunpack.c.l.bf16 %v1963
      %v2012 = vunpack.c.l.bf16 %v1964
      %v2013 = vunpack.c.l.bf16 %v1965
      %v2014 = vunpack.c.l.bf16 %v1966
      %v2015 = vunpack.c.l.bf16 %v1967
      %v2016 = vunpack.c.l.bf16 %v1968
      %v2065 = vrot.slane %v1969, 1
      %v2066 = vrot.slane %v1970, 1
      %v2067 = vsel %vm374, %v2065, %v2066
      %v2068 = vrot.slane %v1971, 1
      %v2069 = vsel %vm374, %v2066, %v2068
      %v2070 = vrot.slane %v1972, 1
      %v2071 = vrot.slane %v1973, 1
      %v2072 = vsel %vm374, %v2070, %v2071
      %v2073 = vrot.slane %v1974, 1
      %v2074 = vsel %vm374, %v2071, %v2073
      %v2075 = vrot.slane %v1975, 1
      %v2076 = vrot.slane %v1976, 1
      %v2077 = vsel %vm374, %v2075, %v2076
      %v2078 = vrot.slane %v1977, 1
      %v2079 = vsel %vm374, %v2076, %v2078
      %v2080 = vrot.slane %v1978, 1
      %v2081 = vrot.slane %v1979, 1
      %v2082 = vsel %vm374, %v2080, %v2081
      %v2083 = vrot.slane %v1980, 1
      %v2084 = vsel %vm374, %v2081, %v2083
      %v2085 = vrot.slane %v1981, 1
      %v2086 = vrot.slane %v1982, 1
      %v2087 = vsel %vm374, %v2085, %v2086
      %v2088 = vrot.slane %v1983, 1
      %v2089 = vsel %vm374, %v2086, %v2088
      %v2090 = vrot.slane %v1984, 1
      %v2091 = vrot.slane %v1985, 1
      %v2092 = vsel %vm374, %v2090, %v2091
      %v2093 = vrot.slane %v1986, 1
      %v2094 = vsel %vm374, %v2091, %v2093
      %v2095 = vrot.slane %v1987, 1
      %v2096 = vrot.slane %v1988, 1
      %v2097 = vsel %vm374, %v2095, %v2096
      %v2098 = vrot.slane %v1989, 1
      %v2099 = vsel %vm374, %v2096, %v2098
      %v2100 = vrot.slane %v1990, 1
      %v2101 = vrot.slane %v1991, 1
      %v2102 = vsel %vm374, %v2100, %v2101
      %v2103 = vrot.slane %v1992, 1
      %v2104 = vsel %vm374, %v2101, %v2103
      %v2105 = vrot.slane %v1993, 1
      %v2106 = vrot.slane %v1994, 1
      %v2107 = vsel %vm374, %v2105, %v2106
      %v2108 = vrot.slane %v1995, 1
      %v2109 = vsel %vm374, %v2106, %v2108
      %v2110 = vrot.slane %v1996, 1
      %v2111 = vrot.slane %v1997, 1
      %v2112 = vsel %vm374, %v2110, %v2111
      %v2113 = vrot.slane %v1998, 1
      %v2114 = vsel %vm374, %v2111, %v2113
      %v2115 = vrot.slane %v1999, 1
      %v2116 = vrot.slane %v2000, 1
      %v2117 = vsel %vm374, %v2115, %v2116
      %v2118 = vrot.slane %v2001, 1
      %v2119 = vsel %vm374, %v2116, %v2118
      %v2120 = vrot.slane %v2002, 1
      %v2121 = vrot.slane %v2003, 1
      %v2122 = vsel %vm374, %v2120, %v2121
      %v2123 = vrot.slane %v2004, 1
      %v2124 = vsel %vm374, %v2121, %v2123
      %v2125 = vrot.slane %v2005, 1
      %v2126 = vrot.slane %v2006, 1
      %v2127 = vsel %vm374, %v2125, %v2126
      %v2128 = vrot.slane %v2007, 1
      %v2129 = vsel %vm374, %v2126, %v2128
      %v2130 = vrot.slane %v2008, 1
      %v2131 = vrot.slane %v2009, 1
      %v2132 = vsel %vm374, %v2130, %v2131
      %v2133 = vrot.slane %v2010, 1
      %v2134 = vsel %vm374, %v2131, %v2133
      %v2135 = vrot.slane %v2011, 1
      %v2136 = vrot.slane %v2012, 1
      %v2137 = vsel %vm374, %v2135, %v2136
      %v2138 = vrot.slane %v2013, 1
      %v2139 = vsel %vm374, %v2136, %v2138
      %v2140 = vrot.slane %v2014, 1
      %v2141 = vrot.slane %v2015, 1
      %v2142 = vsel %vm374, %v2140, %v2141
      %v2143 = vrot.slane %v2016, 1
      %v2144 = vsel %vm374, %v2141, %v2143
      %s2145 = scalar_lea.vmem %s1, 16
      %v2146 = vld [vmem:[%s2145] sm:$0x7]
      %v2147 = vsel %vm457, %v2067, 0
      %v2149 = vsel %vm457, %v2069, 0
      %v2151 = vsel %vm457, %v2072, 0
      %v2153 = vsel %vm457, %v2074, 0
      %v2155 = vsel %vm457, %v2077, 0
      %v2157 = vsel %vm457, %v2079, 0
      %v2159 = vsel %vm457, %v2082, 0
      %v2161 = vsel %vm457, %v2084, 0
      %v2163 = vsel %vm457, %v2087, 0
      %v2165 = vsel %vm457, %v2089, 0
      %v2167 = vsel %vm457, %v2092, 0
      %v2169 = vsel %vm457, %v2094, 0
      %v2171 = vsel %vm457, %v2097, 0
      %v2173 = vsel %vm457, %v2099, 0
      %v2175 = vsel %vm457, %v2102, 0
      %v2177 = vsel %vm457, %v2104, 0
      %v2179 = vsel %vm457, %v2107, 0
      %v2181 = vsel %vm457, %v2109, 0
      %v2183 = vsel %vm457, %v2112, 0
      %v2185 = vsel %vm457, %v2114, 0
      %v2187 = vsel %vm457, %v2117, 0
      %v2189 = vsel %vm457, %v2119, 0
      %v2191 = vsel %vm457, %v2122, 0
      %v2193 = vsel %vm457, %v2124, 0
      %v2195 = vsel %vm457, %v2127, 0
      %v2197 = vsel %vm457, %v2129, 0
      %v2199 = vsel %vm457, %v2132, 0
      %v2201 = vsel %vm457, %v2134, 0
      %v2203 = vsel %vm457, %v2137, 0
      %v2205 = vsel %vm457, %v2139, 0
      %v2207 = vsel %vm457, %v2142, 0
      %v2209 = vsel %vm457, %v2144, 0
      %v2212 = vsel %vm522, %v2146, 0
      %2214 = vmatprep.subr.mxu0 0.0
      %2215 = vmatpush1.msra.mxu0 %v2212
      %2216 = vmatprep.subr.mxu0 0.0
      %2217 = vmatpush1.msra.mxu0 0.0
      %2218 = vmatprep.subr.mxu0 0.0
      %2219 = vmatpush1.msra.mxu0 0.0
      %2220 = vmatprep.subr.mxu0 0.0
      %2221 = vmatpush1.msra.mxu0 0.0
      %2222 = vmatprep.subr.mxu0 0.0
      %2223 = vmatpush1.msra.mxu0 0.0
      %2224 = vmatprep.subr.mxu0 0.0
      %2225 = vmatpush1.msra.mxu0 0.0
      %2226 = vmatprep.subr.mxu0 0.0
      %2227 = vmatpush1.msra.mxu0 0.0
      %2228 = vmatprep.subr.mxu0 0.0
      %2229 = vmatpush1.msra.mxu0 0.0
      %2230 = vmatprep.subr.mxu0 0.0
      %2231 = vmatpush1.msra.mxu0 0.0
      %2232 = vmatprep.subr.mxu0 0.0
      %2233 = vmatpush1.msra.mxu0 0.0
      %2234 = vmatprep.subr.mxu0 0.0
      %2235 = vmatpush1.msra.mxu0 0.0
      %2236 = vmatprep.subr.mxu0 0.0
      %2237 = vmatpush1.msra.mxu0 0.0
      %2238 = vmatprep.subr.mxu0 0.0
      %2239 = vmatpush1.msra.mxu0 0.0
      %2240 = vmatprep.subr.mxu0 0.0
      %2241 = vmatpush1.msra.mxu0 0.0
      %2242 = vmatprep.subr.mxu0 0.0
      %2243 = vmatpush1.msra.mxu0 0.0
      %2244 = vmatprep.subr.mxu0 0.0
      %2245 = vmatpush1.msra.mxu0 0.0
      %2246 = vmatprep.subr.mxu0 0.0
      %2247 = vmatpush1.msra.mxu0 0.0
      %2248 = vmatprep.subr.mxu0 0.0
      %2249 = vmatpush1.msra.mxu0 0.0
      %2250 = vmatprep.subr.mxu0 0.0
      %2251 = vmatpush1.msra.mxu0 0.0
      %2252 = vmatprep.subr.mxu0 0.0
      %2253 = vmatpush1.msra.mxu0 0.0
      %2254 = vmatprep.subr.mxu0 0.0
      %2255 = vmatpush1.msra.mxu0 0.0
      %2256 = vmatprep.subr.mxu0 0.0
      %2257 = vmatpush1.msra.mxu0 0.0
      %2258 = vmatprep.subr.mxu0 0.0
      %2259 = vmatpush1.msra.mxu0 0.0
      %2260 = vmatprep.subr.mxu0 0.0
      %2261 = vmatpush1.msra.mxu0 0.0
      %2262 = vmatprep.subr.mxu0 0.0
      %2263 = vmatpush1.msra.mxu0 0.0
      %2264 = vmatprep.subr.mxu0 0.0
      %2265 = vmatpush1.msra.mxu0 0.0
      %2266 = vmatprep.subr.mxu0 0.0
      %2267 = vmatpush1.msra.mxu0 0.0
      %2268 = vmatprep.subr.mxu0 0.0
      %2269 = vmatpush1.msra.mxu0 0.0
      %2270 = vmatprep.subr.mxu0 0.0
      %2271 = vmatpush1.msra.mxu0 0.0
      %2272 = vmatprep.subr.mxu0 0.0
      %2273 = vmatpush1.msra.mxu0 0.0
      %2274 = vmatprep.subr.mxu0 0.0
      %2275 = vmatpush1.msra.mxu0 0.0
      %2276 = vmatprep.subr.mxu0 0.0
      %2277 = vmatpush1.msra.mxu0 0.0
      %2278 = vmatprep.mubr.f32.mxu0 0.0
      %2279 = vmatmul.mubr.f32.gmra.mrb[0].mxu0 %v2147
      %v2280 = vpop.f32.mrb[0].mxu0
      %v2281 = vadd.f32 0.0, %v2280
      %v2282 = vpop.f32.mrb[0].mxu0
      %2283 = vmatprep.mubr.f32.mxu0 0.0
      %2284 = vmatmul.mubr.f32.gmra.mrb[0].mxu0 %v2149
      %v2285 = vpop.f32.mrb[0].mxu0
      %v2286 = vadd.f32 0.0, %v2285
      %v2287 = vpop.f32.mrb[0].mxu0
      %2288 = vmatprep.mubr.f32.mxu0 0.0
      %2289 = vmatmul.mubr.f32.gmra.mrb[0].mxu0 %v2151
      %v2290 = vpop.f32.mrb[0].mxu0
      %v2291 = vadd.f32 0.0, %v2290
      %v2292 = vpop.f32.mrb[0].mxu0
      %2293 = vmatprep.mubr.f32.mxu0 0.0
      %2294 = vmatmul.mubr.f32.gmra.mrb[0].mxu0 %v2153
      %v2295 = vpop.f32.mrb[0].mxu0
      %v2296 = vadd.f32 0.0, %v2295
      %v2297 = vpop.f32.mrb[0].mxu0
      %2298 = vmatprep.mubr.f32.mxu0 0.0
      %2299 = vmatmul.mubr.f32.gmra.mrb[0].mxu0 %v2155
      %v2300 = vpop.f32.mrb[0].mxu0
      %v2301 = vadd.f32 0.0, %v2300
      %v2302 = vpop.f32.mrb[0].mxu0
      %2303 = vmatprep.mubr.f32.mxu0 0.0
      %2304 = vmatmul.mubr.f32.gmra.mrb[0].mxu0 %v2157
      %v2305 = vpop.f32.mrb[0].mxu0
      %v2306 = vadd.f32 0.0, %v2305
      %v2307 = vpop.f32.mrb[0].mxu0
      %2308 = vmatprep.mubr.f32.mxu0 0.0
      %2309 = vmatmul.mubr.f32.gmra.mrb[0].mxu0 %v2159
      %v2310 = vpop.f32.mrb[0].mxu0
      %v2311 = vadd.f32 0.0, %v2310
      %v2312 = vpop.f32.mrb[0].mxu0
      %2313 = vmatprep.mubr.f32.mxu0 0.0
      %2314 = vmatmul.mubr.f32.gmra.mrb[0].mxu0 %v2161
      %v2315 = vpop.f32.mrb[0].mxu0
      %v2316 = vadd.f32 0.0, %v2315
      %v2317 = vpop.f32.mrb[0].mxu0
      %2318 = vmatprep.mubr.f32.mxu0 0.0
      %2319 = vmatmul.mubr.f32.gmra.mrb[0].mxu0 %v2163
      %v2320 = vpop.f32.mrb[0].mxu0
      %v2321 = vadd.f32 0.0, %v2320
      %v2322 = vpop.f32.mrb[0].mxu0
      %2323 = vmatprep.mubr.f32.mxu0 0.0
      %2324 = vmatmul.mubr.f32.gmra.mrb[0].mxu0 %v2165
      %v2325 = vpop.f32.mrb[0].mxu0
      %v2326 = vadd.f32 0.0, %v2325
      %v2327 = vpop.f32.mrb[0].mxu0
      %2328 = vmatprep.mubr.f32.mxu0 0.0
      %2329 = vmatmul.mubr.f32.gmra.mrb[0].mxu0 %v2167
      %v2330 = vpop.f32.mrb[0].mxu0
      %v2331 = vadd.f32 0.0, %v2330
      %v2332 = vpop.f32.mrb[0].mxu0
      %2333 = vmatprep.mubr.f32.mxu0 0.0
      %2334 = vmatmul.mubr.f32.gmra.mrb[0].mxu0 %v2169
      %v2335 = vpop.f32.mrb[0].mxu0
      %v2336 = vadd.f32 0.0, %v2335
      %v2337 = vpop.f32.mrb[0].mxu0
      %2338 = vmatprep.mubr.f32.mxu0 0.0
      %2339 = vmatmul.mubr.f32.gmra.mrb[0].mxu0 %v2171
      %v2340 = vpop.f32.mrb[0].mxu0
      %v2341 = vadd.f32 0.0, %v2340
      %v2342 = vpop.f32.mrb[0].mxu0
      %2343 = vmatprep.mubr.f32.mxu0 0.0
      %2344 = vmatmul.mubr.f32.gmra.mrb[0].mxu0 %v2173
      %v2345 = vpop.f32.mrb[0].mxu0
      %v2346 = vadd.f32 0.0, %v2345
      %v2347 = vpop.f32.mrb[0].mxu0
      %2348 = vmatprep.mubr.f32.mxu0 0.0
      %2349 = vmatmul.mubr.f32.gmra.mrb[0].mxu0 %v2175
      %v2350 = vpop.f32.mrb[0].mxu0
      %v2351 = vadd.f32 0.0, %v2350
      %v2352 = vpop.f32.mrb[0].mxu0
      %2353 = vmatprep.mubr.f32.mxu0 0.0
      %2354 = vmatmul.mubr.f32.gmra.mrb[0].mxu0 %v2177
      %v2355 = vpop.f32.mrb[0].mxu0
      %v2356 = vadd.f32 0.0, %v2355
      %v2357 = vpop.f32.mrb[0].mxu0
      %2358 = vmatprep.mubr.f32.mxu0 0.0
      %2359 = vmatmul.mubr.f32.gmra.mrb[0].mxu0 %v2179
      %v2360 = vpop.f32.mrb[0].mxu0
      %v2361 = vadd.f32 0.0, %v2360
      %v2362 = vpop.f32.mrb[0].mxu0
      %2363 = vmatprep.mubr.f32.mxu0 0.0
      %2364 = vmatmul.mubr.f32.gmra.mrb[0].mxu0 %v2181
      %v2365 = vpop.f32.mrb[0].mxu0
      %v2366 = vadd.f32 0.0, %v2365
      %v2367 = vpop.f32.mrb[0].mxu0
      %2368 = vmatprep.mubr.f32.mxu0 0.0
      %2369 = vmatmul.mubr.f32.gmra.mrb[0].mxu0 %v2183
      %v2370 = vpop.f32.mrb[0].mxu0
      %v2371 = vadd.f32 0.0, %v2370
      %v2372 = vpop.f32.mrb[0].mxu0
      %2373 = vmatprep.mubr.f32.mxu0 0.0
      %2374 = vmatmul.mubr.f32.gmra.mrb[0].mxu0 %v2185
      %v2375 = vpop.f32.mrb[0].mxu0
      %v2376 = vadd.f32 0.0, %v2375
      %v2377 = vpop.f32.mrb[0].mxu0
      %2378 = vmatprep.mubr.f32.mxu0 0.0
      %2379 = vmatmul.mubr.f32.gmra.mrb[0].mxu0 %v2187
      %v2380 = vpop.f32.mrb[0].mxu0
      %v2381 = vadd.f32 0.0, %v2380
      %v2382 = vpop.f32.mrb[0].mxu0
      %2383 = vmatprep.mubr.f32.mxu0 0.0
      %2384 = vmatmul.mubr.f32.gmra.mrb[0].mxu0 %v2189
      %v2385 = vpop.f32.mrb[0].mxu0
      %v2386 = vadd.f32 0.0, %v2385
      %v2387 = vpop.f32.mrb[0].mxu0
      %2388 = vmatprep.mubr.f32.mxu0 0.0
      %2389 = vmatmul.mubr.f32.gmra.mrb[0].mxu0 %v2191
      %v2390 = vpop.f32.mrb[0].mxu0
      %v2391 = vadd.f32 0.0, %v2390
      %v2392 = vpop.f32.mrb[0].mxu0
      %2393 = vmatprep.mubr.f32.mxu0 0.0
      %2394 = vmatmul.mubr.f32.gmra.mrb[0].mxu0 %v2193
      %v2395 = vpop.f32.mrb[0].mxu0
      %v2396 = vadd.f32 0.0, %v2395
      %v2397 = vpop.f32.mrb[0].mxu0
      %2398 = vmatprep.mubr.f32.mxu0 0.0
      %2399 = vmatmul.mubr.f32.gmra.mrb[0].mxu0 %v2195
      %v2400 = vpop.f32.mrb[0].mxu0
      %v2401 = vadd.f32 0.0, %v2400
      %v2402 = vpop.f32.mrb[0].mxu0
      %2403 = vmatprep.mubr.f32.mxu0 0.0
      %2404 = vmatmul.mubr.f32.gmra.mrb[0].mxu0 %v2197
      %v2405 = vpop.f32.mrb[0].mxu0
      %v2406 = vadd.f32 0.0, %v2405
      %v2407 = vpop.f32.mrb[0].mxu0
      %2408 = vmatprep.mubr.f32.mxu0 0.0
      %2409 = vmatmul.mubr.f32.gmra.mrb[0].mxu0 %v2199
      %v2410 = vpop.f32.mrb[0].mxu0
      %v2411 = vadd.f32 0.0, %v2410
      %v2412 = vpop.f32.mrb[0].mxu0
      %2413 = vmatprep.mubr.f32.mxu0 0.0
      %2414 = vmatmul.mubr.f32.gmra.mrb[0].mxu0 %v2201
      %v2415 = vpop.f32.mrb[0].mxu0
      %v2416 = vadd.f32 0.0, %v2415
      %v2417 = vpop.f32.mrb[0].mxu0
      %2418 = vmatprep.mubr.f32.mxu0 0.0
      %2419 = vmatmul.mubr.f32.gmra.mrb[0].mxu0 %v2203
      %v2420 = vpop.f32.mrb[0].mxu0
      %v2421 = vadd.f32 0.0, %v2420
      %v2422 = vpop.f32.mrb[0].mxu0
      %2423 = vmatprep.mubr.f32.mxu0 0.0
      %2424 = vmatmul.mubr.f32.gmra.mrb[0].mxu0 %v2205
      %v2425 = vpop.f32.mrb[0].mxu0
      %v2426 = vadd.f32 0.0, %v2425
      %v2427 = vpop.f32.mrb[0].mxu0
      %2428 = vmatprep.mubr.f32.mxu0 0.0
      %2429 = vmatmul.mubr.f32.gmra.mrb[0].mxu0 %v2207
      %v2430 = vpop.f32.mrb[0].mxu0
      %v2431 = vadd.f32 0.0, %v2430
      %v2432 = vpop.f32.mrb[0].mxu0
      %2433 = vmatprep.mubr.f32.mxu0 0.0
      %2434 = vmatmul.mubr.f32.gmra.mrb[0].mxu0 %v2209
      %v2435 = vpop.f32.mrb[0].mxu0
      %v2436 = vadd.f32 0.0, %v2435
      %v2437 = vpop.f32.mrb[0].mxu0
      %2438 = vdwg.mxu0
      %v2439 = vadd.f32 %v1889, %v2281
      %v2440 = vadd.f32 %v1890, %v2286
      %v2441 = vadd.f32 %v1891, %v2291
      %v2442 = vadd.f32 %v1892, %v2296
      %v2443 = vadd.f32 %v1893, %v2301
      %v2444 = vadd.f32 %v1894, %v2306
      %v2445 = vadd.f32 %v1895, %v2311
      %v2446 = vadd.f32 %v1896, %v2316
      %v2447 = vadd.f32 %v1897, %v2321
      %v2448 = vadd.f32 %v1898, %v2326
      %v2449 = vadd.f32 %v1899, %v2331
      %v2450 = vadd.f32 %v1900, %v2336
      %v2451 = vadd.f32 %v1901, %v2341
      %v2452 = vadd.f32 %v1902, %v2346
      %v2453 = vadd.f32 %v1903, %v2351
      %v2454 = vadd.f32 %v1904, %v2356
      %v2455 = vadd.f32 %v1905, %v2361
      %v2456 = vadd.f32 %v1906, %v2366
      %v2457 = vadd.f32 %v1907, %v2371
      %v2458 = vadd.f32 %v1908, %v2376
      %v2459 = vadd.f32 %v1909, %v2381
      %v2460 = vadd.f32 %v1910, %v2386
      %v2461 = vadd.f32 %v1911, %v2391
      %v2462 = vadd.f32 %v1912, %v2396
      %v2463 = vadd.f32 %v1913, %v2401
      %v2464 = vadd.f32 %v1914, %v2406
      %v2465 = vadd.f32 %v1915, %v2411
      %v2466 = vadd.f32 %v1916, %v2416
      %v2467 = vadd.f32 %v1917, %v2421
      %v2468 = vadd.f32 %v1918, %v2426
      %v2469 = vadd.f32 %v1919, %v2431
      %v2470 = vadd.f32 %v1920, %v2436
      %v2471 = vld [vmem:[%s1498] sm:$0xe]
      %v2472 = vld [vmem:[%s1498 + $0xc] sm:$0xe]
      %v2473 = vld [vmem:[%s1498 + $0x18] sm:$0xe]
      %v2474 = vld [vmem:[%s1498 + $0x24] sm:$0xe]
      %v2475 = vld [vmem:[%s1498 + $0x30] sm:$0xe]
      %v2476 = vld [vmem:[%s1498 + $0x3c] sm:$0xe]
      %v2477 = vld [vmem:[%s1498 + $0x48] sm:$0xe]
      %v2478 = vld [vmem:[%s1498 + $0x54] sm:$0xe]
      %v2479 = vld [vmem:[%s1498 + $0x60] sm:$0xe]
      %v2480 = vld [vmem:[%s1498 + $0x6c] sm:$0xe]
      %v2481 = vld [vmem:[%s1498 + $0x78] sm:$0xe]
      %v2482 = vld [vmem:[%s1498 + $0x84] sm:$0xe]
      %v2483 = vld [vmem:[%s1498 + $0x90] sm:$0xe]
      %v2484 = vld [vmem:[%s1498 + $0x9c] sm:$0xe]
      %v2485 = vld [vmem:[%s1498 + $0xa8] sm:$0xe]
      %v2486 = vld [vmem:[%s1498 + $0xb4] sm:$0xe]
      %v2487 = vunpack.c.l.bf16 %v2471
      %v2488 = vunpack.c.l.bf16 %v2472
      %v2489 = vunpack.c.l.bf16 %v2473
      %v2490 = vunpack.c.l.bf16 %v2474
      %v2491 = vunpack.c.l.bf16 %v2475
      %v2492 = vunpack.c.l.bf16 %v2476
      %v2493 = vunpack.c.l.bf16 %v2477
      %v2494 = vunpack.c.l.bf16 %v2478
      %v2495 = vunpack.c.l.bf16 %v2479
      %v2496 = vunpack.c.l.bf16 %v2480
      %v2497 = vunpack.c.l.bf16 %v2481
      %v2498 = vunpack.c.l.bf16 %v2482
      %v2499 = vunpack.c.l.bf16 %v2483
      %v2500 = vunpack.c.l.bf16 %v2484
      %v2501 = vunpack.c.l.bf16 %v2485
      %v2502 = vunpack.c.l.bf16 %v2486
      %v2519 = vrot.slane %v2487, 2
      %v2520 = vrot.slane %v1970, 2
      %v2521 = vsel %vm1091, %v2519, %v2520
      %v2522 = vrot.slane %v1971, 2
      %v2523 = vsel %vm1091, %v2520, %v2522
      %v2524 = vrot.slane %v2488, 2
      %v2525 = vrot.slane %v1973, 2
      %v2526 = vsel %vm1091, %v2524, %v2525
      %v2527 = vrot.slane %v1974, 2
      %v2528 = vsel %vm1091, %v2525, %v2527
      %v2529 = vrot.slane %v2489, 2
      %v2530 = vrot.slane %v1976, 2
      %v2531 = vsel %vm1091, %v2529, %v2530
      %v2532 = vrot.slane %v1977, 2
      %v2533 = vsel %vm1091, %v2530, %v2532
      %v2534 = vrot.slane %v2490, 2
      %v2535 = vrot.slane %v1979, 2
      %v2536 = vsel %vm1091, %v2534, %v2535
      %v2537 = vrot.slane %v1980, 2
      %v2538 = vsel %vm1091, %v2535, %v2537
      %v2539 = vrot.slane %v2491, 2
      %v2540 = vrot.slane %v1982, 2
      %v2541 = vsel %vm1091, %v2539, %v2540
      %v2542 = vrot.slane %v1983, 2
      %v2543 = vsel %vm1091, %v2540, %v2542
      %v2544 = vrot.slane %v2492, 2
      %v2545 = vrot.slane %v1985, 2
      %v2546 = vsel %vm1091, %v2544, %v2545
      %v2547 = vrot.slane %v1986, 2
      %v2548 = vsel %vm1091, %v2545, %v2547
      %v2549 = vrot.slane %v2493, 2
      %v2550 = vrot.slane %v1988, 2
      %v2551 = vsel %vm1091, %v2549, %v2550
      %v2552 = vrot.slane %v1989, 2
      %v2553 = vsel %vm1091, %v2550, %v2552
      %v2554 = vrot.slane %v2494, 2
      %v2555 = vrot.slane %v1991, 2
      %v2556 = vsel %vm1091, %v2554, %v2555
      %v2557 = vrot.slane %v1992, 2
      %v2558 = vsel %vm1091, %v2555, %v2557
      %v2559 = vrot.slane %v2495, 2
      %v2560 = vrot.slane %v1994, 2
      %v2561 = vsel %vm1091, %v2559, %v2560
      %v2562 = vrot.slane %v1995, 2
      %v2563 = vsel %vm1091, %v2560, %v2562
      %v2564 = vrot.slane %v2496, 2
      %v2565 = vrot.slane %v1997, 2
      %v2566 = vsel %vm1091, %v2564, %v2565
      %v2567 = vrot.slane %v1998, 2
      %v2568 = vsel %vm1091, %v2565, %v2567
      %v2569 = vrot.slane %v2497, 2
      %v2570 = vrot.slane %v2000, 2
      %v2571 = vsel %vm1091, %v2569, %v2570
      %v2572 = vrot.slane %v2001, 2
      %v2573 = vsel %vm1091, %v2570, %v2572
      %v2574 = vrot.slane %v2498, 2
      %v2575 = vrot.slane %v2003, 2
      %v2576 = vsel %vm1091, %v2574, %v2575
      %v2577 = vrot.slane %v2004, 2
      %v2578 = vsel %vm1091, %v2575, %v2577
      %v2579 = vrot.slane %v2499, 2
      %v2580 = vrot.slane %v2006, 2
      %v2581 = vsel %vm1091, %v2579, %v2580
      %v2582 = vrot.slane %v2007, 2
      %v2583 = vsel %vm1091, %v2580, %v2582
      %v2584 = vrot.slane %v2500, 2
      %v2585 = vrot.slane %v2009, 2
      %v2586 = vsel %vm1091, %v2584, %v2585
      %v2587 = vrot.slane %v2010, 2
      %v2588 = vsel %vm1091, %v2585, %v2587
      %v2589 = vrot.slane %v2501, 2
      %v2590 = vrot.slane %v2012, 2
      %v2591 = vsel %vm1091, %v2589, %v2590
      %v2592 = vrot.slane %v2013, 2
      %v2593 = vsel %vm1091, %v2590, %v2592
      %v2594 = vrot.slane %v2502, 2
      %v2595 = vrot.slane %v2015, 2
      %v2596 = vsel %vm1091, %v2594, %v2595
      %v2597 = vrot.slane %v2016, 2
      %v2598 = vsel %vm1091, %v2595, %v2597
      %s2599 = scalar_lea.vmem %s1, 20
      %v2600 = vld [vmem:[%s2599] sm:$0x7]
      %v2601 = vsel %vm457, %v2521, 0
      %v2603 = vsel %vm457, %v2523, 0
      %v2605 = vsel %vm457, %v2526, 0
      %v2607 = vsel %vm457, %v2528, 0
      %v2609 = vsel %vm457, %v2531, 0
      %v2611 = vsel %vm457, %v2533, 0
      %v2613 = vsel %vm457, %v2536, 0
      %v2615 = vsel %vm457, %v2538, 0
      %v2617 = vsel %vm457, %v2541, 0
      %v2619 = vsel %vm457, %v2543, 0
      %v2621 = vsel %vm457, %v2546, 0
      %v2623 = vsel %vm457, %v2548, 0
      %v2625 = vsel %vm457, %v2551, 0
      %v2627 = vsel %vm457, %v2553, 0
      %v2629 = vsel %vm457, %v2556, 0
      %v2631 = vsel %vm457, %v2558, 0
      %v2633 = vsel %vm457, %v2561, 0
      %v2635 = vsel %vm457, %v2563, 0
      %v2637 = vsel %vm457, %v2566, 0
      %v2639 = vsel %vm457, %v2568, 0
      %v2641 = vsel %vm457, %v2571, 0
      %v2643 = vsel %vm457, %v2573, 0
      %v2645 = vsel %vm457, %v2576, 0
      %v2647 = vsel %vm457, %v2578, 0
      %v2649 = vsel %vm457, %v2581, 0
      %v2651 = vsel %vm457, %v2583, 0
      %v2653 = vsel %vm457, %v2586, 0
      %v2655 = vsel %vm457, %v2588, 0
      %v2657 = vsel %vm457, %v2591, 0
      %v2659 = vsel %vm457, %v2593, 0
      %v2661 = vsel %vm457, %v2596, 0
      %v2663 = vsel %vm457, %v2598, 0
      %v2666 = vsel %vm522, %v2600, 0
      %2668 = vmatprep.subr.mxu0 0.0
      %2669 = vmatpush1.msra.mxu0 %v2666
      %2670 = vmatprep.subr.mxu0 0.0
      %2671 = vmatpush1.msra.mxu0 0.0
      %2672 = vmatprep.subr.mxu0 0.0
      %2673 = vmatpush1.msra.mxu0 0.0
      %2674 = vmatprep.subr.mxu0 0.0
      %2675 = vmatpush1.msra.mxu0 0.0
      %2676 = vmatprep.subr.mxu0 0.0
      %2677 = vmatpush1.msra.mxu0 0.0
      %2678 = vmatprep.subr.mxu0 0.0
      %2679 = vmatpush1.msra.mxu0 0.0
      %2680 = vmatprep.subr.mxu0 0.0
      %2681 = vmatpush1.msra.mxu0 0.0
      %2682 = vmatprep.subr.mxu0 0.0
      %2683 = vmatpush1.msra.mxu0 0.0
      %2684 = vmatprep.subr.mxu0 0.0
      %2685 = vmatpush1.msra.mxu0 0.0
      %2686 = vmatprep.subr.mxu0 0.0
      %2687 = vmatpush1.msra.mxu0 0.0
      %2688 = vmatprep.subr.mxu0 0.0
      %2689 = vmatpush1.msra.mxu0 0.0
      %2690 = vmatprep.subr.mxu0 0.0
      %2691 = vmatpush1.msra.mxu0 0.0
      %2692 = vmatprep.subr.mxu0 0.0
      %2693 = vmatpush1.msra.mxu0 0.0
      %2694 = vmatprep.subr.mxu0 0.0
      %2695 = vmatpush1.msra.mxu0 0.0
      %2696 = vmatprep.subr.mxu0 0.0
      %2697 = vmatpush1.msra.mxu0 0.0
      %2698 = vmatprep.subr.mxu0 0.0
      %2699 = vmatpush1.msra.mxu0 0.0
      %2700 = vmatprep.subr.mxu0 0.0
      %2701 = vmatpush1.msra.mxu0 0.0
      %2702 = vmatprep.subr.mxu0 0.0
      %2703 = vmatpush1.msra.mxu0 0.0
      %2704 = vmatprep.subr.mxu0 0.0
      %2705 = vmatpush1.msra.mxu0 0.0
      %2706 = vmatprep.subr.mxu0 0.0
      %2707 = vmatpush1.msra.mxu0 0.0
      %2708 = vmatprep.subr.mxu0 0.0
      %2709 = vmatpush1.msra.mxu0 0.0
      %2710 = vmatprep.subr.mxu0 0.0
      %2711 = vmatpush1.msra.mxu0 0.0
      %2712 = vmatprep.subr.mxu0 0.0
      %2713 = vmatpush1.msra.mxu0 0.0
      %2714 = vmatprep.subr.mxu0 0.0
      %2715 = vmatpush1.msra.mxu0 0.0
      %2716 = vmatprep.subr.mxu0 0.0
      %2717 = vmatpush1.msra.mxu0 0.0
      %2718 = vmatprep.subr.mxu0 0.0
      %2719 = vmatpush1.msra.mxu0 0.0
      %2720 = vmatprep.subr.mxu0 0.0
      %2721 = vmatpush1.msra.mxu0 0.0
      %2722 = vmatprep.subr.mxu0 0.0
      %2723 = vmatpush1.msra.mxu0 0.0
      %2724 = vmatprep.subr.mxu0 0.0
      %2725 = vmatpush1.msra.mxu0 0.0
      %2726 = vmatprep.subr.mxu0 0.0
      %2727 = vmatpush1.msra.mxu0 0.0
      %2728 = vmatprep.subr.mxu0 0.0
      %2729 = vmatpush1.msra.mxu0 0.0
      %2730 = vmatprep.subr.mxu0 0.0
      %2731 = vmatpush1.msra.mxu0 0.0
      %2732 = vmatprep.mubr.f32.mxu0 0.0
      %2733 = vmatmul.mubr.f32.gmra.mrb[0].mxu0 %v2601
      %v2734 = vpop.f32.mrb[0].mxu0
      %v2735 = vadd.f32 0.0, %v2734
      %v2736 = vpop.f32.mrb[0].mxu0
      %2737 = vmatprep.mubr.f32.mxu0 0.0
      %2738 = vmatmul.mubr.f32.gmra.mrb[0].mxu0 %v2603
      %v2739 = vpop.f32.mrb[0].mxu0
      %v2740 = vadd.f32 0.0, %v2739
      %v2741 = vpop.f32.mrb[0].mxu0
      %2742 = vmatprep.mubr.f32.mxu0 0.0
      %2743 = vmatmul.mubr.f32.gmra.mrb[0].mxu0 %v2605
      %v2744 = vpop.f32.mrb[0].mxu0
      %v2745 = vadd.f32 0.0, %v2744
      %v2746 = vpop.f32.mrb[0].mxu0
      %2747 = vmatprep.mubr.f32.mxu0 0.0
      %2748 = vmatmul.mubr.f32.gmra.mrb[0].mxu0 %v2607
      %v2749 = vpop.f32.mrb[0].mxu0
      %v2750 = vadd.f32 0.0, %v2749
      %v2751 = vpop.f32.mrb[0].mxu0
      %2752 = vmatprep.mubr.f32.mxu0 0.0
      %2753 = vmatmul.mubr.f32.gmra.mrb[0].mxu0 %v2609
      %v2754 = vpop.f32.mrb[0].mxu0
      %v2755 = vadd.f32 0.0, %v2754
      %v2756 = vpop.f32.mrb[0].mxu0
      %2757 = vmatprep.mubr.f32.mxu0 0.0
      %2758 = vmatmul.mubr.f32.gmra.mrb[0].mxu0 %v2611
      %v2759 = vpop.f32.mrb[0].mxu0
      %v2760 = vadd.f32 0.0, %v2759
      %v2761 = vpop.f32.mrb[0].mxu0
      %2762 = vmatprep.mubr.f32.mxu0 0.0
      %2763 = vmatmul.mubr.f32.gmra.mrb[0].mxu0 %v2613
      %v2764 = vpop.f32.mrb[0].mxu0
      %v2765 = vadd.f32 0.0, %v2764
      %v2766 = vpop.f32.mrb[0].mxu0
      %2767 = vmatprep.mubr.f32.mxu0 0.0
      %2768 = vmatmul.mubr.f32.gmra.mrb[0].mxu0 %v2615
      %v2769 = vpop.f32.mrb[0].mxu0
      %v2770 = vadd.f32 0.0, %v2769
      %v2771 = vpop.f32.mrb[0].mxu0
      %2772 = vmatprep.mubr.f32.mxu0 0.0
      %2773 = vmatmul.mubr.f32.gmra.mrb[0].mxu0 %v2617
      %v2774 = vpop.f32.mrb[0].mxu0
      %v2775 = vadd.f32 0.0, %v2774
      %v2776 = vpop.f32.mrb[0].mxu0
      %2777 = vmatprep.mubr.f32.mxu0 0.0
      %2778 = vmatmul.mubr.f32.gmra.mrb[0].mxu0 %v2619
      %v2779 = vpop.f32.mrb[0].mxu0
      %v2780 = vadd.f32 0.0, %v2779
      %v2781 = vpop.f32.mrb[0].mxu0
      %2782 = vmatprep.mubr.f32.mxu0 0.0
      %2783 = vmatmul.mubr.f32.gmra.mrb[0].mxu0 %v2621
      %v2784 = vpop.f32.mrb[0].mxu0
      %v2785 = vadd.f32 0.0, %v2784
      %v2786 = vpop.f32.mrb[0].mxu0
      %2787 = vmatprep.mubr.f32.mxu0 0.0
      %2788 = vmatmul.mubr.f32.gmra.mrb[0].mxu0 %v2623
      %v2789 = vpop.f32.mrb[0].mxu0
      %v2790 = vadd.f32 0.0, %v2789
      %v2791 = vpop.f32.mrb[0].mxu0
      %2792 = vmatprep.mubr.f32.mxu0 0.0
      %2793 = vmatmul.mubr.f32.gmra.mrb[0].mxu0 %v2625
      %v2794 = vpop.f32.mrb[0].mxu0
      %v2795 = vadd.f32 0.0, %v2794
      %v2796 = vpop.f32.mrb[0].mxu0
      %2797 = vmatprep.mubr.f32.mxu0 0.0
      %2798 = vmatmul.mubr.f32.gmra.mrb[0].mxu0 %v2627
      %v2799 = vpop.f32.mrb[0].mxu0
      %v2800 = vadd.f32 0.0, %v2799
      %v2801 = vpop.f32.mrb[0].mxu0
      %2802 = vmatprep.mubr.f32.mxu0 0.0
      %2803 = vmatmul.mubr.f32.gmra.mrb[0].mxu0 %v2629
      %v2804 = vpop.f32.mrb[0].mxu0
      %v2805 = vadd.f32 0.0, %v2804
      %v2806 = vpop.f32.mrb[0].mxu0
      %2807 = vmatprep.mubr.f32.mxu0 0.0
      %2808 = vmatmul.mubr.f32.gmra.mrb[0].mxu0 %v2631
      %v2809 = vpop.f32.mrb[0].mxu0
      %v2810 = vadd.f32 0.0, %v2809
      %v2811 = vpop.f32.mrb[0].mxu0
      %2812 = vmatprep.mubr.f32.mxu0 0.0
      %2813 = vmatmul.mubr.f32.gmra.mrb[0].mxu0 %v2633
      %v2814 = vpop.f32.mrb[0].mxu0
      %v2815 = vadd.f32 0.0, %v2814
      %v2816 = vpop.f32.mrb[0].mxu0
      %2817 = vmatprep.mubr.f32.mxu0 0.0
      %2818 = vmatmul.mubr.f32.gmra.mrb[0].mxu0 %v2635
      %v2819 = vpop.f32.mrb[0].mxu0
      %v2820 = vadd.f32 0.0, %v2819
      %v2821 = vpop.f32.mrb[0].mxu0
      %2822 = vmatprep.mubr.f32.mxu0 0.0
      %2823 = vmatmul.mubr.f32.gmra.mrb[0].mxu0 %v2637
      %v2824 = vpop.f32.mrb[0].mxu0
      %v2825 = vadd.f32 0.0, %v2824
      %v2826 = vpop.f32.mrb[0].mxu0
      %2827 = vmatprep.mubr.f32.mxu0 0.0
      %2828 = vmatmul.mubr.f32.gmra.mrb[0].mxu0 %v2639
      %v2829 = vpop.f32.mrb[0].mxu0
      %v2830 = vadd.f32 0.0, %v2829
      %v2831 = vpop.f32.mrb[0].mxu0
      %2832 = vmatprep.mubr.f32.mxu0 0.0
      %2833 = vmatmul.mubr.f32.gmra.mrb[0].mxu0 %v2641
      %v2834 = vpop.f32.mrb[0].mxu0
      %v2835 = vadd.f32 0.0, %v2834
      %v2836 = vpop.f32.mrb[0].mxu0
      %2837 = vmatprep.mubr.f32.mxu0 0.0
      %2838 = vmatmul.mubr.f32.gmra.mrb[0].mxu0 %v2643
      %v2839 = vpop.f32.mrb[0].mxu0
      %v2840 = vadd.f32 0.0, %v2839
      %v2841 = vpop.f32.mrb[0].mxu0
      %2842 = vmatprep.mubr.f32.mxu0 0.0
      %2843 = vmatmul.mubr.f32.gmra.mrb[0].mxu0 %v2645
      %v2844 = vpop.f32.mrb[0].mxu0
      %v2845 = vadd.f32 0.0, %v2844
      %v2846 = vpop.f32.mrb[0].mxu0
      %2847 = vmatprep.mubr.f32.mxu0 0.0
      %2848 = vmatmul.mubr.f32.gmra.mrb[0].mxu0 %v2647
      %v2849 = vpop.f32.mrb[0].mxu0
      %v2850 = vadd.f32 0.0, %v2849
      %v2851 = vpop.f32.mrb[0].mxu0
      %2852 = vmatprep.mubr.f32.mxu0 0.0
      %2853 = vmatmul.mubr.f32.gmra.mrb[0].mxu0 %v2649
      %v2854 = vpop.f32.mrb[0].mxu0
      %v2855 = vadd.f32 0.0, %v2854
      %v2856 = vpop.f32.mrb[0].mxu0
      %2857 = vmatprep.mubr.f32.mxu0 0.0
      %2858 = vmatmul.mubr.f32.gmra.mrb[0].mxu0 %v2651
      %v2859 = vpop.f32.mrb[0].mxu0
      %v2860 = vadd.f32 0.0, %v2859
      %v2861 = vpop.f32.mrb[0].mxu0
      %2862 = vmatprep.mubr.f32.mxu0 0.0
      %2863 = vmatmul.mubr.f32.gmra.mrb[0].mxu0 %v2653
      %v2864 = vpop.f32.mrb[0].mxu0
      %v2865 = vadd.f32 0.0, %v2864
      %v2866 = vpop.f32.mrb[0].mxu0
      %2867 = vmatprep.mubr.f32.mxu0 0.0
      %2868 = vmatmul.mubr.f32.gmra.mrb[0].mxu0 %v2655
      %v2869 = vpop.f32.mrb[0].mxu0
      %v2870 = vadd.f32 0.0, %v2869
      %v2871 = vpop.f32.mrb[0].mxu0
      %2872 = vmatprep.mubr.f32.mxu0 0.0
      %2873 = vmatmul.mubr.f32.gmra.mrb[0].mxu0 %v2657
      %v2874 = vpop.f32.mrb[0].mxu0
      %v2875 = vadd.f32 0.0, %v2874
      %v2876 = vpop.f32.mrb[0].mxu0
      %2877 = vmatprep.mubr.f32.mxu0 0.0
      %2878 = vmatmul.mubr.f32.gmra.mrb[0].mxu0 %v2659
      %v2879 = vpop.f32.mrb[0].mxu0
      %v2880 = vadd.f32 0.0, %v2879
      %v2881 = vpop.f32.mrb[0].mxu0
      %2882 = vmatprep.mubr.f32.mxu0 0.0
      %2883 = vmatmul.mubr.f32.gmra.mrb[0].mxu0 %v2661
      %v2884 = vpop.f32.mrb[0].mxu0
      %v2885 = vadd.f32 0.0, %v2884
      %v2886 = vpop.f32.mrb[0].mxu0
      %2887 = vmatprep.mubr.f32.mxu0 0.0
      %2888 = vmatmul.mubr.f32.gmra.mrb[0].mxu0 %v2663
      %v2889 = vpop.f32.mrb[0].mxu0
      %v2890 = vadd.f32 0.0, %v2889
      %v2891 = vpop.f32.mrb[0].mxu0
      %2892 = vdwg.mxu0
      %v2893 = vadd.f32 %v2439, %v2735
      %v2894 = vadd.f32 %v2440, %v2740
      %v2895 = vadd.f32 %v2441, %v2745
      %v2896 = vadd.f32 %v2442, %v2750
      %v2897 = vadd.f32 %v2443, %v2755
      %v2898 = vadd.f32 %v2444, %v2760
      %v2899 = vadd.f32 %v2445, %v2765
      %v2900 = vadd.f32 %v2446, %v2770
      %v2901 = vadd.f32 %v2447, %v2775
      %v2902 = vadd.f32 %v2448, %v2780
      %v2903 = vadd.f32 %v2449, %v2785
      %v2904 = vadd.f32 %v2450, %v2790
      %v2905 = vadd.f32 %v2451, %v2795
      %v2906 = vadd.f32 %v2452, %v2800
      %v2907 = vadd.f32 %v2453, %v2805
      %v2908 = vadd.f32 %v2454, %v2810
      %v2909 = vadd.f32 %v2455, %v2815
      %v2910 = vadd.f32 %v2456, %v2820
      %v2911 = vadd.f32 %v2457, %v2825
      %v2912 = vadd.f32 %v2458, %v2830
      %v2913 = vadd.f32 %v2459, %v2835
      %v2914 = vadd.f32 %v2460, %v2840
      %v2915 = vadd.f32 %v2461, %v2845
      %v2916 = vadd.f32 %v2462, %v2850
      %v2917 = vadd.f32 %v2463, %v2855
      %v2918 = vadd.f32 %v2464, %v2860
      %v2919 = vadd.f32 %v2465, %v2865
      %v2920 = vadd.f32 %v2466, %v2870
      %v2921 = vadd.f32 %v2467, %v2875
      %v2922 = vadd.f32 %v2468, %v2880
      %v2923 = vadd.f32 %v2469, %v2885
      %v2924 = vadd.f32 %v2470, %v2890
      %s2925 = scalar_lea.vmem %s222, 24
      %v2926 = vld [vmem:[%s2925] sm:$0xf]
      %v2927 = vld [vmem:[%s2925 + $0x4] sm:$0xf]
      %v2928 = vld [vmem:[%s2925 + $0xc] sm:$0xf]
      %v2929 = vld [vmem:[%s2925 + $0x10] sm:$0xf]
      %v2930 = vld [vmem:[%s2925 + $0x18] sm:$0xf]
      %v2931 = vld [vmem:[%s2925 + $0x1c] sm:$0xf]
      %v2932 = vld [vmem:[%s2925 + $0x24] sm:$0xf]
      %v2933 = vld [vmem:[%s2925 + $0x28] sm:$0xf]
      %v2934 = vld [vmem:[%s2925 + $0x30] sm:$0xf]
      %v2935 = vld [vmem:[%s2925 + $0x34] sm:$0xf]
      %v2936 = vld [vmem:[%s2925 + $0x3c] sm:$0xf]
      %v2937 = vld [vmem:[%s2925 + $0x40] sm:$0xf]
      %v2938 = vld [vmem:[%s2925 + $0x48] sm:$0xf]
      %v2939 = vld [vmem:[%s2925 + $0x4c] sm:$0xf]
      %v2940 = vld [vmem:[%s2925 + $0x54] sm:$0xf]
      %v2941 = vld [vmem:[%s2925 + $0x58] sm:$0xf]
      %v2942 = vld [vmem:[%s2925 + $0x60] sm:$0xf]
      %v2943 = vld [vmem:[%s2925 + $0x64] sm:$0xf]
      %v2944 = vld [vmem:[%s2925 + $0x6c] sm:$0xf]
      %v2945 = vld [vmem:[%s2925 + $0x70] sm:$0xf]
      %v2946 = vld [vmem:[%s2925 + $0x78] sm:$0xf]
      %v2947 = vld [vmem:[%s2925 + $0x7c] sm:$0xf]
      %v2948 = vld [vmem:[%s2925 + $0x84] sm:$0xf]
      %v2949 = vld [vmem:[%s2925 + $0x88] sm:$0xf]
      %v2950 = vld [vmem:[%s2925 + $0x90] sm:$0xf]
      %v2951 = vld [vmem:[%s2925 + $0x94] sm:$0xf]
      %v2952 = vld [vmem:[%s2925 + $0x9c] sm:$0xf]
      %v2953 = vld [vmem:[%s2925 + $0xa0] sm:$0xf]
      %v2954 = vld [vmem:[%s2925 + $0xa8] sm:$0xf]
      %v2955 = vld [vmem:[%s2925 + $0xac] sm:$0xf]
      %v2956 = vld [vmem:[%s2925 + $0xb4] sm:$0xf]
      %v2957 = vld [vmem:[%s2925 + $0xb8] sm:$0xf]
      %v2958 = vunpack.c.l.bf16 %v2926
      %v2959 = vunpack.c.l.bf16 %v2927
      %v2960 = vunpack.c.l.bf16 %v2928
      %v2961 = vunpack.c.l.bf16 %v2929
      %v2962 = vunpack.c.l.bf16 %v2930
      %v2963 = vunpack.c.l.bf16 %v2931
      %v2964 = vunpack.c.l.bf16 %v2932
      %v2965 = vunpack.c.l.bf16 %v2933
      %v2966 = vunpack.c.l.bf16 %v2934
      %v2967 = vunpack.c.l.bf16 %v2935
      %v2968 = vunpack.c.l.bf16 %v2936
      %v2969 = vunpack.c.l.bf16 %v2937
      %v2970 = vunpack.c.l.bf16 %v2938
      %v2971 = vunpack.c.l.bf16 %v2939
      %v2972 = vunpack.c.l.bf16 %v2940
      %v2973 = vunpack.c.l.bf16 %v2941
      %v2974 = vunpack.c.l.bf16 %v2942
      %v2975 = vunpack.c.l.bf16 %v2943
      %v2976 = vunpack.c.l.bf16 %v2944
      %v2977 = vunpack.c.l.bf16 %v2945
      %v2978 = vunpack.c.l.bf16 %v2946
      %v2979 = vunpack.c.l.bf16 %v2947
      %v2980 = vunpack.c.l.bf16 %v2948
      %v2981 = vunpack.c.l.bf16 %v2949
      %v2982 = vunpack.c.l.bf16 %v2950
      %v2983 = vunpack.c.l.bf16 %v2951
      %v2984 = vunpack.c.l.bf16 %v2952
      %v2985 = vunpack.c.l.bf16 %v2953
      %v2986 = vunpack.c.l.bf16 %v2954
      %v2987 = vunpack.c.l.bf16 %v2955
      %v2988 = vunpack.c.l.bf16 %v2956
      %v2989 = vunpack.c.l.bf16 %v2957
      %s2990 = scalar_lea.vmem %s1, 24
      %v2991 = vld [vmem:[%s2990] sm:$0x7]
      %v2993 = vsel %vm457, %v2958, 0
      %v2996 = vsel %vm457, %v2959, 0
      %v2999 = vsel %vm457, %v2960, 0
      %v3002 = vsel %vm457, %v2961, 0
      %v3005 = vsel %vm457, %v2962, 0
      %v3008 = vsel %vm457, %v2963, 0
      %v3011 = vsel %vm457, %v2964, 0
      %v3014 = vsel %vm457, %v2965, 0
      %v3017 = vsel %vm457, %v2966, 0
      %v3020 = vsel %vm457, %v2967, 0
      %v3023 = vsel %vm457, %v2968, 0
      %v3026 = vsel %vm457, %v2969, 0
      %v3029 = vsel %vm457, %v2970, 0
      %v3032 = vsel %vm457, %v2971, 0
      %v3035 = vsel %vm457, %v2972, 0
      %v3038 = vsel %vm457, %v2973, 0
      %v3041 = vsel %vm457, %v2974, 0
      %v3044 = vsel %vm457, %v2975, 0
      %v3047 = vsel %vm457, %v2976, 0
      %v3050 = vsel %vm457, %v2977, 0
      %v3053 = vsel %vm457, %v2978, 0
      %v3056 = vsel %vm457, %v2979, 0
      %v3059 = vsel %vm457, %v2980, 0
      %v3062 = vsel %vm457, %v2981, 0
      %v3065 = vsel %vm457, %v2982, 0
      %v3068 = vsel %vm457, %v2983, 0
      %v3071 = vsel %vm457, %v2984, 0
      %v3074 = vsel %vm457, %v2985, 0
      %v3077 = vsel %vm457, %v2986, 0
      %v3080 = vsel %vm457, %v2987, 0
      %v3083 = vsel %vm457, %v2988, 0
      %v3086 = vsel %vm457, %v2989, 0
      %v3089 = vsel %vm522, %v2991, 0
      %3091 = vmatprep.subr.mxu0 0.0
      %3092 = vmatpush1.msra.mxu0 %v3089
      %3093 = vmatprep.subr.mxu0 0.0
      %3094 = vmatpush1.msra.mxu0 0.0
      %3095 = vmatprep.subr.mxu0 0.0
      %3096 = vmatpush1.msra.mxu0 0.0
      %3097 = vmatprep.subr.mxu0 0.0
      %3098 = vmatpush1.msra.mxu0 0.0
      %3099 = vmatprep.subr.mxu0 0.0
      %3100 = vmatpush1.msra.mxu0 0.0
      %3101 = vmatprep.subr.mxu0 0.0
      %3102 = vmatpush1.msra.mxu0 0.0
      %3103 = vmatprep.subr.mxu0 0.0
      %3104 = vmatpush1.msra.mxu0 0.0
      %3105 = vmatprep.subr.mxu0 0.0
      %3106 = vmatpush1.msra.mxu0 0.0
      %3107 = vmatprep.subr.mxu0 0.0
      %3108 = vmatpush1.msra.mxu0 0.0
      %3109 = vmatprep.subr.mxu0 0.0
      %3110 = vmatpush1.msra.mxu0 0.0
      %3111 = vmatprep.subr.mxu0 0.0
      %3112 = vmatpush1.msra.mxu0 0.0
      %3113 = vmatprep.subr.mxu0 0.0
      %3114 = vmatpush1.msra.mxu0 0.0
      %3115 = vmatprep.subr.mxu0 0.0
      %3116 = vmatpush1.msra.mxu0 0.0
      %3117 = vmatprep.subr.mxu0 0.0
      %3118 = vmatpush1.msra.mxu0 0.0
      %3119 = vmatprep.subr.mxu0 0.0
      %3120 = vmatpush1.msra.mxu0 0.0
      %3121 = vmatprep.subr.mxu0 0.0
      %3122 = vmatpush1.msra.mxu0 0.0
      %3123 = vmatprep.subr.mxu0 0.0
      %3124 = vmatpush1.msra.mxu0 0.0
      %3125 = vmatprep.subr.mxu0 0.0
      %3126 = vmatpush1.msra.mxu0 0.0
      %3127 = vmatprep.subr.mxu0 0.0
      %3128 = vmatpush1.msra.mxu0 0.0
      %3129 = vmatprep.subr.mxu0 0.0
      %3130 = vmatpush1.msra.mxu0 0.0
      %3131 = vmatprep.subr.mxu0 0.0
      %3132 = vmatpush1.msra.mxu0 0.0
      %3133 = vmatprep.subr.mxu0 0.0
      %3134 = vmatpush1.msra.mxu0 0.0
      %3135 = vmatprep.subr.mxu0 0.0
      %3136 = vmatpush1.msra.mxu0 0.0
      %3137 = vmatprep.subr.mxu0 0.0
      %3138 = vmatpush1.msra.mxu0 0.0
      %3139 = vmatprep.subr.mxu0 0.0
      %3140 = vmatpush1.msra.mxu0 0.0
      %3141 = vmatprep.subr.mxu0 0.0
      %3142 = vmatpush1.msra.mxu0 0.0
      %3143 = vmatprep.subr.mxu0 0.0
      %3144 = vmatpush1.msra.mxu0 0.0
      %3145 = vmatprep.subr.mxu0 0.0
      %3146 = vmatpush1.msra.mxu0 0.0
      %3147 = vmatprep.subr.mxu0 0.0
      %3148 = vmatpush1.msra.mxu0 0.0
      %3149 = vmatprep.subr.mxu0 0.0
      %3150 = vmatpush1.msra.mxu0 0.0
      %3151 = vmatprep.subr.mxu0 0.0
      %3152 = vmatpush1.msra.mxu0 0.0
      %3153 = vmatprep.subr.mxu0 0.0
      %3154 = vmatpush1.msra.mxu0 0.0
      %3155 = vmatprep.mubr.f32.mxu0 0.0
      %3156 = vmatmul.mubr.f32.gmra.mrb[0].mxu0 %v2993
      %v3157 = vpop.f32.mrb[0].mxu0
      %v3158 = vadd.f32 0.0, %v3157
      %v3159 = vpop.f32.mrb[0].mxu0
      %3160 = vmatprep.mubr.f32.mxu0 0.0
      %3161 = vmatmul.mubr.f32.gmra.mrb[0].mxu0 %v2996
      %v3162 = vpop.f32.mrb[0].mxu0
      %v3163 = vadd.f32 0.0, %v3162
      %v3164 = vpop.f32.mrb[0].mxu0
      %3165 = vmatprep.mubr.f32.mxu0 0.0
      %3166 = vmatmul.mubr.f32.gmra.mrb[0].mxu0 %v2999
      %v3167 = vpop.f32.mrb[0].mxu0
      %v3168 = vadd.f32 0.0, %v3167
      %v3169 = vpop.f32.mrb[0].mxu0
      %3170 = vmatprep.mubr.f32.mxu0 0.0
      %3171 = vmatmul.mubr.f32.gmra.mrb[0].mxu0 %v3002
      %v3172 = vpop.f32.mrb[0].mxu0
      %v3173 = vadd.f32 0.0, %v3172
      %v3174 = vpop.f32.mrb[0].mxu0
      %3175 = vmatprep.mubr.f32.mxu0 0.0
      %3176 = vmatmul.mubr.f32.gmra.mrb[0].mxu0 %v3005
      %v3177 = vpop.f32.mrb[0].mxu0
      %v3178 = vadd.f32 0.0, %v3177
      %v3179 = vpop.f32.mrb[0].mxu0
      %3180 = vmatprep.mubr.f32.mxu0 0.0
      %3181 = vmatmul.mubr.f32.gmra.mrb[0].mxu0 %v3008
      %v3182 = vpop.f32.mrb[0].mxu0
      %v3183 = vadd.f32 0.0, %v3182
      %v3184 = vpop.f32.mrb[0].mxu0
      %3185 = vmatprep.mubr.f32.mxu0 0.0
      %3186 = vmatmul.mubr.f32.gmra.mrb[0].mxu0 %v3011
      %v3187 = vpop.f32.mrb[0].mxu0
      %v3188 = vadd.f32 0.0, %v3187
      %v3189 = vpop.f32.mrb[0].mxu0
      %3190 = vmatprep.mubr.f32.mxu0 0.0
      %3191 = vmatmul.mubr.f32.gmra.mrb[0].mxu0 %v3014
      %v3192 = vpop.f32.mrb[0].mxu0
      %v3193 = vadd.f32 0.0, %v3192
      %v3194 = vpop.f32.mrb[0].mxu0
      %3195 = vmatprep.mubr.f32.mxu0 0.0
      %3196 = vmatmul.mubr.f32.gmra.mrb[0].mxu0 %v3017
      %v3197 = vpop.f32.mrb[0].mxu0
      %v3198 = vadd.f32 0.0, %v3197
      %v3199 = vpop.f32.mrb[0].mxu0
      %3200 = vmatprep.mubr.f32.mxu0 0.0
      %3201 = vmatmul.mubr.f32.gmra.mrb[0].mxu0 %v3020
      %v3202 = vpop.f32.mrb[0].mxu0
      %v3203 = vadd.f32 0.0, %v3202
      %v3204 = vpop.f32.mrb[0].mxu0
      %3205 = vmatprep.mubr.f32.mxu0 0.0
      %3206 = vmatmul.mubr.f32.gmra.mrb[0].mxu0 %v3023
      %v3207 = vpop.f32.mrb[0].mxu0
      %v3208 = vadd.f32 0.0, %v3207
      %v3209 = vpop.f32.mrb[0].mxu0
      %3210 = vmatprep.mubr.f32.mxu0 0.0
      %3211 = vmatmul.mubr.f32.gmra.mrb[0].mxu0 %v3026
      %v3212 = vpop.f32.mrb[0].mxu0
      %v3213 = vadd.f32 0.0, %v3212
      %v3214 = vpop.f32.mrb[0].mxu0
      %3215 = vmatprep.mubr.f32.mxu0 0.0
      %3216 = vmatmul.mubr.f32.gmra.mrb[0].mxu0 %v3029
      %v3217 = vpop.f32.mrb[0].mxu0
      %v3218 = vadd.f32 0.0, %v3217
      %v3219 = vpop.f32.mrb[0].mxu0
      %3220 = vmatprep.mubr.f32.mxu0 0.0
      %3221 = vmatmul.mubr.f32.gmra.mrb[0].mxu0 %v3032
      %v3222 = vpop.f32.mrb[0].mxu0
      %v3223 = vadd.f32 0.0, %v3222
      %v3224 = vpop.f32.mrb[0].mxu0
      %3225 = vmatprep.mubr.f32.mxu0 0.0
      %3226 = vmatmul.mubr.f32.gmra.mrb[0].mxu0 %v3035
      %v3227 = vpop.f32.mrb[0].mxu0
      %v3228 = vadd.f32 0.0, %v3227
      %v3229 = vpop.f32.mrb[0].mxu0
      %3230 = vmatprep.mubr.f32.mxu0 0.0
      %3231 = vmatmul.mubr.f32.gmra.mrb[0].mxu0 %v3038
      %v3232 = vpop.f32.mrb[0].mxu0
      %v3233 = vadd.f32 0.0, %v3232
      %v3234 = vpop.f32.mrb[0].mxu0
      %3235 = vmatprep.mubr.f32.mxu0 0.0
      %3236 = vmatmul.mubr.f32.gmra.mrb[0].mxu0 %v3041
      %v3237 = vpop.f32.mrb[0].mxu0
      %v3238 = vadd.f32 0.0, %v3237
      %v3239 = vpop.f32.mrb[0].mxu0
      %3240 = vmatprep.mubr.f32.mxu0 0.0
      %3241 = vmatmul.mubr.f32.gmra.mrb[0].mxu0 %v3044
      %v3242 = vpop.f32.mrb[0].mxu0
      %v3243 = vadd.f32 0.0, %v3242
      %v3244 = vpop.f32.mrb[0].mxu0
      %3245 = vmatprep.mubr.f32.mxu0 0.0
      %3246 = vmatmul.mubr.f32.gmra.mrb[0].mxu0 %v3047
      %v3247 = vpop.f32.mrb[0].mxu0
      %v3248 = vadd.f32 0.0, %v3247
      %v3249 = vpop.f32.mrb[0].mxu0
      %3250 = vmatprep.mubr.f32.mxu0 0.0
      %3251 = vmatmul.mubr.f32.gmra.mrb[0].mxu0 %v3050
      %v3252 = vpop.f32.mrb[0].mxu0
      %v3253 = vadd.f32 0.0, %v3252
      %v3254 = vpop.f32.mrb[0].mxu0
      %3255 = vmatprep.mubr.f32.mxu0 0.0
      %3256 = vmatmul.mubr.f32.gmra.mrb[0].mxu0 %v3053
      %v3257 = vpop.f32.mrb[0].mxu0
      %v3258 = vadd.f32 0.0, %v3257
      %v3259 = vpop.f32.mrb[0].mxu0
      %3260 = vmatprep.mubr.f32.mxu0 0.0
      %3261 = vmatmul.mubr.f32.gmra.mrb[0].mxu0 %v3056
      %v3262 = vpop.f32.mrb[0].mxu0
      %v3263 = vadd.f32 0.0, %v3262
      %v3264 = vpop.f32.mrb[0].mxu0
      %3265 = vmatprep.mubr.f32.mxu0 0.0
      %3266 = vmatmul.mubr.f32.gmra.mrb[0].mxu0 %v3059
      %v3267 = vpop.f32.mrb[0].mxu0
      %v3268 = vadd.f32 0.0, %v3267
      %v3269 = vpop.f32.mrb[0].mxu0
      %3270 = vmatprep.mubr.f32.mxu0 0.0
      %3271 = vmatmul.mubr.f32.gmra.mrb[0].mxu0 %v3062
      %v3272 = vpop.f32.mrb[0].mxu0
      %v3273 = vadd.f32 0.0, %v3272
      %v3274 = vpop.f32.mrb[0].mxu0
      %3275 = vmatprep.mubr.f32.mxu0 0.0
      %3276 = vmatmul.mubr.f32.gmra.mrb[0].mxu0 %v3065
      %v3277 = vpop.f32.mrb[0].mxu0
      %v3278 = vadd.f32 0.0, %v3277
      %v3279 = vpop.f32.mrb[0].mxu0
      %3280 = vmatprep.mubr.f32.mxu0 0.0
      %3281 = vmatmul.mubr.f32.gmra.mrb[0].mxu0 %v3068
      %v3282 = vpop.f32.mrb[0].mxu0
      %v3283 = vadd.f32 0.0, %v3282
      %v3284 = vpop.f32.mrb[0].mxu0
      %3285 = vmatprep.mubr.f32.mxu0 0.0
      %3286 = vmatmul.mubr.f32.gmra.mrb[0].mxu0 %v3071
      %v3287 = vpop.f32.mrb[0].mxu0
      %v3288 = vadd.f32 0.0, %v3287
      %v3289 = vpop.f32.mrb[0].mxu0
      %3290 = vmatprep.mubr.f32.mxu0 0.0
      %3291 = vmatmul.mubr.f32.gmra.mrb[0].mxu0 %v3074
      %v3292 = vpop.f32.mrb[0].mxu0
      %v3293 = vadd.f32 0.0, %v3292
      %v3294 = vpop.f32.mrb[0].mxu0
      %3295 = vmatprep.mubr.f32.mxu0 0.0
      %3296 = vmatmul.mubr.f32.gmra.mrb[0].mxu0 %v3077
      %v3297 = vpop.f32.mrb[0].mxu0
      %v3298 = vadd.f32 0.0, %v3297
      %v3299 = vpop.f32.mrb[0].mxu0
      %3300 = vmatprep.mubr.f32.mxu0 0.0
      %3301 = vmatmul.mubr.f32.gmra.mrb[0].mxu0 %v3080
      %v3302 = vpop.f32.mrb[0].mxu0
      %v3303 = vadd.f32 0.0, %v3302
      %v3304 = vpop.f32.mrb[0].mxu0
      %3305 = vmatprep.mubr.f32.mxu0 0.0
      %3306 = vmatmul.mubr.f32.gmra.mrb[0].mxu0 %v3083
      %v3307 = vpop.f32.mrb[0].mxu0
      %v3308 = vadd.f32 0.0, %v3307
      %v3309 = vpop.f32.mrb[0].mxu0
      %3310 = vmatprep.mubr.f32.mxu0 0.0
      %3311 = vmatmul.mubr.f32.gmra.mrb[0].mxu0 %v3086
      %v3312 = vpop.f32.mrb[0].mxu0
      %v3313 = vadd.f32 0.0, %v3312
      %v3314 = vpop.f32.mrb[0].mxu0
      %3315 = vdwg.mxu0
      %v3316 = vadd.f32 %v2893, %v3158
      %v3317 = vadd.f32 %v2894, %v3163
      %v3318 = vadd.f32 %v2895, %v3168
      %v3319 = vadd.f32 %v2896, %v3173
      %v3320 = vadd.f32 %v2897, %v3178
      %v3321 = vadd.f32 %v2898, %v3183
      %v3322 = vadd.f32 %v2899, %v3188
      %v3323 = vadd.f32 %v2900, %v3193
      %v3324 = vadd.f32 %v2901, %v3198
      %v3325 = vadd.f32 %v2902, %v3203
      %v3326 = vadd.f32 %v2903, %v3208
      %v3327 = vadd.f32 %v2904, %v3213
      %v3328 = vadd.f32 %v2905, %v3218
      %v3329 = vadd.f32 %v2906, %v3223
      %v3330 = vadd.f32 %v2907, %v3228
      %v3331 = vadd.f32 %v2908, %v3233
      %v3332 = vadd.f32 %v2909, %v3238
      %v3333 = vadd.f32 %v2910, %v3243
      %v3334 = vadd.f32 %v2911, %v3248
      %v3335 = vadd.f32 %v2912, %v3253
      %v3336 = vadd.f32 %v2913, %v3258
      %v3337 = vadd.f32 %v2914, %v3263
      %v3338 = vadd.f32 %v2915, %v3268
      %v3339 = vadd.f32 %v2916, %v3273
      %v3340 = vadd.f32 %v2917, %v3278
      %v3341 = vadd.f32 %v2918, %v3283
      %v3342 = vadd.f32 %v2919, %v3288
      %v3343 = vadd.f32 %v2920, %v3293
      %v3344 = vadd.f32 %v2921, %v3298
      %v3345 = vadd.f32 %v2922, %v3303
      %v3346 = vadd.f32 %v2923, %v3308
      %v3347 = vadd.f32 %v2924, %v3313
      %v3348 = vld [vmem:[%s2925] sm:$0xf]
      %v3349 = vld [vmem:[%s2925 + $0x4] sm:$0xf]
      %v3350 = vld [vmem:[%s2925 + $0x8] sm:$0x1]
      %v3351 = vld [vmem:[%s2925 + $0xc] sm:$0xf]
      %v3352 = vld [vmem:[%s2925 + $0x10] sm:$0xf]
      %v3353 = vld [vmem:[%s2925 + $0x14] sm:$0x1]
      %v3354 = vld [vmem:[%s2925 + $0x18] sm:$0xf]
      %v3355 = vld [vmem:[%s2925 + $0x1c] sm:$0xf]
      %v3356 = vld [vmem:[%s2925 + $0x20] sm:$0x1]
      %v3357 = vld [vmem:[%s2925 + $0x24] sm:$0xf]
      %v3358 = vld [vmem:[%s2925 + $0x28] sm:$0xf]
      %v3359 = vld [vmem:[%s2925 + $0x2c] sm:$0x1]
      %v3360 = vld [vmem:[%s2925 + $0x30] sm:$0xf]
      %v3361 = vld [vmem:[%s2925 + $0x34] sm:$0xf]
      %v3362 = vld [vmem:[%s2925 + $0x38] sm:$0x1]
      %v3363 = vld [vmem:[%s2925 + $0x3c] sm:$0xf]
      %v3364 = vld [vmem:[%s2925 + $0x40] sm:$0xf]
      %v3365 = vld [vmem:[%s2925 + $0x44] sm:$0x1]
      %v3366 = vld [vmem:[%s2925 + $0x48] sm:$0xf]
      %v3367 = vld [vmem:[%s2925 + $0x4c] sm:$0xf]
      %v3368 = vld [vmem:[%s2925 + $0x50] sm:$0x1]
      %v3369 = vld [vmem:[%s2925 + $0x54] sm:$0xf]
      %v3370 = vld [vmem:[%s2925 + $0x58] sm:$0xf]
      %v3371 = vld [vmem:[%s2925 + $0x5c] sm:$0x1]
      %v3372 = vld [vmem:[%s2925 + $0x60] sm:$0xf]
      %v3373 = vld [vmem:[%s2925 + $0x64] sm:$0xf]
      %v3374 = vld [vmem:[%s2925 + $0x68] sm:$0x1]
      %v3375 = vld [vmem:[%s2925 + $0x6c] sm:$0xf]
      %v3376 = vld [vmem:[%s2925 + $0x70] sm:$0xf]
      %v3377 = vld [vmem:[%s2925 + $0x74] sm:$0x1]
      %v3378 = vld [vmem:[%s2925 + $0x78] sm:$0xf]
      %v3379 = vld [vmem:[%s2925 + $0x7c] sm:$0xf]
      %v3380 = vld [vmem:[%s2925 + $0x80] sm:$0x1]
      %v3381 = vld [vmem:[%s2925 + $0x84] sm:$0xf]
      %v3382 = vld [vmem:[%s2925 + $0x88] sm:$0xf]
      %v3383 = vld [vmem:[%s2925 + $0x8c] sm:$0x1]
      %v3384 = vld [vmem:[%s2925 + $0x90] sm:$0xf]
      %v3385 = vld [vmem:[%s2925 + $0x94] sm:$0xf]
      %v3386 = vld [vmem:[%s2925 + $0x98] sm:$0x1]
      %v3387 = vld [vmem:[%s2925 + $0x9c] sm:$0xf]
      %v3388 = vld [vmem:[%s2925 + $0xa0] sm:$0xf]
      %v3389 = vld [vmem:[%s2925 + $0xa4] sm:$0x1]
      %v3390 = vld [vmem:[%s2925 + $0xa8] sm:$0xf]
      %v3391 = vld [vmem:[%s2925 + $0xac] sm:$0xf]
      %v3392 = vld [vmem:[%s2925 + $0xb0] sm:$0x1]
      %v3393 = vld [vmem:[%s2925 + $0xb4] sm:$0xf]
      %v3394 = vld [vmem:[%s2925 + $0xb8] sm:$0xf]
      %v3395 = vld [vmem:[%s2925 + $0xbc] sm:$0x1]
      %v3396 = vunpack.c.l.bf16 %v3348
      %v3397 = vunpack.c.l.bf16 %v3349
      %v3398 = vunpack.c.l.bf16 %v3350
      %v3399 = vunpack.c.l.bf16 %v3351
      %v3400 = vunpack.c.l.bf16 %v3352
      %v3401 = vunpack.c.l.bf16 %v3353
      %v3402 = vunpack.c.l.bf16 %v3354
      %v3403 = vunpack.c.l.bf16 %v3355
      %v3404 = vunpack.c.l.bf16 %v3356
      %v3405 = vunpack.c.l.bf16 %v3357
      %v3406 = vunpack.c.l.bf16 %v3358
      %v3407 = vunpack.c.l.bf16 %v3359
      %v3408 = vunpack.c.l.bf16 %v3360
      %v3409 = vunpack.c.l.bf16 %v3361
      %v3410 = vunpack.c.l.bf16 %v3362
      %v3411 = vunpack.c.l.bf16 %v3363
      %v3412 = vunpack.c.l.bf16 %v3364
      %v3413 = vunpack.c.l.bf16 %v3365
      %v3414 = vunpack.c.l.bf16 %v3366
      %v3415 = vunpack.c.l.bf16 %v3367
      %v3416 = vunpack.c.l.bf16 %v3368
      %v3417 = vunpack.c.l.bf16 %v3369
      %v3418 = vunpack.c.l.bf16 %v3370
      %v3419 = vunpack.c.l.bf16 %v3371
      %v3420 = vunpack.c.l.bf16 %v3372
      %v3421 = vunpack.c.l.bf16 %v3373
      %v3422 = vunpack.c.l.bf16 %v3374
      %v3423 = vunpack.c.l.bf16 %v3375
      %v3424 = vunpack.c.l.bf16 %v3376
      %v3425 = vunpack.c.l.bf16 %v3377
      %v3426 = vunpack.c.l.bf16 %v3378
      %v3427 = vunpack.c.l.bf16 %v3379
      %v3428 = vunpack.c.l.bf16 %v3380
      %v3429 = vunpack.c.l.bf16 %v3381
      %v3430 = vunpack.c.l.bf16 %v3382
      %v3431 = vunpack.c.l.bf16 %v3383
      %v3432 = vunpack.c.l.bf16 %v3384
      %v3433 = vunpack.c.l.bf16 %v3385
      %v3434 = vunpack.c.l.bf16 %v3386
      %v3435 = vunpack.c.l.bf16 %v3387
      %v3436 = vunpack.c.l.bf16 %v3388
      %v3437 = vunpack.c.l.bf16 %v3389
      %v3438 = vunpack.c.l.bf16 %v3390
      %v3439 = vunpack.c.l.bf16 %v3391
      %v3440 = vunpack.c.l.bf16 %v3392
      %v3441 = vunpack.c.l.bf16 %v3393
      %v3442 = vunpack.c.l.bf16 %v3394
      %v3443 = vunpack.c.l.bf16 %v3395
      %v3492 = vrot.slane %v3396, 1
      %v3493 = vrot.slane %v3397, 1
      %v3494 = vsel %vm374, %v3492, %v3493
      %v3495 = vrot.slane %v3398, 1
      %v3496 = vsel %vm374, %v3493, %v3495
      %v3497 = vrot.slane %v3399, 1
      %v3498 = vrot.slane %v3400, 1
      %v3499 = vsel %vm374, %v3497, %v3498
      %v3500 = vrot.slane %v3401, 1
      %v3501 = vsel %vm374, %v3498, %v3500
      %v3502 = vrot.slane %v3402, 1
      %v3503 = vrot.slane %v3403, 1
      %v3504 = vsel %vm374, %v3502, %v3503
      %v3505 = vrot.slane %v3404, 1
      %v3506 = vsel %vm374, %v3503, %v3505
      %v3507 = vrot.slane %v3405, 1
      %v3508 = vrot.slane %v3406, 1
      %v3509 = vsel %vm374, %v3507, %v3508
      %v3510 = vrot.slane %v3407, 1
      %v3511 = vsel %vm374, %v3508, %v3510
      %v3512 = vrot.slane %v3408, 1
      %v3513 = vrot.slane %v3409, 1
      %v3514 = vsel %vm374, %v3512, %v3513
      %v3515 = vrot.slane %v3410, 1
      %v3516 = vsel %vm374, %v3513, %v3515
      %v3517 = vrot.slane %v3411, 1
      %v3518 = vrot.slane %v3412, 1
      %v3519 = vsel %vm374, %v3517, %v3518
      %v3520 = vrot.slane %v3413, 1
      %v3521 = vsel %vm374, %v3518, %v3520
      %v3522 = vrot.slane %v3414, 1
      %v3523 = vrot.slane %v3415, 1
      %v3524 = vsel %vm374, %v3522, %v3523
      %v3525 = vrot.slane %v3416, 1
      %v3526 = vsel %vm374, %v3523, %v3525
      %v3527 = vrot.slane %v3417, 1
      %v3528 = vrot.slane %v3418, 1
      %v3529 = vsel %vm374, %v3527, %v3528
      %v3530 = vrot.slane %v3419, 1
      %v3531 = vsel %vm374, %v3528, %v3530
      %v3532 = vrot.slane %v3420, 1
      %v3533 = vrot.slane %v3421, 1
      %v3534 = vsel %vm374, %v3532, %v3533
      %v3535 = vrot.slane %v3422, 1
      %v3536 = vsel %vm374, %v3533, %v3535
      %v3537 = vrot.slane %v3423, 1
      %v3538 = vrot.slane %v3424, 1
      %v3539 = vsel %vm374, %v3537, %v3538
      %v3540 = vrot.slane %v3425, 1
      %v3541 = vsel %vm374, %v3538, %v3540
      %v3542 = vrot.slane %v3426, 1
      %v3543 = vrot.slane %v3427, 1
      %v3544 = vsel %vm374, %v3542, %v3543
      %v3545 = vrot.slane %v3428, 1
      %v3546 = vsel %vm374, %v3543, %v3545
      %v3547 = vrot.slane %v3429, 1
      %v3548 = vrot.slane %v3430, 1
      %v3549 = vsel %vm374, %v3547, %v3548
      %v3550 = vrot.slane %v3431, 1
      %v3551 = vsel %vm374, %v3548, %v3550
      %v3552 = vrot.slane %v3432, 1
      %v3553 = vrot.slane %v3433, 1
      %v3554 = vsel %vm374, %v3552, %v3553
      %v3555 = vrot.slane %v3434, 1
      %v3556 = vsel %vm374, %v3553, %v3555
      %v3557 = vrot.slane %v3435, 1
      %v3558 = vrot.slane %v3436, 1
      %v3559 = vsel %vm374, %v3557, %v3558
      %v3560 = vrot.slane %v3437, 1
      %v3561 = vsel %vm374, %v3558, %v3560
      %v3562 = vrot.slane %v3438, 1
      %v3563 = vrot.slane %v3439, 1
      %v3564 = vsel %vm374, %v3562, %v3563
      %v3565 = vrot.slane %v3440, 1
      %v3566 = vsel %vm374, %v3563, %v3565
      %v3567 = vrot.slane %v3441, 1
      %v3568 = vrot.slane %v3442, 1
      %v3569 = vsel %vm374, %v3567, %v3568
      %v3570 = vrot.slane %v3443, 1
      %v3571 = vsel %vm374, %v3568, %v3570
      %s3572 = scalar_lea.vmem %s1, 28
      %v3573 = vld [vmem:[%s3572] sm:$0x7]
      %v3574 = vsel %vm457, %v3494, 0
      %v3576 = vsel %vm457, %v3496, 0
      %v3578 = vsel %vm457, %v3499, 0
      %v3580 = vsel %vm457, %v3501, 0
      %v3582 = vsel %vm457, %v3504, 0
      %v3584 = vsel %vm457, %v3506, 0
      %v3586 = vsel %vm457, %v3509, 0
      %v3588 = vsel %vm457, %v3511, 0
      %v3590 = vsel %vm457, %v3514, 0
      %v3592 = vsel %vm457, %v3516, 0
      %v3594 = vsel %vm457, %v3519, 0
      %v3596 = vsel %vm457, %v3521, 0
      %v3598 = vsel %vm457, %v3524, 0
      %v3600 = vsel %vm457, %v3526, 0
      %v3602 = vsel %vm457, %v3529, 0
      %v3604 = vsel %vm457, %v3531, 0
      %v3606 = vsel %vm457, %v3534, 0
      %v3608 = vsel %vm457, %v3536, 0
      %v3610 = vsel %vm457, %v3539, 0
      %v3612 = vsel %vm457, %v3541, 0
      %v3614 = vsel %vm457, %v3544, 0
      %v3616 = vsel %vm457, %v3546, 0
      %v3618 = vsel %vm457, %v3549, 0
      %v3620 = vsel %vm457, %v3551, 0
      %v3622 = vsel %vm457, %v3554, 0
      %v3624 = vsel %vm457, %v3556, 0
      %v3626 = vsel %vm457, %v3559, 0
      %v3628 = vsel %vm457, %v3561, 0
      %v3630 = vsel %vm457, %v3564, 0
      %v3632 = vsel %vm457, %v3566, 0
      %v3634 = vsel %vm457, %v3569, 0
      %v3636 = vsel %vm457, %v3571, 0
      %v3639 = vsel %vm522, %v3573, 0
      %3641 = vmatprep.subr.mxu0 0.0
      %3642 = vmatpush1.msra.mxu0 %v3639
      %3643 = vmatprep.subr.mxu0 0.0
      %3644 = vmatpush1.msra.mxu0 0.0
      %3645 = vmatprep.subr.mxu0 0.0
      %3646 = vmatpush1.msra.mxu0 0.0
      %3647 = vmatprep.subr.mxu0 0.0
      %3648 = vmatpush1.msra.mxu0 0.0
      %3649 = vmatprep.subr.mxu0 0.0
      %3650 = vmatpush1.msra.mxu0 0.0
      %3651 = vmatprep.subr.mxu0 0.0
      %3652 = vmatpush1.msra.mxu0 0.0
      %3653 = vmatprep.subr.mxu0 0.0
      %3654 = vmatpush1.msra.mxu0 0.0
      %3655 = vmatprep.subr.mxu0 0.0
      %3656 = vmatpush1.msra.mxu0 0.0
      %3657 = vmatprep.subr.mxu0 0.0
      %3658 = vmatpush1.msra.mxu0 0.0
      %3659 = vmatprep.subr.mxu0 0.0
      %3660 = vmatpush1.msra.mxu0 0.0
      %3661 = vmatprep.subr.mxu0 0.0
      %3662 = vmatpush1.msra.mxu0 0.0
      %3663 = vmatprep.subr.mxu0 0.0
      %3664 = vmatpush1.msra.mxu0 0.0
      %3665 = vmatprep.subr.mxu0 0.0
      %3666 = vmatpush1.msra.mxu0 0.0
      %3667 = vmatprep.subr.mxu0 0.0
      %3668 = vmatpush1.msra.mxu0 0.0
      %3669 = vmatprep.subr.mxu0 0.0
      %3670 = vmatpush1.msra.mxu0 0.0
      %3671 = vmatprep.subr.mxu0 0.0
      %3672 = vmatpush1.msra.mxu0 0.0
      %3673 = vmatprep.subr.mxu0 0.0
      %3674 = vmatpush1.msra.mxu0 0.0
      %3675 = vmatprep.subr.mxu0 0.0
      %3676 = vmatpush1.msra.mxu0 0.0
      %3677 = vmatprep.subr.mxu0 0.0
      %3678 = vmatpush1.msra.mxu0 0.0
      %3679 = vmatprep.subr.mxu0 0.0
      %3680 = vmatpush1.msra.mxu0 0.0
      %3681 = vmatprep.subr.mxu0 0.0
      %3682 = vmatpush1.msra.mxu0 0.0
      %3683 = vmatprep.subr.mxu0 0.0
      %3684 = vmatpush1.msra.mxu0 0.0
      %3685 = vmatprep.subr.mxu0 0.0
      %3686 = vmatpush1.msra.mxu0 0.0
      %3687 = vmatprep.subr.mxu0 0.0
      %3688 = vmatpush1.msra.mxu0 0.0
      %3689 = vmatprep.subr.mxu0 0.0
      %3690 = vmatpush1.msra.mxu0 0.0
      %3691 = vmatprep.subr.mxu0 0.0
      %3692 = vmatpush1.msra.mxu0 0.0
      %3693 = vmatprep.subr.mxu0 0.0
      %3694 = vmatpush1.msra.mxu0 0.0
      %3695 = vmatprep.subr.mxu0 0.0
      %3696 = vmatpush1.msra.mxu0 0.0
      %3697 = vmatprep.subr.mxu0 0.0
      %3698 = vmatpush1.msra.mxu0 0.0
      %3699 = vmatprep.subr.mxu0 0.0
      %3700 = vmatpush1.msra.mxu0 0.0
      %3701 = vmatprep.subr.mxu0 0.0
      %3702 = vmatpush1.msra.mxu0 0.0
      %3703 = vmatprep.subr.mxu0 0.0
      %3704 = vmatpush1.msra.mxu0 0.0
      %3705 = vmatprep.mubr.f32.mxu0 0.0
      %3706 = vmatmul.mubr.f32.gmra.mrb[0].mxu0 %v3574
      %v3707 = vpop.f32.mrb[0].mxu0
      %v3708 = vadd.f32 0.0, %v3707
      %v3709 = vpop.f32.mrb[0].mxu0
      %3710 = vmatprep.mubr.f32.mxu0 0.0
      %3711 = vmatmul.mubr.f32.gmra.mrb[0].mxu0 %v3576
      %v3712 = vpop.f32.mrb[0].mxu0
      %v3713 = vadd.f32 0.0, %v3712
      %v3714 = vpop.f32.mrb[0].mxu0
      %3715 = vmatprep.mubr.f32.mxu0 0.0
      %3716 = vmatmul.mubr.f32.gmra.mrb[0].mxu0 %v3578
      %v3717 = vpop.f32.mrb[0].mxu0
      %v3718 = vadd.f32 0.0, %v3717
      %v3719 = vpop.f32.mrb[0].mxu0
      %3720 = vmatprep.mubr.f32.mxu0 0.0
      %3721 = vmatmul.mubr.f32.gmra.mrb[0].mxu0 %v3580
      %v3722 = vpop.f32.mrb[0].mxu0
      %v3723 = vadd.f32 0.0, %v3722
      %v3724 = vpop.f32.mrb[0].mxu0
      %3725 = vmatprep.mubr.f32.mxu0 0.0
      %3726 = vmatmul.mubr.f32.gmra.mrb[0].mxu0 %v3582
      %v3727 = vpop.f32.mrb[0].mxu0
      %v3728 = vadd.f32 0.0, %v3727
      %v3729 = vpop.f32.mrb[0].mxu0
      %3730 = vmatprep.mubr.f32.mxu0 0.0
      %3731 = vmatmul.mubr.f32.gmra.mrb[0].mxu0 %v3584
      %v3732 = vpop.f32.mrb[0].mxu0
      %v3733 = vadd.f32 0.0, %v3732
      %v3734 = vpop.f32.mrb[0].mxu0
      %3735 = vmatprep.mubr.f32.mxu0 0.0
      %3736 = vmatmul.mubr.f32.gmra.mrb[0].mxu0 %v3586
      %v3737 = vpop.f32.mrb[0].mxu0
      %v3738 = vadd.f32 0.0, %v3737
      %v3739 = vpop.f32.mrb[0].mxu0
      %3740 = vmatprep.mubr.f32.mxu0 0.0
      %3741 = vmatmul.mubr.f32.gmra.mrb[0].mxu0 %v3588
      %v3742 = vpop.f32.mrb[0].mxu0
      %v3743 = vadd.f32 0.0, %v3742
      %v3744 = vpop.f32.mrb[0].mxu0
      %3745 = vmatprep.mubr.f32.mxu0 0.0
      %3746 = vmatmul.mubr.f32.gmra.mrb[0].mxu0 %v3590
      %v3747 = vpop.f32.mrb[0].mxu0
      %v3748 = vadd.f32 0.0, %v3747
      %v3749 = vpop.f32.mrb[0].mxu0
      %3750 = vmatprep.mubr.f32.mxu0 0.0
      %3751 = vmatmul.mubr.f32.gmra.mrb[0].mxu0 %v3592
      %v3752 = vpop.f32.mrb[0].mxu0
      %v3753 = vadd.f32 0.0, %v3752
      %v3754 = vpop.f32.mrb[0].mxu0
      %3755 = vmatprep.mubr.f32.mxu0 0.0
      %3756 = vmatmul.mubr.f32.gmra.mrb[0].mxu0 %v3594
      %v3757 = vpop.f32.mrb[0].mxu0
      %v3758 = vadd.f32 0.0, %v3757
      %v3759 = vpop.f32.mrb[0].mxu0
      %3760 = vmatprep.mubr.f32.mxu0 0.0
      %3761 = vmatmul.mubr.f32.gmra.mrb[0].mxu0 %v3596
      %v3762 = vpop.f32.mrb[0].mxu0
      %v3763 = vadd.f32 0.0, %v3762
      %v3764 = vpop.f32.mrb[0].mxu0
      %3765 = vmatprep.mubr.f32.mxu0 0.0
      %3766 = vmatmul.mubr.f32.gmra.mrb[0].mxu0 %v3598
      %v3767 = vpop.f32.mrb[0].mxu0
      %v3768 = vadd.f32 0.0, %v3767
      %v3769 = vpop.f32.mrb[0].mxu0
      %3770 = vmatprep.mubr.f32.mxu0 0.0
      %3771 = vmatmul.mubr.f32.gmra.mrb[0].mxu0 %v3600
      %v3772 = vpop.f32.mrb[0].mxu0
      %v3773 = vadd.f32 0.0, %v3772
      %v3774 = vpop.f32.mrb[0].mxu0
      %3775 = vmatprep.mubr.f32.mxu0 0.0
      %3776 = vmatmul.mubr.f32.gmra.mrb[0].mxu0 %v3602
      %v3777 = vpop.f32.mrb[0].mxu0
      %v3778 = vadd.f32 0.0, %v3777
      %v3779 = vpop.f32.mrb[0].mxu0
      %3780 = vmatprep.mubr.f32.mxu0 0.0
      %3781 = vmatmul.mubr.f32.gmra.mrb[0].mxu0 %v3604
      %v3782 = vpop.f32.mrb[0].mxu0
      %v3783 = vadd.f32 0.0, %v3782
      %v3784 = vpop.f32.mrb[0].mxu0
      %3785 = vmatprep.mubr.f32.mxu0 0.0
      %3786 = vmatmul.mubr.f32.gmra.mrb[0].mxu0 %v3606
      %v3787 = vpop.f32.mrb[0].mxu0
      %v3788 = vadd.f32 0.0, %v3787
      %v3789 = vpop.f32.mrb[0].mxu0
      %3790 = vmatprep.mubr.f32.mxu0 0.0
      %3791 = vmatmul.mubr.f32.gmra.mrb[0].mxu0 %v3608
      %v3792 = vpop.f32.mrb[0].mxu0
      %v3793 = vadd.f32 0.0, %v3792
      %v3794 = vpop.f32.mrb[0].mxu0
      %3795 = vmatprep.mubr.f32.mxu0 0.0
      %3796 = vmatmul.mubr.f32.gmra.mrb[0].mxu0 %v3610
      %v3797 = vpop.f32.mrb[0].mxu0
      %v3798 = vadd.f32 0.0, %v3797
      %v3799 = vpop.f32.mrb[0].mxu0
      %3800 = vmatprep.mubr.f32.mxu0 0.0
      %3801 = vmatmul.mubr.f32.gmra.mrb[0].mxu0 %v3612
      %v3802 = vpop.f32.mrb[0].mxu0
      %v3803 = vadd.f32 0.0, %v3802
      %v3804 = vpop.f32.mrb[0].mxu0
      %3805 = vmatprep.mubr.f32.mxu0 0.0
      %3806 = vmatmul.mubr.f32.gmra.mrb[0].mxu0 %v3614
      %v3807 = vpop.f32.mrb[0].mxu0
      %v3808 = vadd.f32 0.0, %v3807
      %v3809 = vpop.f32.mrb[0].mxu0
      %3810 = vmatprep.mubr.f32.mxu0 0.0
      %3811 = vmatmul.mubr.f32.gmra.mrb[0].mxu0 %v3616
      %v3812 = vpop.f32.mrb[0].mxu0
      %v3813 = vadd.f32 0.0, %v3812
      %v3814 = vpop.f32.mrb[0].mxu0
      %3815 = vmatprep.mubr.f32.mxu0 0.0
      %3816 = vmatmul.mubr.f32.gmra.mrb[0].mxu0 %v3618
      %v3817 = vpop.f32.mrb[0].mxu0
      %v3818 = vadd.f32 0.0, %v3817
      %v3819 = vpop.f32.mrb[0].mxu0
      %3820 = vmatprep.mubr.f32.mxu0 0.0
      %3821 = vmatmul.mubr.f32.gmra.mrb[0].mxu0 %v3620
      %v3822 = vpop.f32.mrb[0].mxu0
      %v3823 = vadd.f32 0.0, %v3822
      %v3824 = vpop.f32.mrb[0].mxu0
      %3825 = vmatprep.mubr.f32.mxu0 0.0
      %3826 = vmatmul.mubr.f32.gmra.mrb[0].mxu0 %v3622
      %v3827 = vpop.f32.mrb[0].mxu0
      %v3828 = vadd.f32 0.0, %v3827
      %v3829 = vpop.f32.mrb[0].mxu0
      %3830 = vmatprep.mubr.f32.mxu0 0.0
      %3831 = vmatmul.mubr.f32.gmra.mrb[0].mxu0 %v3624
      %v3832 = vpop.f32.mrb[0].mxu0
      %v3833 = vadd.f32 0.0, %v3832
      %v3834 = vpop.f32.mrb[0].mxu0
      %3835 = vmatprep.mubr.f32.mxu0 0.0
      %3836 = vmatmul.mubr.f32.gmra.mrb[0].mxu0 %v3626
      %v3837 = vpop.f32.mrb[0].mxu0
      %v3838 = vadd.f32 0.0, %v3837
      %v3839 = vpop.f32.mrb[0].mxu0
      %3840 = vmatprep.mubr.f32.mxu0 0.0
      %3841 = vmatmul.mubr.f32.gmra.mrb[0].mxu0 %v3628
      %v3842 = vpop.f32.mrb[0].mxu0
      %v3843 = vadd.f32 0.0, %v3842
      %v3844 = vpop.f32.mrb[0].mxu0
      %3845 = vmatprep.mubr.f32.mxu0 0.0
      %3846 = vmatmul.mubr.f32.gmra.mrb[0].mxu0 %v3630
      %v3847 = vpop.f32.mrb[0].mxu0
      %v3848 = vadd.f32 0.0, %v3847
      %v3849 = vpop.f32.mrb[0].mxu0
      %3850 = vmatprep.mubr.f32.mxu0 0.0
      %3851 = vmatmul.mubr.f32.gmra.mrb[0].mxu0 %v3632
      %v3852 = vpop.f32.mrb[0].mxu0
      %v3853 = vadd.f32 0.0, %v3852
      %v3854 = vpop.f32.mrb[0].mxu0
      %3855 = vmatprep.mubr.f32.mxu0 0.0
      %3856 = vmatmul.mubr.f32.gmra.mrb[0].mxu0 %v3634
      %v3857 = vpop.f32.mrb[0].mxu0
      %v3858 = vadd.f32 0.0, %v3857
      %v3859 = vpop.f32.mrb[0].mxu0
      %3860 = vmatprep.mubr.f32.mxu0 0.0
      %3861 = vmatmul.mubr.f32.gmra.mrb[0].mxu0 %v3636
      %v3862 = vpop.f32.mrb[0].mxu0
      %v3863 = vadd.f32 0.0, %v3862
      %v3864 = vpop.f32.mrb[0].mxu0
      %3865 = vdwg.mxu0
      %v3866 = vadd.f32 %v3316, %v3708
      %v3867 = vadd.f32 %v3317, %v3713
      %v3868 = vadd.f32 %v3318, %v3718
      %v3869 = vadd.f32 %v3319, %v3723
      %v3870 = vadd.f32 %v3320, %v3728
      %v3871 = vadd.f32 %v3321, %v3733
      %v3872 = vadd.f32 %v3322, %v3738
      %v3873 = vadd.f32 %v3323, %v3743
      %v3874 = vadd.f32 %v3324, %v3748
      %v3875 = vadd.f32 %v3325, %v3753
      %v3876 = vadd.f32 %v3326, %v3758
      %v3877 = vadd.f32 %v3327, %v3763
      %v3878 = vadd.f32 %v3328, %v3768
      %v3879 = vadd.f32 %v3329, %v3773
      %v3880 = vadd.f32 %v3330, %v3778
      %v3881 = vadd.f32 %v3331, %v3783
      %v3882 = vadd.f32 %v3332, %v3788
      %v3883 = vadd.f32 %v3333, %v3793
      %v3884 = vadd.f32 %v3334, %v3798
      %v3885 = vadd.f32 %v3335, %v3803
      %v3886 = vadd.f32 %v3336, %v3808
      %v3887 = vadd.f32 %v3337, %v3813
      %v3888 = vadd.f32 %v3338, %v3818
      %v3889 = vadd.f32 %v3339, %v3823
      %v3890 = vadd.f32 %v3340, %v3828
      %v3891 = vadd.f32 %v3341, %v3833
      %v3892 = vadd.f32 %v3342, %v3838
      %v3893 = vadd.f32 %v3343, %v3843
      %v3894 = vadd.f32 %v3344, %v3848
      %v3895 = vadd.f32 %v3345, %v3853
      %v3896 = vadd.f32 %v3346, %v3858
      %v3897 = vadd.f32 %v3347, %v3863
      %v3898 = vld [vmem:[%s2925] sm:$0xe]
      %v3899 = vld [vmem:[%s2925 + $0xc] sm:$0xe]
      %v3900 = vld [vmem:[%s2925 + $0x18] sm:$0xe]
      %v3901 = vld [vmem:[%s2925 + $0x24] sm:$0xe]
      %v3902 = vld [vmem:[%s2925 + $0x30] sm:$0xe]
      %v3903 = vld [vmem:[%s2925 + $0x3c] sm:$0xe]
      %v3904 = vld [vmem:[%s2925 + $0x48] sm:$0xe]
      %v3905 = vld [vmem:[%s2925 + $0x54] sm:$0xe]
      %v3906 = vld [vmem:[%s2925 + $0x60] sm:$0xe]
      %v3907 = vld [vmem:[%s2925 + $0x6c] sm:$0xe]
      %v3908 = vld [vmem:[%s2925 + $0x78] sm:$0xe]
      %v3909 = vld [vmem:[%s2925 + $0x84] sm:$0xe]
      %v3910 = vld [vmem:[%s2925 + $0x90] sm:$0xe]
      %v3911 = vld [vmem:[%s2925 + $0x9c] sm:$0xe]
      %v3912 = vld [vmem:[%s2925 + $0xa8] sm:$0xe]
      %v3913 = vld [vmem:[%s2925 + $0xb4] sm:$0xe]
      %v3914 = vunpack.c.l.bf16 %v3898
      %v3915 = vunpack.c.l.bf16 %v3899
      %v3916 = vunpack.c.l.bf16 %v3900
      %v3917 = vunpack.c.l.bf16 %v3901
      %v3918 = vunpack.c.l.bf16 %v3902
      %v3919 = vunpack.c.l.bf16 %v3903
      %v3920 = vunpack.c.l.bf16 %v3904
      %v3921 = vunpack.c.l.bf16 %v3905
      %v3922 = vunpack.c.l.bf16 %v3906
      %v3923 = vunpack.c.l.bf16 %v3907
      %v3924 = vunpack.c.l.bf16 %v3908
      %v3925 = vunpack.c.l.bf16 %v3909
      %v3926 = vunpack.c.l.bf16 %v3910
      %v3927 = vunpack.c.l.bf16 %v3911
      %v3928 = vunpack.c.l.bf16 %v3912
      %v3929 = vunpack.c.l.bf16 %v3913
      %v3946 = vrot.slane %v3914, 2
      %v3947 = vrot.slane %v3397, 2
      %v3948 = vsel %vm1091, %v3946, %v3947
      %v3949 = vrot.slane %v3398, 2
      %v3950 = vsel %vm1091, %v3947, %v3949
      %v3951 = vrot.slane %v3915, 2
      %v3952 = vrot.slane %v3400, 2
      %v3953 = vsel %vm1091, %v3951, %v3952
      %v3954 = vrot.slane %v3401, 2
      %v3955 = vsel %vm1091, %v3952, %v3954
      %v3956 = vrot.slane %v3916, 2
      %v3957 = vrot.slane %v3403, 2
      %v3958 = vsel %vm1091, %v3956, %v3957
      %v3959 = vrot.slane %v3404, 2
      %v3960 = vsel %vm1091, %v3957, %v3959
      %v3961 = vrot.slane %v3917, 2
      %v3962 = vrot.slane %v3406, 2
      %v3963 = vsel %vm1091, %v3961, %v3962
      %v3964 = vrot.slane %v3407, 2
      %v3965 = vsel %vm1091, %v3962, %v3964
      %v3966 = vrot.slane %v3918, 2
      %v3967 = vrot.slane %v3409, 2
      %v3968 = vsel %vm1091, %v3966, %v3967
      %v3969 = vrot.slane %v3410, 2
      %v3970 = vsel %vm1091, %v3967, %v3969
      %v3971 = vrot.slane %v3919, 2
      %v3972 = vrot.slane %v3412, 2
      %v3973 = vsel %vm1091, %v3971, %v3972
      %v3974 = vrot.slane %v3413, 2
      %v3975 = vsel %vm1091, %v3972, %v3974
      %v3976 = vrot.slane %v3920, 2
      %v3977 = vrot.slane %v3415, 2
      %v3978 = vsel %vm1091, %v3976, %v3977
      %v3979 = vrot.slane %v3416, 2
      %v3980 = vsel %vm1091, %v3977, %v3979
      %v3981 = vrot.slane %v3921, 2
      %v3982 = vrot.slane %v3418, 2
      %v3983 = vsel %vm1091, %v3981, %v3982
      %v3984 = vrot.slane %v3419, 2
      %v3985 = vsel %vm1091, %v3982, %v3984
      %v3986 = vrot.slane %v3922, 2
      %v3987 = vrot.slane %v3421, 2
      %v3988 = vsel %vm1091, %v3986, %v3987
      %v3989 = vrot.slane %v3422, 2
      %v3990 = vsel %vm1091, %v3987, %v3989
      %v3991 = vrot.slane %v3923, 2
      %v3992 = vrot.slane %v3424, 2
      %v3993 = vsel %vm1091, %v3991, %v3992
      %v3994 = vrot.slane %v3425, 2
      %v3995 = vsel %vm1091, %v3992, %v3994
      %v3996 = vrot.slane %v3924, 2
      %v3997 = vrot.slane %v3427, 2
      %v3998 = vsel %vm1091, %v3996, %v3997
      %v3999 = vrot.slane %v3428, 2
      %v4000 = vsel %vm1091, %v3997, %v3999
      %v4001 = vrot.slane %v3925, 2
      %v4002 = vrot.slane %v3430, 2
      %v4003 = vsel %vm1091, %v4001, %v4002
      %v4004 = vrot.slane %v3431, 2
      %v4005 = vsel %vm1091, %v4002, %v4004
      %v4006 = vrot.slane %v3926, 2
      %v4007 = vrot.slane %v3433, 2
      %v4008 = vsel %vm1091, %v4006, %v4007
      %v4009 = vrot.slane %v3434, 2
      %v4010 = vsel %vm1091, %v4007, %v4009
      %v4011 = vrot.slane %v3927, 2
      %v4012 = vrot.slane %v3436, 2
      %v4013 = vsel %vm1091, %v4011, %v4012
      %v4014 = vrot.slane %v3437, 2
      %v4015 = vsel %vm1091, %v4012, %v4014
      %v4016 = vrot.slane %v3928, 2
      %v4017 = vrot.slane %v3439, 2
      %v4018 = vsel %vm1091, %v4016, %v4017
      %v4019 = vrot.slane %v3440, 2
      %v4020 = vsel %vm1091, %v4017, %v4019
      %v4021 = vrot.slane %v3929, 2
      %v4022 = vrot.slane %v3442, 2
      %v4023 = vsel %vm1091, %v4021, %v4022
      %v4024 = vrot.slane %v3443, 2
      %v4025 = vsel %vm1091, %v4022, %v4024
      %s4026 = scalar_lea.vmem %s1, 32
      %v4027 = vld [vmem:[%s4026] sm:$0x7]
      %v4028 = vsel %vm457, %v3948, 0
      %v4030 = vsel %vm457, %v3950, 0
      %v4032 = vsel %vm457, %v3953, 0
      %v4034 = vsel %vm457, %v3955, 0
      %v4036 = vsel %vm457, %v3958, 0
      %v4038 = vsel %vm457, %v3960, 0
      %v4040 = vsel %vm457, %v3963, 0
      %v4042 = vsel %vm457, %v3965, 0
      %v4044 = vsel %vm457, %v3968, 0
      %v4046 = vsel %vm457, %v3970, 0
      %v4048 = vsel %vm457, %v3973, 0
      %v4050 = vsel %vm457, %v3975, 0
      %v4052 = vsel %vm457, %v3978, 0
      %v4054 = vsel %vm457, %v3980, 0
      %v4056 = vsel %vm457, %v3983, 0
      %v4058 = vsel %vm457, %v3985, 0
      %v4060 = vsel %vm457, %v3988, 0
      %v4062 = vsel %vm457, %v3990, 0
      %v4064 = vsel %vm457, %v3993, 0
      %v4066 = vsel %vm457, %v3995, 0
      %v4068 = vsel %vm457, %v3998, 0
      %v4070 = vsel %vm457, %v4000, 0
      %v4072 = vsel %vm457, %v4003, 0
      %v4074 = vsel %vm457, %v4005, 0
      %v4076 = vsel %vm457, %v4008, 0
      %v4078 = vsel %vm457, %v4010, 0
      %v4080 = vsel %vm457, %v4013, 0
      %v4082 = vsel %vm457, %v4015, 0
      %v4084 = vsel %vm457, %v4018, 0
      %v4086 = vsel %vm457, %v4020, 0
      %v4088 = vsel %vm457, %v4023, 0
      %v4090 = vsel %vm457, %v4025, 0
      %v4093 = vsel %vm522, %v4027, 0
      %4095 = vmatprep.subr.mxu0 0.0
      %4096 = vmatpush1.msra.mxu0 %v4093
      %4097 = vmatprep.subr.mxu0 0.0
      %4098 = vmatpush1.msra.mxu0 0.0
      %4099 = vmatprep.subr.mxu0 0.0
      %4100 = vmatpush1.msra.mxu0 0.0
      %4101 = vmatprep.subr.mxu0 0.0
      %4102 = vmatpush1.msra.mxu0 0.0
      %4103 = vmatprep.subr.mxu0 0.0
      %4104 = vmatpush1.msra.mxu0 0.0
      %4105 = vmatprep.subr.mxu0 0.0
      %4106 = vmatpush1.msra.mxu0 0.0
      %4107 = vmatprep.subr.mxu0 0.0
      %4108 = vmatpush1.msra.mxu0 0.0
      %4109 = vmatprep.subr.mxu0 0.0
      %4110 = vmatpush1.msra.mxu0 0.0
      %4111 = vmatprep.subr.mxu0 0.0
      %4112 = vmatpush1.msra.mxu0 0.0
      %4113 = vmatprep.subr.mxu0 0.0
      %4114 = vmatpush1.msra.mxu0 0.0
      %4115 = vmatprep.subr.mxu0 0.0
      %4116 = vmatpush1.msra.mxu0 0.0
      %4117 = vmatprep.subr.mxu0 0.0
      %4118 = vmatpush1.msra.mxu0 0.0
      %4119 = vmatprep.subr.mxu0 0.0
      %4120 = vmatpush1.msra.mxu0 0.0
      %4121 = vmatprep.subr.mxu0 0.0
      %4122 = vmatpush1.msra.mxu0 0.0
      %4123 = vmatprep.subr.mxu0 0.0
      %4124 = vmatpush1.msra.mxu0 0.0
      %4125 = vmatprep.subr.mxu0 0.0
      %4126 = vmatpush1.msra.mxu0 0.0
      %4127 = vmatprep.subr.mxu0 0.0
      %4128 = vmatpush1.msra.mxu0 0.0
      %4129 = vmatprep.subr.mxu0 0.0
      %4130 = vmatpush1.msra.mxu0 0.0
      %4131 = vmatprep.subr.mxu0 0.0
      %4132 = vmatpush1.msra.mxu0 0.0
      %4133 = vmatprep.subr.mxu0 0.0
      %4134 = vmatpush1.msra.mxu0 0.0
      %4135 = vmatprep.subr.mxu0 0.0
      %4136 = vmatpush1.msra.mxu0 0.0
      %4137 = vmatprep.subr.mxu0 0.0
      %4138 = vmatpush1.msra.mxu0 0.0
      %4139 = vmatprep.subr.mxu0 0.0
      %4140 = vmatpush1.msra.mxu0 0.0
      %4141 = vmatprep.subr.mxu0 0.0
      %4142 = vmatpush1.msra.mxu0 0.0
      %4143 = vmatprep.subr.mxu0 0.0
      %4144 = vmatpush1.msra.mxu0 0.0
      %4145 = vmatprep.subr.mxu0 0.0
      %4146 = vmatpush1.msra.mxu0 0.0
      %4147 = vmatprep.subr.mxu0 0.0
      %4148 = vmatpush1.msra.mxu0 0.0
      %4149 = vmatprep.subr.mxu0 0.0
      %4150 = vmatpush1.msra.mxu0 0.0
      %4151 = vmatprep.subr.mxu0 0.0
      %4152 = vmatpush1.msra.mxu0 0.0
      %4153 = vmatprep.subr.mxu0 0.0
      %4154 = vmatpush1.msra.mxu0 0.0
      %4155 = vmatprep.subr.mxu0 0.0
      %4156 = vmatpush1.msra.mxu0 0.0
      %4157 = vmatprep.subr.mxu0 0.0
      %4158 = vmatpush1.msra.mxu0 0.0
      %4159 = vmatprep.mubr.f32.mxu0 0.0
      %4160 = vmatmul.mubr.f32.gmra.mrb[0].mxu0 %v4028
      %v4161 = vpop.f32.mrb[0].mxu0
      %v4162 = vadd.f32 0.0, %v4161
      %v4163 = vpop.f32.mrb[0].mxu0
      %4164 = vmatprep.mubr.f32.mxu0 0.0
      %4165 = vmatmul.mubr.f32.gmra.mrb[0].mxu0 %v4030
      %v4166 = vpop.f32.mrb[0].mxu0
      %v4167 = vadd.f32 0.0, %v4166
      %v4168 = vpop.f32.mrb[0].mxu0
      %4169 = vmatprep.mubr.f32.mxu0 0.0
      %4170 = vmatmul.mubr.f32.gmra.mrb[0].mxu0 %v4032
      %v4171 = vpop.f32.mrb[0].mxu0
      %v4172 = vadd.f32 0.0, %v4171
      %v4173 = vpop.f32.mrb[0].mxu0
      %4174 = vmatprep.mubr.f32.mxu0 0.0
      %4175 = vmatmul.mubr.f32.gmra.mrb[0].mxu0 %v4034
      %v4176 = vpop.f32.mrb[0].mxu0
      %v4177 = vadd.f32 0.0, %v4176
      %v4178 = vpop.f32.mrb[0].mxu0
      %4179 = vmatprep.mubr.f32.mxu0 0.0
      %4180 = vmatmul.mubr.f32.gmra.mrb[0].mxu0 %v4036
      %v4181 = vpop.f32.mrb[0].mxu0
      %v4182 = vadd.f32 0.0, %v4181
      %v4183 = vpop.f32.mrb[0].mxu0
      %4184 = vmatprep.mubr.f32.mxu0 0.0
      %4185 = vmatmul.mubr.f32.gmra.mrb[0].mxu0 %v4038
      %v4186 = vpop.f32.mrb[0].mxu0
      %v4187 = vadd.f32 0.0, %v4186
      %v4188 = vpop.f32.mrb[0].mxu0
      %4189 = vmatprep.mubr.f32.mxu0 0.0
      %4190 = vmatmul.mubr.f32.gmra.mrb[0].mxu0 %v4040
      %v4191 = vpop.f32.mrb[0].mxu0
      %v4192 = vadd.f32 0.0, %v4191
      %v4193 = vpop.f32.mrb[0].mxu0
      %4194 = vmatprep.mubr.f32.mxu0 0.0
      %4195 = vmatmul.mubr.f32.gmra.mrb[0].mxu0 %v4042
      %v4196 = vpop.f32.mrb[0].mxu0
      %v4197 = vadd.f32 0.0, %v4196
      %v4198 = vpop.f32.mrb[0].mxu0
      %4199 = vmatprep.mubr.f32.mxu0 0.0
      %4200 = vmatmul.mubr.f32.gmra.mrb[0].mxu0 %v4044
      %v4201 = vpop.f32.mrb[0].mxu0
      %v4202 = vadd.f32 0.0, %v4201
      %v4203 = vpop.f32.mrb[0].mxu0
      %4204 = vmatprep.mubr.f32.mxu0 0.0
      %4205 = vmatmul.mubr.f32.gmra.mrb[0].mxu0 %v4046
      %v4206 = vpop.f32.mrb[0].mxu0
      %v4207 = vadd.f32 0.0, %v4206
      %v4208 = vpop.f32.mrb[0].mxu0
      %4209 = vmatprep.mubr.f32.mxu0 0.0
      %4210 = vmatmul.mubr.f32.gmra.mrb[0].mxu0 %v4048
      %v4211 = vpop.f32.mrb[0].mxu0
      %v4212 = vadd.f32 0.0, %v4211
      %v4213 = vpop.f32.mrb[0].mxu0
      %4214 = vmatprep.mubr.f32.mxu0 0.0
      %4215 = vmatmul.mubr.f32.gmra.mrb[0].mxu0 %v4050
      %v4216 = vpop.f32.mrb[0].mxu0
      %v4217 = vadd.f32 0.0, %v4216
      %v4218 = vpop.f32.mrb[0].mxu0
      %4219 = vmatprep.mubr.f32.mxu0 0.0
      %4220 = vmatmul.mubr.f32.gmra.mrb[0].mxu0 %v4052
      %v4221 = vpop.f32.mrb[0].mxu0
      %v4222 = vadd.f32 0.0, %v4221
      %v4223 = vpop.f32.mrb[0].mxu0
      %4224 = vmatprep.mubr.f32.mxu0 0.0
      %4225 = vmatmul.mubr.f32.gmra.mrb[0].mxu0 %v4054
      %v4226 = vpop.f32.mrb[0].mxu0
      %v4227 = vadd.f32 0.0, %v4226
      %v4228 = vpop.f32.mrb[0].mxu0
      %4229 = vmatprep.mubr.f32.mxu0 0.0
      %4230 = vmatmul.mubr.f32.gmra.mrb[0].mxu0 %v4056
      %v4231 = vpop.f32.mrb[0].mxu0
      %v4232 = vadd.f32 0.0, %v4231
      %v4233 = vpop.f32.mrb[0].mxu0
      %4234 = vmatprep.mubr.f32.mxu0 0.0
      %4235 = vmatmul.mubr.f32.gmra.mrb[0].mxu0 %v4058
      %v4236 = vpop.f32.mrb[0].mxu0
      %v4237 = vadd.f32 0.0, %v4236
      %v4238 = vpop.f32.mrb[0].mxu0
      %4239 = vmatprep.mubr.f32.mxu0 0.0
      %4240 = vmatmul.mubr.f32.gmra.mrb[0].mxu0 %v4060
      %v4241 = vpop.f32.mrb[0].mxu0
      %v4242 = vadd.f32 0.0, %v4241
      %v4243 = vpop.f32.mrb[0].mxu0
      %4244 = vmatprep.mubr.f32.mxu0 0.0
      %4245 = vmatmul.mubr.f32.gmra.mrb[0].mxu0 %v4062
      %v4246 = vpop.f32.mrb[0].mxu0
      %v4247 = vadd.f32 0.0, %v4246
      %v4248 = vpop.f32.mrb[0].mxu0
      %4249 = vmatprep.mubr.f32.mxu0 0.0
      %4250 = vmatmul.mubr.f32.gmra.mrb[0].mxu0 %v4064
      %v4251 = vpop.f32.mrb[0].mxu0
      %v4252 = vadd.f32 0.0, %v4251
      %v4253 = vpop.f32.mrb[0].mxu0
      %4254 = vmatprep.mubr.f32.mxu0 0.0
      %4255 = vmatmul.mubr.f32.gmra.mrb[0].mxu0 %v4066
      %v4256 = vpop.f32.mrb[0].mxu0
      %v4257 = vadd.f32 0.0, %v4256
      %v4258 = vpop.f32.mrb[0].mxu0
      %4259 = vmatprep.mubr.f32.mxu0 0.0
      %4260 = vmatmul.mubr.f32.gmra.mrb[0].mxu0 %v4068
      %v4261 = vpop.f32.mrb[0].mxu0
      %v4262 = vadd.f32 0.0, %v4261
      %v4263 = vpop.f32.mrb[0].mxu0
      %4264 = vmatprep.mubr.f32.mxu0 0.0
      %4265 = vmatmul.mubr.f32.gmra.mrb[0].mxu0 %v4070
      %v4266 = vpop.f32.mrb[0].mxu0
      %v4267 = vadd.f32 0.0, %v4266
      %v4268 = vpop.f32.mrb[0].mxu0
      %4269 = vmatprep.mubr.f32.mxu0 0.0
      %4270 = vmatmul.mubr.f32.gmra.mrb[0].mxu0 %v4072
      %v4271 = vpop.f32.mrb[0].mxu0
      %v4272 = vadd.f32 0.0, %v4271
      %v4273 = vpop.f32.mrb[0].mxu0
      %4274 = vmatprep.mubr.f32.mxu0 0.0
      %4275 = vmatmul.mubr.f32.gmra.mrb[0].mxu0 %v4074
      %v4276 = vpop.f32.mrb[0].mxu0
      %v4277 = vadd.f32 0.0, %v4276
      %v4278 = vpop.f32.mrb[0].mxu0
      %4279 = vmatprep.mubr.f32.mxu0 0.0
      %4280 = vmatmul.mubr.f32.gmra.mrb[0].mxu0 %v4076
      %v4281 = vpop.f32.mrb[0].mxu0
      %v4282 = vadd.f32 0.0, %v4281
      %v4283 = vpop.f32.mrb[0].mxu0
      %4284 = vmatprep.mubr.f32.mxu0 0.0
      %4285 = vmatmul.mubr.f32.gmra.mrb[0].mxu0 %v4078
      %v4286 = vpop.f32.mrb[0].mxu0
      %v4287 = vadd.f32 0.0, %v4286
      %v4288 = vpop.f32.mrb[0].mxu0
      %4289 = vmatprep.mubr.f32.mxu0 0.0
      %4290 = vmatmul.mubr.f32.gmra.mrb[0].mxu0 %v4080
      %v4291 = vpop.f32.mrb[0].mxu0
      %v4292 = vadd.f32 0.0, %v4291
      %v4293 = vpop.f32.mrb[0].mxu0
      %4294 = vmatprep.mubr.f32.mxu0 0.0
      %4295 = vmatmul.mubr.f32.gmra.mrb[0].mxu0 %v4082
      %v4296 = vpop.f32.mrb[0].mxu0
      %v4297 = vadd.f32 0.0, %v4296
      %v4298 = vpop.f32.mrb[0].mxu0
      %4299 = vmatprep.mubr.f32.mxu0 0.0
      %4300 = vmatmul.mubr.f32.gmra.mrb[0].mxu0 %v4084
      %v4301 = vpop.f32.mrb[0].mxu0
      %v4302 = vadd.f32 0.0, %v4301
      %v4303 = vpop.f32.mrb[0].mxu0
      %4304 = vmatprep.mubr.f32.mxu0 0.0
      %4305 = vmatmul.mubr.f32.gmra.mrb[0].mxu0 %v4086
      %v4306 = vpop.f32.mrb[0].mxu0
      %v4307 = vadd.f32 0.0, %v4306
      %v4308 = vpop.f32.mrb[0].mxu0
      %4309 = vmatprep.mubr.f32.mxu0 0.0
      %4310 = vmatmul.mubr.f32.gmra.mrb[0].mxu0 %v4088
      %v4311 = vpop.f32.mrb[0].mxu0
      %v4312 = vadd.f32 0.0, %v4311
      %v4313 = vpop.f32.mrb[0].mxu0
      %4314 = vmatprep.mubr.f32.mxu0 0.0
      %4315 = vmatmul.mubr.f32.gmra.mrb[0].mxu0 %v4090
      %v4316 = vpop.f32.mrb[0].mxu0
      %v4317 = vadd.f32 0.0, %v4316
      %v4318 = vpop.f32.mrb[0].mxu0
      %4319 = vdwg.mxu0
      %v4320 = vadd.f32 %v3866, %v4162
      %v4321 = vadd.f32 %v3867, %v4167
      %v4322 = vadd.f32 %v3868, %v4172
      %v4323 = vadd.f32 %v3869, %v4177
      %v4324 = vadd.f32 %v3870, %v4182
      %v4325 = vadd.f32 %v3871, %v4187
      %v4326 = vadd.f32 %v3872, %v4192
      %v4327 = vadd.f32 %v3873, %v4197
      %v4328 = vadd.f32 %v3874, %v4202
      %v4329 = vadd.f32 %v3875, %v4207
      %v4330 = vadd.f32 %v3876, %v4212
      %v4331 = vadd.f32 %v3877, %v4217
      %v4332 = vadd.f32 %v3878, %v4222
      %v4333 = vadd.f32 %v3879, %v4227
      %v4334 = vadd.f32 %v3880, %v4232
      %v4335 = vadd.f32 %v3881, %v4237
      %v4336 = vadd.f32 %v3882, %v4242
      %v4337 = vadd.f32 %v3883, %v4247
      %v4338 = vadd.f32 %v3884, %v4252
      %v4339 = vadd.f32 %v3885, %v4257
      %v4340 = vadd.f32 %v3886, %v4262
      %v4341 = vadd.f32 %v3887, %v4267
      %v4342 = vadd.f32 %v3888, %v4272
      %v4343 = vadd.f32 %v3889, %v4277
      %v4344 = vadd.f32 %v3890, %v4282
      %v4345 = vadd.f32 %v3891, %v4287
      %v4346 = vadd.f32 %v3892, %v4292
      %v4347 = vadd.f32 %v3893, %v4297
      %v4348 = vadd.f32 %v3894, %v4302
      %v4349 = vadd.f32 %v3895, %v4307
      %v4350 = vadd.f32 %v3896, %v4312
      %v4351 = vadd.f32 %v3897, %v4317
      %v4352 = vld [vmem:[%s2] sm:$0x1]
      %v4354 = vlaneseq
      %v4355 = vshrl.u32 %v4354, 7
      %v4356 = vsub.s32 0, %v4355
      %v4357 = vrot.slane %v4352, %v4356
      %v4359 = vadd.f32 %v4320, %v4357
      %v4360 = vadd.f32 %v4321, %v4357
      %v4361 = vadd.f32 %v4322, %v4357
      %v4362 = vadd.f32 %v4323, %v4357
      %v4363 = vadd.f32 %v4324, %v4357
      %v4364 = vadd.f32 %v4325, %v4357
      %v4365 = vadd.f32 %v4326, %v4357
      %v4366 = vadd.f32 %v4327, %v4357
      %v4367 = vadd.f32 %v4328, %v4357
      %v4368 = vadd.f32 %v4329, %v4357
      %v4369 = vadd.f32 %v4330, %v4357
      %v4370 = vadd.f32 %v4331, %v4357
      %v4371 = vadd.f32 %v4332, %v4357
      %v4372 = vadd.f32 %v4333, %v4357
      %v4373 = vadd.f32 %v4334, %v4357
      %v4374 = vadd.f32 %v4335, %v4357
      %v4375 = vadd.f32 %v4336, %v4357
      %v4376 = vadd.f32 %v4337, %v4357
      %v4377 = vadd.f32 %v4338, %v4357
      %v4378 = vadd.f32 %v4339, %v4357
      %v4379 = vadd.f32 %v4340, %v4357
      %v4380 = vadd.f32 %v4341, %v4357
      %v4381 = vadd.f32 %v4342, %v4357
      %v4382 = vadd.f32 %v4343, %v4357
      %v4383 = vadd.f32 %v4344, %v4357
      %v4384 = vadd.f32 %v4345, %v4357
      %v4385 = vadd.f32 %v4346, %v4357
      %v4386 = vadd.f32 %v4347, %v4357
      %v4387 = vadd.f32 %v4348, %v4357
      %v4388 = vadd.f32 %v4349, %v4357
      %v4389 = vadd.f32 %v4350, %v4357
      %v4390 = vadd.f32 %v4351, %v4357
      %p4391 = scmp.eq.s32.totalorder %s21, 0
      // Predicated region
      $region33: #{byol_forward.2} parent=31 // pred_check
        %p4392 = pneg %p4391
      $region34: #{byol_forward.2} parent=31 // pred_check_branch
        %4394 = sbr.rel (%p4392) target = $region36
      $region35: #{byol_forward.2} parent=31 // pred_region
        %4395 = vst [vmem:[%s225] sm:$0x1] 0.0
        %4396 = vst [vmem:[%s228] sm:$0x1] 0.0
      $region36: #{byol_forward.2} parent=31 // pred_fallthru
        _
      %v4397 = vld [vmem:[%s225] sm:$0x1]
      %v4398 = vadd.f32 %v4359, %v4360
      %v4399 = vadd.f32 %v4398, %v4361
      %v4400 = vadd.f32 %v4399, %v4362
      %v4401 = vadd.f32 %v4400, %v4363
      %v4402 = vadd.f32 %v4401, %v4364
      %v4403 = vadd.f32 %v4402, %v4365
      %v4404 = vadd.f32 %v4403, %v4366
      %v4405 = vadd.f32 %v4404, %v4367
      %v4406 = vadd.f32 %v4405, %v4368
      %v4407 = vadd.f32 %v4406, %v4369
      %v4408 = vadd.f32 %v4407, %v4370
      %v4409 = vadd.f32 %v4408, %v4371
      %v4410 = vadd.f32 %v4409, %v4372
      %v4411 = vadd.f32 %v4410, %v4373
      %v4412 = vadd.f32 %v4411, %v4374
      %v4413 = vadd.f32 %v4412, %v4375
      %v4414 = vadd.f32 %v4413, %v4376
      %v4415 = vadd.f32 %v4414, %v4377
      %v4416 = vadd.f32 %v4415, %v4378
      %v4417 = vadd.f32 %v4416, %v4379
      %v4418 = vadd.f32 %v4417, %v4380
      %v4419 = vadd.f32 %v4418, %v4381
      %v4420 = vadd.f32 %v4419, %v4382
      %v4421 = vadd.f32 %v4420, %v4383
      %v4422 = vadd.f32 %v4421, %v4384
      %v4423 = vadd.f32 %v4422, %v4385
      %v4424 = vadd.f32 %v4423, %v4386
      %v4425 = vadd.f32 %v4424, %v4387
      %v4426 = vadd.f32 %v4425, %v4388
      %v4427 = vadd.f32 %v4426, %v4389
      %v4428 = vadd.f32 %v4427, %v4390
      %v4429 = vrot.slane %v4428, 4
      %v4430 = vadd.f32 %v4428, %v4429
      %v4431 = vrot.slane %v4430, 2
      %v4432 = vadd.f32 %v4430, %v4431
      %v4433 = vrot.slane %v4432, 1
      %v4434 = vadd.f32 %v4432, %v4433
      %v4435 = vadd.f32 %v4397, %v4434
      %4436 = vst [vmem:[%s225] sm:$0x1] %v4435
      %v4437 = vld [vmem:[%s228] sm:$0x1]
      %v4438 = vmul.f32 %v4359, %v4359
      %v4439 = vmul.f32 %v4360, %v4360
      %v4440 = vmul.f32 %v4361, %v4361
      %v4441 = vmul.f32 %v4362, %v4362
      %v4442 = vmul.f32 %v4363, %v4363
      %v4443 = vmul.f32 %v4364, %v4364
      %v4444 = vmul.f32 %v4365, %v4365
      %v4445 = vmul.f32 %v4366, %v4366
      %v4446 = vmul.f32 %v4367, %v4367
      %v4447 = vmul.f32 %v4368, %v4368
      %v4448 = vmul.f32 %v4369, %v4369
      %v4449 = vmul.f32 %v4370, %v4370
      %v4450 = vmul.f32 %v4371, %v4371
      %v4451 = vmul.f32 %v4372, %v4372
      %v4452 = vmul.f32 %v4373, %v4373
      %v4453 = vmul.f32 %v4374, %v4374
      %v4454 = vmul.f32 %v4375, %v4375
      %v4455 = vmul.f32 %v4376, %v4376
      %v4456 = vmul.f32 %v4377, %v4377
      %v4457 = vmul.f32 %v4378, %v4378
      %v4458 = vmul.f32 %v4379, %v4379
      %v4459 = vmul.f32 %v4380, %v4380
      %v4460 = vmul.f32 %v4381, %v4381
      %v4461 = vmul.f32 %v4382, %v4382
      %v4462 = vmul.f32 %v4383, %v4383
      %v4463 = vmul.f32 %v4384, %v4384
      %v4464 = vmul.f32 %v4385, %v4385
      %v4465 = vmul.f32 %v4386, %v4386
      %v4466 = vmul.f32 %v4387, %v4387
      %v4467 = vmul.f32 %v4388, %v4388
      %v4468 = vmul.f32 %v4389, %v4389
      %v4469 = vmul.f32 %v4390, %v4390
      %v4470 = vadd.f32 %v4438, %v4439
      %v4471 = vadd.f32 %v4470, %v4440
      %v4472 = vadd.f32 %v4471, %v4441
      %v4473 = vadd.f32 %v4472, %v4442
      %v4474 = vadd.f32 %v4473, %v4443
      %v4475 = vadd.f32 %v4474, %v4444
      %v4476 = vadd.f32 %v4475, %v4445
      %v4477 = vadd.f32 %v4476, %v4446
      %v4478 = vadd.f32 %v4477, %v4447
      %v4479 = vadd.f32 %v4478, %v4448
      %v4480 = vadd.f32 %v4479, %v4449
      %v4481 = vadd.f32 %v4480, %v4450
      %v4482 = vadd.f32 %v4481, %v4451
      %v4483 = vadd.f32 %v4482, %v4452
      %v4484 = vadd.f32 %v4483, %v4453
      %v4485 = vadd.f32 %v4484, %v4454
      %v4486 = vadd.f32 %v4485, %v4455
      %v4487 = vadd.f32 %v4486, %v4456
      %v4488 = vadd.f32 %v4487, %v4457
      %v4489 = vadd.f32 %v4488, %v4458
      %v4490 = vadd.f32 %v4489, %v4459
      %v4491 = vadd.f32 %v4490, %v4460
      %v4492 = vadd.f32 %v4491, %v4461
      %v4493 = vadd.f32 %v4492, %v4462
      %v4494 = vadd.f32 %v4493, %v4463
      %v4495 = vadd.f32 %v4494, %v4464
      %v4496 = vadd.f32 %v4495, %v4465
      %v4497 = vadd.f32 %v4496, %v4466
      %v4498 = vadd.f32 %v4497, %v4467
      %v4499 = vadd.f32 %v4498, %v4468
      %v4500 = vadd.f32 %v4499, %v4469
      %v4501 = vrot.slane %v4500, 4
      %v4502 = vadd.f32 %v4500, %v4501
      %v4503 = vrot.slane %v4502, 2
      %v4504 = vadd.f32 %v4502, %v4503
      %v4505 = vrot.slane %v4504, 1
      %v4506 = vadd.f32 %v4504, %v4505
      %v4507 = vadd.f32 %v4437, %v4506
      %4508 = vst [vmem:[%s228] sm:$0x1] %v4507
      %p4509 = scmp.lt.s32.totalorder %s20, 0
      %s4510 = scalar_select %p4509, %s20, 0
      %s4511 = scalar_lea.vmem %s3, %s4510
      %p4512 = scmp.lt.s32.totalorder %s20, 0
      %s4513 = scalar_select %p4512, %s20, 0
      %s4514 = scalar_lea.vmem %s4, %s4513
      // Predicated region
      $region37: #{byol_forward.2} parent=31 // pred_check
        %p4515 = pneg %p116
      $region38: #{byol_forward.2} parent=31 // pred_check_branch
        %4517 = sbr.rel (%p4515) target = $region40
      $region39: #{byol_forward.2} parent=31 // pred_region
        _
      $region40: #{byol_forward.2} parent=31 // pred_fallthru
        _
      // Predicated region
      $region41: #{byol_forward.2} parent=31 // pred_check
        %p4518 = pneg %p142
      $region42: #{byol_forward.2} parent=31 // pred_check_branch
        %4520 = sbr.rel (%p4518) target = $region44
      $region43: #{byol_forward.2} parent=31 // pred_region
        _
      $region44: #{byol_forward.2} parent=31 // pred_fallthru
        _
      // Predicated region
      $region45: #{byol_forward.2} parent=31 // pred_check
        %p4521 = pneg %p116
      $region46: #{byol_forward.2} parent=31 // pred_check_branch
        %4523 = sbr.rel (%p4521) target = $region48
      $region47: #{byol_forward.2} parent=31 // pred_region
        %p4524 = scmp.lt.s32.totalorder %s20, 0
        %s4525 = scalar_select %p4524, %s20, 0
        %s4526 = scalar_lea.vmem %s3, %s4525
      $region48: #{byol_forward.2} parent=31 // pred_fallthru
        _
      // Predicated region
      $region49: #{byol_forward.2} parent=31 // pred_check
        %p4527 = pneg %p142
      $region50: #{byol_forward.2} parent=31 // pred_check_branch
        %4529 = sbr.rel (%p4527) target = $region52
      $region51: #{byol_forward.2} parent=31 // pred_region
        %p4530 = scmp.lt.s32.totalorder %s20, 0
        %s4531 = scalar_select %p4530, %s20, 0
        %s4532 = scalar_lea.vmem %s4, %s4531
      $region52: #{byol_forward.2} parent=31 // pred_fallthru
        _
    $region32: #{byol_forward.2} parent=5 // pred_fallthru
      _
    %p4533 = scmp.le.s32.totalorder 2, %s11
    // Predicated region
    $region53: #{byol_forward.2} parent=5 // pred_check
      %p4534 = pneg %p4533
    $region54: #{byol_forward.2} parent=5 // pred_check_branch
      %4536 = sbr.rel (%p4534) target = $region56
    $region55: #{byol_forward.2} parent=5 // pred_region
      %s4537 = ssub.s32 %s11, 2
    $region56: #{byol_forward.2} parent=5 // pred_fallthru
      _
  $region6: #{byol_forward.2} parent=0 // loop_footer
    %s15 = sadd.s32 1, %s11
  $region7: #{byol_forward.2} parent=0 // loop_footer_branch
    %10 = sbr.rel target = $region3
  $region8: #{byol_forward.2} parent=0 // loop_exit
    _

// kernel: byol_forward.3
$region0: #{byol_forward.3}
  #allocation0 [shape = 'u32[]', space=smem, size = 0x4, offset = 0x4, fixed_abs, tag = 'smem constant byte address 0x4 - core index']
  #allocation1 [shape = 'u32[144,128]{1,0:T(1,128)}', space=vmem, size = 0x12000, scoped, tag = 'internal scratch']
  %s0 = inlined_call_operand.vmem [shape: bf16[1,2,18,18,3], index: 0, kind: input, shape index: {}]
  %s1 = inlined_call_operand.vmem [shape: f32[9,3,128], index: 1, kind: input, shape index: {}]
  %s2 = inlined_call_operand.vmem [shape: f32[1,128], index: 2, kind: input, shape index: {}]
  %s3 = inlined_call_operand.vmem [shape: f32[1,128], index: 3, kind: input, shape index: {}]
  %s4 = inlined_call_operand.vmem [shape: f32[1,128], index: 4, kind: input, shape index: {}]
  %s5 = inlined_call_operand.vmem [shape: f32[1,1,128], index: 5, kind: input, shape index: {}]
  %s6 = inlined_call_operand.vmem [shape: f32[1,1,128], index: 6, kind: input, shape index: {}]
  %s7 = inlined_call_operand.vmem [shape: f32[1,2,128], index: 7, kind: output, shape index: {}]
  %s8 = sld [smem:[#allocation0]]
  $region61: #{byol_forward.3} parent=0
    _
  %s10 = ssub.s32 1, %s8
  %s11 = scalar_select 0, %s10, %s8
  loop: start=0, step=1, limit=4
  $region2: #{byol_forward.3} parent=0 // loop_pre_header
    _
  $region3: #{byol_forward.3} parent=0 // loop_header
    %s13 = sphi 0, %s17
    %p14 = scmp.ge.s32.totalorder %s13, 4
    %s20 = sphi 0, %s32
    %s21 = sphi 0, %s28
    %s22 = sphi 0, %s20
    %s23 = sphi 0, %s21
    %s24 = sphi 0, %s22
    %s25 = sphi 0, %s23
    %s37 = sphi 0, %s39
    %s40 = sphi 0, %s37
    %s41 = sphi 0, %s40
    %s57 = sphi 0, %s41
    %s61 = sphi 0, %s61
    %s63 = sphi 0, %s61
    %s64 = sphi 0, %s63
    %s78 = sphi 0, %s64
    %s82 = sphi 0, %s82
    %s84 = sphi 0, %s82
    %s85 = sphi 0, %s84
    %s99 = sphi 0, %s85
    %s103 = sphi 0, %s103
    %s105 = sphi 0, %s103
    %s106 = sphi 0, %s105
    %s120 = sphi 0, %s106
    %s124 = sphi 0, %s124
    %s126 = sphi 0, %s124
    %s127 = sphi 0, %s126
    %s141 = sphi 0, %s127
    %s147 = sphi 0, %s149
    %s150 = sphi 0, %s147
    %s151 = sphi 0, %s150
    %s167 = sphi 0, %s151
    %s173 = sphi 0, %s175
    %s176 = sphi 0, %s173
    %s177 = sphi 0, %s176
    %s193 = sphi 0, %s177
    %s199 = sphi 0, %s201
    %s202 = sphi 0, %s199
    %s203 = sphi 0, %s202
    %s219 = sphi 0, %s203
  $region4: #{byol_forward.3} parent=0 // loop_header_branch
    %16 = sbr.rel (%p14) target = $region8
  $region5: #{byol_forward.3} parent=0 // loop_body
    %s18 = ssub.s32 %s13, 1
    %s19 = ssub.s32 %s13, 2
    %s26 = sadd.s32 1, %s21
    %p27 = scmp.ge.s32.totalorder %s26, 2
    %s28 = scalar_select %p27, 0, %s26
    %s29 = sadd.s32 1, %s20
    %s30 = scalar_select %p27, %s29, %s20
    %p31 = scmp.ge.s32.totalorder %s30, 1
    %s32 = scalar_select %p31, 0, %s30
    %s33 = ssub.s32 %s20, %s32
    %s34 = ssub.s32 %s21, %s28
    %s35 = sor.u32 %s33, %s34
    %p36 = scmp.eq.s32.totalorder %s35, 0
    %s38 = sadd.s32 %s37, 1
    %s39 = scalar_select %p36, %s37, %s38
    %p42 = pneg %p36
    %p43 = scmp.eq.s32.totalorder %s13, 1
    %p44 = por %p42, %p43
    %p45 = scmp.ne.s32.totalorder %s37, %s40
    %p46 = scmp.eq.s32.totalorder %s13, 0
    %p47 = por %p45, %p46
    %p48 = scmp.ne.s32.totalorder %s37, %s40
    %p49 = scmp.eq.s32.totalorder %s18, 1
    %p50 = por %p48, %p49
    %p51 = scmp.ne.s32.totalorder %s40, %s41
    %p52 = scmp.eq.s32.totalorder %s18, 0
    %p53 = por %p51, %p52
    %p54 = scmp.ne.s32.totalorder %s40, %s41
    %p55 = scmp.eq.s32.totalorder %s19, 1
    %p56 = por %p54, %p55
    %p58 = scmp.ne.s32.totalorder %s41, %s57
    %p59 = scmp.eq.s32.totalorder %s19, 0
    %p60 = por %p58, %p59
    %s62 = sadd.s32 %s61, 1
    %p65 = scmp.eq.s32.totalorder %s13, 1
    %p66 = scmp.ne.s32.totalorder %s61, %s63
    %p67 = scmp.eq.s32.totalorder %s13, 0
    %p68 = por %p66, %p67
    %p69 = scmp.ne.s32.totalorder %s61, %s63
    %p70 = scmp.eq.s32.totalorder %s18, 1
    %p71 = por %p69, %p70
    %p72 = scmp.ne.s32.totalorder %s63, %s64
    %p73 = scmp.eq.s32.totalorder %s18, 0
    %p74 = por %p72, %p73
    %p75 = scmp.ne.s32.totalorder %s63, %s64
    %p76 = scmp.eq.s32.totalorder %s19, 1
    %p77 = por %p75, %p76
    %p79 = scmp.ne.s32.totalorder %s64, %s78
    %p80 = scmp.eq.s32.totalorder %s19, 0
    %p81 = por %p79, %p80
    %s83 = sadd.s32 %s82, 1
    %p86 = scmp.eq.s32.totalorder %s13, 1
    %p87 = scmp.ne.s32.totalorder %s82, %s84
    %p88 = scmp.eq.s32.totalorder %s13, 0
    %p89 = por %p87, %p88
    %p90 = scmp.ne.s32.totalorder %s82, %s84
    %p91 = scmp.eq.s32.totalorder %s18, 1
    %p92 = por %p90, %p91
    %p93 = scmp.ne.s32.totalorder %s84, %s85
    %p94 = scmp.eq.s32.totalorder %s18, 0
    %p95 = por %p93, %p94
    %p96 = scmp.ne.s32.totalorder %s84, %s85
    %p97 = scmp.eq.s32.totalorder %s19, 1
    %p98 = por %p96, %p97
    %p100 = scmp.ne.s32.totalorder %s85, %s99
    %p101 = scmp.eq.s32.totalorder %s19, 0
    %p102 = por %p100, %p101
    %s104 = sadd.s32 %s103, 1
    %p107 = scmp.eq.s32.totalorder %s13, 1
    %p108 = scmp.ne.s32.totalorder %s103, %s105
    %p109 = scmp.eq.s32.totalorder %s13, 0
    %p110 = por %p108, %p109
    %p111 = scmp.ne.s32.totalorder %s103, %s105
    %p112 = scmp.eq.s32.totalorder %s18, 1
    %p113 = por %p111, %p112
    %p114 = scmp.ne.s32.totalorder %s105, %s106
    %p115 = scmp.eq.s32.totalorder %s18, 0
    %p116 = por %p114, %p115
    %p117 = scmp.ne.s32.totalorder %s105, %s106
    %p118 = scmp.eq.s32.totalorder %s19, 1
    %p119 = por %p117, %p118
    %p121 = scmp.ne.s32.totalorder %s106, %s120
    %p122 = scmp.eq.s32.totalorder %s19, 0
    %p123 = por %p121, %p122
    %s125 = sadd.s32 %s124, 1
    %p128 = scmp.eq.s32.totalorder %s13, 1
    %p129 = scmp.ne.s32.totalorder %s124, %s126
    %p130 = scmp.eq.s32.totalorder %s13, 0
    %p131 = por %p129, %p130
    %p132 = scmp.ne.s32.totalorder %s124, %s126
    %p133 = scmp.eq.s32.totalorder %s18, 1
    %p134 = por %p132, %p133
    %p135 = scmp.ne.s32.totalorder %s126, %s127
    %p136 = scmp.eq.s32.totalorder %s18, 0
    %p137 = por %p135, %p136
    %p138 = scmp.ne.s32.totalorder %s126, %s127
    %p139 = scmp.eq.s32.totalorder %s19, 1
    %p140 = por %p138, %p139
    %p142 = scmp.ne.s32.totalorder %s127, %s141
    %p143 = scmp.eq.s32.totalorder %s19, 0
    %p144 = por %p142, %p143
    %s145 = ssub.s32 %s20, %s32
    %p146 = scmp.eq.s32.totalorder %s145, 0
    %s148 = sadd.s32 %s147, 1
    %s149 = scalar_select %p146, %s147, %s148
    %p152 = pneg %p146
    %p153 = scmp.eq.s32.totalorder %s13, 1
    %p154 = por %p152, %p153
    %p155 = scmp.ne.s32.totalorder %s147, %s150
    %p156 = scmp.eq.s32.totalorder %s13, 0
    %p157 = por %p155, %p156
    %p158 = scmp.ne.s32.totalorder %s147, %s150
    %p159 = scmp.eq.s32.totalorder %s18, 1
    %p160 = por %p158, %p159
    %p161 = scmp.ne.s32.totalorder %s150, %s151
    %p162 = scmp.eq.s32.totalorder %s18, 0
    %p163 = por %p161, %p162
    %p164 = scmp.ne.s32.totalorder %s150, %s151
    %p165 = scmp.eq.s32.totalorder %s19, 1
    %p166 = por %p164, %p165
    %p168 = scmp.ne.s32.totalorder %s151, %s167
    %p169 = scmp.eq.s32.totalorder %s19, 0
    %p170 = por %p168, %p169
    %s171 = ssub.s32 %s20, %s32
    %p172 = scmp.eq.s32.totalorder %s171, 0
    %s174 = sadd.s32 %s173, 1
    %s175 = scalar_select %p172, %s173, %s174
    %p178 = pneg %p172
    %p179 = scmp.eq.s32.totalorder %s13, 1
    %p180 = por %p178, %p179
    %p181 = scmp.ne.s32.totalorder %s173, %s176
    %p182 = scmp.eq.s32.totalorder %s13, 0
    %p183 = por %p181, %p182
    %p184 = scmp.ne.s32.totalorder %s173, %s176
    %p185 = scmp.eq.s32.totalorder %s18, 1
    %p186 = por %p184, %p185
    %p187 = scmp.ne.s32.totalorder %s176, %s177
    %p188 = scmp.eq.s32.totalorder %s18, 0
    %p189 = por %p187, %p188
    %p190 = scmp.ne.s32.totalorder %s176, %s177
    %p191 = scmp.eq.s32.totalorder %s19, 1
    %p192 = por %p190, %p191
    %p194 = scmp.ne.s32.totalorder %s177, %s193
    %p195 = scmp.eq.s32.totalorder %s19, 0
    %p196 = por %p194, %p195
    %s197 = ssub.s32 %s20, %s32
    %p198 = scmp.eq.s32.totalorder %s197, 0
    %s200 = sadd.s32 %s199, 1
    %s201 = scalar_select %p198, %s199, %s200
    %p204 = pneg %p198
    %p205 = scmp.eq.s32.totalorder %s13, 1
    %p206 = por %p204, %p205
    %p207 = scmp.ne.s32.totalorder %s199, %s202
    %p208 = scmp.eq.s32.totalorder %s13, 0
    %p209 = por %p207, %p208
    %p210 = scmp.ne.s32.totalorder %s199, %s202
    %p211 = scmp.eq.s32.totalorder %s18, 1
    %p212 = por %p210, %p211
    %p213 = scmp.ne.s32.totalorder %s202, %s203
    %p214 = scmp.eq.s32.totalorder %s18, 0
    %p215 = por %p213, %p214
    %p216 = scmp.ne.s32.totalorder %s202, %s203
    %p217 = scmp.eq.s32.totalorder %s19, 1
    %p218 = por %p216, %p217
    %p220 = scmp.ne.s32.totalorder %s203, %s219
    %p221 = scmp.eq.s32.totalorder %s19, 0
    %p222 = por %p220, %p221
    %p223 = scmp.le.s32.totalorder 1, %s13
    %p224 = scmp.lt.s32.totalorder %s13, 3
    %p225 = pnand %p223, %p224
    %p226 = pneg %p225
    // Predicated region
    $region9: #{byol_forward.3} parent=5 // pred_check
      _
    $region10: #{byol_forward.3} parent=5 // pred_check_branch
      %228 = sbr.rel (%p225) target = $region12
    $region11: #{byol_forward.3} parent=5 // pred_region
      %s229 = ssub.s32 %s13, 1
      // Predicated region
      $region13: #{byol_forward.3} parent=11 // pred_check
        %p230 = pneg %p74
      $region14: #{byol_forward.3} parent=11 // pred_check_branch
        %232 = sbr.rel (%p230) target = $region16
      $region15: #{byol_forward.3} parent=11 // pred_region
        _
      $region16: #{byol_forward.3} parent=11 // pred_fallthru
        _
      // Predicated region
      $region17: #{byol_forward.3} parent=11 // pred_check
        %p233 = pneg %p95
      $region18: #{byol_forward.3} parent=11 // pred_check_branch
        %235 = sbr.rel (%p233) target = $region20
      $region19: #{byol_forward.3} parent=11 // pred_region
        _
      $region20: #{byol_forward.3} parent=11 // pred_fallthru
        _
      // Predicated region
      $region21: #{byol_forward.3} parent=11 // pred_check
        %p236 = pneg %p116
      $region22: #{byol_forward.3} parent=11 // pred_check_branch
        %238 = sbr.rel (%p236) target = $region24
      $region23: #{byol_forward.3} parent=11 // pred_region
        _
      $region24: #{byol_forward.3} parent=11 // pred_fallthru
        _
      // Predicated region
      $region25: #{byol_forward.3} parent=11 // pred_check
        %p239 = pneg %p137
      $region26: #{byol_forward.3} parent=11 // pred_check_branch
        %241 = sbr.rel (%p239) target = $region28
      $region27: #{byol_forward.3} parent=11 // pred_region
        _
      $region28: #{byol_forward.3} parent=11 // pred_fallthru
        _
      // Predicated region
      $region29: #{byol_forward.3} parent=11 // pred_check
        %p242 = pneg %p163
      $region30: #{byol_forward.3} parent=11 // pred_check_branch
        %244 = sbr.rel (%p242) target = $region32
      $region31: #{byol_forward.3} parent=11 // pred_region
        %p245 = scmp.lt.s32.totalorder %s22, 0
        %s246 = scalar_select %p245, %s22, 0
        %s247 = scalar_lea.vmem %s5, %s246
      $region32: #{byol_forward.3} parent=11 // pred_fallthru
        _
      // Predicated region
      $region33: #{byol_forward.3} parent=11 // pred_check
        %p248 = pneg %p189
      $region34: #{byol_forward.3} parent=11 // pred_check_branch
        %250 = sbr.rel (%p248) target = $region36
      $region35: #{byol_forward.3} parent=11 // pred_region
        %p251 = scmp.lt.s32.totalorder %s22, 0
        %s252 = scalar_select %p251, %s22, 0
        %s253 = scalar_lea.vmem %s6, %s252
      $region36: #{byol_forward.3} parent=11 // pred_fallthru
        _
    $region12: #{byol_forward.3} parent=5 // pred_fallthru
      _
    %p254 = scmp.lt.s32.totalorder %s13, 2
    // Predicated region
    $region37: #{byol_forward.3} parent=5 // pred_check
      %p255 = pneg %p254
    $region38: #{byol_forward.3} parent=5 // pred_check_branch
      %257 = sbr.rel (%p255) target = $region40
    $region39: #{byol_forward.3} parent=5 // pred_region
      // Predicated region
      $region41: #{byol_forward.3} parent=39 // pred_check
        %p258 = pneg %p47
      $region42: #{byol_forward.3} parent=39 // pred_check_branch
        %260 = sbr.rel (%p258) target = $region44
      $region43: #{byol_forward.3} parent=39 // pred_region
        %p261 = scmp.lt.s32.totalorder %s20, 0
        %s262 = scalar_select %p261, %s20, 0
        %p263 = scmp.lt.s32.totalorder %s21, 1
        %s264 = scalar_select %p263, %s21, 1
        %s265 = smul.addr %s264, 54
        %s266 = smul.addr %s262, 108
        %s267 = sadd.s32 %s265, %s266
        %s268 = smul.addr %s267, 4
        %s269 = scalar_lea.vmem %s0, %s268
      $region44: #{byol_forward.3} parent=39 // pred_fallthru
        _
    $region40: #{byol_forward.3} parent=5 // pred_fallthru
      _
    %p270 = scmp.le.s32.totalorder 1, %s13
    %p271 = scmp.lt.s32.totalorder %s13, 3
    %p272 = pnand %p270, %p271
    %p273 = pneg %p272
    // Predicated region
    $region45: #{byol_forward.3} parent=5 // pred_check
      _
    $region46: #{byol_forward.3} parent=5 // pred_check_branch
      %275 = sbr.rel (%p272) target = $region48
    $region47: #{byol_forward.3} parent=5 // pred_region
      %s276 = ssub.s32 %s13, 1
      %p277 = scmp.lt.s32.totalorder %s22, 0
      %s278 = scalar_select %p277, %s22, 0
      %p279 = scmp.lt.s32.totalorder %s23, 1
      %s280 = scalar_select %p279, %s23, 1
      %s281 = smul.addr %s280, 54
      %s282 = smul.addr %s278, 108
      %s283 = sadd.s32 %s281, %s282
      %s284 = smul.addr %s283, 4
      %s285 = scalar_lea.vmem %s0, %s284
      %p286 = pneg %p53
      %p287 = pneg %p50
      %p288 = pneg %p74
      %p289 = pneg %p71
      %p290 = pneg %p95
      %p291 = pneg %p92
      %p292 = pneg %p116
      %p293 = pneg %p113
      %p294 = pneg %p137
      %p295 = pneg %p134
      %p296 = scmp.lt.s32.totalorder %s22, 0
      %s297 = scalar_select %p296, %s22, 0
      %s298 = scalar_lea.vmem %s5, %s297
      %p299 = pneg %p163
      %p300 = pneg %p160
      %p301 = scmp.lt.s32.totalorder %s22, 0
      %s302 = scalar_select %p301, %s22, 0
      %s303 = scalar_lea.vmem %s6, %s302
      %p304 = pneg %p189
      %p305 = pneg %p186
      %p306 = pneg %p215
      %p307 = pneg %p212
      %p308 = scmp.lt.s32.totalorder %s22, 0
      %s309 = scalar_select %p308, %s22, 0
      %s310 = smul.addr %s309, 2
      %s311 = scalar_lea.vmem %s7, %s310
      %p312 = scmp.lt.s32.totalorder %s22, 0
      %s313 = scalar_select %p312, %s22, 0
      %p314 = scmp.lt.s32.totalorder %s23, 1
      %s315 = scalar_select %p314, %s23, 1
      %s316 = smul.addr %s315, 54
      %s317 = smul.addr %s313, 108
      %s318 = sadd.s32 %s316, %s317
      %s319 = smul.addr %s318, 4
      %s320 = scalar_lea.vmem %s0, %s319
      %p321 = scmp.lt.s32.totalorder %s22, 0
      %s322 = scalar_select %p321, %s22, 0
      %s323 = scalar_lea.vmem %s5, %s322
      %p324 = scmp.lt.s32.totalorder %s22, 0
      %s325 = scalar_select %p324, %s22, 0
      %s326 = scalar_lea.vmem %s6, %s325
      %p327 = scmp.lt.s32.totalorder %s22, 0
      %s328 = scalar_select %p327, %s22, 0
      %s329 = smul.addr %s328, 2
      %s330 = scalar_lea.vmem %s7, %s329
      %v331 = vld [vmem:[%s320] sm:$0xf]
      %v332 = vld [vmem:[%s320 + $0x4] sm:$0xf]
      %v333 = vld [vmem:[%s320 + $0xc] sm:$0xf]
      %v334 = vld [vmem:[%s320 + $0x10] sm:$0xf]
      %v335 = vld [vmem:[%s320 + $0x18] sm:$0xf]
      %v336 = vld [vmem:[%s320 + $0x1c] sm:$0xf]
      %v337 = vld [vmem:[%s320 + $0x24] sm:$0xf]
      %v338 = vld [vmem:[%s320 + $0x28] sm:$0xf]
      %v339 = vld [vmem:[%s320 + $0x30] sm:$0xf]
      %v340 = vld [vmem:[%s320 + $0x34] sm:$0xf]
      %v341 = vld [vmem:[%s320 + $0x3c] sm:$0xf]
      %v342 = vld [vmem:[%s320 + $0x40] sm:$0xf]
      %v343 = vld [vmem:[%s320 + $0x48] sm:$0xf]
      %v344 = vld [vmem:[%s320 + $0x4c] sm:$0xf]
      %v345 = vld [vmem:[%s320 + $0x54] sm:$0xf]
      %v346 = vld [vmem:[%s320 + $0x58] sm:$0xf]
      %v347 = vld [vmem:[%s320 + $0x60] sm:$0xf]
      %v348 = vld [vmem:[%s320 + $0x64] sm:$0xf]
      %v349 = vld [vmem:[%s320 + $0x6c] sm:$0xf]
      %v350 = vld [vmem:[%s320 + $0x70] sm:$0xf]
      %v351 = vld [vmem:[%s320 + $0x78] sm:$0xf]
      %v352 = vld [vmem:[%s320 + $0x7c] sm:$0xf]
      %v353 = vld [vmem:[%s320 + $0x84] sm:$0xf]
      %v354 = vld [vmem:[%s320 + $0x88] sm:$0xf]
      %v355 = vld [vmem:[%s320 + $0x90] sm:$0xf]
      %v356 = vld [vmem:[%s320 + $0x94] sm:$0xf]
      %v357 = vld [vmem:[%s320 + $0x9c] sm:$0xf]
      %v358 = vld [vmem:[%s320 + $0xa0] sm:$0xf]
      %v359 = vld [vmem:[%s320 + $0xa8] sm:$0xf]
      %v360 = vld [vmem:[%s320 + $0xac] sm:$0xf]
      %v361 = vld [vmem:[%s320 + $0xb4] sm:$0xf]
      %v362 = vld [vmem:[%s320 + $0xb8] sm:$0xf]
      %v363 = vunpack.c.l.bf16 %v331
      %v364 = vunpack.c.l.bf16 %v332
      %v365 = vunpack.c.l.bf16 %v333
      %v366 = vunpack.c.l.bf16 %v334
      %v367 = vunpack.c.l.bf16 %v335
      %v368 = vunpack.c.l.bf16 %v336
      %v369 = vunpack.c.l.bf16 %v337
      %v370 = vunpack.c.l.bf16 %v338
      %v371 = vunpack.c.l.bf16 %v339
      %v372 = vunpack.c.l.bf16 %v340
      %v373 = vunpack.c.l.bf16 %v341
      %v374 = vunpack.c.l.bf16 %v342
      %v375 = vunpack.c.l.bf16 %v343
      %v376 = vunpack.c.l.bf16 %v344
      %v377 = vunpack.c.l.bf16 %v345
      %v378 = vunpack.c.l.bf16 %v346
      %v379 = vunpack.c.l.bf16 %v347
      %v380 = vunpack.c.l.bf16 %v348
      %v381 = vunpack.c.l.bf16 %v349
      %v382 = vunpack.c.l.bf16 %v350
      %v383 = vunpack.c.l.bf16 %v351
      %v384 = vunpack.c.l.bf16 %v352
      %v385 = vunpack.c.l.bf16 %v353
      %v386 = vunpack.c.l.bf16 %v354
      %v387 = vunpack.c.l.bf16 %v355
      %v388 = vunpack.c.l.bf16 %v356
      %v389 = vunpack.c.l.bf16 %v357
      %v390 = vunpack.c.l.bf16 %v358
      %v391 = vunpack.c.l.bf16 %v359
      %v392 = vunpack.c.l.bf16 %v360
      %v393 = vunpack.c.l.bf16 %v361
      %v394 = vunpack.c.l.bf16 %v362
      %v395 = vld [vmem:[%s1] sm:$0x7]
      %v396 = vld [vmem:[%s320 + $0x8] sm:$0x1]
      %v397 = vld [vmem:[%s320 + $0x14] sm:$0x1]
      %v398 = vld [vmem:[%s320 + $0x20] sm:$0x1]
      %v399 = vld [vmem:[%s320 + $0x2c] sm:$0x1]
      %v400 = vld [vmem:[%s320 + $0x38] sm:$0x1]
      %v401 = vld [vmem:[%s320 + $0x44] sm:$0x1]
      %v402 = vld [vmem:[%s320 + $0x50] sm:$0x1]
      %v403 = vld [vmem:[%s320 + $0x5c] sm:$0x1]
      %v404 = vld [vmem:[%s320 + $0x68] sm:$0x1]
      %v405 = vld [vmem:[%s320 + $0x74] sm:$0x1]
      %v406 = vld [vmem:[%s320 + $0x80] sm:$0x1]
      %v407 = vld [vmem:[%s320 + $0x8c] sm:$0x1]
      %v408 = vld [vmem:[%s320 + $0x98] sm:$0x1]
      %v409 = vld [vmem:[%s320 + $0xa4] sm:$0x1]
      %v410 = vld [vmem:[%s320 + $0xb0] sm:$0x1]
      %v411 = vld [vmem:[%s320 + $0xbc] sm:$0x1]
      %v412 = vunpack.c.l.bf16 %v396
      %v413 = vunpack.c.l.bf16 %v397
      %v414 = vunpack.c.l.bf16 %v398
      %v415 = vunpack.c.l.bf16 %v399
      %v416 = vunpack.c.l.bf16 %v400
      %v417 = vunpack.c.l.bf16 %v401
      %v418 = vunpack.c.l.bf16 %v402
      %v419 = vunpack.c.l.bf16 %v403
      %v420 = vunpack.c.l.bf16 %v404
      %v421 = vunpack.c.l.bf16 %v405
      %v422 = vunpack.c.l.bf16 %v406
      %v423 = vunpack.c.l.bf16 %v407
      %v424 = vunpack.c.l.bf16 %v408
      %v425 = vunpack.c.l.bf16 %v409
      %v426 = vunpack.c.l.bf16 %v410
      %v427 = vunpack.c.l.bf16 %v411
      %vm476 = vcmask 1046528
      %v477 = vrot.slane %v363, 1
      %v478 = vrot.slane %v364, 1
      %v479 = vsel %vm476, %v477, %v478
      %v480 = vrot.slane %v412, 1
      %v481 = vsel %vm476, %v478, %v480
      %v482 = vrot.slane %v365, 1
      %v483 = vrot.slane %v366, 1
      %v484 = vsel %vm476, %v482, %v483
      %v485 = vrot.slane %v413, 1
      %v486 = vsel %vm476, %v483, %v485
      %v487 = vrot.slane %v367, 1
      %v488 = vrot.slane %v368, 1
      %v489 = vsel %vm476, %v487, %v488
      %v490 = vrot.slane %v414, 1
      %v491 = vsel %vm476, %v488, %v490
      %v492 = vrot.slane %v369, 1
      %v493 = vrot.slane %v370, 1
      %v494 = vsel %vm476, %v492, %v493
      %v495 = vrot.slane %v415, 1
      %v496 = vsel %vm476, %v493, %v495
      %v497 = vrot.slane %v371, 1
      %v498 = vrot.slane %v372, 1
      %v499 = vsel %vm476, %v497, %v498
      %v500 = vrot.slane %v416, 1
      %v501 = vsel %vm476, %v498, %v500
      %v502 = vrot.slane %v373, 1
      %v503 = vrot.slane %v374, 1
      %v504 = vsel %vm476, %v502, %v503
      %v505 = vrot.slane %v417, 1
      %v506 = vsel %vm476, %v503, %v505
      %v507 = vrot.slane %v375, 1
      %v508 = vrot.slane %v376, 1
      %v509 = vsel %vm476, %v507, %v508
      %v510 = vrot.slane %v418, 1
      %v511 = vsel %vm476, %v508, %v510
      %v512 = vrot.slane %v377, 1
      %v513 = vrot.slane %v378, 1
      %v514 = vsel %vm476, %v512, %v513
      %v515 = vrot.slane %v419, 1
      %v516 = vsel %vm476, %v513, %v515
      %v517 = vrot.slane %v379, 1
      %v518 = vrot.slane %v380, 1
      %v519 = vsel %vm476, %v517, %v518
      %v520 = vrot.slane %v420, 1
      %v521 = vsel %vm476, %v518, %v520
      %v522 = vrot.slane %v381, 1
      %v523 = vrot.slane %v382, 1
      %v524 = vsel %vm476, %v522, %v523
      %v525 = vrot.slane %v421, 1
      %v526 = vsel %vm476, %v523, %v525
      %v527 = vrot.slane %v383, 1
      %v528 = vrot.slane %v384, 1
      %v529 = vsel %vm476, %v527, %v528
      %v530 = vrot.slane %v422, 1
      %v531 = vsel %vm476, %v528, %v530
      %v532 = vrot.slane %v385, 1
      %v533 = vrot.slane %v386, 1
      %v534 = vsel %vm476, %v532, %v533
      %v535 = vrot.slane %v423, 1
      %v536 = vsel %vm476, %v533, %v535
      %v537 = vrot.slane %v387, 1
      %v538 = vrot.slane %v388, 1
      %v539 = vsel %vm476, %v537, %v538
      %v540 = vrot.slane %v424, 1
      %v541 = vsel %vm476, %v538, %v540
      %v542 = vrot.slane %v389, 1
      %v543 = vrot.slane %v390, 1
      %v544 = vsel %vm476, %v542, %v543
      %v545 = vrot.slane %v425, 1
      %v546 = vsel %vm476, %v543, %v545
      %v547 = vrot.slane %v391, 1
      %v548 = vrot.slane %v392, 1
      %v549 = vsel %vm476, %v547, %v548
      %v550 = vrot.slane %v426, 1
      %v551 = vsel %vm476, %v548, %v550
      %v552 = vrot.slane %v393, 1
      %v553 = vrot.slane %v394, 1
      %v554 = vsel %vm476, %v552, %v553
      %v555 = vrot.slane %v427, 1
      %v556 = vsel %vm476, %v553, %v555
      %s557 = scalar_lea.vmem %s1, 4
      %v558 = vld [vmem:[%s557] sm:$0x7]
      %vm559 = vcmask 23552
      %v560 = vsel %vm559, %v479, 0
      %v562 = vsel %vm559, %v481, 0
      %v564 = vsel %vm559, %v484, 0
      %v566 = vsel %vm559, %v486, 0
      %v568 = vsel %vm559, %v489, 0
      %v570 = vsel %vm559, %v491, 0
      %v572 = vsel %vm559, %v494, 0
      %v574 = vsel %vm559, %v496, 0
      %v576 = vsel %vm559, %v499, 0
      %v578 = vsel %vm559, %v501, 0
      %v580 = vsel %vm559, %v504, 0
      %v582 = vsel %vm559, %v506, 0
      %v584 = vsel %vm559, %v509, 0
      %v586 = vsel %vm559, %v511, 0
      %v588 = vsel %vm559, %v514, 0
      %v590 = vsel %vm559, %v516, 0
      %v592 = vsel %vm559, %v519, 0
      %v594 = vsel %vm559, %v521, 0
      %v596 = vsel %vm559, %v524, 0
      %v598 = vsel %vm559, %v526, 0
      %v600 = vsel %vm559, %v529, 0
      %v602 = vsel %vm559, %v531, 0
      %v604 = vsel %vm559, %v534, 0
      %v606 = vsel %vm559, %v536, 0
      %v608 = vsel %vm559, %v539, 0
      %v610 = vsel %vm559, %v541, 0
      %v612 = vsel %vm559, %v544, 0
      %v614 = vsel %vm559, %v546, 0
      %v616 = vsel %vm559, %v549, 0
      %v618 = vsel %vm559, %v551, 0
      %v620 = vsel %vm559, %v554, 0
      %v622 = vsel %vm559, %v556, 0
      %vm624 = vcmask 1042432
      %v626 = vsel %vm624, %v558, 0
      %628 = vmatprep.subr.mxu0 0.0
      %629 = vmatpush1.msra.mxu0 %v626
      %630 = vmatprep.subr.mxu0 0.0
      %631 = vmatpush1.msra.mxu0 0.0
      %632 = vmatprep.subr.mxu0 0.0
      %633 = vmatpush1.msra.mxu0 0.0
      %634 = vmatprep.subr.mxu0 0.0
      %635 = vmatpush1.msra.mxu0 0.0
      %636 = vmatprep.subr.mxu0 0.0
      %637 = vmatpush1.msra.mxu0 0.0
      %638 = vmatprep.subr.mxu0 0.0
      %639 = vmatpush1.msra.mxu0 0.0
      %640 = vmatprep.subr.mxu0 0.0
      %641 = vmatpush1.msra.mxu0 0.0
      %642 = vmatprep.subr.mxu0 0.0
      %643 = vmatpush1.msra.mxu0 0.0
      %644 = vmatprep.subr.mxu0 0.0
      %645 = vmatpush1.msra.mxu0 0.0
      %646 = vmatprep.subr.mxu0 0.0
      %647 = vmatpush1.msra.mxu0 0.0
      %648 = vmatprep.subr.mxu0 0.0
      %649 = vmatpush1.msra.mxu0 0.0
      %650 = vmatprep.subr.mxu0 0.0
      %651 = vmatpush1.msra.mxu0 0.0
      %652 = vmatprep.subr.mxu0 0.0
      %653 = vmatpush1.msra.mxu0 0.0
      %654 = vmatprep.subr.mxu0 0.0
      %655 = vmatpush1.msra.mxu0 0.0
      %656 = vmatprep.subr.mxu0 0.0
      %657 = vmatpush1.msra.mxu0 0.0
      %658 = vmatprep.subr.mxu0 0.0
      %659 = vmatpush1.msra.mxu0 0.0
      %660 = vmatprep.subr.mxu0 0.0
      %661 = vmatpush1.msra.mxu0 0.0
      %662 = vmatprep.subr.mxu0 0.0
      %663 = vmatpush1.msra.mxu0 0.0
      %664 = vmatprep.subr.mxu0 0.0
      %665 = vmatpush1.msra.mxu0 0.0
      %666 = vmatprep.subr.mxu0 0.0
      %667 = vmatpush1.msra.mxu0 0.0
      %668 = vmatprep.subr.mxu0 0.0
      %669 = vmatpush1.msra.mxu0 0.0
      %670 = vmatprep.subr.mxu0 0.0
      %671 = vmatpush1.msra.mxu0 0.0
      %672 = vmatprep.subr.mxu0 0.0
      %673 = vmatpush1.msra.mxu0 0.0
      %674 = vmatprep.subr.mxu0 0.0
      %675 = vmatpush1.msra.mxu0 0.0
      %676 = vmatprep.subr.mxu0 0.0
      %677 = vmatpush1.msra.mxu0 0.0
      %678 = vmatprep.subr.mxu0 0.0
      %679 = vmatpush1.msra.mxu0 0.0
      %680 = vmatprep.subr.mxu0 0.0
      %681 = vmatpush1.msra.mxu0 0.0
      %682 = vmatprep.subr.mxu0 0.0
      %683 = vmatpush1.msra.mxu0 0.0
      %684 = vmatprep.subr.mxu0 0.0
      %685 = vmatpush1.msra.mxu0 0.0
      %686 = vmatprep.subr.mxu0 0.0
      %687 = vmatpush1.msra.mxu0 0.0
      %688 = vmatprep.subr.mxu0 0.0
      %689 = vmatpush1.msra.mxu0 0.0
      %690 = vmatprep.subr.mxu0 0.0
      %691 = vmatpush1.msra.mxu0 0.0
      %692 = vmatprep.mubr.f32.mxu0 0.0
      %693 = vmatmul.mubr.f32.gmra.mrb[0].mxu0 %v560
      %v694 = vpop.f32.mrb[0].mxu0
      %v695 = vadd.f32 0.0, %v694
      %v696 = vpop.f32.mrb[0].mxu0
      %697 = vmatprep.mubr.f32.mxu0 0.0
      %698 = vmatmul.mubr.f32.gmra.mrb[0].mxu0 %v562
      %v699 = vpop.f32.mrb[0].mxu0
      %v700 = vadd.f32 0.0, %v699
      %v701 = vpop.f32.mrb[0].mxu0
      %702 = vmatprep.mubr.f32.mxu0 0.0
      %703 = vmatmul.mubr.f32.gmra.mrb[0].mxu0 %v564
      %v704 = vpop.f32.mrb[0].mxu0
      %v705 = vadd.f32 0.0, %v704
      %v706 = vpop.f32.mrb[0].mxu0
      %707 = vmatprep.mubr.f32.mxu0 0.0
      %708 = vmatmul.mubr.f32.gmra.mrb[0].mxu0 %v566
      %v709 = vpop.f32.mrb[0].mxu0
      %v710 = vadd.f32 0.0, %v709
      %v711 = vpop.f32.mrb[0].mxu0
      %712 = vmatprep.mubr.f32.mxu0 0.0
      %713 = vmatmul.mubr.f32.gmra.mrb[0].mxu0 %v568
      %v714 = vpop.f32.mrb[0].mxu0
      %v715 = vadd.f32 0.0, %v714
      %v716 = vpop.f32.mrb[0].mxu0
      %717 = vmatprep.mubr.f32.mxu0 0.0
      %718 = vmatmul.mubr.f32.gmra.mrb[0].mxu0 %v570
      %v719 = vpop.f32.mrb[0].mxu0
      %v720 = vadd.f32 0.0, %v719
      %v721 = vpop.f32.mrb[0].mxu0
      %722 = vmatprep.mubr.f32.mxu0 0.0
      %723 = vmatmul.mubr.f32.gmra.mrb[0].mxu0 %v572
      %v724 = vpop.f32.mrb[0].mxu0
      %v725 = vadd.f32 0.0, %v724
      %v726 = vpop.f32.mrb[0].mxu0
      %727 = vmatprep.mubr.f32.mxu0 0.0
      %728 = vmatmul.mubr.f32.gmra.mrb[0].mxu0 %v574
      %v729 = vpop.f32.mrb[0].mxu0
      %v730 = vadd.f32 0.0, %v729
      %v731 = vpop.f32.mrb[0].mxu0
      %732 = vmatprep.mubr.f32.mxu0 0.0
      %733 = vmatmul.mubr.f32.gmra.mrb[0].mxu0 %v576
      %v734 = vpop.f32.mrb[0].mxu0
      %v735 = vadd.f32 0.0, %v734
      %v736 = vpop.f32.mrb[0].mxu0
      %737 = vmatprep.mubr.f32.mxu0 0.0
      %738 = vmatmul.mubr.f32.gmra.mrb[0].mxu0 %v578
      %v739 = vpop.f32.mrb[0].mxu0
      %v740 = vadd.f32 0.0, %v739
      %v741 = vpop.f32.mrb[0].mxu0
      %742 = vmatprep.mubr.f32.mxu0 0.0
      %743 = vmatmul.mubr.f32.gmra.mrb[0].mxu0 %v580
      %v744 = vpop.f32.mrb[0].mxu0
      %v745 = vadd.f32 0.0, %v744
      %v746 = vpop.f32.mrb[0].mxu0
      %747 = vmatprep.mubr.f32.mxu0 0.0
      %748 = vmatmul.mubr.f32.gmra.mrb[0].mxu0 %v582
      %v749 = vpop.f32.mrb[0].mxu0
      %v750 = vadd.f32 0.0, %v749
      %v751 = vpop.f32.mrb[0].mxu0
      %752 = vmatprep.mubr.f32.mxu0 0.0
      %753 = vmatmul.mubr.f32.gmra.mrb[0].mxu0 %v584
      %v754 = vpop.f32.mrb[0].mxu0
      %v755 = vadd.f32 0.0, %v754
      %v756 = vpop.f32.mrb[0].mxu0
      %757 = vmatprep.mubr.f32.mxu0 0.0
      %758 = vmatmul.mubr.f32.gmra.mrb[0].mxu0 %v586
      %v759 = vpop.f32.mrb[0].mxu0
      %v760 = vadd.f32 0.0, %v759
      %v761 = vpop.f32.mrb[0].mxu0
      %762 = vmatprep.mubr.f32.mxu0 0.0
      %763 = vmatmul.mubr.f32.gmra.mrb[0].mxu0 %v588
      %v764 = vpop.f32.mrb[0].mxu0
      %v765 = vadd.f32 0.0, %v764
      %v766 = vpop.f32.mrb[0].mxu0
      %767 = vmatprep.mubr.f32.mxu0 0.0
      %768 = vmatmul.mubr.f32.gmra.mrb[0].mxu0 %v590
      %v769 = vpop.f32.mrb[0].mxu0
      %v770 = vadd.f32 0.0, %v769
      %v771 = vpop.f32.mrb[0].mxu0
      %772 = vmatprep.mubr.f32.mxu0 0.0
      %773 = vmatmul.mubr.f32.gmra.mrb[0].mxu0 %v592
      %v774 = vpop.f32.mrb[0].mxu0
      %v775 = vadd.f32 0.0, %v774
      %v776 = vpop.f32.mrb[0].mxu0
      %777 = vmatprep.mubr.f32.mxu0 0.0
      %778 = vmatmul.mubr.f32.gmra.mrb[0].mxu0 %v594
      %v779 = vpop.f32.mrb[0].mxu0
      %v780 = vadd.f32 0.0, %v779
      %v781 = vpop.f32.mrb[0].mxu0
      %782 = vmatprep.mubr.f32.mxu0 0.0
      %783 = vmatmul.mubr.f32.gmra.mrb[0].mxu0 %v596
      %v784 = vpop.f32.mrb[0].mxu0
      %v785 = vadd.f32 0.0, %v784
      %v786 = vpop.f32.mrb[0].mxu0
      %787 = vmatprep.mubr.f32.mxu0 0.0
      %788 = vmatmul.mubr.f32.gmra.mrb[0].mxu0 %v598
      %v789 = vpop.f32.mrb[0].mxu0
      %v790 = vadd.f32 0.0, %v789
      %v791 = vpop.f32.mrb[0].mxu0
      %792 = vmatprep.mubr.f32.mxu0 0.0
      %793 = vmatmul.mubr.f32.gmra.mrb[0].mxu0 %v600
      %v794 = vpop.f32.mrb[0].mxu0
      %v795 = vadd.f32 0.0, %v794
      %v796 = vpop.f32.mrb[0].mxu0
      %797 = vmatprep.mubr.f32.mxu0 0.0
      %798 = vmatmul.mubr.f32.gmra.mrb[0].mxu0 %v602
      %v799 = vpop.f32.mrb[0].mxu0
      %v800 = vadd.f32 0.0, %v799
      %v801 = vpop.f32.mrb[0].mxu0
      %802 = vmatprep.mubr.f32.mxu0 0.0
      %803 = vmatmul.mubr.f32.gmra.mrb[0].mxu0 %v604
      %v804 = vpop.f32.mrb[0].mxu0
      %v805 = vadd.f32 0.0, %v804
      %v806 = vpop.f32.mrb[0].mxu0
      %807 = vmatprep.mubr.f32.mxu0 0.0
      %808 = vmatmul.mubr.f32.gmra.mrb[0].mxu0 %v606
      %v809 = vpop.f32.mrb[0].mxu0
      %v810 = vadd.f32 0.0, %v809
      %v811 = vpop.f32.mrb[0].mxu0
      %812 = vmatprep.mubr.f32.mxu0 0.0
      %813 = vmatmul.mubr.f32.gmra.mrb[0].mxu0 %v608
      %v814 = vpop.f32.mrb[0].mxu0
      %v815 = vadd.f32 0.0, %v814
      %v816 = vpop.f32.mrb[0].mxu0
      %817 = vmatprep.mubr.f32.mxu0 0.0
      %818 = vmatmul.mubr.f32.gmra.mrb[0].mxu0 %v610
      %v819 = vpop.f32.mrb[0].mxu0
      %v820 = vadd.f32 0.0, %v819
      %v821 = vpop.f32.mrb[0].mxu0
      %822 = vmatprep.mubr.f32.mxu0 0.0
      %823 = vmatmul.mubr.f32.gmra.mrb[0].mxu0 %v612
      %v824 = vpop.f32.mrb[0].mxu0
      %v825 = vadd.f32 0.0, %v824
      %v826 = vpop.f32.mrb[0].mxu0
      %827 = vmatprep.mubr.f32.mxu0 0.0
      %828 = vmatmul.mubr.f32.gmra.mrb[0].mxu0 %v614
      %v829 = vpop.f32.mrb[0].mxu0
      %v830 = vadd.f32 0.0, %v829
      %v831 = vpop.f32.mrb[0].mxu0
      %832 = vmatprep.mubr.f32.mxu0 0.0
      %833 = vmatmul.mubr.f32.gmra.mrb[0].mxu0 %v616
      %v834 = vpop.f32.mrb[0].mxu0
      %v835 = vadd.f32 0.0, %v834
      %v836 = vpop.f32.mrb[0].mxu0
      %837 = vmatprep.mubr.f32.mxu0 0.0
      %838 = vmatmul.mubr.f32.gmra.mrb[0].mxu0 %v618
      %v839 = vpop.f32.mrb[0].mxu0
      %v840 = vadd.f32 0.0, %v839
      %v841 = vpop.f32.mrb[0].mxu0
      %842 = vmatprep.mubr.f32.mxu0 0.0
      %843 = vmatmul.mubr.f32.gmra.mrb[0].mxu0 %v620
      %v844 = vpop.f32.mrb[0].mxu0
      %v845 = vadd.f32 0.0, %v844
      %v846 = vpop.f32.mrb[0].mxu0
      %847 = vmatprep.mubr.f32.mxu0 0.0
      %848 = vmatmul.mubr.f32.gmra.mrb[0].mxu0 %v622
      %v849 = vpop.f32.mrb[0].mxu0
      %v850 = vadd.f32 0.0, %v849
      %v851 = vpop.f32.mrb[0].mxu0
      %852 = vdwg.mxu0
      %v853 = vsel %vm559, %v363, 0
      %v855 = vsel %vm559, %v364, 0
      %v857 = vsel %vm559, %v365, 0
      %v859 = vsel %vm559, %v366, 0
      %v861 = vsel %vm559, %v367, 0
      %v863 = vsel %vm559, %v368, 0
      %v865 = vsel %vm559, %v369, 0
      %v867 = vsel %vm559, %v370, 0
      %v869 = vsel %vm559, %v371, 0
      %v871 = vsel %vm559, %v372, 0
      %v873 = vsel %vm559, %v373, 0
      %v875 = vsel %vm559, %v374, 0
      %v877 = vsel %vm559, %v375, 0
      %v879 = vsel %vm559, %v376, 0
      %v881 = vsel %vm559, %v377, 0
      %v883 = vsel %vm559, %v378, 0
      %v885 = vsel %vm559, %v379, 0
      %v887 = vsel %vm559, %v380, 0
      %v889 = vsel %vm559, %v381, 0
      %v891 = vsel %vm559, %v382, 0
      %v893 = vsel %vm559, %v383, 0
      %v895 = vsel %vm559, %v384, 0
      %v897 = vsel %vm559, %v385, 0
      %v899 = vsel %vm559, %v386, 0
      %v901 = vsel %vm559, %v387, 0
      %v903 = vsel %vm559, %v388, 0
      %v905 = vsel %vm559, %v389, 0
      %v907 = vsel %vm559, %v390, 0
      %v909 = vsel %vm559, %v391, 0
      %v911 = vsel %vm559, %v392, 0
      %v913 = vsel %vm559, %v393, 0
      %v915 = vsel %vm559, %v394, 0
      %v918 = vsel %vm624, %v395, 0
      %920 = vmatprep.subr.mxu0 0.0
      %921 = vmatpush1.msra.mxu0 %v918
      %922 = vmatprep.subr.mxu0 0.0
      %923 = vmatpush1.msra.mxu0 0.0
      %924 = vmatprep.subr.mxu0 0.0
      %925 = vmatpush1.msra.mxu0 0.0
      %926 = vmatprep.subr.mxu0 0.0
      %927 = vmatpush1.msra.mxu0 0.0
      %928 = vmatprep.subr.mxu0 0.0
      %929 = vmatpush1.msra.mxu0 0.0
      %930 = vmatprep.subr.mxu0 0.0
      %931 = vmatpush1.msra.mxu0 0.0
      %932 = vmatprep.subr.mxu0 0.0
      %933 = vmatpush1.msra.mxu0 0.0
      %934 = vmatprep.subr.mxu0 0.0
      %935 = vmatpush1.msra.mxu0 0.0
      %936 = vmatprep.subr.mxu0 0.0
      %937 = vmatpush1.msra.mxu0 0.0
      %938 = vmatprep.subr.mxu0 0.0
      %939 = vmatpush1.msra.mxu0 0.0
      %940 = vmatprep.subr.mxu0 0.0
      %941 = vmatpush1.msra.mxu0 0.0
      %942 = vmatprep.subr.mxu0 0.0
      %943 = vmatpush1.msra.mxu0 0.0
      %944 = vmatprep.subr.mxu0 0.0
      %945 = vmatpush1.msra.mxu0 0.0
      %946 = vmatprep.subr.mxu0 0.0
      %947 = vmatpush1.msra.mxu0 0.0
      %948 = vmatprep.subr.mxu0 0.0
      %949 = vmatpush1.msra.mxu0 0.0
      %950 = vmatprep.subr.mxu0 0.0
      %951 = vmatpush1.msra.mxu0 0.0
      %952 = vmatprep.subr.mxu0 0.0
      %953 = vmatpush1.msra.mxu0 0.0
      %954 = vmatprep.subr.mxu0 0.0
      %955 = vmatpush1.msra.mxu0 0.0
      %956 = vmatprep.subr.mxu0 0.0
      %957 = vmatpush1.msra.mxu0 0.0
      %958 = vmatprep.subr.mxu0 0.0
      %959 = vmatpush1.msra.mxu0 0.0
      %960 = vmatprep.subr.mxu0 0.0
      %961 = vmatpush1.msra.mxu0 0.0
      %962 = vmatprep.subr.mxu0 0.0
      %963 = vmatpush1.msra.mxu0 0.0
      %964 = vmatprep.subr.mxu0 0.0
      %965 = vmatpush1.msra.mxu0 0.0
      %966 = vmatprep.subr.mxu0 0.0
      %967 = vmatpush1.msra.mxu0 0.0
      %968 = vmatprep.subr.mxu0 0.0
      %969 = vmatpush1.msra.mxu0 0.0
      %970 = vmatprep.subr.mxu0 0.0
      %971 = vmatpush1.msra.mxu0 0.0
      %972 = vmatprep.subr.mxu0 0.0
      %973 = vmatpush1.msra.mxu0 0.0
      %974 = vmatprep.subr.mxu0 0.0
      %975 = vmatpush1.msra.mxu0 0.0
      %976 = vmatprep.subr.mxu0 0.0
      %977 = vmatpush1.msra.mxu0 0.0
      %978 = vmatprep.subr.mxu0 0.0
      %979 = vmatpush1.msra.mxu0 0.0
      %980 = vmatprep.subr.mxu0 0.0
      %981 = vmatpush1.msra.mxu0 0.0
      %982 = vmatprep.subr.mxu0 0.0
      %983 = vmatpush1.msra.mxu0 0.0
      %984 = vmatprep.mubr.f32.mxu0 0.0
      %985 = vmatmul.mubr.f32.gmra.mrb[0].mxu0 %v853
      %v986 = vpop.f32.mrb[0].mxu0
      %v987 = vadd.f32 %v695, %v986
      %v988 = vpop.f32.mrb[0].mxu0
      %989 = vmatprep.mubr.f32.mxu0 0.0
      %990 = vmatmul.mubr.f32.gmra.mrb[0].mxu0 %v855
      %v991 = vpop.f32.mrb[0].mxu0
      %v992 = vadd.f32 %v700, %v991
      %v993 = vpop.f32.mrb[0].mxu0
      %994 = vmatprep.mubr.f32.mxu0 0.0
      %995 = vmatmul.mubr.f32.gmra.mrb[0].mxu0 %v857
      %v996 = vpop.f32.mrb[0].mxu0
      %v997 = vadd.f32 %v705, %v996
      %v998 = vpop.f32.mrb[0].mxu0
      %999 = vmatprep.mubr.f32.mxu0 0.0
      %1000 = vmatmul.mubr.f32.gmra.mrb[0].mxu0 %v859
      %v1001 = vpop.f32.mrb[0].mxu0
      %v1002 = vadd.f32 %v710, %v1001
      %v1003 = vpop.f32.mrb[0].mxu0
      %1004 = vmatprep.mubr.f32.mxu0 0.0
      %1005 = vmatmul.mubr.f32.gmra.mrb[0].mxu0 %v861
      %v1006 = vpop.f32.mrb[0].mxu0
      %v1007 = vadd.f32 %v715, %v1006
      %v1008 = vpop.f32.mrb[0].mxu0
      %1009 = vmatprep.mubr.f32.mxu0 0.0
      %1010 = vmatmul.mubr.f32.gmra.mrb[0].mxu0 %v863
      %v1011 = vpop.f32.mrb[0].mxu0
      %v1012 = vadd.f32 %v720, %v1011
      %v1013 = vpop.f32.mrb[0].mxu0
      %1014 = vmatprep.mubr.f32.mxu0 0.0
      %1015 = vmatmul.mubr.f32.gmra.mrb[0].mxu0 %v865
      %v1016 = vpop.f32.mrb[0].mxu0
      %v1017 = vadd.f32 %v725, %v1016
      %v1018 = vpop.f32.mrb[0].mxu0
      %1019 = vmatprep.mubr.f32.mxu0 0.0
      %1020 = vmatmul.mubr.f32.gmra.mrb[0].mxu0 %v867
      %v1021 = vpop.f32.mrb[0].mxu0
      %v1022 = vadd.f32 %v730, %v1021
      %v1023 = vpop.f32.mrb[0].mxu0
      %1024 = vmatprep.mubr.f32.mxu0 0.0
      %1025 = vmatmul.mubr.f32.gmra.mrb[0].mxu0 %v869
      %v1026 = vpop.f32.mrb[0].mxu0
      %v1027 = vadd.f32 %v735, %v1026
      %v1028 = vpop.f32.mrb[0].mxu0
      %1029 = vmatprep.mubr.f32.mxu0 0.0
      %1030 = vmatmul.mubr.f32.gmra.mrb[0].mxu0 %v871
      %v1031 = vpop.f32.mrb[0].mxu0
      %v1032 = vadd.f32 %v740, %v1031
      %v1033 = vpop.f32.mrb[0].mxu0
      %1034 = vmatprep.mubr.f32.mxu0 0.0
      %1035 = vmatmul.mubr.f32.gmra.mrb[0].mxu0 %v873
      %v1036 = vpop.f32.mrb[0].mxu0
      %v1037 = vadd.f32 %v745, %v1036
      %v1038 = vpop.f32.mrb[0].mxu0
      %1039 = vmatprep.mubr.f32.mxu0 0.0
      %1040 = vmatmul.mubr.f32.gmra.mrb[0].mxu0 %v875
      %v1041 = vpop.f32.mrb[0].mxu0
      %v1042 = vadd.f32 %v750, %v1041
      %v1043 = vpop.f32.mrb[0].mxu0
      %1044 = vmatprep.mubr.f32.mxu0 0.0
      %1045 = vmatmul.mubr.f32.gmra.mrb[0].mxu0 %v877
      %v1046 = vpop.f32.mrb[0].mxu0
      %v1047 = vadd.f32 %v755, %v1046
      %v1048 = vpop.f32.mrb[0].mxu0
      %1049 = vmatprep.mubr.f32.mxu0 0.0
      %1050 = vmatmul.mubr.f32.gmra.mrb[0].mxu0 %v879
      %v1051 = vpop.f32.mrb[0].mxu0
      %v1052 = vadd.f32 %v760, %v1051
      %v1053 = vpop.f32.mrb[0].mxu0
      %1054 = vmatprep.mubr.f32.mxu0 0.0
      %1055 = vmatmul.mubr.f32.gmra.mrb[0].mxu0 %v881
      %v1056 = vpop.f32.mrb[0].mxu0
      %v1057 = vadd.f32 %v765, %v1056
      %v1058 = vpop.f32.mrb[0].mxu0
      %1059 = vmatprep.mubr.f32.mxu0 0.0
      %1060 = vmatmul.mubr.f32.gmra.mrb[0].mxu0 %v883
      %v1061 = vpop.f32.mrb[0].mxu0
      %v1062 = vadd.f32 %v770, %v1061
      %v1063 = vpop.f32.mrb[0].mxu0
      %1064 = vmatprep.mubr.f32.mxu0 0.0
      %1065 = vmatmul.mubr.f32.gmra.mrb[0].mxu0 %v885
      %v1066 = vpop.f32.mrb[0].mxu0
      %v1067 = vadd.f32 %v775, %v1066
      %v1068 = vpop.f32.mrb[0].mxu0
      %1069 = vmatprep.mubr.f32.mxu0 0.0
      %1070 = vmatmul.mubr.f32.gmra.mrb[0].mxu0 %v887
      %v1071 = vpop.f32.mrb[0].mxu0
      %v1072 = vadd.f32 %v780, %v1071
      %v1073 = vpop.f32.mrb[0].mxu0
      %1074 = vmatprep.mubr.f32.mxu0 0.0
      %1075 = vmatmul.mubr.f32.gmra.mrb[0].mxu0 %v889
      %v1076 = vpop.f32.mrb[0].mxu0
      %v1077 = vadd.f32 %v785, %v1076
      %v1078 = vpop.f32.mrb[0].mxu0
      %1079 = vmatprep.mubr.f32.mxu0 0.0
      %1080 = vmatmul.mubr.f32.gmra.mrb[0].mxu0 %v891
      %v1081 = vpop.f32.mrb[0].mxu0
      %v1082 = vadd.f32 %v790, %v1081
      %v1083 = vpop.f32.mrb[0].mxu0
      %1084 = vmatprep.mubr.f32.mxu0 0.0
      %1085 = vmatmul.mubr.f32.gmra.mrb[0].mxu0 %v893
      %v1086 = vpop.f32.mrb[0].mxu0
      %v1087 = vadd.f32 %v795, %v1086
      %v1088 = vpop.f32.mrb[0].mxu0
      %1089 = vmatprep.mubr.f32.mxu0 0.0
      %1090 = vmatmul.mubr.f32.gmra.mrb[0].mxu0 %v895
      %v1091 = vpop.f32.mrb[0].mxu0
      %v1092 = vadd.f32 %v800, %v1091
      %v1093 = vpop.f32.mrb[0].mxu0
      %1094 = vmatprep.mubr.f32.mxu0 0.0
      %1095 = vmatmul.mubr.f32.gmra.mrb[0].mxu0 %v897
      %v1096 = vpop.f32.mrb[0].mxu0
      %v1097 = vadd.f32 %v805, %v1096
      %v1098 = vpop.f32.mrb[0].mxu0
      %1099 = vmatprep.mubr.f32.mxu0 0.0
      %1100 = vmatmul.mubr.f32.gmra.mrb[0].mxu0 %v899
      %v1101 = vpop.f32.mrb[0].mxu0
      %v1102 = vadd.f32 %v810, %v1101
      %v1103 = vpop.f32.mrb[0].mxu0
      %1104 = vmatprep.mubr.f32.mxu0 0.0
      %1105 = vmatmul.mubr.f32.gmra.mrb[0].mxu0 %v901
      %v1106 = vpop.f32.mrb[0].mxu0
      %v1107 = vadd.f32 %v815, %v1106
      %v1108 = vpop.f32.mrb[0].mxu0
      %1109 = vmatprep.mubr.f32.mxu0 0.0
      %1110 = vmatmul.mubr.f32.gmra.mrb[0].mxu0 %v903
      %v1111 = vpop.f32.mrb[0].mxu0
      %v1112 = vadd.f32 %v820, %v1111
      %v1113 = vpop.f32.mrb[0].mxu0
      %1114 = vmatprep.mubr.f32.mxu0 0.0
      %1115 = vmatmul.mubr.f32.gmra.mrb[0].mxu0 %v905
      %v1116 = vpop.f32.mrb[0].mxu0
      %v1117 = vadd.f32 %v825, %v1116
      %v1118 = vpop.f32.mrb[0].mxu0
      %1119 = vmatprep.mubr.f32.mxu0 0.0
      %1120 = vmatmul.mubr.f32.gmra.mrb[0].mxu0 %v907
      %v1121 = vpop.f32.mrb[0].mxu0
      %v1122 = vadd.f32 %v830, %v1121
      %v1123 = vpop.f32.mrb[0].mxu0
      %1124 = vmatprep.mubr.f32.mxu0 0.0
      %1125 = vmatmul.mubr.f32.gmra.mrb[0].mxu0 %v909
      %v1126 = vpop.f32.mrb[0].mxu0
      %v1127 = vadd.f32 %v835, %v1126
      %v1128 = vpop.f32.mrb[0].mxu0
      %1129 = vmatprep.mubr.f32.mxu0 0.0
      %1130 = vmatmul.mubr.f32.gmra.mrb[0].mxu0 %v911
      %v1131 = vpop.f32.mrb[0].mxu0
      %v1132 = vadd.f32 %v840, %v1131
      %v1133 = vpop.f32.mrb[0].mxu0
      %1134 = vmatprep.mubr.f32.mxu0 0.0
      %1135 = vmatmul.mubr.f32.gmra.mrb[0].mxu0 %v913
      %v1136 = vpop.f32.mrb[0].mxu0
      %v1137 = vadd.f32 %v845, %v1136
      %v1138 = vpop.f32.mrb[0].mxu0
      %1139 = vmatprep.mubr.f32.mxu0 0.0
      %1140 = vmatmul.mubr.f32.gmra.mrb[0].mxu0 %v915
      %v1141 = vpop.f32.mrb[0].mxu0
      %v1142 = vadd.f32 %v850, %v1141
      %v1143 = vpop.f32.mrb[0].mxu0
      %1144 = vdwg.mxu0
      %v1145 = vld [vmem:[%s320] sm:$0xe]
      %v1146 = vld [vmem:[%s320 + $0xc] sm:$0xe]
      %v1147 = vld [vmem:[%s320 + $0x18] sm:$0xe]
      %v1148 = vld [vmem:[%s320 + $0x24] sm:$0xe]
      %v1149 = vld [vmem:[%s320 + $0x30] sm:$0xe]
      %v1150 = vld [vmem:[%s320 + $0x3c] sm:$0xe]
      %v1151 = vld [vmem:[%s320 + $0x48] sm:$0xe]
      %v1152 = vld [vmem:[%s320 + $0x54] sm:$0xe]
      %v1153 = vld [vmem:[%s320 + $0x60] sm:$0xe]
      %v1154 = vld [vmem:[%s320 + $0x6c] sm:$0xe]
      %v1155 = vld [vmem:[%s320 + $0x78] sm:$0xe]
      %v1156 = vld [vmem:[%s320 + $0x84] sm:$0xe]
      %v1157 = vld [vmem:[%s320 + $0x90] sm:$0xe]
      %v1158 = vld [vmem:[%s320 + $0x9c] sm:$0xe]
      %v1159 = vld [vmem:[%s320 + $0xa8] sm:$0xe]
      %v1160 = vld [vmem:[%s320 + $0xb4] sm:$0xe]
      %v1161 = vunpack.c.l.bf16 %v1145
      %v1162 = vunpack.c.l.bf16 %v1146
      %v1163 = vunpack.c.l.bf16 %v1147
      %v1164 = vunpack.c.l.bf16 %v1148
      %v1165 = vunpack.c.l.bf16 %v1149
      %v1166 = vunpack.c.l.bf16 %v1150
      %v1167 = vunpack.c.l.bf16 %v1151
      %v1168 = vunpack.c.l.bf16 %v1152
      %v1169 = vunpack.c.l.bf16 %v1153
      %v1170 = vunpack.c.l.bf16 %v1154
      %v1171 = vunpack.c.l.bf16 %v1155
      %v1172 = vunpack.c.l.bf16 %v1156
      %v1173 = vunpack.c.l.bf16 %v1157
      %v1174 = vunpack.c.l.bf16 %v1158
      %v1175 = vunpack.c.l.bf16 %v1159
      %v1176 = vunpack.c.l.bf16 %v1160
      %vm1193 = vcmask 1045504
      %v1194 = vrot.slane %v1161, 2
      %v1195 = vrot.slane %v364, 2
      %v1196 = vsel %vm1193, %v1194, %v1195
      %v1197 = vrot.slane %v412, 2
      %v1198 = vsel %vm1193, %v1195, %v1197
      %v1199 = vrot.slane %v1162, 2
      %v1200 = vrot.slane %v366, 2
      %v1201 = vsel %vm1193, %v1199, %v1200
      %v1202 = vrot.slane %v413, 2
      %v1203 = vsel %vm1193, %v1200, %v1202
      %v1204 = vrot.slane %v1163, 2
      %v1205 = vrot.slane %v368, 2
      %v1206 = vsel %vm1193, %v1204, %v1205
      %v1207 = vrot.slane %v414, 2
      %v1208 = vsel %vm1193, %v1205, %v1207
      %v1209 = vrot.slane %v1164, 2
      %v1210 = vrot.slane %v370, 2
      %v1211 = vsel %vm1193, %v1209, %v1210
      %v1212 = vrot.slane %v415, 2
      %v1213 = vsel %vm1193, %v1210, %v1212
      %v1214 = vrot.slane %v1165, 2
      %v1215 = vrot.slane %v372, 2
      %v1216 = vsel %vm1193, %v1214, %v1215
      %v1217 = vrot.slane %v416, 2
      %v1218 = vsel %vm1193, %v1215, %v1217
      %v1219 = vrot.slane %v1166, 2
      %v1220 = vrot.slane %v374, 2
      %v1221 = vsel %vm1193, %v1219, %v1220
      %v1222 = vrot.slane %v417, 2
      %v1223 = vsel %vm1193, %v1220, %v1222
      %v1224 = vrot.slane %v1167, 2
      %v1225 = vrot.slane %v376, 2
      %v1226 = vsel %vm1193, %v1224, %v1225
      %v1227 = vrot.slane %v418, 2
      %v1228 = vsel %vm1193, %v1225, %v1227
      %v1229 = vrot.slane %v1168, 2
      %v1230 = vrot.slane %v378, 2
      %v1231 = vsel %vm1193, %v1229, %v1230
      %v1232 = vrot.slane %v419, 2
      %v1233 = vsel %vm1193, %v1230, %v1232
      %v1234 = vrot.slane %v1169, 2
      %v1235 = vrot.slane %v380, 2
      %v1236 = vsel %vm1193, %v1234, %v1235
      %v1237 = vrot.slane %v420, 2
      %v1238 = vsel %vm1193, %v1235, %v1237
      %v1239 = vrot.slane %v1170, 2
      %v1240 = vrot.slane %v382, 2
      %v1241 = vsel %vm1193, %v1239, %v1240
      %v1242 = vrot.slane %v421, 2
      %v1243 = vsel %vm1193, %v1240, %v1242
      %v1244 = vrot.slane %v1171, 2
      %v1245 = vrot.slane %v384, 2
      %v1246 = vsel %vm1193, %v1244, %v1245
      %v1247 = vrot.slane %v422, 2
      %v1248 = vsel %vm1193, %v1245, %v1247
      %v1249 = vrot.slane %v1172, 2
      %v1250 = vrot.slane %v386, 2
      %v1251 = vsel %vm1193, %v1249, %v1250
      %v1252 = vrot.slane %v423, 2
      %v1253 = vsel %vm1193, %v1250, %v1252
      %v1254 = vrot.slane %v1173, 2
      %v1255 = vrot.slane %v388, 2
      %v1256 = vsel %vm1193, %v1254, %v1255
      %v1257 = vrot.slane %v424, 2
      %v1258 = vsel %vm1193, %v1255, %v1257
      %v1259 = vrot.slane %v1174, 2
      %v1260 = vrot.slane %v390, 2
      %v1261 = vsel %vm1193, %v1259, %v1260
      %v1262 = vrot.slane %v425, 2
      %v1263 = vsel %vm1193, %v1260, %v1262
      %v1264 = vrot.slane %v1175, 2
      %v1265 = vrot.slane %v392, 2
      %v1266 = vsel %vm1193, %v1264, %v1265
      %v1267 = vrot.slane %v426, 2
      %v1268 = vsel %vm1193, %v1265, %v1267
      %v1269 = vrot.slane %v1176, 2
      %v1270 = vrot.slane %v394, 2
      %v1271 = vsel %vm1193, %v1269, %v1270
      %v1272 = vrot.slane %v427, 2
      %v1273 = vsel %vm1193, %v1270, %v1272
      %s1274 = scalar_lea.vmem %s1, 8
      %v1275 = vld [vmem:[%s1274] sm:$0x7]
      %v1276 = vsel %vm559, %v1196, 0
      %v1278 = vsel %vm559, %v1198, 0
      %v1280 = vsel %vm559, %v1201, 0
      %v1282 = vsel %vm559, %v1203, 0
      %v1284 = vsel %vm559, %v1206, 0
      %v1286 = vsel %vm559, %v1208, 0
      %v1288 = vsel %vm559, %v1211, 0
      %v1290 = vsel %vm559, %v1213, 0
      %v1292 = vsel %vm559, %v1216, 0
      %v1294 = vsel %vm559, %v1218, 0
      %v1296 = vsel %vm559, %v1221, 0
      %v1298 = vsel %vm559, %v1223, 0
      %v1300 = vsel %vm559, %v1226, 0
      %v1302 = vsel %vm559, %v1228, 0
      %v1304 = vsel %vm559, %v1231, 0
      %v1306 = vsel %vm559, %v1233, 0
      %v1308 = vsel %vm559, %v1236, 0
      %v1310 = vsel %vm559, %v1238, 0
      %v1312 = vsel %vm559, %v1241, 0
      %v1314 = vsel %vm559, %v1243, 0
      %v1316 = vsel %vm559, %v1246, 0
      %v1318 = vsel %vm559, %v1248, 0
      %v1320 = vsel %vm559, %v1251, 0
      %v1322 = vsel %vm559, %v1253, 0
      %v1324 = vsel %vm559, %v1256, 0
      %v1326 = vsel %vm559, %v1258, 0
      %v1328 = vsel %vm559, %v1261, 0
      %v1330 = vsel %vm559, %v1263, 0
      %v1332 = vsel %vm559, %v1266, 0
      %v1334 = vsel %vm559, %v1268, 0
      %v1336 = vsel %vm559, %v1271, 0
      %v1338 = vsel %vm559, %v1273, 0
      %v1341 = vsel %vm624, %v1275, 0
      %1343 = vmatprep.subr.mxu0 0.0
      %1344 = vmatpush1.msra.mxu0 %v1341
      %1345 = vmatprep.subr.mxu0 0.0
      %1346 = vmatpush1.msra.mxu0 0.0
      %1347 = vmatprep.subr.mxu0 0.0
      %1348 = vmatpush1.msra.mxu0 0.0
      %1349 = vmatprep.subr.mxu0 0.0
      %1350 = vmatpush1.msra.mxu0 0.0
      %1351 = vmatprep.subr.mxu0 0.0
      %1352 = vmatpush1.msra.mxu0 0.0
      %1353 = vmatprep.subr.mxu0 0.0
      %1354 = vmatpush1.msra.mxu0 0.0
      %1355 = vmatprep.subr.mxu0 0.0
      %1356 = vmatpush1.msra.mxu0 0.0
      %1357 = vmatprep.subr.mxu0 0.0
      %1358 = vmatpush1.msra.mxu0 0.0
      %1359 = vmatprep.subr.mxu0 0.0
      %1360 = vmatpush1.msra.mxu0 0.0
      %1361 = vmatprep.subr.mxu0 0.0
      %1362 = vmatpush1.msra.mxu0 0.0
      %1363 = vmatprep.subr.mxu0 0.0
      %1364 = vmatpush1.msra.mxu0 0.0
      %1365 = vmatprep.subr.mxu0 0.0
      %1366 = vmatpush1.msra.mxu0 0.0
      %1367 = vmatprep.subr.mxu0 0.0
      %1368 = vmatpush1.msra.mxu0 0.0
      %1369 = vmatprep.subr.mxu0 0.0
      %1370 = vmatpush1.msra.mxu0 0.0
      %1371 = vmatprep.subr.mxu0 0.0
      %1372 = vmatpush1.msra.mxu0 0.0
      %1373 = vmatprep.subr.mxu0 0.0
      %1374 = vmatpush1.msra.mxu0 0.0
      %1375 = vmatprep.subr.mxu0 0.0
      %1376 = vmatpush1.msra.mxu0 0.0
      %1377 = vmatprep.subr.mxu0 0.0
      %1378 = vmatpush1.msra.mxu0 0.0
      %1379 = vmatprep.subr.mxu0 0.0
      %1380 = vmatpush1.msra.mxu0 0.0
      %1381 = vmatprep.subr.mxu0 0.0
      %1382 = vmatpush1.msra.mxu0 0.0
      %1383 = vmatprep.subr.mxu0 0.0
      %1384 = vmatpush1.msra.mxu0 0.0
      %1385 = vmatprep.subr.mxu0 0.0
      %1386 = vmatpush1.msra.mxu0 0.0
      %1387 = vmatprep.subr.mxu0 0.0
      %1388 = vmatpush1.msra.mxu0 0.0
      %1389 = vmatprep.subr.mxu0 0.0
      %1390 = vmatpush1.msra.mxu0 0.0
      %1391 = vmatprep.subr.mxu0 0.0
      %1392 = vmatpush1.msra.mxu0 0.0
      %1393 = vmatprep.subr.mxu0 0.0
      %1394 = vmatpush1.msra.mxu0 0.0
      %1395 = vmatprep.subr.mxu0 0.0
      %1396 = vmatpush1.msra.mxu0 0.0
      %1397 = vmatprep.subr.mxu0 0.0
      %1398 = vmatpush1.msra.mxu0 0.0
      %1399 = vmatprep.subr.mxu0 0.0
      %1400 = vmatpush1.msra.mxu0 0.0
      %1401 = vmatprep.subr.mxu0 0.0
      %1402 = vmatpush1.msra.mxu0 0.0
      %1403 = vmatprep.subr.mxu0 0.0
      %1404 = vmatpush1.msra.mxu0 0.0
      %1405 = vmatprep.subr.mxu0 0.0
      %1406 = vmatpush1.msra.mxu0 0.0
      %1407 = vmatprep.mubr.f32.mxu0 0.0
      %1408 = vmatmul.mubr.f32.gmra.mrb[0].mxu0 %v1276
      %v1409 = vpop.f32.mrb[0].mxu0
      %v1410 = vadd.f32 0.0, %v1409
      %v1411 = vpop.f32.mrb[0].mxu0
      %1412 = vmatprep.mubr.f32.mxu0 0.0
      %1413 = vmatmul.mubr.f32.gmra.mrb[0].mxu0 %v1278
      %v1414 = vpop.f32.mrb[0].mxu0
      %v1415 = vadd.f32 0.0, %v1414
      %v1416 = vpop.f32.mrb[0].mxu0
      %1417 = vmatprep.mubr.f32.mxu0 0.0
      %1418 = vmatmul.mubr.f32.gmra.mrb[0].mxu0 %v1280
      %v1419 = vpop.f32.mrb[0].mxu0
      %v1420 = vadd.f32 0.0, %v1419
      %v1421 = vpop.f32.mrb[0].mxu0
      %1422 = vmatprep.mubr.f32.mxu0 0.0
      %1423 = vmatmul.mubr.f32.gmra.mrb[0].mxu0 %v1282
      %v1424 = vpop.f32.mrb[0].mxu0
      %v1425 = vadd.f32 0.0, %v1424
      %v1426 = vpop.f32.mrb[0].mxu0
      %1427 = vmatprep.mubr.f32.mxu0 0.0
      %1428 = vmatmul.mubr.f32.gmra.mrb[0].mxu0 %v1284
      %v1429 = vpop.f32.mrb[0].mxu0
      %v1430 = vadd.f32 0.0, %v1429
      %v1431 = vpop.f32.mrb[0].mxu0
      %1432 = vmatprep.mubr.f32.mxu0 0.0
      %1433 = vmatmul.mubr.f32.gmra.mrb[0].mxu0 %v1286
      %v1434 = vpop.f32.mrb[0].mxu0
      %v1435 = vadd.f32 0.0, %v1434
      %v1436 = vpop.f32.mrb[0].mxu0
      %1437 = vmatprep.mubr.f32.mxu0 0.0
      %1438 = vmatmul.mubr.f32.gmra.mrb[0].mxu0 %v1288
      %v1439 = vpop.f32.mrb[0].mxu0
      %v1440 = vadd.f32 0.0, %v1439
      %v1441 = vpop.f32.mrb[0].mxu0
      %1442 = vmatprep.mubr.f32.mxu0 0.0
      %1443 = vmatmul.mubr.f32.gmra.mrb[0].mxu0 %v1290
      %v1444 = vpop.f32.mrb[0].mxu0
      %v1445 = vadd.f32 0.0, %v1444
      %v1446 = vpop.f32.mrb[0].mxu0
      %1447 = vmatprep.mubr.f32.mxu0 0.0
      %1448 = vmatmul.mubr.f32.gmra.mrb[0].mxu0 %v1292
      %v1449 = vpop.f32.mrb[0].mxu0
      %v1450 = vadd.f32 0.0, %v1449
      %v1451 = vpop.f32.mrb[0].mxu0
      %1452 = vmatprep.mubr.f32.mxu0 0.0
      %1453 = vmatmul.mubr.f32.gmra.mrb[0].mxu0 %v1294
      %v1454 = vpop.f32.mrb[0].mxu0
      %v1455 = vadd.f32 0.0, %v1454
      %v1456 = vpop.f32.mrb[0].mxu0
      %1457 = vmatprep.mubr.f32.mxu0 0.0
      %1458 = vmatmul.mubr.f32.gmra.mrb[0].mxu0 %v1296
      %v1459 = vpop.f32.mrb[0].mxu0
      %v1460 = vadd.f32 0.0, %v1459
      %v1461 = vpop.f32.mrb[0].mxu0
      %1462 = vmatprep.mubr.f32.mxu0 0.0
      %1463 = vmatmul.mubr.f32.gmra.mrb[0].mxu0 %v1298
      %v1464 = vpop.f32.mrb[0].mxu0
      %v1465 = vadd.f32 0.0, %v1464
      %v1466 = vpop.f32.mrb[0].mxu0
      %1467 = vmatprep.mubr.f32.mxu0 0.0
      %1468 = vmatmul.mubr.f32.gmra.mrb[0].mxu0 %v1300
      %v1469 = vpop.f32.mrb[0].mxu0
      %v1470 = vadd.f32 0.0, %v1469
      %v1471 = vpop.f32.mrb[0].mxu0
      %1472 = vmatprep.mubr.f32.mxu0 0.0
      %1473 = vmatmul.mubr.f32.gmra.mrb[0].mxu0 %v1302
      %v1474 = vpop.f32.mrb[0].mxu0
      %v1475 = vadd.f32 0.0, %v1474
      %v1476 = vpop.f32.mrb[0].mxu0
      %1477 = vmatprep.mubr.f32.mxu0 0.0
      %1478 = vmatmul.mubr.f32.gmra.mrb[0].mxu0 %v1304
      %v1479 = vpop.f32.mrb[0].mxu0
      %v1480 = vadd.f32 0.0, %v1479
      %v1481 = vpop.f32.mrb[0].mxu0
      %1482 = vmatprep.mubr.f32.mxu0 0.0
      %1483 = vmatmul.mubr.f32.gmra.mrb[0].mxu0 %v1306
      %v1484 = vpop.f32.mrb[0].mxu0
      %v1485 = vadd.f32 0.0, %v1484
      %v1486 = vpop.f32.mrb[0].mxu0
      %1487 = vmatprep.mubr.f32.mxu0 0.0
      %1488 = vmatmul.mubr.f32.gmra.mrb[0].mxu0 %v1308
      %v1489 = vpop.f32.mrb[0].mxu0
      %v1490 = vadd.f32 0.0, %v1489
      %v1491 = vpop.f32.mrb[0].mxu0
      %1492 = vmatprep.mubr.f32.mxu0 0.0
      %1493 = vmatmul.mubr.f32.gmra.mrb[0].mxu0 %v1310
      %v1494 = vpop.f32.mrb[0].mxu0
      %v1495 = vadd.f32 0.0, %v1494
      %v1496 = vpop.f32.mrb[0].mxu0
      %1497 = vmatprep.mubr.f32.mxu0 0.0
      %1498 = vmatmul.mubr.f32.gmra.mrb[0].mxu0 %v1312
      %v1499 = vpop.f32.mrb[0].mxu0
      %v1500 = vadd.f32 0.0, %v1499
      %v1501 = vpop.f32.mrb[0].mxu0
      %1502 = vmatprep.mubr.f32.mxu0 0.0
      %1503 = vmatmul.mubr.f32.gmra.mrb[0].mxu0 %v1314
      %v1504 = vpop.f32.mrb[0].mxu0
      %v1505 = vadd.f32 0.0, %v1504
      %v1506 = vpop.f32.mrb[0].mxu0
      %1507 = vmatprep.mubr.f32.mxu0 0.0
      %1508 = vmatmul.mubr.f32.gmra.mrb[0].mxu0 %v1316
      %v1509 = vpop.f32.mrb[0].mxu0
      %v1510 = vadd.f32 0.0, %v1509
      %v1511 = vpop.f32.mrb[0].mxu0
      %1512 = vmatprep.mubr.f32.mxu0 0.0
      %1513 = vmatmul.mubr.f32.gmra.mrb[0].mxu0 %v1318
      %v1514 = vpop.f32.mrb[0].mxu0
      %v1515 = vadd.f32 0.0, %v1514
      %v1516 = vpop.f32.mrb[0].mxu0
      %1517 = vmatprep.mubr.f32.mxu0 0.0
      %1518 = vmatmul.mubr.f32.gmra.mrb[0].mxu0 %v1320
      %v1519 = vpop.f32.mrb[0].mxu0
      %v1520 = vadd.f32 0.0, %v1519
      %v1521 = vpop.f32.mrb[0].mxu0
      %1522 = vmatprep.mubr.f32.mxu0 0.0
      %1523 = vmatmul.mubr.f32.gmra.mrb[0].mxu0 %v1322
      %v1524 = vpop.f32.mrb[0].mxu0
      %v1525 = vadd.f32 0.0, %v1524
      %v1526 = vpop.f32.mrb[0].mxu0
      %1527 = vmatprep.mubr.f32.mxu0 0.0
      %1528 = vmatmul.mubr.f32.gmra.mrb[0].mxu0 %v1324
      %v1529 = vpop.f32.mrb[0].mxu0
      %v1530 = vadd.f32 0.0, %v1529
      %v1531 = vpop.f32.mrb[0].mxu0
      %1532 = vmatprep.mubr.f32.mxu0 0.0
      %1533 = vmatmul.mubr.f32.gmra.mrb[0].mxu0 %v1326
      %v1534 = vpop.f32.mrb[0].mxu0
      %v1535 = vadd.f32 0.0, %v1534
      %v1536 = vpop.f32.mrb[0].mxu0
      %1537 = vmatprep.mubr.f32.mxu0 0.0
      %1538 = vmatmul.mubr.f32.gmra.mrb[0].mxu0 %v1328
      %v1539 = vpop.f32.mrb[0].mxu0
      %v1540 = vadd.f32 0.0, %v1539
      %v1541 = vpop.f32.mrb[0].mxu0
      %1542 = vmatprep.mubr.f32.mxu0 0.0
      %1543 = vmatmul.mubr.f32.gmra.mrb[0].mxu0 %v1330
      %v1544 = vpop.f32.mrb[0].mxu0
      %v1545 = vadd.f32 0.0, %v1544
      %v1546 = vpop.f32.mrb[0].mxu0
      %1547 = vmatprep.mubr.f32.mxu0 0.0
      %1548 = vmatmul.mubr.f32.gmra.mrb[0].mxu0 %v1332
      %v1549 = vpop.f32.mrb[0].mxu0
      %v1550 = vadd.f32 0.0, %v1549
      %v1551 = vpop.f32.mrb[0].mxu0
      %1552 = vmatprep.mubr.f32.mxu0 0.0
      %1553 = vmatmul.mubr.f32.gmra.mrb[0].mxu0 %v1334
      %v1554 = vpop.f32.mrb[0].mxu0
      %v1555 = vadd.f32 0.0, %v1554
      %v1556 = vpop.f32.mrb[0].mxu0
      %1557 = vmatprep.mubr.f32.mxu0 0.0
      %1558 = vmatmul.mubr.f32.gmra.mrb[0].mxu0 %v1336
      %v1559 = vpop.f32.mrb[0].mxu0
      %v1560 = vadd.f32 0.0, %v1559
      %v1561 = vpop.f32.mrb[0].mxu0
      %1562 = vmatprep.mubr.f32.mxu0 0.0
      %1563 = vmatmul.mubr.f32.gmra.mrb[0].mxu0 %v1338
      %v1564 = vpop.f32.mrb[0].mxu0
      %v1565 = vadd.f32 0.0, %v1564
      %v1566 = vpop.f32.mrb[0].mxu0
      %1567 = vdwg.mxu0
      %v1568 = vadd.f32 %v987, %v1410
      %v1569 = vadd.f32 %v992, %v1415
      %v1570 = vadd.f32 %v997, %v1420
      %v1571 = vadd.f32 %v1002, %v1425
      %v1572 = vadd.f32 %v1007, %v1430
      %v1573 = vadd.f32 %v1012, %v1435
      %v1574 = vadd.f32 %v1017, %v1440
      %v1575 = vadd.f32 %v1022, %v1445
      %v1576 = vadd.f32 %v1027, %v1450
      %v1577 = vadd.f32 %v1032, %v1455
      %v1578 = vadd.f32 %v1037, %v1460
      %v1579 = vadd.f32 %v1042, %v1465
      %v1580 = vadd.f32 %v1047, %v1470
      %v1581 = vadd.f32 %v1052, %v1475
      %v1582 = vadd.f32 %v1057, %v1480
      %v1583 = vadd.f32 %v1062, %v1485
      %v1584 = vadd.f32 %v1067, %v1490
      %v1585 = vadd.f32 %v1072, %v1495
      %v1586 = vadd.f32 %v1077, %v1500
      %v1587 = vadd.f32 %v1082, %v1505
      %v1588 = vadd.f32 %v1087, %v1510
      %v1589 = vadd.f32 %v1092, %v1515
      %v1590 = vadd.f32 %v1097, %v1520
      %v1591 = vadd.f32 %v1102, %v1525
      %v1592 = vadd.f32 %v1107, %v1530
      %v1593 = vadd.f32 %v1112, %v1535
      %v1594 = vadd.f32 %v1117, %v1540
      %v1595 = vadd.f32 %v1122, %v1545
      %v1596 = vadd.f32 %v1127, %v1550
      %v1597 = vadd.f32 %v1132, %v1555
      %v1598 = vadd.f32 %v1137, %v1560
      %v1599 = vadd.f32 %v1142, %v1565
      %s1600 = scalar_lea.vmem %s320, 12
      %v1601 = vld [vmem:[%s1600] sm:$0xf]
      %v1602 = vld [vmem:[%s1600 + $0x4] sm:$0xf]
      %v1603 = vld [vmem:[%s1600 + $0xc] sm:$0xf]
      %v1604 = vld [vmem:[%s1600 + $0x10] sm:$0xf]
      %v1605 = vld [vmem:[%s1600 + $0x18] sm:$0xf]
      %v1606 = vld [vmem:[%s1600 + $0x1c] sm:$0xf]
      %v1607 = vld [vmem:[%s1600 + $0x24] sm:$0xf]
      %v1608 = vld [vmem:[%s1600 + $0x28] sm:$0xf]
      %v1609 = vld [vmem:[%s1600 + $0x30] sm:$0xf]
      %v1610 = vld [vmem:[%s1600 + $0x34] sm:$0xf]
      %v1611 = vld [vmem:[%s1600 + $0x3c] sm:$0xf]
      %v1612 = vld [vmem:[%s1600 + $0x40] sm:$0xf]
      %v1613 = vld [vmem:[%s1600 + $0x48] sm:$0xf]
      %v1614 = vld [vmem:[%s1600 + $0x4c] sm:$0xf]
      %v1615 = vld [vmem:[%s1600 + $0x54] sm:$0xf]
      %v1616 = vld [vmem:[%s1600 + $0x58] sm:$0xf]
      %v1617 = vld [vmem:[%s1600 + $0x60] sm:$0xf]
      %v1618 = vld [vmem:[%s1600 + $0x64] sm:$0xf]
      %v1619 = vld [vmem:[%s1600 + $0x6c] sm:$0xf]
      %v1620 = vld [vmem:[%s1600 + $0x70] sm:$0xf]
      %v1621 = vld [vmem:[%s1600 + $0x78] sm:$0xf]
      %v1622 = vld [vmem:[%s1600 + $0x7c] sm:$0xf]
      %v1623 = vld [vmem:[%s1600 + $0x84] sm:$0xf]
      %v1624 = vld [vmem:[%s1600 + $0x88] sm:$0xf]
      %v1625 = vld [vmem:[%s1600 + $0x90] sm:$0xf]
      %v1626 = vld [vmem:[%s1600 + $0x94] sm:$0xf]
      %v1627 = vld [vmem:[%s1600 + $0x9c] sm:$0xf]
      %v1628 = vld [vmem:[%s1600 + $0xa0] sm:$0xf]
      %v1629 = vld [vmem:[%s1600 + $0xa8] sm:$0xf]
      %v1630 = vld [vmem:[%s1600 + $0xac] sm:$0xf]
      %v1631 = vld [vmem:[%s1600 + $0xb4] sm:$0xf]
      %v1632 = vld [vmem:[%s1600 + $0xb8] sm:$0xf]
      %v1633 = vunpack.c.l.bf16 %v1601
      %v1634 = vunpack.c.l.bf16 %v1602
      %v1635 = vunpack.c.l.bf16 %v1603
      %v1636 = vunpack.c.l.bf16 %v1604
      %v1637 = vunpack.c.l.bf16 %v1605
      %v1638 = vunpack.c.l.bf16 %v1606
      %v1639 = vunpack.c.l.bf16 %v1607
      %v1640 = vunpack.c.l.bf16 %v1608
      %v1641 = vunpack.c.l.bf16 %v1609
      %v1642 = vunpack.c.l.bf16 %v1610
      %v1643 = vunpack.c.l.bf16 %v1611
      %v1644 = vunpack.c.l.bf16 %v1612
      %v1645 = vunpack.c.l.bf16 %v1613
      %v1646 = vunpack.c.l.bf16 %v1614
      %v1647 = vunpack.c.l.bf16 %v1615
      %v1648 = vunpack.c.l.bf16 %v1616
      %v1649 = vunpack.c.l.bf16 %v1617
      %v1650 = vunpack.c.l.bf16 %v1618
      %v1651 = vunpack.c.l.bf16 %v1619
      %v1652 = vunpack.c.l.bf16 %v1620
      %v1653 = vunpack.c.l.bf16 %v1621
      %v1654 = vunpack.c.l.bf16 %v1622
      %v1655 = vunpack.c.l.bf16 %v1623
      %v1656 = vunpack.c.l.bf16 %v1624
      %v1657 = vunpack.c.l.bf16 %v1625
      %v1658 = vunpack.c.l.bf16 %v1626
      %v1659 = vunpack.c.l.bf16 %v1627
      %v1660 = vunpack.c.l.bf16 %v1628
      %v1661 = vunpack.c.l.bf16 %v1629
      %v1662 = vunpack.c.l.bf16 %v1630
      %v1663 = vunpack.c.l.bf16 %v1631
      %v1664 = vunpack.c.l.bf16 %v1632
      %s1665 = scalar_lea.vmem %s1, 12
      %v1666 = vld [vmem:[%s1665] sm:$0x7]
      %v1668 = vsel %vm559, %v1633, 0
      %v1671 = vsel %vm559, %v1634, 0
      %v1674 = vsel %vm559, %v1635, 0
      %v1677 = vsel %vm559, %v1636, 0
      %v1680 = vsel %vm559, %v1637, 0
      %v1683 = vsel %vm559, %v1638, 0
      %v1686 = vsel %vm559, %v1639, 0
      %v1689 = vsel %vm559, %v1640, 0
      %v1692 = vsel %vm559, %v1641, 0
      %v1695 = vsel %vm559, %v1642, 0
      %v1698 = vsel %vm559, %v1643, 0
      %v1701 = vsel %vm559, %v1644, 0
      %v1704 = vsel %vm559, %v1645, 0
      %v1707 = vsel %vm559, %v1646, 0
      %v1710 = vsel %vm559, %v1647, 0
      %v1713 = vsel %vm559, %v1648, 0
      %v1716 = vsel %vm559, %v1649, 0
      %v1719 = vsel %vm559, %v1650, 0
      %v1722 = vsel %vm559, %v1651, 0
      %v1725 = vsel %vm559, %v1652, 0
      %v1728 = vsel %vm559, %v1653, 0
      %v1731 = vsel %vm559, %v1654, 0
      %v1734 = vsel %vm559, %v1655, 0
      %v1737 = vsel %vm559, %v1656, 0
      %v1740 = vsel %vm559, %v1657, 0
      %v1743 = vsel %vm559, %v1658, 0
      %v1746 = vsel %vm559, %v1659, 0
      %v1749 = vsel %vm559, %v1660, 0
      %v1752 = vsel %vm559, %v1661, 0
      %v1755 = vsel %vm559, %v1662, 0
      %v1758 = vsel %vm559, %v1663, 0
      %v1761 = vsel %vm559, %v1664, 0
      %v1764 = vsel %vm624, %v1666, 0
      %1766 = vmatprep.subr.mxu0 0.0
      %1767 = vmatpush1.msra.mxu0 %v1764
      %1768 = vmatprep.subr.mxu0 0.0
      %1769 = vmatpush1.msra.mxu0 0.0
      %1770 = vmatprep.subr.mxu0 0.0
      %1771 = vmatpush1.msra.mxu0 0.0
      %1772 = vmatprep.subr.mxu0 0.0
      %1773 = vmatpush1.msra.mxu0 0.0
      %1774 = vmatprep.subr.mxu0 0.0
      %1775 = vmatpush1.msra.mxu0 0.0
      %1776 = vmatprep.subr.mxu0 0.0
      %1777 = vmatpush1.msra.mxu0 0.0
      %1778 = vmatprep.subr.mxu0 0.0
      %1779 = vmatpush1.msra.mxu0 0.0
      %1780 = vmatprep.subr.mxu0 0.0
      %1781 = vmatpush1.msra.mxu0 0.0
      %1782 = vmatprep.subr.mxu0 0.0
      %1783 = vmatpush1.msra.mxu0 0.0
      %1784 = vmatprep.subr.mxu0 0.0
      %1785 = vmatpush1.msra.mxu0 0.0
      %1786 = vmatprep.subr.mxu0 0.0
      %1787 = vmatpush1.msra.mxu0 0.0
      %1788 = vmatprep.subr.mxu0 0.0
      %1789 = vmatpush1.msra.mxu0 0.0
      %1790 = vmatprep.subr.mxu0 0.0
      %1791 = vmatpush1.msra.mxu0 0.0
      %1792 = vmatprep.subr.mxu0 0.0
      %1793 = vmatpush1.msra.mxu0 0.0
      %1794 = vmatprep.subr.mxu0 0.0
      %1795 = vmatpush1.msra.mxu0 0.0
      %1796 = vmatprep.subr.mxu0 0.0
      %1797 = vmatpush1.msra.mxu0 0.0
      %1798 = vmatprep.subr.mxu0 0.0
      %1799 = vmatpush1.msra.mxu0 0.0
      %1800 = vmatprep.subr.mxu0 0.0
      %1801 = vmatpush1.msra.mxu0 0.0
      %1802 = vmatprep.subr.mxu0 0.0
      %1803 = vmatpush1.msra.mxu0 0.0
      %1804 = vmatprep.subr.mxu0 0.0
      %1805 = vmatpush1.msra.mxu0 0.0
      %1806 = vmatprep.subr.mxu0 0.0
      %1807 = vmatpush1.msra.mxu0 0.0
      %1808 = vmatprep.subr.mxu0 0.0
      %1809 = vmatpush1.msra.mxu0 0.0
      %1810 = vmatprep.subr.mxu0 0.0
      %1811 = vmatpush1.msra.mxu0 0.0
      %1812 = vmatprep.subr.mxu0 0.0
      %1813 = vmatpush1.msra.mxu0 0.0
      %1814 = vmatprep.subr.mxu0 0.0
      %1815 = vmatpush1.msra.mxu0 0.0
      %1816 = vmatprep.subr.mxu0 0.0
      %1817 = vmatpush1.msra.mxu0 0.0
      %1818 = vmatprep.subr.mxu0 0.0
      %1819 = vmatpush1.msra.mxu0 0.0
      %1820 = vmatprep.subr.mxu0 0.0
      %1821 = vmatpush1.msra.mxu0 0.0
      %1822 = vmatprep.subr.mxu0 0.0
      %1823 = vmatpush1.msra.mxu0 0.0
      %1824 = vmatprep.subr.mxu0 0.0
      %1825 = vmatpush1.msra.mxu0 0.0
      %1826 = vmatprep.subr.mxu0 0.0
      %1827 = vmatpush1.msra.mxu0 0.0
      %1828 = vmatprep.subr.mxu0 0.0
      %1829 = vmatpush1.msra.mxu0 0.0
      %1830 = vmatprep.mubr.f32.mxu0 0.0
      %1831 = vmatmul.mubr.f32.gmra.mrb[0].mxu0 %v1668
      %v1832 = vpop.f32.mrb[0].mxu0
      %v1833 = vadd.f32 0.0, %v1832
      %v1834 = vpop.f32.mrb[0].mxu0
      %1835 = vmatprep.mubr.f32.mxu0 0.0
      %1836 = vmatmul.mubr.f32.gmra.mrb[0].mxu0 %v1671
      %v1837 = vpop.f32.mrb[0].mxu0
      %v1838 = vadd.f32 0.0, %v1837
      %v1839 = vpop.f32.mrb[0].mxu0
      %1840 = vmatprep.mubr.f32.mxu0 0.0
      %1841 = vmatmul.mubr.f32.gmra.mrb[0].mxu0 %v1674
      %v1842 = vpop.f32.mrb[0].mxu0
      %v1843 = vadd.f32 0.0, %v1842
      %v1844 = vpop.f32.mrb[0].mxu0
      %1845 = vmatprep.mubr.f32.mxu0 0.0
      %1846 = vmatmul.mubr.f32.gmra.mrb[0].mxu0 %v1677
      %v1847 = vpop.f32.mrb[0].mxu0
      %v1848 = vadd.f32 0.0, %v1847
      %v1849 = vpop.f32.mrb[0].mxu0
      %1850 = vmatprep.mubr.f32.mxu0 0.0
      %1851 = vmatmul.mubr.f32.gmra.mrb[0].mxu0 %v1680
      %v1852 = vpop.f32.mrb[0].mxu0
      %v1853 = vadd.f32 0.0, %v1852
      %v1854 = vpop.f32.mrb[0].mxu0
      %1855 = vmatprep.mubr.f32.mxu0 0.0
      %1856 = vmatmul.mubr.f32.gmra.mrb[0].mxu0 %v1683
      %v1857 = vpop.f32.mrb[0].mxu0
      %v1858 = vadd.f32 0.0, %v1857
      %v1859 = vpop.f32.mrb[0].mxu0
      %1860 = vmatprep.mubr.f32.mxu0 0.0
      %1861 = vmatmul.mubr.f32.gmra.mrb[0].mxu0 %v1686
      %v1862 = vpop.f32.mrb[0].mxu0
      %v1863 = vadd.f32 0.0, %v1862
      %v1864 = vpop.f32.mrb[0].mxu0
      %1865 = vmatprep.mubr.f32.mxu0 0.0
      %1866 = vmatmul.mubr.f32.gmra.mrb[0].mxu0 %v1689
      %v1867 = vpop.f32.mrb[0].mxu0
      %v1868 = vadd.f32 0.0, %v1867
      %v1869 = vpop.f32.mrb[0].mxu0
      %1870 = vmatprep.mubr.f32.mxu0 0.0
      %1871 = vmatmul.mubr.f32.gmra.mrb[0].mxu0 %v1692
      %v1872 = vpop.f32.mrb[0].mxu0
      %v1873 = vadd.f32 0.0, %v1872
      %v1874 = vpop.f32.mrb[0].mxu0
      %1875 = vmatprep.mubr.f32.mxu0 0.0
      %1876 = vmatmul.mubr.f32.gmra.mrb[0].mxu0 %v1695
      %v1877 = vpop.f32.mrb[0].mxu0
      %v1878 = vadd.f32 0.0, %v1877
      %v1879 = vpop.f32.mrb[0].mxu0
      %1880 = vmatprep.mubr.f32.mxu0 0.0
      %1881 = vmatmul.mubr.f32.gmra.mrb[0].mxu0 %v1698
      %v1882 = vpop.f32.mrb[0].mxu0
      %v1883 = vadd.f32 0.0, %v1882
      %v1884 = vpop.f32.mrb[0].mxu0
      %1885 = vmatprep.mubr.f32.mxu0 0.0
      %1886 = vmatmul.mubr.f32.gmra.mrb[0].mxu0 %v1701
      %v1887 = vpop.f32.mrb[0].mxu0
      %v1888 = vadd.f32 0.0, %v1887
      %v1889 = vpop.f32.mrb[0].mxu0
      %1890 = vmatprep.mubr.f32.mxu0 0.0
      %1891 = vmatmul.mubr.f32.gmra.mrb[0].mxu0 %v1704
      %v1892 = vpop.f32.mrb[0].mxu0
      %v1893 = vadd.f32 0.0, %v1892
      %v1894 = vpop.f32.mrb[0].mxu0
      %1895 = vmatprep.mubr.f32.mxu0 0.0
      %1896 = vmatmul.mubr.f32.gmra.mrb[0].mxu0 %v1707
      %v1897 = vpop.f32.mrb[0].mxu0
      %v1898 = vadd.f32 0.0, %v1897
      %v1899 = vpop.f32.mrb[0].mxu0
      %1900 = vmatprep.mubr.f32.mxu0 0.0
      %1901 = vmatmul.mubr.f32.gmra.mrb[0].mxu0 %v1710
      %v1902 = vpop.f32.mrb[0].mxu0
      %v1903 = vadd.f32 0.0, %v1902
      %v1904 = vpop.f32.mrb[0].mxu0
      %1905 = vmatprep.mubr.f32.mxu0 0.0
      %1906 = vmatmul.mubr.f32.gmra.mrb[0].mxu0 %v1713
      %v1907 = vpop.f32.mrb[0].mxu0
      %v1908 = vadd.f32 0.0, %v1907
      %v1909 = vpop.f32.mrb[0].mxu0
      %1910 = vmatprep.mubr.f32.mxu0 0.0
      %1911 = vmatmul.mubr.f32.gmra.mrb[0].mxu0 %v1716
      %v1912 = vpop.f32.mrb[0].mxu0
      %v1913 = vadd.f32 0.0, %v1912
      %v1914 = vpop.f32.mrb[0].mxu0
      %1915 = vmatprep.mubr.f32.mxu0 0.0
      %1916 = vmatmul.mubr.f32.gmra.mrb[0].mxu0 %v1719
      %v1917 = vpop.f32.mrb[0].mxu0
      %v1918 = vadd.f32 0.0, %v1917
      %v1919 = vpop.f32.mrb[0].mxu0
      %1920 = vmatprep.mubr.f32.mxu0 0.0
      %1921 = vmatmul.mubr.f32.gmra.mrb[0].mxu0 %v1722
      %v1922 = vpop.f32.mrb[0].mxu0
      %v1923 = vadd.f32 0.0, %v1922
      %v1924 = vpop.f32.mrb[0].mxu0
      %1925 = vmatprep.mubr.f32.mxu0 0.0
      %1926 = vmatmul.mubr.f32.gmra.mrb[0].mxu0 %v1725
      %v1927 = vpop.f32.mrb[0].mxu0
      %v1928 = vadd.f32 0.0, %v1927
      %v1929 = vpop.f32.mrb[0].mxu0
      %1930 = vmatprep.mubr.f32.mxu0 0.0
      %1931 = vmatmul.mubr.f32.gmra.mrb[0].mxu0 %v1728
      %v1932 = vpop.f32.mrb[0].mxu0
      %v1933 = vadd.f32 0.0, %v1932
      %v1934 = vpop.f32.mrb[0].mxu0
      %1935 = vmatprep.mubr.f32.mxu0 0.0
      %1936 = vmatmul.mubr.f32.gmra.mrb[0].mxu0 %v1731
      %v1937 = vpop.f32.mrb[0].mxu0
      %v1938 = vadd.f32 0.0, %v1937
      %v1939 = vpop.f32.mrb[0].mxu0
      %1940 = vmatprep.mubr.f32.mxu0 0.0
      %1941 = vmatmul.mubr.f32.gmra.mrb[0].mxu0 %v1734
      %v1942 = vpop.f32.mrb[0].mxu0
      %v1943 = vadd.f32 0.0, %v1942
      %v1944 = vpop.f32.mrb[0].mxu0
      %1945 = vmatprep.mubr.f32.mxu0 0.0
      %1946 = vmatmul.mubr.f32.gmra.mrb[0].mxu0 %v1737
      %v1947 = vpop.f32.mrb[0].mxu0
      %v1948 = vadd.f32 0.0, %v1947
      %v1949 = vpop.f32.mrb[0].mxu0
      %1950 = vmatprep.mubr.f32.mxu0 0.0
      %1951 = vmatmul.mubr.f32.gmra.mrb[0].mxu0 %v1740
      %v1952 = vpop.f32.mrb[0].mxu0
      %v1953 = vadd.f32 0.0, %v1952
      %v1954 = vpop.f32.mrb[0].mxu0
      %1955 = vmatprep.mubr.f32.mxu0 0.0
      %1956 = vmatmul.mubr.f32.gmra.mrb[0].mxu0 %v1743
      %v1957 = vpop.f32.mrb[0].mxu0
      %v1958 = vadd.f32 0.0, %v1957
      %v1959 = vpop.f32.mrb[0].mxu0
      %1960 = vmatprep.mubr.f32.mxu0 0.0
      %1961 = vmatmul.mubr.f32.gmra.mrb[0].mxu0 %v1746
      %v1962 = vpop.f32.mrb[0].mxu0
      %v1963 = vadd.f32 0.0, %v1962
      %v1964 = vpop.f32.mrb[0].mxu0
      %1965 = vmatprep.mubr.f32.mxu0 0.0
      %1966 = vmatmul.mubr.f32.gmra.mrb[0].mxu0 %v1749
      %v1967 = vpop.f32.mrb[0].mxu0
      %v1968 = vadd.f32 0.0, %v1967
      %v1969 = vpop.f32.mrb[0].mxu0
      %1970 = vmatprep.mubr.f32.mxu0 0.0
      %1971 = vmatmul.mubr.f32.gmra.mrb[0].mxu0 %v1752
      %v1972 = vpop.f32.mrb[0].mxu0
      %v1973 = vadd.f32 0.0, %v1972
      %v1974 = vpop.f32.mrb[0].mxu0
      %1975 = vmatprep.mubr.f32.mxu0 0.0
      %1976 = vmatmul.mubr.f32.gmra.mrb[0].mxu0 %v1755
      %v1977 = vpop.f32.mrb[0].mxu0
      %v1978 = vadd.f32 0.0, %v1977
      %v1979 = vpop.f32.mrb[0].mxu0
      %1980 = vmatprep.mubr.f32.mxu0 0.0
      %1981 = vmatmul.mubr.f32.gmra.mrb[0].mxu0 %v1758
      %v1982 = vpop.f32.mrb[0].mxu0
      %v1983 = vadd.f32 0.0, %v1982
      %v1984 = vpop.f32.mrb[0].mxu0
      %1985 = vmatprep.mubr.f32.mxu0 0.0
      %1986 = vmatmul.mubr.f32.gmra.mrb[0].mxu0 %v1761
      %v1987 = vpop.f32.mrb[0].mxu0
      %v1988 = vadd.f32 0.0, %v1987
      %v1989 = vpop.f32.mrb[0].mxu0
      %1990 = vdwg.mxu0
      %v1991 = vadd.f32 %v1568, %v1833
      %v1992 = vadd.f32 %v1569, %v1838
      %v1993 = vadd.f32 %v1570, %v1843
      %v1994 = vadd.f32 %v1571, %v1848
      %v1995 = vadd.f32 %v1572, %v1853
      %v1996 = vadd.f32 %v1573, %v1858
      %v1997 = vadd.f32 %v1574, %v1863
      %v1998 = vadd.f32 %v1575, %v1868
      %v1999 = vadd.f32 %v1576, %v1873
      %v2000 = vadd.f32 %v1577, %v1878
      %v2001 = vadd.f32 %v1578, %v1883
      %v2002 = vadd.f32 %v1579, %v1888
      %v2003 = vadd.f32 %v1580, %v1893
      %v2004 = vadd.f32 %v1581, %v1898
      %v2005 = vadd.f32 %v1582, %v1903
      %v2006 = vadd.f32 %v1583, %v1908
      %v2007 = vadd.f32 %v1584, %v1913
      %v2008 = vadd.f32 %v1585, %v1918
      %v2009 = vadd.f32 %v1586, %v1923
      %v2010 = vadd.f32 %v1587, %v1928
      %v2011 = vadd.f32 %v1588, %v1933
      %v2012 = vadd.f32 %v1589, %v1938
      %v2013 = vadd.f32 %v1590, %v1943
      %v2014 = vadd.f32 %v1591, %v1948
      %v2015 = vadd.f32 %v1592, %v1953
      %v2016 = vadd.f32 %v1593, %v1958
      %v2017 = vadd.f32 %v1594, %v1963
      %v2018 = vadd.f32 %v1595, %v1968
      %v2019 = vadd.f32 %v1596, %v1973
      %v2020 = vadd.f32 %v1597, %v1978
      %v2021 = vadd.f32 %v1598, %v1983
      %v2022 = vadd.f32 %v1599, %v1988
      %v2023 = vld [vmem:[%s1600] sm:$0xf]
      %v2024 = vld [vmem:[%s1600 + $0x4] sm:$0xf]
      %v2025 = vld [vmem:[%s1600 + $0x8] sm:$0x1]
      %v2026 = vld [vmem:[%s1600 + $0xc] sm:$0xf]
      %v2027 = vld [vmem:[%s1600 + $0x10] sm:$0xf]
      %v2028 = vld [vmem:[%s1600 + $0x14] sm:$0x1]
      %v2029 = vld [vmem:[%s1600 + $0x18] sm:$0xf]
      %v2030 = vld [vmem:[%s1600 + $0x1c] sm:$0xf]
      %v2031 = vld [vmem:[%s1600 + $0x20] sm:$0x1]
      %v2032 = vld [vmem:[%s1600 + $0x24] sm:$0xf]
      %v2033 = vld [vmem:[%s1600 + $0x28] sm:$0xf]
      %v2034 = vld [vmem:[%s1600 + $0x2c] sm:$0x1]
      %v2035 = vld [vmem:[%s1600 + $0x30] sm:$0xf]
      %v2036 = vld [vmem:[%s1600 + $0x34] sm:$0xf]
      %v2037 = vld [vmem:[%s1600 + $0x38] sm:$0x1]
      %v2038 = vld [vmem:[%s1600 + $0x3c] sm:$0xf]
      %v2039 = vld [vmem:[%s1600 + $0x40] sm:$0xf]
      %v2040 = vld [vmem:[%s1600 + $0x44] sm:$0x1]
      %v2041 = vld [vmem:[%s1600 + $0x48] sm:$0xf]
      %v2042 = vld [vmem:[%s1600 + $0x4c] sm:$0xf]
      %v2043 = vld [vmem:[%s1600 + $0x50] sm:$0x1]
      %v2044 = vld [vmem:[%s1600 + $0x54] sm:$0xf]
      %v2045 = vld [vmem:[%s1600 + $0x58] sm:$0xf]
      %v2046 = vld [vmem:[%s1600 + $0x5c] sm:$0x1]
      %v2047 = vld [vmem:[%s1600 + $0x60] sm:$0xf]
      %v2048 = vld [vmem:[%s1600 + $0x64] sm:$0xf]
      %v2049 = vld [vmem:[%s1600 + $0x68] sm:$0x1]
      %v2050 = vld [vmem:[%s1600 + $0x6c] sm:$0xf]
      %v2051 = vld [vmem:[%s1600 + $0x70] sm:$0xf]
      %v2052 = vld [vmem:[%s1600 + $0x74] sm:$0x1]
      %v2053 = vld [vmem:[%s1600 + $0x78] sm:$0xf]
      %v2054 = vld [vmem:[%s1600 + $0x7c] sm:$0xf]
      %v2055 = vld [vmem:[%s1600 + $0x80] sm:$0x1]
      %v2056 = vld [vmem:[%s1600 + $0x84] sm:$0xf]
      %v2057 = vld [vmem:[%s1600 + $0x88] sm:$0xf]
      %v2058 = vld [vmem:[%s1600 + $0x8c] sm:$0x1]
      %v2059 = vld [vmem:[%s1600 + $0x90] sm:$0xf]
      %v2060 = vld [vmem:[%s1600 + $0x94] sm:$0xf]
      %v2061 = vld [vmem:[%s1600 + $0x98] sm:$0x1]
      %v2062 = vld [vmem:[%s1600 + $0x9c] sm:$0xf]
      %v2063 = vld [vmem:[%s1600 + $0xa0] sm:$0xf]
      %v2064 = vld [vmem:[%s1600 + $0xa4] sm:$0x1]
      %v2065 = vld [vmem:[%s1600 + $0xa8] sm:$0xf]
      %v2066 = vld [vmem:[%s1600 + $0xac] sm:$0xf]
      %v2067 = vld [vmem:[%s1600 + $0xb0] sm:$0x1]
      %v2068 = vld [vmem:[%s1600 + $0xb4] sm:$0xf]
      %v2069 = vld [vmem:[%s1600 + $0xb8] sm:$0xf]
      %v2070 = vld [vmem:[%s1600 + $0xbc] sm:$0x1]
      %v2071 = vunpack.c.l.bf16 %v2023
      %v2072 = vunpack.c.l.bf16 %v2024
      %v2073 = vunpack.c.l.bf16 %v2025
      %v2074 = vunpack.c.l.bf16 %v2026
      %v2075 = vunpack.c.l.bf16 %v2027
      %v2076 = vunpack.c.l.bf16 %v2028
      %v2077 = vunpack.c.l.bf16 %v2029
      %v2078 = vunpack.c.l.bf16 %v2030
      %v2079 = vunpack.c.l.bf16 %v2031
      %v2080 = vunpack.c.l.bf16 %v2032
      %v2081 = vunpack.c.l.bf16 %v2033
      %v2082 = vunpack.c.l.bf16 %v2034
      %v2083 = vunpack.c.l.bf16 %v2035
      %v2084 = vunpack.c.l.bf16 %v2036
      %v2085 = vunpack.c.l.bf16 %v2037
      %v2086 = vunpack.c.l.bf16 %v2038
      %v2087 = vunpack.c.l.bf16 %v2039
      %v2088 = vunpack.c.l.bf16 %v2040
      %v2089 = vunpack.c.l.bf16 %v2041
      %v2090 = vunpack.c.l.bf16 %v2042
      %v2091 = vunpack.c.l.bf16 %v2043
      %v2092 = vunpack.c.l.bf16 %v2044
      %v2093 = vunpack.c.l.bf16 %v2045
      %v2094 = vunpack.c.l.bf16 %v2046
      %v2095 = vunpack.c.l.bf16 %v2047
      %v2096 = vunpack.c.l.bf16 %v2048
      %v2097 = vunpack.c.l.bf16 %v2049
      %v2098 = vunpack.c.l.bf16 %v2050
      %v2099 = vunpack.c.l.bf16 %v2051
      %v2100 = vunpack.c.l.bf16 %v2052
      %v2101 = vunpack.c.l.bf16 %v2053
      %v2102 = vunpack.c.l.bf16 %v2054
      %v2103 = vunpack.c.l.bf16 %v2055
      %v2104 = vunpack.c.l.bf16 %v2056
      %v2105 = vunpack.c.l.bf16 %v2057
      %v2106 = vunpack.c.l.bf16 %v2058
      %v2107 = vunpack.c.l.bf16 %v2059
      %v2108 = vunpack.c.l.bf16 %v2060
      %v2109 = vunpack.c.l.bf16 %v2061
      %v2110 = vunpack.c.l.bf16 %v2062
      %v2111 = vunpack.c.l.bf16 %v2063
      %v2112 = vunpack.c.l.bf16 %v2064
      %v2113 = vunpack.c.l.bf16 %v2065
      %v2114 = vunpack.c.l.bf16 %v2066
      %v2115 = vunpack.c.l.bf16 %v2067
      %v2116 = vunpack.c.l.bf16 %v2068
      %v2117 = vunpack.c.l.bf16 %v2069
      %v2118 = vunpack.c.l.bf16 %v2070
      %v2167 = vrot.slane %v2071, 1
      %v2168 = vrot.slane %v2072, 1
      %v2169 = vsel %vm476, %v2167, %v2168
      %v2170 = vrot.slane %v2073, 1
      %v2171 = vsel %vm476, %v2168, %v2170
      %v2172 = vrot.slane %v2074, 1
      %v2173 = vrot.slane %v2075, 1
      %v2174 = vsel %vm476, %v2172, %v2173
      %v2175 = vrot.slane %v2076, 1
      %v2176 = vsel %vm476, %v2173, %v2175
      %v2177 = vrot.slane %v2077, 1
      %v2178 = vrot.slane %v2078, 1
      %v2179 = vsel %vm476, %v2177, %v2178
      %v2180 = vrot.slane %v2079, 1
      %v2181 = vsel %vm476, %v2178, %v2180
      %v2182 = vrot.slane %v2080, 1
      %v2183 = vrot.slane %v2081, 1
      %v2184 = vsel %vm476, %v2182, %v2183
      %v2185 = vrot.slane %v2082, 1
      %v2186 = vsel %vm476, %v2183, %v2185
      %v2187 = vrot.slane %v2083, 1
      %v2188 = vrot.slane %v2084, 1
      %v2189 = vsel %vm476, %v2187, %v2188
      %v2190 = vrot.slane %v2085, 1
      %v2191 = vsel %vm476, %v2188, %v2190
      %v2192 = vrot.slane %v2086, 1
      %v2193 = vrot.slane %v2087, 1
      %v2194 = vsel %vm476, %v2192, %v2193
      %v2195 = vrot.slane %v2088, 1
      %v2196 = vsel %vm476, %v2193, %v2195
      %v2197 = vrot.slane %v2089, 1
      %v2198 = vrot.slane %v2090, 1
      %v2199 = vsel %vm476, %v2197, %v2198
      %v2200 = vrot.slane %v2091, 1
      %v2201 = vsel %vm476, %v2198, %v2200
      %v2202 = vrot.slane %v2092, 1
      %v2203 = vrot.slane %v2093, 1
      %v2204 = vsel %vm476, %v2202, %v2203
      %v2205 = vrot.slane %v2094, 1
      %v2206 = vsel %vm476, %v2203, %v2205
      %v2207 = vrot.slane %v2095, 1
      %v2208 = vrot.slane %v2096, 1
      %v2209 = vsel %vm476, %v2207, %v2208
      %v2210 = vrot.slane %v2097, 1
      %v2211 = vsel %vm476, %v2208, %v2210
      %v2212 = vrot.slane %v2098, 1
      %v2213 = vrot.slane %v2099, 1
      %v2214 = vsel %vm476, %v2212, %v2213
      %v2215 = vrot.slane %v2100, 1
      %v2216 = vsel %vm476, %v2213, %v2215
      %v2217 = vrot.slane %v2101, 1
      %v2218 = vrot.slane %v2102, 1
      %v2219 = vsel %vm476, %v2217, %v2218
      %v2220 = vrot.slane %v2103, 1
      %v2221 = vsel %vm476, %v2218, %v2220
      %v2222 = vrot.slane %v2104, 1
      %v2223 = vrot.slane %v2105, 1
      %v2224 = vsel %vm476, %v2222, %v2223
      %v2225 = vrot.slane %v2106, 1
      %v2226 = vsel %vm476, %v2223, %v2225
      %v2227 = vrot.slane %v2107, 1
      %v2228 = vrot.slane %v2108, 1
      %v2229 = vsel %vm476, %v2227, %v2228
      %v2230 = vrot.slane %v2109, 1
      %v2231 = vsel %vm476, %v2228, %v2230
      %v2232 = vrot.slane %v2110, 1
      %v2233 = vrot.slane %v2111, 1
      %v2234 = vsel %vm476, %v2232, %v2233
      %v2235 = vrot.slane %v2112, 1
      %v2236 = vsel %vm476, %v2233, %v2235
      %v2237 = vrot.slane %v2113, 1
      %v2238 = vrot.slane %v2114, 1
      %v2239 = vsel %vm476, %v2237, %v2238
      %v2240 = vrot.slane %v2115, 1
      %v2241 = vsel %vm476, %v2238, %v2240
      %v2242 = vrot.slane %v2116, 1
      %v2243 = vrot.slane %v2117, 1
      %v2244 = vsel %vm476, %v2242, %v2243
      %v2245 = vrot.slane %v2118, 1
      %v2246 = vsel %vm476, %v2243, %v2245
      %s2247 = scalar_lea.vmem %s1, 16
      %v2248 = vld [vmem:[%s2247] sm:$0x7]
      %v2249 = vsel %vm559, %v2169, 0
      %v2251 = vsel %vm559, %v2171, 0
      %v2253 = vsel %vm559, %v2174, 0
      %v2255 = vsel %vm559, %v2176, 0
      %v2257 = vsel %vm559, %v2179, 0
      %v2259 = vsel %vm559, %v2181, 0
      %v2261 = vsel %vm559, %v2184, 0
      %v2263 = vsel %vm559, %v2186, 0
      %v2265 = vsel %vm559, %v2189, 0
      %v2267 = vsel %vm559, %v2191, 0
      %v2269 = vsel %vm559, %v2194, 0
      %v2271 = vsel %vm559, %v2196, 0
      %v2273 = vsel %vm559, %v2199, 0
      %v2275 = vsel %vm559, %v2201, 0
      %v2277 = vsel %vm559, %v2204, 0
      %v2279 = vsel %vm559, %v2206, 0
      %v2281 = vsel %vm559, %v2209, 0
      %v2283 = vsel %vm559, %v2211, 0
      %v2285 = vsel %vm559, %v2214, 0
      %v2287 = vsel %vm559, %v2216, 0
      %v2289 = vsel %vm559, %v2219, 0
      %v2291 = vsel %vm559, %v2221, 0
      %v2293 = vsel %vm559, %v2224, 0
      %v2295 = vsel %vm559, %v2226, 0
      %v2297 = vsel %vm559, %v2229, 0
      %v2299 = vsel %vm559, %v2231, 0
      %v2301 = vsel %vm559, %v2234, 0
      %v2303 = vsel %vm559, %v2236, 0
      %v2305 = vsel %vm559, %v2239, 0
      %v2307 = vsel %vm559, %v2241, 0
      %v2309 = vsel %vm559, %v2244, 0
      %v2311 = vsel %vm559, %v2246, 0
      %v2314 = vsel %vm624, %v2248, 0
      %2316 = vmatprep.subr.mxu0 0.0
      %2317 = vmatpush1.msra.mxu0 %v2314
      %2318 = vmatprep.subr.mxu0 0.0
      %2319 = vmatpush1.msra.mxu0 0.0
      %2320 = vmatprep.subr.mxu0 0.0
      %2321 = vmatpush1.msra.mxu0 0.0
      %2322 = vmatprep.subr.mxu0 0.0
      %2323 = vmatpush1.msra.mxu0 0.0
      %2324 = vmatprep.subr.mxu0 0.0
      %2325 = vmatpush1.msra.mxu0 0.0
      %2326 = vmatprep.subr.mxu0 0.0
      %2327 = vmatpush1.msra.mxu0 0.0
      %2328 = vmatprep.subr.mxu0 0.0
      %2329 = vmatpush1.msra.mxu0 0.0
      %2330 = vmatprep.subr.mxu0 0.0
      %2331 = vmatpush1.msra.mxu0 0.0
      %2332 = vmatprep.subr.mxu0 0.0
      %2333 = vmatpush1.msra.mxu0 0.0
      %2334 = vmatprep.subr.mxu0 0.0
      %2335 = vmatpush1.msra.mxu0 0.0
      %2336 = vmatprep.subr.mxu0 0.0
      %2337 = vmatpush1.msra.mxu0 0.0
      %2338 = vmatprep.subr.mxu0 0.0
      %2339 = vmatpush1.msra.mxu0 0.0
      %2340 = vmatprep.subr.mxu0 0.0
      %2341 = vmatpush1.msra.mxu0 0.0
      %2342 = vmatprep.subr.mxu0 0.0
      %2343 = vmatpush1.msra.mxu0 0.0
      %2344 = vmatprep.subr.mxu0 0.0
      %2345 = vmatpush1.msra.mxu0 0.0
      %2346 = vmatprep.subr.mxu0 0.0
      %2347 = vmatpush1.msra.mxu0 0.0
      %2348 = vmatprep.subr.mxu0 0.0
      %2349 = vmatpush1.msra.mxu0 0.0
      %2350 = vmatprep.subr.mxu0 0.0
      %2351 = vmatpush1.msra.mxu0 0.0
      %2352 = vmatprep.subr.mxu0 0.0
      %2353 = vmatpush1.msra.mxu0 0.0
      %2354 = vmatprep.subr.mxu0 0.0
      %2355 = vmatpush1.msra.mxu0 0.0
      %2356 = vmatprep.subr.mxu0 0.0
      %2357 = vmatpush1.msra.mxu0 0.0
      %2358 = vmatprep.subr.mxu0 0.0
      %2359 = vmatpush1.msra.mxu0 0.0
      %2360 = vmatprep.subr.mxu0 0.0
      %2361 = vmatpush1.msra.mxu0 0.0
      %2362 = vmatprep.subr.mxu0 0.0
      %2363 = vmatpush1.msra.mxu0 0.0
      %2364 = vmatprep.subr.mxu0 0.0
      %2365 = vmatpush1.msra.mxu0 0.0
      %2366 = vmatprep.subr.mxu0 0.0
      %2367 = vmatpush1.msra.mxu0 0.0
      %2368 = vmatprep.subr.mxu0 0.0
      %2369 = vmatpush1.msra.mxu0 0.0
      %2370 = vmatprep.subr.mxu0 0.0
      %2371 = vmatpush1.msra.mxu0 0.0
      %2372 = vmatprep.subr.mxu0 0.0
      %2373 = vmatpush1.msra.mxu0 0.0
      %2374 = vmatprep.subr.mxu0 0.0
      %2375 = vmatpush1.msra.mxu0 0.0
      %2376 = vmatprep.subr.mxu0 0.0
      %2377 = vmatpush1.msra.mxu0 0.0
      %2378 = vmatprep.subr.mxu0 0.0
      %2379 = vmatpush1.msra.mxu0 0.0
      %2380 = vmatprep.mubr.f32.mxu0 0.0
      %2381 = vmatmul.mubr.f32.gmra.mrb[0].mxu0 %v2249
      %v2382 = vpop.f32.mrb[0].mxu0
      %v2383 = vadd.f32 0.0, %v2382
      %v2384 = vpop.f32.mrb[0].mxu0
      %2385 = vmatprep.mubr.f32.mxu0 0.0
      %2386 = vmatmul.mubr.f32.gmra.mrb[0].mxu0 %v2251
      %v2387 = vpop.f32.mrb[0].mxu0
      %v2388 = vadd.f32 0.0, %v2387
      %v2389 = vpop.f32.mrb[0].mxu0
      %2390 = vmatprep.mubr.f32.mxu0 0.0
      %2391 = vmatmul.mubr.f32.gmra.mrb[0].mxu0 %v2253
      %v2392 = vpop.f32.mrb[0].mxu0
      %v2393 = vadd.f32 0.0, %v2392
      %v2394 = vpop.f32.mrb[0].mxu0
      %2395 = vmatprep.mubr.f32.mxu0 0.0
      %2396 = vmatmul.mubr.f32.gmra.mrb[0].mxu0 %v2255
      %v2397 = vpop.f32.mrb[0].mxu0
      %v2398 = vadd.f32 0.0, %v2397
      %v2399 = vpop.f32.mrb[0].mxu0
      %2400 = vmatprep.mubr.f32.mxu0 0.0
      %2401 = vmatmul.mubr.f32.gmra.mrb[0].mxu0 %v2257
      %v2402 = vpop.f32.mrb[0].mxu0
      %v2403 = vadd.f32 0.0, %v2402
      %v2404 = vpop.f32.mrb[0].mxu0
      %2405 = vmatprep.mubr.f32.mxu0 0.0
      %2406 = vmatmul.mubr.f32.gmra.mrb[0].mxu0 %v2259
      %v2407 = vpop.f32.mrb[0].mxu0
      %v2408 = vadd.f32 0.0, %v2407
      %v2409 = vpop.f32.mrb[0].mxu0
      %2410 = vmatprep.mubr.f32.mxu0 0.0
      %2411 = vmatmul.mubr.f32.gmra.mrb[0].mxu0 %v2261
      %v2412 = vpop.f32.mrb[0].mxu0
      %v2413 = vadd.f32 0.0, %v2412
      %v2414 = vpop.f32.mrb[0].mxu0
      %2415 = vmatprep.mubr.f32.mxu0 0.0
      %2416 = vmatmul.mubr.f32.gmra.mrb[0].mxu0 %v2263
      %v2417 = vpop.f32.mrb[0].mxu0
      %v2418 = vadd.f32 0.0, %v2417
      %v2419 = vpop.f32.mrb[0].mxu0
      %2420 = vmatprep.mubr.f32.mxu0 0.0
      %2421 = vmatmul.mubr.f32.gmra.mrb[0].mxu0 %v2265
      %v2422 = vpop.f32.mrb[0].mxu0
      %v2423 = vadd.f32 0.0, %v2422
      %v2424 = vpop.f32.mrb[0].mxu0
      %2425 = vmatprep.mubr.f32.mxu0 0.0
      %2426 = vmatmul.mubr.f32.gmra.mrb[0].mxu0 %v2267
      %v2427 = vpop.f32.mrb[0].mxu0
      %v2428 = vadd.f32 0.0, %v2427
      %v2429 = vpop.f32.mrb[0].mxu0
      %2430 = vmatprep.mubr.f32.mxu0 0.0
      %2431 = vmatmul.mubr.f32.gmra.mrb[0].mxu0 %v2269
      %v2432 = vpop.f32.mrb[0].mxu0
      %v2433 = vadd.f32 0.0, %v2432
      %v2434 = vpop.f32.mrb[0].mxu0
      %2435 = vmatprep.mubr.f32.mxu0 0.0
      %2436 = vmatmul.mubr.f32.gmra.mrb[0].mxu0 %v2271
      %v2437 = vpop.f32.mrb[0].mxu0
      %v2438 = vadd.f32 0.0, %v2437
      %v2439 = vpop.f32.mrb[0].mxu0
      %2440 = vmatprep.mubr.f32.mxu0 0.0
      %2441 = vmatmul.mubr.f32.gmra.mrb[0].mxu0 %v2273
      %v2442 = vpop.f32.mrb[0].mxu0
      %v2443 = vadd.f32 0.0, %v2442
      %v2444 = vpop.f32.mrb[0].mxu0
      %2445 = vmatprep.mubr.f32.mxu0 0.0
      %2446 = vmatmul.mubr.f32.gmra.mrb[0].mxu0 %v2275
      %v2447 = vpop.f32.mrb[0].mxu0
      %v2448 = vadd.f32 0.0, %v2447
      %v2449 = vpop.f32.mrb[0].mxu0
      %2450 = vmatprep.mubr.f32.mxu0 0.0
      %2451 = vmatmul.mubr.f32.gmra.mrb[0].mxu0 %v2277
      %v2452 = vpop.f32.mrb[0].mxu0
      %v2453 = vadd.f32 0.0, %v2452
      %v2454 = vpop.f32.mrb[0].mxu0
      %2455 = vmatprep.mubr.f32.mxu0 0.0
      %2456 = vmatmul.mubr.f32.gmra.mrb[0].mxu0 %v2279
      %v2457 = vpop.f32.mrb[0].mxu0
      %v2458 = vadd.f32 0.0, %v2457
      %v2459 = vpop.f32.mrb[0].mxu0
      %2460 = vmatprep.mubr.f32.mxu0 0.0
      %2461 = vmatmul.mubr.f32.gmra.mrb[0].mxu0 %v2281
      %v2462 = vpop.f32.mrb[0].mxu0
      %v2463 = vadd.f32 0.0, %v2462
      %v2464 = vpop.f32.mrb[0].mxu0
      %2465 = vmatprep.mubr.f32.mxu0 0.0
      %2466 = vmatmul.mubr.f32.gmra.mrb[0].mxu0 %v2283
      %v2467 = vpop.f32.mrb[0].mxu0
      %v2468 = vadd.f32 0.0, %v2467
      %v2469 = vpop.f32.mrb[0].mxu0
      %2470 = vmatprep.mubr.f32.mxu0 0.0
      %2471 = vmatmul.mubr.f32.gmra.mrb[0].mxu0 %v2285
      %v2472 = vpop.f32.mrb[0].mxu0
      %v2473 = vadd.f32 0.0, %v2472
      %v2474 = vpop.f32.mrb[0].mxu0
      %2475 = vmatprep.mubr.f32.mxu0 0.0
      %2476 = vmatmul.mubr.f32.gmra.mrb[0].mxu0 %v2287
      %v2477 = vpop.f32.mrb[0].mxu0
      %v2478 = vadd.f32 0.0, %v2477
      %v2479 = vpop.f32.mrb[0].mxu0
      %2480 = vmatprep.mubr.f32.mxu0 0.0
      %2481 = vmatmul.mubr.f32.gmra.mrb[0].mxu0 %v2289
      %v2482 = vpop.f32.mrb[0].mxu0
      %v2483 = vadd.f32 0.0, %v2482
      %v2484 = vpop.f32.mrb[0].mxu0
      %2485 = vmatprep.mubr.f32.mxu0 0.0
      %2486 = vmatmul.mubr.f32.gmra.mrb[0].mxu0 %v2291
      %v2487 = vpop.f32.mrb[0].mxu0
      %v2488 = vadd.f32 0.0, %v2487
      %v2489 = vpop.f32.mrb[0].mxu0
      %2490 = vmatprep.mubr.f32.mxu0 0.0
      %2491 = vmatmul.mubr.f32.gmra.mrb[0].mxu0 %v2293
      %v2492 = vpop.f32.mrb[0].mxu0
      %v2493 = vadd.f32 0.0, %v2492
      %v2494 = vpop.f32.mrb[0].mxu0
      %2495 = vmatprep.mubr.f32.mxu0 0.0
      %2496 = vmatmul.mubr.f32.gmra.mrb[0].mxu0 %v2295
      %v2497 = vpop.f32.mrb[0].mxu0
      %v2498 = vadd.f32 0.0, %v2497
      %v2499 = vpop.f32.mrb[0].mxu0
      %2500 = vmatprep.mubr.f32.mxu0 0.0
      %2501 = vmatmul.mubr.f32.gmra.mrb[0].mxu0 %v2297
      %v2502 = vpop.f32.mrb[0].mxu0
      %v2503 = vadd.f32 0.0, %v2502
      %v2504 = vpop.f32.mrb[0].mxu0
      %2505 = vmatprep.mubr.f32.mxu0 0.0
      %2506 = vmatmul.mubr.f32.gmra.mrb[0].mxu0 %v2299
      %v2507 = vpop.f32.mrb[0].mxu0
      %v2508 = vadd.f32 0.0, %v2507
      %v2509 = vpop.f32.mrb[0].mxu0
      %2510 = vmatprep.mubr.f32.mxu0 0.0
      %2511 = vmatmul.mubr.f32.gmra.mrb[0].mxu0 %v2301
      %v2512 = vpop.f32.mrb[0].mxu0
      %v2513 = vadd.f32 0.0, %v2512
      %v2514 = vpop.f32.mrb[0].mxu0
      %2515 = vmatprep.mubr.f32.mxu0 0.0
      %2516 = vmatmul.mubr.f32.gmra.mrb[0].mxu0 %v2303
      %v2517 = vpop.f32.mrb[0].mxu0
      %v2518 = vadd.f32 0.0, %v2517
      %v2519 = vpop.f32.mrb[0].mxu0
      %2520 = vmatprep.mubr.f32.mxu0 0.0
      %2521 = vmatmul.mubr.f32.gmra.mrb[0].mxu0 %v2305
      %v2522 = vpop.f32.mrb[0].mxu0
      %v2523 = vadd.f32 0.0, %v2522
      %v2524 = vpop.f32.mrb[0].mxu0
      %2525 = vmatprep.mubr.f32.mxu0 0.0
      %2526 = vmatmul.mubr.f32.gmra.mrb[0].mxu0 %v2307
      %v2527 = vpop.f32.mrb[0].mxu0
      %v2528 = vadd.f32 0.0, %v2527
      %v2529 = vpop.f32.mrb[0].mxu0
      %2530 = vmatprep.mubr.f32.mxu0 0.0
      %2531 = vmatmul.mubr.f32.gmra.mrb[0].mxu0 %v2309
      %v2532 = vpop.f32.mrb[0].mxu0
      %v2533 = vadd.f32 0.0, %v2532
      %v2534 = vpop.f32.mrb[0].mxu0
      %2535 = vmatprep.mubr.f32.mxu0 0.0
      %2536 = vmatmul.mubr.f32.gmra.mrb[0].mxu0 %v2311
      %v2537 = vpop.f32.mrb[0].mxu0
      %v2538 = vadd.f32 0.0, %v2537
      %v2539 = vpop.f32.mrb[0].mxu0
      %2540 = vdwg.mxu0
      %v2541 = vadd.f32 %v1991, %v2383
      %v2542 = vadd.f32 %v1992, %v2388
      %v2543 = vadd.f32 %v1993, %v2393
      %v2544 = vadd.f32 %v1994, %v2398
      %v2545 = vadd.f32 %v1995, %v2403
      %v2546 = vadd.f32 %v1996, %v2408
      %v2547 = vadd.f32 %v1997, %v2413
      %v2548 = vadd.f32 %v1998, %v2418
      %v2549 = vadd.f32 %v1999, %v2423
      %v2550 = vadd.f32 %v2000, %v2428
      %v2551 = vadd.f32 %v2001, %v2433
      %v2552 = vadd.f32 %v2002, %v2438
      %v2553 = vadd.f32 %v2003, %v2443
      %v2554 = vadd.f32 %v2004, %v2448
      %v2555 = vadd.f32 %v2005, %v2453
      %v2556 = vadd.f32 %v2006, %v2458
      %v2557 = vadd.f32 %v2007, %v2463
      %v2558 = vadd.f32 %v2008, %v2468
      %v2559 = vadd.f32 %v2009, %v2473
      %v2560 = vadd.f32 %v2010, %v2478
      %v2561 = vadd.f32 %v2011, %v2483
      %v2562 = vadd.f32 %v2012, %v2488
      %v2563 = vadd.f32 %v2013, %v2493
      %v2564 = vadd.f32 %v2014, %v2498
      %v2565 = vadd.f32 %v2015, %v2503
      %v2566 = vadd.f32 %v2016, %v2508
      %v2567 = vadd.f32 %v2017, %v2513
      %v2568 = vadd.f32 %v2018, %v2518
      %v2569 = vadd.f32 %v2019, %v2523
      %v2570 = vadd.f32 %v2020, %v2528
      %v2571 = vadd.f32 %v2021, %v2533
      %v2572 = vadd.f32 %v2022, %v2538
      %v2573 = vld [vmem:[%s1600] sm:$0xe]
      %v2574 = vld [vmem:[%s1600 + $0xc] sm:$0xe]
      %v2575 = vld [vmem:[%s1600 + $0x18] sm:$0xe]
      %v2576 = vld [vmem:[%s1600 + $0x24] sm:$0xe]
      %v2577 = vld [vmem:[%s1600 + $0x30] sm:$0xe]
      %v2578 = vld [vmem:[%s1600 + $0x3c] sm:$0xe]
      %v2579 = vld [vmem:[%s1600 + $0x48] sm:$0xe]
      %v2580 = vld [vmem:[%s1600 + $0x54] sm:$0xe]
      %v2581 = vld [vmem:[%s1600 + $0x60] sm:$0xe]
      %v2582 = vld [vmem:[%s1600 + $0x6c] sm:$0xe]
      %v2583 = vld [vmem:[%s1600 + $0x78] sm:$0xe]
      %v2584 = vld [vmem:[%s1600 + $0x84] sm:$0xe]
      %v2585 = vld [vmem:[%s1600 + $0x90] sm:$0xe]
      %v2586 = vld [vmem:[%s1600 + $0x9c] sm:$0xe]
      %v2587 = vld [vmem:[%s1600 + $0xa8] sm:$0xe]
      %v2588 = vld [vmem:[%s1600 + $0xb4] sm:$0xe]
      %v2589 = vunpack.c.l.bf16 %v2573
      %v2590 = vunpack.c.l.bf16 %v2574
      %v2591 = vunpack.c.l.bf16 %v2575
      %v2592 = vunpack.c.l.bf16 %v2576
      %v2593 = vunpack.c.l.bf16 %v2577
      %v2594 = vunpack.c.l.bf16 %v2578
      %v2595 = vunpack.c.l.bf16 %v2579
      %v2596 = vunpack.c.l.bf16 %v2580
      %v2597 = vunpack.c.l.bf16 %v2581
      %v2598 = vunpack.c.l.bf16 %v2582
      %v2599 = vunpack.c.l.bf16 %v2583
      %v2600 = vunpack.c.l.bf16 %v2584
      %v2601 = vunpack.c.l.bf16 %v2585
      %v2602 = vunpack.c.l.bf16 %v2586
      %v2603 = vunpack.c.l.bf16 %v2587
      %v2604 = vunpack.c.l.bf16 %v2588
      %v2621 = vrot.slane %v2589, 2
      %v2622 = vrot.slane %v2072, 2
      %v2623 = vsel %vm1193, %v2621, %v2622
      %v2624 = vrot.slane %v2073, 2
      %v2625 = vsel %vm1193, %v2622, %v2624
      %v2626 = vrot.slane %v2590, 2
      %v2627 = vrot.slane %v2075, 2
      %v2628 = vsel %vm1193, %v2626, %v2627
      %v2629 = vrot.slane %v2076, 2
      %v2630 = vsel %vm1193, %v2627, %v2629
      %v2631 = vrot.slane %v2591, 2
      %v2632 = vrot.slane %v2078, 2
      %v2633 = vsel %vm1193, %v2631, %v2632
      %v2634 = vrot.slane %v2079, 2
      %v2635 = vsel %vm1193, %v2632, %v2634
      %v2636 = vrot.slane %v2592, 2
      %v2637 = vrot.slane %v2081, 2
      %v2638 = vsel %vm1193, %v2636, %v2637
      %v2639 = vrot.slane %v2082, 2
      %v2640 = vsel %vm1193, %v2637, %v2639
      %v2641 = vrot.slane %v2593, 2
      %v2642 = vrot.slane %v2084, 2
      %v2643 = vsel %vm1193, %v2641, %v2642
      %v2644 = vrot.slane %v2085, 2
      %v2645 = vsel %vm1193, %v2642, %v2644
      %v2646 = vrot.slane %v2594, 2
      %v2647 = vrot.slane %v2087, 2
      %v2648 = vsel %vm1193, %v2646, %v2647
      %v2649 = vrot.slane %v2088, 2
      %v2650 = vsel %vm1193, %v2647, %v2649
      %v2651 = vrot.slane %v2595, 2
      %v2652 = vrot.slane %v2090, 2
      %v2653 = vsel %vm1193, %v2651, %v2652
      %v2654 = vrot.slane %v2091, 2
      %v2655 = vsel %vm1193, %v2652, %v2654
      %v2656 = vrot.slane %v2596, 2
      %v2657 = vrot.slane %v2093, 2
      %v2658 = vsel %vm1193, %v2656, %v2657
      %v2659 = vrot.slane %v2094, 2
      %v2660 = vsel %vm1193, %v2657, %v2659
      %v2661 = vrot.slane %v2597, 2
      %v2662 = vrot.slane %v2096, 2
      %v2663 = vsel %vm1193, %v2661, %v2662
      %v2664 = vrot.slane %v2097, 2
      %v2665 = vsel %vm1193, %v2662, %v2664
      %v2666 = vrot.slane %v2598, 2
      %v2667 = vrot.slane %v2099, 2
      %v2668 = vsel %vm1193, %v2666, %v2667
      %v2669 = vrot.slane %v2100, 2
      %v2670 = vsel %vm1193, %v2667, %v2669
      %v2671 = vrot.slane %v2599, 2
      %v2672 = vrot.slane %v2102, 2
      %v2673 = vsel %vm1193, %v2671, %v2672
      %v2674 = vrot.slane %v2103, 2
      %v2675 = vsel %vm1193, %v2672, %v2674
      %v2676 = vrot.slane %v2600, 2
      %v2677 = vrot.slane %v2105, 2
      %v2678 = vsel %vm1193, %v2676, %v2677
      %v2679 = vrot.slane %v2106, 2
      %v2680 = vsel %vm1193, %v2677, %v2679
      %v2681 = vrot.slane %v2601, 2
      %v2682 = vrot.slane %v2108, 2
      %v2683 = vsel %vm1193, %v2681, %v2682
      %v2684 = vrot.slane %v2109, 2
      %v2685 = vsel %vm1193, %v2682, %v2684
      %v2686 = vrot.slane %v2602, 2
      %v2687 = vrot.slane %v2111, 2
      %v2688 = vsel %vm1193, %v2686, %v2687
      %v2689 = vrot.slane %v2112, 2
      %v2690 = vsel %vm1193, %v2687, %v2689
      %v2691 = vrot.slane %v2603, 2
      %v2692 = vrot.slane %v2114, 2
      %v2693 = vsel %vm1193, %v2691, %v2692
      %v2694 = vrot.slane %v2115, 2
      %v2695 = vsel %vm1193, %v2692, %v2694
      %v2696 = vrot.slane %v2604, 2
      %v2697 = vrot.slane %v2117, 2
      %v2698 = vsel %vm1193, %v2696, %v2697
      %v2699 = vrot.slane %v2118, 2
      %v2700 = vsel %vm1193, %v2697, %v2699
      %s2701 = scalar_lea.vmem %s1, 20
      %v2702 = vld [vmem:[%s2701] sm:$0x7]
      %v2703 = vsel %vm559, %v2623, 0
      %v2705 = vsel %vm559, %v2625, 0
      %v2707 = vsel %vm559, %v2628, 0
      %v2709 = vsel %vm559, %v2630, 0
      %v2711 = vsel %vm559, %v2633, 0
      %v2713 = vsel %vm559, %v2635, 0
      %v2715 = vsel %vm559, %v2638, 0
      %v2717 = vsel %vm559, %v2640, 0
      %v2719 = vsel %vm559, %v2643, 0
      %v2721 = vsel %vm559, %v2645, 0
      %v2723 = vsel %vm559, %v2648, 0
      %v2725 = vsel %vm559, %v2650, 0
      %v2727 = vsel %vm559, %v2653, 0
      %v2729 = vsel %vm559, %v2655, 0
      %v2731 = vsel %vm559, %v2658, 0
      %v2733 = vsel %vm559, %v2660, 0
      %v2735 = vsel %vm559, %v2663, 0
      %v2737 = vsel %vm559, %v2665, 0
      %v2739 = vsel %vm559, %v2668, 0
      %v2741 = vsel %vm559, %v2670, 0
      %v2743 = vsel %vm559, %v2673, 0
      %v2745 = vsel %vm559, %v2675, 0
      %v2747 = vsel %vm559, %v2678, 0
      %v2749 = vsel %vm559, %v2680, 0
      %v2751 = vsel %vm559, %v2683, 0
      %v2753 = vsel %vm559, %v2685, 0
      %v2755 = vsel %vm559, %v2688, 0
      %v2757 = vsel %vm559, %v2690, 0
      %v2759 = vsel %vm559, %v2693, 0
      %v2761 = vsel %vm559, %v2695, 0
      %v2763 = vsel %vm559, %v2698, 0
      %v2765 = vsel %vm559, %v2700, 0
      %v2768 = vsel %vm624, %v2702, 0
      %2770 = vmatprep.subr.mxu0 0.0
      %2771 = vmatpush1.msra.mxu0 %v2768
      %2772 = vmatprep.subr.mxu0 0.0
      %2773 = vmatpush1.msra.mxu0 0.0
      %2774 = vmatprep.subr.mxu0 0.0
      %2775 = vmatpush1.msra.mxu0 0.0
      %2776 = vmatprep.subr.mxu0 0.0
      %2777 = vmatpush1.msra.mxu0 0.0
      %2778 = vmatprep.subr.mxu0 0.0
      %2779 = vmatpush1.msra.mxu0 0.0
      %2780 = vmatprep.subr.mxu0 0.0
      %2781 = vmatpush1.msra.mxu0 0.0
      %2782 = vmatprep.subr.mxu0 0.0
      %2783 = vmatpush1.msra.mxu0 0.0
      %2784 = vmatprep.subr.mxu0 0.0
      %2785 = vmatpush1.msra.mxu0 0.0
      %2786 = vmatprep.subr.mxu0 0.0
      %2787 = vmatpush1.msra.mxu0 0.0
      %2788 = vmatprep.subr.mxu0 0.0
      %2789 = vmatpush1.msra.mxu0 0.0
      %2790 = vmatprep.subr.mxu0 0.0
      %2791 = vmatpush1.msra.mxu0 0.0
      %2792 = vmatprep.subr.mxu0 0.0
      %2793 = vmatpush1.msra.mxu0 0.0
      %2794 = vmatprep.subr.mxu0 0.0
      %2795 = vmatpush1.msra.mxu0 0.0
      %2796 = vmatprep.subr.mxu0 0.0
      %2797 = vmatpush1.msra.mxu0 0.0
      %2798 = vmatprep.subr.mxu0 0.0
      %2799 = vmatpush1.msra.mxu0 0.0
      %2800 = vmatprep.subr.mxu0 0.0
      %2801 = vmatpush1.msra.mxu0 0.0
      %2802 = vmatprep.subr.mxu0 0.0
      %2803 = vmatpush1.msra.mxu0 0.0
      %2804 = vmatprep.subr.mxu0 0.0
      %2805 = vmatpush1.msra.mxu0 0.0
      %2806 = vmatprep.subr.mxu0 0.0
      %2807 = vmatpush1.msra.mxu0 0.0
      %2808 = vmatprep.subr.mxu0 0.0
      %2809 = vmatpush1.msra.mxu0 0.0
      %2810 = vmatprep.subr.mxu0 0.0
      %2811 = vmatpush1.msra.mxu0 0.0
      %2812 = vmatprep.subr.mxu0 0.0
      %2813 = vmatpush1.msra.mxu0 0.0
      %2814 = vmatprep.subr.mxu0 0.0
      %2815 = vmatpush1.msra.mxu0 0.0
      %2816 = vmatprep.subr.mxu0 0.0
      %2817 = vmatpush1.msra.mxu0 0.0
      %2818 = vmatprep.subr.mxu0 0.0
      %2819 = vmatpush1.msra.mxu0 0.0
      %2820 = vmatprep.subr.mxu0 0.0
      %2821 = vmatpush1.msra.mxu0 0.0
      %2822 = vmatprep.subr.mxu0 0.0
      %2823 = vmatpush1.msra.mxu0 0.0
      %2824 = vmatprep.subr.mxu0 0.0
      %2825 = vmatpush1.msra.mxu0 0.0
      %2826 = vmatprep.subr.mxu0 0.0
      %2827 = vmatpush1.msra.mxu0 0.0
      %2828 = vmatprep.subr.mxu0 0.0
      %2829 = vmatpush1.msra.mxu0 0.0
      %2830 = vmatprep.subr.mxu0 0.0
      %2831 = vmatpush1.msra.mxu0 0.0
      %2832 = vmatprep.subr.mxu0 0.0
      %2833 = vmatpush1.msra.mxu0 0.0
      %2834 = vmatprep.mubr.f32.mxu0 0.0
      %2835 = vmatmul.mubr.f32.gmra.mrb[0].mxu0 %v2703
      %v2836 = vpop.f32.mrb[0].mxu0
      %v2837 = vadd.f32 0.0, %v2836
      %v2838 = vpop.f32.mrb[0].mxu0
      %2839 = vmatprep.mubr.f32.mxu0 0.0
      %2840 = vmatmul.mubr.f32.gmra.mrb[0].mxu0 %v2705
      %v2841 = vpop.f32.mrb[0].mxu0
      %v2842 = vadd.f32 0.0, %v2841
      %v2843 = vpop.f32.mrb[0].mxu0
      %2844 = vmatprep.mubr.f32.mxu0 0.0
      %2845 = vmatmul.mubr.f32.gmra.mrb[0].mxu0 %v2707
      %v2846 = vpop.f32.mrb[0].mxu0
      %v2847 = vadd.f32 0.0, %v2846
      %v2848 = vpop.f32.mrb[0].mxu0
      %2849 = vmatprep.mubr.f32.mxu0 0.0
      %2850 = vmatmul.mubr.f32.gmra.mrb[0].mxu0 %v2709
      %v2851 = vpop.f32.mrb[0].mxu0
      %v2852 = vadd.f32 0.0, %v2851
      %v2853 = vpop.f32.mrb[0].mxu0
      %2854 = vmatprep.mubr.f32.mxu0 0.0
      %2855 = vmatmul.mubr.f32.gmra.mrb[0].mxu0 %v2711
      %v2856 = vpop.f32.mrb[0].mxu0
      %v2857 = vadd.f32 0.0, %v2856
      %v2858 = vpop.f32.mrb[0].mxu0
      %2859 = vmatprep.mubr.f32.mxu0 0.0
      %2860 = vmatmul.mubr.f32.gmra.mrb[0].mxu0 %v2713
      %v2861 = vpop.f32.mrb[0].mxu0
      %v2862 = vadd.f32 0.0, %v2861
      %v2863 = vpop.f32.mrb[0].mxu0
      %2864 = vmatprep.mubr.f32.mxu0 0.0
      %2865 = vmatmul.mubr.f32.gmra.mrb[0].mxu0 %v2715
      %v2866 = vpop.f32.mrb[0].mxu0
      %v2867 = vadd.f32 0.0, %v2866
      %v2868 = vpop.f32.mrb[0].mxu0
      %2869 = vmatprep.mubr.f32.mxu0 0.0
      %2870 = vmatmul.mubr.f32.gmra.mrb[0].mxu0 %v2717
      %v2871 = vpop.f32.mrb[0].mxu0
      %v2872 = vadd.f32 0.0, %v2871
      %v2873 = vpop.f32.mrb[0].mxu0
      %2874 = vmatprep.mubr.f32.mxu0 0.0
      %2875 = vmatmul.mubr.f32.gmra.mrb[0].mxu0 %v2719
      %v2876 = vpop.f32.mrb[0].mxu0
      %v2877 = vadd.f32 0.0, %v2876
      %v2878 = vpop.f32.mrb[0].mxu0
      %2879 = vmatprep.mubr.f32.mxu0 0.0
      %2880 = vmatmul.mubr.f32.gmra.mrb[0].mxu0 %v2721
      %v2881 = vpop.f32.mrb[0].mxu0
      %v2882 = vadd.f32 0.0, %v2881
      %v2883 = vpop.f32.mrb[0].mxu0
      %2884 = vmatprep.mubr.f32.mxu0 0.0
      %2885 = vmatmul.mubr.f32.gmra.mrb[0].mxu0 %v2723
      %v2886 = vpop.f32.mrb[0].mxu0
      %v2887 = vadd.f32 0.0, %v2886
      %v2888 = vpop.f32.mrb[0].mxu0
      %2889 = vmatprep.mubr.f32.mxu0 0.0
      %2890 = vmatmul.mubr.f32.gmra.mrb[0].mxu0 %v2725
      %v2891 = vpop.f32.mrb[0].mxu0
      %v2892 = vadd.f32 0.0, %v2891
      %v2893 = vpop.f32.mrb[0].mxu0
      %2894 = vmatprep.mubr.f32.mxu0 0.0
      %2895 = vmatmul.mubr.f32.gmra.mrb[0].mxu0 %v2727
      %v2896 = vpop.f32.mrb[0].mxu0
      %v2897 = vadd.f32 0.0, %v2896
      %v2898 = vpop.f32.mrb[0].mxu0
      %2899 = vmatprep.mubr.f32.mxu0 0.0
      %2900 = vmatmul.mubr.f32.gmra.mrb[0].mxu0 %v2729
      %v2901 = vpop.f32.mrb[0].mxu0
      %v2902 = vadd.f32 0.0, %v2901
      %v2903 = vpop.f32.mrb[0].mxu0
      %2904 = vmatprep.mubr.f32.mxu0 0.0
      %2905 = vmatmul.mubr.f32.gmra.mrb[0].mxu0 %v2731
      %v2906 = vpop.f32.mrb[0].mxu0
      %v2907 = vadd.f32 0.0, %v2906
      %v2908 = vpop.f32.mrb[0].mxu0
      %2909 = vmatprep.mubr.f32.mxu0 0.0
      %2910 = vmatmul.mubr.f32.gmra.mrb[0].mxu0 %v2733
      %v2911 = vpop.f32.mrb[0].mxu0
      %v2912 = vadd.f32 0.0, %v2911
      %v2913 = vpop.f32.mrb[0].mxu0
      %2914 = vmatprep.mubr.f32.mxu0 0.0
      %2915 = vmatmul.mubr.f32.gmra.mrb[0].mxu0 %v2735
      %v2916 = vpop.f32.mrb[0].mxu0
      %v2917 = vadd.f32 0.0, %v2916
      %v2918 = vpop.f32.mrb[0].mxu0
      %2919 = vmatprep.mubr.f32.mxu0 0.0
      %2920 = vmatmul.mubr.f32.gmra.mrb[0].mxu0 %v2737
      %v2921 = vpop.f32.mrb[0].mxu0
      %v2922 = vadd.f32 0.0, %v2921
      %v2923 = vpop.f32.mrb[0].mxu0
      %2924 = vmatprep.mubr.f32.mxu0 0.0
      %2925 = vmatmul.mubr.f32.gmra.mrb[0].mxu0 %v2739
      %v2926 = vpop.f32.mrb[0].mxu0
      %v2927 = vadd.f32 0.0, %v2926
      %v2928 = vpop.f32.mrb[0].mxu0
      %2929 = vmatprep.mubr.f32.mxu0 0.0
      %2930 = vmatmul.mubr.f32.gmra.mrb[0].mxu0 %v2741
      %v2931 = vpop.f32.mrb[0].mxu0
      %v2932 = vadd.f32 0.0, %v2931
      %v2933 = vpop.f32.mrb[0].mxu0
      %2934 = vmatprep.mubr.f32.mxu0 0.0
      %2935 = vmatmul.mubr.f32.gmra.mrb[0].mxu0 %v2743
      %v2936 = vpop.f32.mrb[0].mxu0
      %v2937 = vadd.f32 0.0, %v2936
      %v2938 = vpop.f32.mrb[0].mxu0
      %2939 = vmatprep.mubr.f32.mxu0 0.0
      %2940 = vmatmul.mubr.f32.gmra.mrb[0].mxu0 %v2745
      %v2941 = vpop.f32.mrb[0].mxu0
      %v2942 = vadd.f32 0.0, %v2941
      %v2943 = vpop.f32.mrb[0].mxu0
      %2944 = vmatprep.mubr.f32.mxu0 0.0
      %2945 = vmatmul.mubr.f32.gmra.mrb[0].mxu0 %v2747
      %v2946 = vpop.f32.mrb[0].mxu0
      %v2947 = vadd.f32 0.0, %v2946
      %v2948 = vpop.f32.mrb[0].mxu0
      %2949 = vmatprep.mubr.f32.mxu0 0.0
      %2950 = vmatmul.mubr.f32.gmra.mrb[0].mxu0 %v2749
      %v2951 = vpop.f32.mrb[0].mxu0
      %v2952 = vadd.f32 0.0, %v2951
      %v2953 = vpop.f32.mrb[0].mxu0
      %2954 = vmatprep.mubr.f32.mxu0 0.0
      %2955 = vmatmul.mubr.f32.gmra.mrb[0].mxu0 %v2751
      %v2956 = vpop.f32.mrb[0].mxu0
      %v2957 = vadd.f32 0.0, %v2956
      %v2958 = vpop.f32.mrb[0].mxu0
      %2959 = vmatprep.mubr.f32.mxu0 0.0
      %2960 = vmatmul.mubr.f32.gmra.mrb[0].mxu0 %v2753
      %v2961 = vpop.f32.mrb[0].mxu0
      %v2962 = vadd.f32 0.0, %v2961
      %v2963 = vpop.f32.mrb[0].mxu0
      %2964 = vmatprep.mubr.f32.mxu0 0.0
      %2965 = vmatmul.mubr.f32.gmra.mrb[0].mxu0 %v2755
      %v2966 = vpop.f32.mrb[0].mxu0
      %v2967 = vadd.f32 0.0, %v2966
      %v2968 = vpop.f32.mrb[0].mxu0
      %2969 = vmatprep.mubr.f32.mxu0 0.0
      %2970 = vmatmul.mubr.f32.gmra.mrb[0].mxu0 %v2757
      %v2971 = vpop.f32.mrb[0].mxu0
      %v2972 = vadd.f32 0.0, %v2971
      %v2973 = vpop.f32.mrb[0].mxu0
      %2974 = vmatprep.mubr.f32.mxu0 0.0
      %2975 = vmatmul.mubr.f32.gmra.mrb[0].mxu0 %v2759
      %v2976 = vpop.f32.mrb[0].mxu0
      %v2977 = vadd.f32 0.0, %v2976
      %v2978 = vpop.f32.mrb[0].mxu0
      %2979 = vmatprep.mubr.f32.mxu0 0.0
      %2980 = vmatmul.mubr.f32.gmra.mrb[0].mxu0 %v2761
      %v2981 = vpop.f32.mrb[0].mxu0
      %v2982 = vadd.f32 0.0, %v2981
      %v2983 = vpop.f32.mrb[0].mxu0
      %2984 = vmatprep.mubr.f32.mxu0 0.0
      %2985 = vmatmul.mubr.f32.gmra.mrb[0].mxu0 %v2763
      %v2986 = vpop.f32.mrb[0].mxu0
      %v2987 = vadd.f32 0.0, %v2986
      %v2988 = vpop.f32.mrb[0].mxu0
      %2989 = vmatprep.mubr.f32.mxu0 0.0
      %2990 = vmatmul.mubr.f32.gmra.mrb[0].mxu0 %v2765
      %v2991 = vpop.f32.mrb[0].mxu0
      %v2992 = vadd.f32 0.0, %v2991
      %v2993 = vpop.f32.mrb[0].mxu0
      %2994 = vdwg.mxu0
      %v2995 = vadd.f32 %v2541, %v2837
      %v2996 = vadd.f32 %v2542, %v2842
      %v2997 = vadd.f32 %v2543, %v2847
      %v2998 = vadd.f32 %v2544, %v2852
      %v2999 = vadd.f32 %v2545, %v2857
      %v3000 = vadd.f32 %v2546, %v2862
      %v3001 = vadd.f32 %v2547, %v2867
      %v3002 = vadd.f32 %v2548, %v2872
      %v3003 = vadd.f32 %v2549, %v2877
      %v3004 = vadd.f32 %v2550, %v2882
      %v3005 = vadd.f32 %v2551, %v2887
      %v3006 = vadd.f32 %v2552, %v2892
      %v3007 = vadd.f32 %v2553, %v2897
      %v3008 = vadd.f32 %v2554, %v2902
      %v3009 = vadd.f32 %v2555, %v2907
      %v3010 = vadd.f32 %v2556, %v2912
      %v3011 = vadd.f32 %v2557, %v2917
      %v3012 = vadd.f32 %v2558, %v2922
      %v3013 = vadd.f32 %v2559, %v2927
      %v3014 = vadd.f32 %v2560, %v2932
      %v3015 = vadd.f32 %v2561, %v2937
      %v3016 = vadd.f32 %v2562, %v2942
      %v3017 = vadd.f32 %v2563, %v2947
      %v3018 = vadd.f32 %v2564, %v2952
      %v3019 = vadd.f32 %v2565, %v2957
      %v3020 = vadd.f32 %v2566, %v2962
      %v3021 = vadd.f32 %v2567, %v2967
      %v3022 = vadd.f32 %v2568, %v2972
      %v3023 = vadd.f32 %v2569, %v2977
      %v3024 = vadd.f32 %v2570, %v2982
      %v3025 = vadd.f32 %v2571, %v2987
      %v3026 = vadd.f32 %v2572, %v2992
      %s3027 = scalar_lea.vmem %s320, 24
      %v3028 = vld [vmem:[%s3027] sm:$0xf]
      %v3029 = vld [vmem:[%s3027 + $0x4] sm:$0xf]
      %v3030 = vld [vmem:[%s3027 + $0xc] sm:$0xf]
      %v3031 = vld [vmem:[%s3027 + $0x10] sm:$0xf]
      %v3032 = vld [vmem:[%s3027 + $0x18] sm:$0xf]
      %v3033 = vld [vmem:[%s3027 + $0x1c] sm:$0xf]
      %v3034 = vld [vmem:[%s3027 + $0x24] sm:$0xf]
      %v3035 = vld [vmem:[%s3027 + $0x28] sm:$0xf]
      %v3036 = vld [vmem:[%s3027 + $0x30] sm:$0xf]
      %v3037 = vld [vmem:[%s3027 + $0x34] sm:$0xf]
      %v3038 = vld [vmem:[%s3027 + $0x3c] sm:$0xf]
      %v3039 = vld [vmem:[%s3027 + $0x40] sm:$0xf]
      %v3040 = vld [vmem:[%s3027 + $0x48] sm:$0xf]
      %v3041 = vld [vmem:[%s3027 + $0x4c] sm:$0xf]
      %v3042 = vld [vmem:[%s3027 + $0x54] sm:$0xf]
      %v3043 = vld [vmem:[%s3027 + $0x58] sm:$0xf]
      %v3044 = vld [vmem:[%s3027 + $0x60] sm:$0xf]
      %v3045 = vld [vmem:[%s3027 + $0x64] sm:$0xf]
      %v3046 = vld [vmem:[%s3027 + $0x6c] sm:$0xf]
      %v3047 = vld [vmem:[%s3027 + $0x70] sm:$0xf]
      %v3048 = vld [vmem:[%s3027 + $0x78] sm:$0xf]
      %v3049 = vld [vmem:[%s3027 + $0x7c] sm:$0xf]
      %v3050 = vld [vmem:[%s3027 + $0x84] sm:$0xf]
      %v3051 = vld [vmem:[%s3027 + $0x88] sm:$0xf]
      %v3052 = vld [vmem:[%s3027 + $0x90] sm:$0xf]
      %v3053 = vld [vmem:[%s3027 + $0x94] sm:$0xf]
      %v3054 = vld [vmem:[%s3027 + $0x9c] sm:$0xf]
      %v3055 = vld [vmem:[%s3027 + $0xa0] sm:$0xf]
      %v3056 = vld [vmem:[%s3027 + $0xa8] sm:$0xf]
      %v3057 = vld [vmem:[%s3027 + $0xac] sm:$0xf]
      %v3058 = vld [vmem:[%s3027 + $0xb4] sm:$0xf]
      %v3059 = vld [vmem:[%s3027 + $0xb8] sm:$0xf]
      %v3060 = vunpack.c.l.bf16 %v3028
      %v3061 = vunpack.c.l.bf16 %v3029
      %v3062 = vunpack.c.l.bf16 %v3030
      %v3063 = vunpack.c.l.bf16 %v3031
      %v3064 = vunpack.c.l.bf16 %v3032
      %v3065 = vunpack.c.l.bf16 %v3033
      %v3066 = vunpack.c.l.bf16 %v3034
      %v3067 = vunpack.c.l.bf16 %v3035
      %v3068 = vunpack.c.l.bf16 %v3036
      %v3069 = vunpack.c.l.bf16 %v3037
      %v3070 = vunpack.c.l.bf16 %v3038
      %v3071 = vunpack.c.l.bf16 %v3039
      %v3072 = vunpack.c.l.bf16 %v3040
      %v3073 = vunpack.c.l.bf16 %v3041
      %v3074 = vunpack.c.l.bf16 %v3042
      %v3075 = vunpack.c.l.bf16 %v3043
      %v3076 = vunpack.c.l.bf16 %v3044
      %v3077 = vunpack.c.l.bf16 %v3045
      %v3078 = vunpack.c.l.bf16 %v3046
      %v3079 = vunpack.c.l.bf16 %v3047
      %v3080 = vunpack.c.l.bf16 %v3048
      %v3081 = vunpack.c.l.bf16 %v3049
      %v3082 = vunpack.c.l.bf16 %v3050
      %v3083 = vunpack.c.l.bf16 %v3051
      %v3084 = vunpack.c.l.bf16 %v3052
      %v3085 = vunpack.c.l.bf16 %v3053
      %v3086 = vunpack.c.l.bf16 %v3054
      %v3087 = vunpack.c.l.bf16 %v3055
      %v3088 = vunpack.c.l.bf16 %v3056
      %v3089 = vunpack.c.l.bf16 %v3057
      %v3090 = vunpack.c.l.bf16 %v3058
      %v3091 = vunpack.c.l.bf16 %v3059
      %s3092 = scalar_lea.vmem %s1, 24
      %v3093 = vld [vmem:[%s3092] sm:$0x7]
      %v3095 = vsel %vm559, %v3060, 0
      %v3098 = vsel %vm559, %v3061, 0
      %v3101 = vsel %vm559, %v3062, 0
      %v3104 = vsel %vm559, %v3063, 0
      %v3107 = vsel %vm559, %v3064, 0
      %v3110 = vsel %vm559, %v3065, 0
      %v3113 = vsel %vm559, %v3066, 0
      %v3116 = vsel %vm559, %v3067, 0
      %v3119 = vsel %vm559, %v3068, 0
      %v3122 = vsel %vm559, %v3069, 0
      %v3125 = vsel %vm559, %v3070, 0
      %v3128 = vsel %vm559, %v3071, 0
      %v3131 = vsel %vm559, %v3072, 0
      %v3134 = vsel %vm559, %v3073, 0
      %v3137 = vsel %vm559, %v3074, 0
      %v3140 = vsel %vm559, %v3075, 0
      %v3143 = vsel %vm559, %v3076, 0
      %v3146 = vsel %vm559, %v3077, 0
      %v3149 = vsel %vm559, %v3078, 0
      %v3152 = vsel %vm559, %v3079, 0
      %v3155 = vsel %vm559, %v3080, 0
      %v3158 = vsel %vm559, %v3081, 0
      %v3161 = vsel %vm559, %v3082, 0
      %v3164 = vsel %vm559, %v3083, 0
      %v3167 = vsel %vm559, %v3084, 0
      %v3170 = vsel %vm559, %v3085, 0
      %v3173 = vsel %vm559, %v3086, 0
      %v3176 = vsel %vm559, %v3087, 0
      %v3179 = vsel %vm559, %v3088, 0
      %v3182 = vsel %vm559, %v3089, 0
      %v3185 = vsel %vm559, %v3090, 0
      %v3188 = vsel %vm559, %v3091, 0
      %v3191 = vsel %vm624, %v3093, 0
      %3193 = vmatprep.subr.mxu0 0.0
      %3194 = vmatpush1.msra.mxu0 %v3191
      %3195 = vmatprep.subr.mxu0 0.0
      %3196 = vmatpush1.msra.mxu0 0.0
      %3197 = vmatprep.subr.mxu0 0.0
      %3198 = vmatpush1.msra.mxu0 0.0
      %3199 = vmatprep.subr.mxu0 0.0
      %3200 = vmatpush1.msra.mxu0 0.0
      %3201 = vmatprep.subr.mxu0 0.0
      %3202 = vmatpush1.msra.mxu0 0.0
      %3203 = vmatprep.subr.mxu0 0.0
      %3204 = vmatpush1.msra.mxu0 0.0
      %3205 = vmatprep.subr.mxu0 0.0
      %3206 = vmatpush1.msra.mxu0 0.0
      %3207 = vmatprep.subr.mxu0 0.0
      %3208 = vmatpush1.msra.mxu0 0.0
      %3209 = vmatprep.subr.mxu0 0.0
      %3210 = vmatpush1.msra.mxu0 0.0
      %3211 = vmatprep.subr.mxu0 0.0
      %3212 = vmatpush1.msra.mxu0 0.0
      %3213 = vmatprep.subr.mxu0 0.0
      %3214 = vmatpush1.msra.mxu0 0.0
      %3215 = vmatprep.subr.mxu0 0.0
      %3216 = vmatpush1.msra.mxu0 0.0
      %3217 = vmatprep.subr.mxu0 0.0
      %3218 = vmatpush1.msra.mxu0 0.0
      %3219 = vmatprep.subr.mxu0 0.0
      %3220 = vmatpush1.msra.mxu0 0.0
      %3221 = vmatprep.subr.mxu0 0.0
      %3222 = vmatpush1.msra.mxu0 0.0
      %3223 = vmatprep.subr.mxu0 0.0
      %3224 = vmatpush1.msra.mxu0 0.0
      %3225 = vmatprep.subr.mxu0 0.0
      %3226 = vmatpush1.msra.mxu0 0.0
      %3227 = vmatprep.subr.mxu0 0.0
      %3228 = vmatpush1.msra.mxu0 0.0
      %3229 = vmatprep.subr.mxu0 0.0
      %3230 = vmatpush1.msra.mxu0 0.0
      %3231 = vmatprep.subr.mxu0 0.0
      %3232 = vmatpush1.msra.mxu0 0.0
      %3233 = vmatprep.subr.mxu0 0.0
      %3234 = vmatpush1.msra.mxu0 0.0
      %3235 = vmatprep.subr.mxu0 0.0
      %3236 = vmatpush1.msra.mxu0 0.0
      %3237 = vmatprep.subr.mxu0 0.0
      %3238 = vmatpush1.msra.mxu0 0.0
      %3239 = vmatprep.subr.mxu0 0.0
      %3240 = vmatpush1.msra.mxu0 0.0
      %3241 = vmatprep.subr.mxu0 0.0
      %3242 = vmatpush1.msra.mxu0 0.0
      %3243 = vmatprep.subr.mxu0 0.0
      %3244 = vmatpush1.msra.mxu0 0.0
      %3245 = vmatprep.subr.mxu0 0.0
      %3246 = vmatpush1.msra.mxu0 0.0
      %3247 = vmatprep.subr.mxu0 0.0
      %3248 = vmatpush1.msra.mxu0 0.0
      %3249 = vmatprep.subr.mxu0 0.0
      %3250 = vmatpush1.msra.mxu0 0.0
      %3251 = vmatprep.subr.mxu0 0.0
      %3252 = vmatpush1.msra.mxu0 0.0
      %3253 = vmatprep.subr.mxu0 0.0
      %3254 = vmatpush1.msra.mxu0 0.0
      %3255 = vmatprep.subr.mxu0 0.0
      %3256 = vmatpush1.msra.mxu0 0.0
      %3257 = vmatprep.mubr.f32.mxu0 0.0
      %3258 = vmatmul.mubr.f32.gmra.mrb[0].mxu0 %v3095
      %v3259 = vpop.f32.mrb[0].mxu0
      %v3260 = vadd.f32 0.0, %v3259
      %v3261 = vpop.f32.mrb[0].mxu0
      %3262 = vmatprep.mubr.f32.mxu0 0.0
      %3263 = vmatmul.mubr.f32.gmra.mrb[0].mxu0 %v3098
      %v3264 = vpop.f32.mrb[0].mxu0
      %v3265 = vadd.f32 0.0, %v3264
      %v3266 = vpop.f32.mrb[0].mxu0
      %3267 = vmatprep.mubr.f32.mxu0 0.0
      %3268 = vmatmul.mubr.f32.gmra.mrb[0].mxu0 %v3101
      %v3269 = vpop.f32.mrb[0].mxu0
      %v3270 = vadd.f32 0.0, %v3269
      %v3271 = vpop.f32.mrb[0].mxu0
      %3272 = vmatprep.mubr.f32.mxu0 0.0
      %3273 = vmatmul.mubr.f32.gmra.mrb[0].mxu0 %v3104
      %v3274 = vpop.f32.mrb[0].mxu0
      %v3275 = vadd.f32 0.0, %v3274
      %v3276 = vpop.f32.mrb[0].mxu0
      %3277 = vmatprep.mubr.f32.mxu0 0.0
      %3278 = vmatmul.mubr.f32.gmra.mrb[0].mxu0 %v3107
      %v3279 = vpop.f32.mrb[0].mxu0
      %v3280 = vadd.f32 0.0, %v3279
      %v3281 = vpop.f32.mrb[0].mxu0
      %3282 = vmatprep.mubr.f32.mxu0 0.0
      %3283 = vmatmul.mubr.f32.gmra.mrb[0].mxu0 %v3110
      %v3284 = vpop.f32.mrb[0].mxu0
      %v3285 = vadd.f32 0.0, %v3284
      %v3286 = vpop.f32.mrb[0].mxu0
      %3287 = vmatprep.mubr.f32.mxu0 0.0
      %3288 = vmatmul.mubr.f32.gmra.mrb[0].mxu0 %v3113
      %v3289 = vpop.f32.mrb[0].mxu0
      %v3290 = vadd.f32 0.0, %v3289
      %v3291 = vpop.f32.mrb[0].mxu0
      %3292 = vmatprep.mubr.f32.mxu0 0.0
      %3293 = vmatmul.mubr.f32.gmra.mrb[0].mxu0 %v3116
      %v3294 = vpop.f32.mrb[0].mxu0
      %v3295 = vadd.f32 0.0, %v3294
      %v3296 = vpop.f32.mrb[0].mxu0
      %3297 = vmatprep.mubr.f32.mxu0 0.0
      %3298 = vmatmul.mubr.f32.gmra.mrb[0].mxu0 %v3119
      %v3299 = vpop.f32.mrb[0].mxu0
      %v3300 = vadd.f32 0.0, %v3299
      %v3301 = vpop.f32.mrb[0].mxu0
      %3302 = vmatprep.mubr.f32.mxu0 0.0
      %3303 = vmatmul.mubr.f32.gmra.mrb[0].mxu0 %v3122
      %v3304 = vpop.f32.mrb[0].mxu0
      %v3305 = vadd.f32 0.0, %v3304
      %v3306 = vpop.f32.mrb[0].mxu0
      %3307 = vmatprep.mubr.f32.mxu0 0.0
      %3308 = vmatmul.mubr.f32.gmra.mrb[0].mxu0 %v3125
      %v3309 = vpop.f32.mrb[0].mxu0
      %v3310 = vadd.f32 0.0, %v3309
      %v3311 = vpop.f32.mrb[0].mxu0
      %3312 = vmatprep.mubr.f32.mxu0 0.0
      %3313 = vmatmul.mubr.f32.gmra.mrb[0].mxu0 %v3128
      %v3314 = vpop.f32.mrb[0].mxu0
      %v3315 = vadd.f32 0.0, %v3314
      %v3316 = vpop.f32.mrb[0].mxu0
      %3317 = vmatprep.mubr.f32.mxu0 0.0
      %3318 = vmatmul.mubr.f32.gmra.mrb[0].mxu0 %v3131
      %v3319 = vpop.f32.mrb[0].mxu0
      %v3320 = vadd.f32 0.0, %v3319
      %v3321 = vpop.f32.mrb[0].mxu0
      %3322 = vmatprep.mubr.f32.mxu0 0.0
      %3323 = vmatmul.mubr.f32.gmra.mrb[0].mxu0 %v3134
      %v3324 = vpop.f32.mrb[0].mxu0
      %v3325 = vadd.f32 0.0, %v3324
      %v3326 = vpop.f32.mrb[0].mxu0
      %3327 = vmatprep.mubr.f32.mxu0 0.0
      %3328 = vmatmul.mubr.f32.gmra.mrb[0].mxu0 %v3137
      %v3329 = vpop.f32.mrb[0].mxu0
      %v3330 = vadd.f32 0.0, %v3329
      %v3331 = vpop.f32.mrb[0].mxu0
      %3332 = vmatprep.mubr.f32.mxu0 0.0
      %3333 = vmatmul.mubr.f32.gmra.mrb[0].mxu0 %v3140
      %v3334 = vpop.f32.mrb[0].mxu0
      %v3335 = vadd.f32 0.0, %v3334
      %v3336 = vpop.f32.mrb[0].mxu0
      %3337 = vmatprep.mubr.f32.mxu0 0.0
      %3338 = vmatmul.mubr.f32.gmra.mrb[0].mxu0 %v3143
      %v3339 = vpop.f32.mrb[0].mxu0
      %v3340 = vadd.f32 0.0, %v3339
      %v3341 = vpop.f32.mrb[0].mxu0
      %3342 = vmatprep.mubr.f32.mxu0 0.0
      %3343 = vmatmul.mubr.f32.gmra.mrb[0].mxu0 %v3146
      %v3344 = vpop.f32.mrb[0].mxu0
      %v3345 = vadd.f32 0.0, %v3344
      %v3346 = vpop.f32.mrb[0].mxu0
      %3347 = vmatprep.mubr.f32.mxu0 0.0
      %3348 = vmatmul.mubr.f32.gmra.mrb[0].mxu0 %v3149
      %v3349 = vpop.f32.mrb[0].mxu0
      %v3350 = vadd.f32 0.0, %v3349
      %v3351 = vpop.f32.mrb[0].mxu0
      %3352 = vmatprep.mubr.f32.mxu0 0.0
      %3353 = vmatmul.mubr.f32.gmra.mrb[0].mxu0 %v3152
      %v3354 = vpop.f32.mrb[0].mxu0
      %v3355 = vadd.f32 0.0, %v3354
      %v3356 = vpop.f32.mrb[0].mxu0
      %3357 = vmatprep.mubr.f32.mxu0 0.0
      %3358 = vmatmul.mubr.f32.gmra.mrb[0].mxu0 %v3155
      %v3359 = vpop.f32.mrb[0].mxu0
      %v3360 = vadd.f32 0.0, %v3359
      %v3361 = vpop.f32.mrb[0].mxu0
      %3362 = vmatprep.mubr.f32.mxu0 0.0
      %3363 = vmatmul.mubr.f32.gmra.mrb[0].mxu0 %v3158
      %v3364 = vpop.f32.mrb[0].mxu0
      %v3365 = vadd.f32 0.0, %v3364
      %v3366 = vpop.f32.mrb[0].mxu0
      %3367 = vmatprep.mubr.f32.mxu0 0.0
      %3368 = vmatmul.mubr.f32.gmra.mrb[0].mxu0 %v3161
      %v3369 = vpop.f32.mrb[0].mxu0
      %v3370 = vadd.f32 0.0, %v3369
      %v3371 = vpop.f32.mrb[0].mxu0
      %3372 = vmatprep.mubr.f32.mxu0 0.0
      %3373 = vmatmul.mubr.f32.gmra.mrb[0].mxu0 %v3164
      %v3374 = vpop.f32.mrb[0].mxu0
      %v3375 = vadd.f32 0.0, %v3374
      %v3376 = vpop.f32.mrb[0].mxu0
      %3377 = vmatprep.mubr.f32.mxu0 0.0
      %3378 = vmatmul.mubr.f32.gmra.mrb[0].mxu0 %v3167
      %v3379 = vpop.f32.mrb[0].mxu0
      %v3380 = vadd.f32 0.0, %v3379
      %v3381 = vpop.f32.mrb[0].mxu0
      %3382 = vmatprep.mubr.f32.mxu0 0.0
      %3383 = vmatmul.mubr.f32.gmra.mrb[0].mxu0 %v3170
      %v3384 = vpop.f32.mrb[0].mxu0
      %v3385 = vadd.f32 0.0, %v3384
      %v3386 = vpop.f32.mrb[0].mxu0
      %3387 = vmatprep.mubr.f32.mxu0 0.0
      %3388 = vmatmul.mubr.f32.gmra.mrb[0].mxu0 %v3173
      %v3389 = vpop.f32.mrb[0].mxu0
      %v3390 = vadd.f32 0.0, %v3389
      %v3391 = vpop.f32.mrb[0].mxu0
      %3392 = vmatprep.mubr.f32.mxu0 0.0
      %3393 = vmatmul.mubr.f32.gmra.mrb[0].mxu0 %v3176
      %v3394 = vpop.f32.mrb[0].mxu0
      %v3395 = vadd.f32 0.0, %v3394
      %v3396 = vpop.f32.mrb[0].mxu0
      %3397 = vmatprep.mubr.f32.mxu0 0.0
      %3398 = vmatmul.mubr.f32.gmra.mrb[0].mxu0 %v3179
      %v3399 = vpop.f32.mrb[0].mxu0
      %v3400 = vadd.f32 0.0, %v3399
      %v3401 = vpop.f32.mrb[0].mxu0
      %3402 = vmatprep.mubr.f32.mxu0 0.0
      %3403 = vmatmul.mubr.f32.gmra.mrb[0].mxu0 %v3182
      %v3404 = vpop.f32.mrb[0].mxu0
      %v3405 = vadd.f32 0.0, %v3404
      %v3406 = vpop.f32.mrb[0].mxu0
      %3407 = vmatprep.mubr.f32.mxu0 0.0
      %3408 = vmatmul.mubr.f32.gmra.mrb[0].mxu0 %v3185
      %v3409 = vpop.f32.mrb[0].mxu0
      %v3410 = vadd.f32 0.0, %v3409
      %v3411 = vpop.f32.mrb[0].mxu0
      %3412 = vmatprep.mubr.f32.mxu0 0.0
      %3413 = vmatmul.mubr.f32.gmra.mrb[0].mxu0 %v3188
      %v3414 = vpop.f32.mrb[0].mxu0
      %v3415 = vadd.f32 0.0, %v3414
      %v3416 = vpop.f32.mrb[0].mxu0
      %3417 = vdwg.mxu0
      %v3418 = vadd.f32 %v2995, %v3260
      %v3419 = vadd.f32 %v2996, %v3265
      %v3420 = vadd.f32 %v2997, %v3270
      %v3421 = vadd.f32 %v2998, %v3275
      %v3422 = vadd.f32 %v2999, %v3280
      %v3423 = vadd.f32 %v3000, %v3285
      %v3424 = vadd.f32 %v3001, %v3290
      %v3425 = vadd.f32 %v3002, %v3295
      %v3426 = vadd.f32 %v3003, %v3300
      %v3427 = vadd.f32 %v3004, %v3305
      %v3428 = vadd.f32 %v3005, %v3310
      %v3429 = vadd.f32 %v3006, %v3315
      %v3430 = vadd.f32 %v3007, %v3320
      %v3431 = vadd.f32 %v3008, %v3325
      %v3432 = vadd.f32 %v3009, %v3330
      %v3433 = vadd.f32 %v3010, %v3335
      %v3434 = vadd.f32 %v3011, %v3340
      %v3435 = vadd.f32 %v3012, %v3345
      %v3436 = vadd.f32 %v3013, %v3350
      %v3437 = vadd.f32 %v3014, %v3355
      %v3438 = vadd.f32 %v3015, %v3360
      %v3439 = vadd.f32 %v3016, %v3365
      %v3440 = vadd.f32 %v3017, %v3370
      %v3441 = vadd.f32 %v3018, %v3375
      %v3442 = vadd.f32 %v3019, %v3380
      %v3443 = vadd.f32 %v3020, %v3385
      %v3444 = vadd.f32 %v3021, %v3390
      %v3445 = vadd.f32 %v3022, %v3395
      %v3446 = vadd.f32 %v3023, %v3400
      %v3447 = vadd.f32 %v3024, %v3405
      %v3448 = vadd.f32 %v3025, %v3410
      %v3449 = vadd.f32 %v3026, %v3415
      %v3450 = vld [vmem:[%s3027] sm:$0xf]
      %v3451 = vld [vmem:[%s3027 + $0x4] sm:$0xf]
      %v3452 = vld [vmem:[%s3027 + $0x8] sm:$0x1]
      %v3453 = vld [vmem:[%s3027 + $0xc] sm:$0xf]
      %v3454 = vld [vmem:[%s3027 + $0x10] sm:$0xf]
      %v3455 = vld [vmem:[%s3027 + $0x14] sm:$0x1]
      %v3456 = vld [vmem:[%s3027 + $0x18] sm:$0xf]
      %v3457 = vld [vmem:[%s3027 + $0x1c] sm:$0xf]
      %v3458 = vld [vmem:[%s3027 + $0x20] sm:$0x1]
      %v3459 = vld [vmem:[%s3027 + $0x24] sm:$0xf]
      %v3460 = vld [vmem:[%s3027 + $0x28] sm:$0xf]
      %v3461 = vld [vmem:[%s3027 + $0x2c] sm:$0x1]
      %v3462 = vld [vmem:[%s3027 + $0x30] sm:$0xf]
      %v3463 = vld [vmem:[%s3027 + $0x34] sm:$0xf]
      %v3464 = vld [vmem:[%s3027 + $0x38] sm:$0x1]
      %v3465 = vld [vmem:[%s3027 + $0x3c] sm:$0xf]
      %v3466 = vld [vmem:[%s3027 + $0x40] sm:$0xf]
      %v3467 = vld [vmem:[%s3027 + $0x44] sm:$0x1]
      %v3468 = vld [vmem:[%s3027 + $0x48] sm:$0xf]
      %v3469 = vld [vmem:[%s3027 + $0x4c] sm:$0xf]
      %v3470 = vld [vmem:[%s3027 + $0x50] sm:$0x1]
      %v3471 = vld [vmem:[%s3027 + $0x54] sm:$0xf]
      %v3472 = vld [vmem:[%s3027 + $0x58] sm:$0xf]
      %v3473 = vld [vmem:[%s3027 + $0x5c] sm:$0x1]
      %v3474 = vld [vmem:[%s3027 + $0x60] sm:$0xf]
      %v3475 = vld [vmem:[%s3027 + $0x64] sm:$0xf]
      %v3476 = vld [vmem:[%s3027 + $0x68] sm:$0x1]
      %v3477 = vld [vmem:[%s3027 + $0x6c] sm:$0xf]
      %v3478 = vld [vmem:[%s3027 + $0x70] sm:$0xf]
      %v3479 = vld [vmem:[%s3027 + $0x74] sm:$0x1]
      %v3480 = vld [vmem:[%s3027 + $0x78] sm:$0xf]
      %v3481 = vld [vmem:[%s3027 + $0x7c] sm:$0xf]
      %v3482 = vld [vmem:[%s3027 + $0x80] sm:$0x1]
      %v3483 = vld [vmem:[%s3027 + $0x84] sm:$0xf]
      %v3484 = vld [vmem:[%s3027 + $0x88] sm:$0xf]
      %v3485 = vld [vmem:[%s3027 + $0x8c] sm:$0x1]
      %v3486 = vld [vmem:[%s3027 + $0x90] sm:$0xf]
      %v3487 = vld [vmem:[%s3027 + $0x94] sm:$0xf]
      %v3488 = vld [vmem:[%s3027 + $0x98] sm:$0x1]
      %v3489 = vld [vmem:[%s3027 + $0x9c] sm:$0xf]
      %v3490 = vld [vmem:[%s3027 + $0xa0] sm:$0xf]
      %v3491 = vld [vmem:[%s3027 + $0xa4] sm:$0x1]
      %v3492 = vld [vmem:[%s3027 + $0xa8] sm:$0xf]
      %v3493 = vld [vmem:[%s3027 + $0xac] sm:$0xf]
      %v3494 = vld [vmem:[%s3027 + $0xb0] sm:$0x1]
      %v3495 = vld [vmem:[%s3027 + $0xb4] sm:$0xf]
      %v3496 = vld [vmem:[%s3027 + $0xb8] sm:$0xf]
      %v3497 = vld [vmem:[%s3027 + $0xbc] sm:$0x1]
      %v3498 = vunpack.c.l.bf16 %v3450
      %v3499 = vunpack.c.l.bf16 %v3451
      %v3500 = vunpack.c.l.bf16 %v3452
      %v3501 = vunpack.c.l.bf16 %v3453
      %v3502 = vunpack.c.l.bf16 %v3454
      %v3503 = vunpack.c.l.bf16 %v3455
      %v3504 = vunpack.c.l.bf16 %v3456
      %v3505 = vunpack.c.l.bf16 %v3457
      %v3506 = vunpack.c.l.bf16 %v3458
      %v3507 = vunpack.c.l.bf16 %v3459
      %v3508 = vunpack.c.l.bf16 %v3460
      %v3509 = vunpack.c.l.bf16 %v3461
      %v3510 = vunpack.c.l.bf16 %v3462
      %v3511 = vunpack.c.l.bf16 %v3463
      %v3512 = vunpack.c.l.bf16 %v3464
      %v3513 = vunpack.c.l.bf16 %v3465
      %v3514 = vunpack.c.l.bf16 %v3466
      %v3515 = vunpack.c.l.bf16 %v3467
      %v3516 = vunpack.c.l.bf16 %v3468
      %v3517 = vunpack.c.l.bf16 %v3469
      %v3518 = vunpack.c.l.bf16 %v3470
      %v3519 = vunpack.c.l.bf16 %v3471
      %v3520 = vunpack.c.l.bf16 %v3472
      %v3521 = vunpack.c.l.bf16 %v3473
      %v3522 = vunpack.c.l.bf16 %v3474
      %v3523 = vunpack.c.l.bf16 %v3475
      %v3524 = vunpack.c.l.bf16 %v3476
      %v3525 = vunpack.c.l.bf16 %v3477
      %v3526 = vunpack.c.l.bf16 %v3478
      %v3527 = vunpack.c.l.bf16 %v3479
      %v3528 = vunpack.c.l.bf16 %v3480
      %v3529 = vunpack.c.l.bf16 %v3481
      %v3530 = vunpack.c.l.bf16 %v3482
      %v3531 = vunpack.c.l.bf16 %v3483
      %v3532 = vunpack.c.l.bf16 %v3484
      %v3533 = vunpack.c.l.bf16 %v3485
      %v3534 = vunpack.c.l.bf16 %v3486
      %v3535 = vunpack.c.l.bf16 %v3487
      %v3536 = vunpack.c.l.bf16 %v3488
      %v3537 = vunpack.c.l.bf16 %v3489
      %v3538 = vunpack.c.l.bf16 %v3490
      %v3539 = vunpack.c.l.bf16 %v3491
      %v3540 = vunpack.c.l.bf16 %v3492
      %v3541 = vunpack.c.l.bf16 %v3493
      %v3542 = vunpack.c.l.bf16 %v3494
      %v3543 = vunpack.c.l.bf16 %v3495
      %v3544 = vunpack.c.l.bf16 %v3496
      %v3545 = vunpack.c.l.bf16 %v3497
      %v3594 = vrot.slane %v3498, 1
      %v3595 = vrot.slane %v3499, 1
      %v3596 = vsel %vm476, %v3594, %v3595
      %v3597 = vrot.slane %v3500, 1
      %v3598 = vsel %vm476, %v3595, %v3597
      %v3599 = vrot.slane %v3501, 1
      %v3600 = vrot.slane %v3502, 1
      %v3601 = vsel %vm476, %v3599, %v3600
      %v3602 = vrot.slane %v3503, 1
      %v3603 = vsel %vm476, %v3600, %v3602
      %v3604 = vrot.slane %v3504, 1
      %v3605 = vrot.slane %v3505, 1
      %v3606 = vsel %vm476, %v3604, %v3605
      %v3607 = vrot.slane %v3506, 1
      %v3608 = vsel %vm476, %v3605, %v3607
      %v3609 = vrot.slane %v3507, 1
      %v3610 = vrot.slane %v3508, 1
      %v3611 = vsel %vm476, %v3609, %v3610
      %v3612 = vrot.slane %v3509, 1
      %v3613 = vsel %vm476, %v3610, %v3612
      %v3614 = vrot.slane %v3510, 1
      %v3615 = vrot.slane %v3511, 1
      %v3616 = vsel %vm476, %v3614, %v3615
      %v3617 = vrot.slane %v3512, 1
      %v3618 = vsel %vm476, %v3615, %v3617
      %v3619 = vrot.slane %v3513, 1
      %v3620 = vrot.slane %v3514, 1
      %v3621 = vsel %vm476, %v3619, %v3620
      %v3622 = vrot.slane %v3515, 1
      %v3623 = vsel %vm476, %v3620, %v3622
      %v3624 = vrot.slane %v3516, 1
      %v3625 = vrot.slane %v3517, 1
      %v3626 = vsel %vm476, %v3624, %v3625
      %v3627 = vrot.slane %v3518, 1
      %v3628 = vsel %vm476, %v3625, %v3627
      %v3629 = vrot.slane %v3519, 1
      %v3630 = vrot.slane %v3520, 1
      %v3631 = vsel %vm476, %v3629, %v3630
      %v3632 = vrot.slane %v3521, 1
      %v3633 = vsel %vm476, %v3630, %v3632
      %v3634 = vrot.slane %v3522, 1
      %v3635 = vrot.slane %v3523, 1
      %v3636 = vsel %vm476, %v3634, %v3635
      %v3637 = vrot.slane %v3524, 1
      %v3638 = vsel %vm476, %v3635, %v3637
      %v3639 = vrot.slane %v3525, 1
      %v3640 = vrot.slane %v3526, 1
      %v3641 = vsel %vm476, %v3639, %v3640
      %v3642 = vrot.slane %v3527, 1
      %v3643 = vsel %vm476, %v3640, %v3642
      %v3644 = vrot.slane %v3528, 1
      %v3645 = vrot.slane %v3529, 1
      %v3646 = vsel %vm476, %v3644, %v3645
      %v3647 = vrot.slane %v3530, 1
      %v3648 = vsel %vm476, %v3645, %v3647
      %v3649 = vrot.slane %v3531, 1
      %v3650 = vrot.slane %v3532, 1
      %v3651 = vsel %vm476, %v3649, %v3650
      %v3652 = vrot.slane %v3533, 1
      %v3653 = vsel %vm476, %v3650, %v3652
      %v3654 = vrot.slane %v3534, 1
      %v3655 = vrot.slane %v3535, 1
      %v3656 = vsel %vm476, %v3654, %v3655
      %v3657 = vrot.slane %v3536, 1
      %v3658 = vsel %vm476, %v3655, %v3657
      %v3659 = vrot.slane %v3537, 1
      %v3660 = vrot.slane %v3538, 1
      %v3661 = vsel %vm476, %v3659, %v3660
      %v3662 = vrot.slane %v3539, 1
      %v3663 = vsel %vm476, %v3660, %v3662
      %v3664 = vrot.slane %v3540, 1
      %v3665 = vrot.slane %v3541, 1
      %v3666 = vsel %vm476, %v3664, %v3665
      %v3667 = vrot.slane %v3542, 1
      %v3668 = vsel %vm476, %v3665, %v3667
      %v3669 = vrot.slane %v3543, 1
      %v3670 = vrot.slane %v3544, 1
      %v3671 = vsel %vm476, %v3669, %v3670
      %v3672 = vrot.slane %v3545, 1
      %v3673 = vsel %vm476, %v3670, %v3672
      %s3674 = scalar_lea.vmem %s1, 28
      %v3675 = vld [vmem:[%s3674] sm:$0x7]
      %v3676 = vsel %vm559, %v3596, 0
      %v3678 = vsel %vm559, %v3598, 0
      %v3680 = vsel %vm559, %v3601, 0
      %v3682 = vsel %vm559, %v3603, 0
      %v3684 = vsel %vm559, %v3606, 0
      %v3686 = vsel %vm559, %v3608, 0
      %v3688 = vsel %vm559, %v3611, 0
      %v3690 = vsel %vm559, %v3613, 0
      %v3692 = vsel %vm559, %v3616, 0
      %v3694 = vsel %vm559, %v3618, 0
      %v3696 = vsel %vm559, %v3621, 0
      %v3698 = vsel %vm559, %v3623, 0
      %v3700 = vsel %vm559, %v3626, 0
      %v3702 = vsel %vm559, %v3628, 0
      %v3704 = vsel %vm559, %v3631, 0
      %v3706 = vsel %vm559, %v3633, 0
      %v3708 = vsel %vm559, %v3636, 0
      %v3710 = vsel %vm559, %v3638, 0
      %v3712 = vsel %vm559, %v3641, 0
      %v3714 = vsel %vm559, %v3643, 0
      %v3716 = vsel %vm559, %v3646, 0
      %v3718 = vsel %vm559, %v3648, 0
      %v3720 = vsel %vm559, %v3651, 0
      %v3722 = vsel %vm559, %v3653, 0
      %v3724 = vsel %vm559, %v3656, 0
      %v3726 = vsel %vm559, %v3658, 0
      %v3728 = vsel %vm559, %v3661, 0
      %v3730 = vsel %vm559, %v3663, 0
      %v3732 = vsel %vm559, %v3666, 0
      %v3734 = vsel %vm559, %v3668, 0
      %v3736 = vsel %vm559, %v3671, 0
      %v3738 = vsel %vm559, %v3673, 0
      %v3741 = vsel %vm624, %v3675, 0
      %3743 = vmatprep.subr.mxu0 0.0
      %3744 = vmatpush1.msra.mxu0 %v3741
      %3745 = vmatprep.subr.mxu0 0.0
      %3746 = vmatpush1.msra.mxu0 0.0
      %3747 = vmatprep.subr.mxu0 0.0
      %3748 = vmatpush1.msra.mxu0 0.0
      %3749 = vmatprep.subr.mxu0 0.0
      %3750 = vmatpush1.msra.mxu0 0.0
      %3751 = vmatprep.subr.mxu0 0.0
      %3752 = vmatpush1.msra.mxu0 0.0
      %3753 = vmatprep.subr.mxu0 0.0
      %3754 = vmatpush1.msra.mxu0 0.0
      %3755 = vmatprep.subr.mxu0 0.0
      %3756 = vmatpush1.msra.mxu0 0.0
      %3757 = vmatprep.subr.mxu0 0.0
      %3758 = vmatpush1.msra.mxu0 0.0
      %3759 = vmatprep.subr.mxu0 0.0
      %3760 = vmatpush1.msra.mxu0 0.0
      %3761 = vmatprep.subr.mxu0 0.0
      %3762 = vmatpush1.msra.mxu0 0.0
      %3763 = vmatprep.subr.mxu0 0.0
      %3764 = vmatpush1.msra.mxu0 0.0
      %3765 = vmatprep.subr.mxu0 0.0
      %3766 = vmatpush1.msra.mxu0 0.0
      %3767 = vmatprep.subr.mxu0 0.0
      %3768 = vmatpush1.msra.mxu0 0.0
      %3769 = vmatprep.subr.mxu0 0.0
      %3770 = vmatpush1.msra.mxu0 0.0
      %3771 = vmatprep.subr.mxu0 0.0
      %3772 = vmatpush1.msra.mxu0 0.0
      %3773 = vmatprep.subr.mxu0 0.0
      %3774 = vmatpush1.msra.mxu0 0.0
      %3775 = vmatprep.subr.mxu0 0.0
      %3776 = vmatpush1.msra.mxu0 0.0
      %3777 = vmatprep.subr.mxu0 0.0
      %3778 = vmatpush1.msra.mxu0 0.0
      %3779 = vmatprep.subr.mxu0 0.0
      %3780 = vmatpush1.msra.mxu0 0.0
      %3781 = vmatprep.subr.mxu0 0.0
      %3782 = vmatpush1.msra.mxu0 0.0
      %3783 = vmatprep.subr.mxu0 0.0
      %3784 = vmatpush1.msra.mxu0 0.0
      %3785 = vmatprep.subr.mxu0 0.0
      %3786 = vmatpush1.msra.mxu0 0.0
      %3787 = vmatprep.subr.mxu0 0.0
      %3788 = vmatpush1.msra.mxu0 0.0
      %3789 = vmatprep.subr.mxu0 0.0
      %3790 = vmatpush1.msra.mxu0 0.0
      %3791 = vmatprep.subr.mxu0 0.0
      %3792 = vmatpush1.msra.mxu0 0.0
      %3793 = vmatprep.subr.mxu0 0.0
      %3794 = vmatpush1.msra.mxu0 0.0
      %3795 = vmatprep.subr.mxu0 0.0
      %3796 = vmatpush1.msra.mxu0 0.0
      %3797 = vmatprep.subr.mxu0 0.0
      %3798 = vmatpush1.msra.mxu0 0.0
      %3799 = vmatprep.subr.mxu0 0.0
      %3800 = vmatpush1.msra.mxu0 0.0
      %3801 = vmatprep.subr.mxu0 0.0
      %3802 = vmatpush1.msra.mxu0 0.0
      %3803 = vmatprep.subr.mxu0 0.0
      %3804 = vmatpush1.msra.mxu0 0.0
      %3805 = vmatprep.subr.mxu0 0.0
      %3806 = vmatpush1.msra.mxu0 0.0
      %3807 = vmatprep.mubr.f32.mxu0 0.0
      %3808 = vmatmul.mubr.f32.gmra.mrb[0].mxu0 %v3676
      %v3809 = vpop.f32.mrb[0].mxu0
      %v3810 = vadd.f32 0.0, %v3809
      %v3811 = vpop.f32.mrb[0].mxu0
      %3812 = vmatprep.mubr.f32.mxu0 0.0
      %3813 = vmatmul.mubr.f32.gmra.mrb[0].mxu0 %v3678
      %v3814 = vpop.f32.mrb[0].mxu0
      %v3815 = vadd.f32 0.0, %v3814
      %v3816 = vpop.f32.mrb[0].mxu0
      %3817 = vmatprep.mubr.f32.mxu0 0.0
      %3818 = vmatmul.mubr.f32.gmra.mrb[0].mxu0 %v3680
      %v3819 = vpop.f32.mrb[0].mxu0
      %v3820 = vadd.f32 0.0, %v3819
      %v3821 = vpop.f32.mrb[0].mxu0
      %3822 = vmatprep.mubr.f32.mxu0 0.0
      %3823 = vmatmul.mubr.f32.gmra.mrb[0].mxu0 %v3682
      %v3824 = vpop.f32.mrb[0].mxu0
      %v3825 = vadd.f32 0.0, %v3824
      %v3826 = vpop.f32.mrb[0].mxu0
      %3827 = vmatprep.mubr.f32.mxu0 0.0
      %3828 = vmatmul.mubr.f32.gmra.mrb[0].mxu0 %v3684
      %v3829 = vpop.f32.mrb[0].mxu0
      %v3830 = vadd.f32 0.0, %v3829
      %v3831 = vpop.f32.mrb[0].mxu0
      %3832 = vmatprep.mubr.f32.mxu0 0.0
      %3833 = vmatmul.mubr.f32.gmra.mrb[0].mxu0 %v3686
      %v3834 = vpop.f32.mrb[0].mxu0
      %v3835 = vadd.f32 0.0, %v3834
      %v3836 = vpop.f32.mrb[0].mxu0
      %3837 = vmatprep.mubr.f32.mxu0 0.0
      %3838 = vmatmul.mubr.f32.gmra.mrb[0].mxu0 %v3688
      %v3839 = vpop.f32.mrb[0].mxu0
      %v3840 = vadd.f32 0.0, %v3839
      %v3841 = vpop.f32.mrb[0].mxu0
      %3842 = vmatprep.mubr.f32.mxu0 0.0
      %3843 = vmatmul.mubr.f32.gmra.mrb[0].mxu0 %v3690
      %v3844 = vpop.f32.mrb[0].mxu0
      %v3845 = vadd.f32 0.0, %v3844
      %v3846 = vpop.f32.mrb[0].mxu0
      %3847 = vmatprep.mubr.f32.mxu0 0.0
      %3848 = vmatmul.mubr.f32.gmra.mrb[0].mxu0 %v3692
      %v3849 = vpop.f32.mrb[0].mxu0
      %v3850 = vadd.f32 0.0, %v3849
      %v3851 = vpop.f32.mrb[0].mxu0
      %3852 = vmatprep.mubr.f32.mxu0 0.0
      %3853 = vmatmul.mubr.f32.gmra.mrb[0].mxu0 %v3694
      %v3854 = vpop.f32.mrb[0].mxu0
      %v3855 = vadd.f32 0.0, %v3854
      %v3856 = vpop.f32.mrb[0].mxu0
      %3857 = vmatprep.mubr.f32.mxu0 0.0
      %3858 = vmatmul.mubr.f32.gmra.mrb[0].mxu0 %v3696
      %v3859 = vpop.f32.mrb[0].mxu0
      %v3860 = vadd.f32 0.0, %v3859
      %v3861 = vpop.f32.mrb[0].mxu0
      %3862 = vmatprep.mubr.f32.mxu0 0.0
      %3863 = vmatmul.mubr.f32.gmra.mrb[0].mxu0 %v3698
      %v3864 = vpop.f32.mrb[0].mxu0
      %v3865 = vadd.f32 0.0, %v3864
      %v3866 = vpop.f32.mrb[0].mxu0
      %3867 = vmatprep.mubr.f32.mxu0 0.0
      %3868 = vmatmul.mubr.f32.gmra.mrb[0].mxu0 %v3700
      %v3869 = vpop.f32.mrb[0].mxu0
      %v3870 = vadd.f32 0.0, %v3869
      %v3871 = vpop.f32.mrb[0].mxu0
      %3872 = vmatprep.mubr.f32.mxu0 0.0
      %3873 = vmatmul.mubr.f32.gmra.mrb[0].mxu0 %v3702
      %v3874 = vpop.f32.mrb[0].mxu0
      %v3875 = vadd.f32 0.0, %v3874
      %v3876 = vpop.f32.mrb[0].mxu0
      %3877 = vmatprep.mubr.f32.mxu0 0.0
      %3878 = vmatmul.mubr.f32.gmra.mrb[0].mxu0 %v3704
      %v3879 = vpop.f32.mrb[0].mxu0
      %v3880 = vadd.f32 0.0, %v3879
      %v3881 = vpop.f32.mrb[0].mxu0
      %3882 = vmatprep.mubr.f32.mxu0 0.0
      %3883 = vmatmul.mubr.f32.gmra.mrb[0].mxu0 %v3706
      %v3884 = vpop.f32.mrb[0].mxu0
      %v3885 = vadd.f32 0.0, %v3884
      %v3886 = vpop.f32.mrb[0].mxu0
      %3887 = vmatprep.mubr.f32.mxu0 0.0
      %3888 = vmatmul.mubr.f32.gmra.mrb[0].mxu0 %v3708
      %v3889 = vpop.f32.mrb[0].mxu0
      %v3890 = vadd.f32 0.0, %v3889
      %v3891 = vpop.f32.mrb[0].mxu0
      %3892 = vmatprep.mubr.f32.mxu0 0.0
      %3893 = vmatmul.mubr.f32.gmra.mrb[0].mxu0 %v3710
      %v3894 = vpop.f32.mrb[0].mxu0
      %v3895 = vadd.f32 0.0, %v3894
      %v3896 = vpop.f32.mrb[0].mxu0
      %3897 = vmatprep.mubr.f32.mxu0 0.0
      %3898 = vmatmul.mubr.f32.gmra.mrb[0].mxu0 %v3712
      %v3899 = vpop.f32.mrb[0].mxu0
      %v3900 = vadd.f32 0.0, %v3899
      %v3901 = vpop.f32.mrb[0].mxu0
      %3902 = vmatprep.mubr.f32.mxu0 0.0
      %3903 = vmatmul.mubr.f32.gmra.mrb[0].mxu0 %v3714
      %v3904 = vpop.f32.mrb[0].mxu0
      %v3905 = vadd.f32 0.0, %v3904
      %v3906 = vpop.f32.mrb[0].mxu0
      %3907 = vmatprep.mubr.f32.mxu0 0.0
      %3908 = vmatmul.mubr.f32.gmra.mrb[0].mxu0 %v3716
      %v3909 = vpop.f32.mrb[0].mxu0
      %v3910 = vadd.f32 0.0, %v3909
      %v3911 = vpop.f32.mrb[0].mxu0
      %3912 = vmatprep.mubr.f32.mxu0 0.0
      %3913 = vmatmul.mubr.f32.gmra.mrb[0].mxu0 %v3718
      %v3914 = vpop.f32.mrb[0].mxu0
      %v3915 = vadd.f32 0.0, %v3914
      %v3916 = vpop.f32.mrb[0].mxu0
      %3917 = vmatprep.mubr.f32.mxu0 0.0
      %3918 = vmatmul.mubr.f32.gmra.mrb[0].mxu0 %v3720
      %v3919 = vpop.f32.mrb[0].mxu0
      %v3920 = vadd.f32 0.0, %v3919
      %v3921 = vpop.f32.mrb[0].mxu0
      %3922 = vmatprep.mubr.f32.mxu0 0.0
      %3923 = vmatmul.mubr.f32.gmra.mrb[0].mxu0 %v3722
      %v3924 = vpop.f32.mrb[0].mxu0
      %v3925 = vadd.f32 0.0, %v3924
      %v3926 = vpop.f32.mrb[0].mxu0
      %3927 = vmatprep.mubr.f32.mxu0 0.0
      %3928 = vmatmul.mubr.f32.gmra.mrb[0].mxu0 %v3724
      %v3929 = vpop.f32.mrb[0].mxu0
      %v3930 = vadd.f32 0.0, %v3929
      %v3931 = vpop.f32.mrb[0].mxu0
      %3932 = vmatprep.mubr.f32.mxu0 0.0
      %3933 = vmatmul.mubr.f32.gmra.mrb[0].mxu0 %v3726
      %v3934 = vpop.f32.mrb[0].mxu0
      %v3935 = vadd.f32 0.0, %v3934
      %v3936 = vpop.f32.mrb[0].mxu0
      %3937 = vmatprep.mubr.f32.mxu0 0.0
      %3938 = vmatmul.mubr.f32.gmra.mrb[0].mxu0 %v3728
      %v3939 = vpop.f32.mrb[0].mxu0
      %v3940 = vadd.f32 0.0, %v3939
      %v3941 = vpop.f32.mrb[0].mxu0
      %3942 = vmatprep.mubr.f32.mxu0 0.0
      %3943 = vmatmul.mubr.f32.gmra.mrb[0].mxu0 %v3730
      %v3944 = vpop.f32.mrb[0].mxu0
      %v3945 = vadd.f32 0.0, %v3944
      %v3946 = vpop.f32.mrb[0].mxu0
      %3947 = vmatprep.mubr.f32.mxu0 0.0
      %3948 = vmatmul.mubr.f32.gmra.mrb[0].mxu0 %v3732
      %v3949 = vpop.f32.mrb[0].mxu0
      %v3950 = vadd.f32 0.0, %v3949
      %v3951 = vpop.f32.mrb[0].mxu0
      %3952 = vmatprep.mubr.f32.mxu0 0.0
      %3953 = vmatmul.mubr.f32.gmra.mrb[0].mxu0 %v3734
      %v3954 = vpop.f32.mrb[0].mxu0
      %v3955 = vadd.f32 0.0, %v3954
      %v3956 = vpop.f32.mrb[0].mxu0
      %3957 = vmatprep.mubr.f32.mxu0 0.0
      %3958 = vmatmul.mubr.f32.gmra.mrb[0].mxu0 %v3736
      %v3959 = vpop.f32.mrb[0].mxu0
      %v3960 = vadd.f32 0.0, %v3959
      %v3961 = vpop.f32.mrb[0].mxu0
      %3962 = vmatprep.mubr.f32.mxu0 0.0
      %3963 = vmatmul.mubr.f32.gmra.mrb[0].mxu0 %v3738
      %v3964 = vpop.f32.mrb[0].mxu0
      %v3965 = vadd.f32 0.0, %v3964
      %v3966 = vpop.f32.mrb[0].mxu0
      %3967 = vdwg.mxu0
      %v3968 = vadd.f32 %v3418, %v3810
      %v3969 = vadd.f32 %v3419, %v3815
      %v3970 = vadd.f32 %v3420, %v3820
      %v3971 = vadd.f32 %v3421, %v3825
      %v3972 = vadd.f32 %v3422, %v3830
      %v3973 = vadd.f32 %v3423, %v3835
      %v3974 = vadd.f32 %v3424, %v3840
      %v3975 = vadd.f32 %v3425, %v3845
      %v3976 = vadd.f32 %v3426, %v3850
      %v3977 = vadd.f32 %v3427, %v3855
      %v3978 = vadd.f32 %v3428, %v3860
      %v3979 = vadd.f32 %v3429, %v3865
      %v3980 = vadd.f32 %v3430, %v3870
      %v3981 = vadd.f32 %v3431, %v3875
      %v3982 = vadd.f32 %v3432, %v3880
      %v3983 = vadd.f32 %v3433, %v3885
      %v3984 = vadd.f32 %v3434, %v3890
      %v3985 = vadd.f32 %v3435, %v3895
      %v3986 = vadd.f32 %v3436, %v3900
      %v3987 = vadd.f32 %v3437, %v3905
      %v3988 = vadd.f32 %v3438, %v3910
      %v3989 = vadd.f32 %v3439, %v3915
      %v3990 = vadd.f32 %v3440, %v3920
      %v3991 = vadd.f32 %v3441, %v3925
      %v3992 = vadd.f32 %v3442, %v3930
      %v3993 = vadd.f32 %v3443, %v3935
      %v3994 = vadd.f32 %v3444, %v3940
      %v3995 = vadd.f32 %v3445, %v3945
      %v3996 = vadd.f32 %v3446, %v3950
      %v3997 = vadd.f32 %v3447, %v3955
      %v3998 = vadd.f32 %v3448, %v3960
      %v3999 = vadd.f32 %v3449, %v3965
      %v4000 = vld [vmem:[%s3027] sm:$0xe]
      %v4001 = vld [vmem:[%s3027 + $0xc] sm:$0xe]
      %v4002 = vld [vmem:[%s3027 + $0x18] sm:$0xe]
      %v4003 = vld [vmem:[%s3027 + $0x24] sm:$0xe]
      %v4004 = vld [vmem:[%s3027 + $0x30] sm:$0xe]
      %v4005 = vld [vmem:[%s3027 + $0x3c] sm:$0xe]
      %v4006 = vld [vmem:[%s3027 + $0x48] sm:$0xe]
      %v4007 = vld [vmem:[%s3027 + $0x54] sm:$0xe]
      %v4008 = vld [vmem:[%s3027 + $0x60] sm:$0xe]
      %v4009 = vld [vmem:[%s3027 + $0x6c] sm:$0xe]
      %v4010 = vld [vmem:[%s3027 + $0x78] sm:$0xe]
      %v4011 = vld [vmem:[%s3027 + $0x84] sm:$0xe]
      %v4012 = vld [vmem:[%s3027 + $0x90] sm:$0xe]
      %v4013 = vld [vmem:[%s3027 + $0x9c] sm:$0xe]
      %v4014 = vld [vmem:[%s3027 + $0xa8] sm:$0xe]
      %v4015 = vld [vmem:[%s3027 + $0xb4] sm:$0xe]
      %v4016 = vunpack.c.l.bf16 %v4000
      %v4017 = vunpack.c.l.bf16 %v4001
      %v4018 = vunpack.c.l.bf16 %v4002
      %v4019 = vunpack.c.l.bf16 %v4003
      %v4020 = vunpack.c.l.bf16 %v4004
      %v4021 = vunpack.c.l.bf16 %v4005
      %v4022 = vunpack.c.l.bf16 %v4006
      %v4023 = vunpack.c.l.bf16 %v4007
      %v4024 = vunpack.c.l.bf16 %v4008
      %v4025 = vunpack.c.l.bf16 %v4009
      %v4026 = vunpack.c.l.bf16 %v4010
      %v4027 = vunpack.c.l.bf16 %v4011
      %v4028 = vunpack.c.l.bf16 %v4012
      %v4029 = vunpack.c.l.bf16 %v4013
      %v4030 = vunpack.c.l.bf16 %v4014
      %v4031 = vunpack.c.l.bf16 %v4015
      %v4048 = vrot.slane %v4016, 2
      %v4049 = vrot.slane %v3499, 2
      %v4050 = vsel %vm1193, %v4048, %v4049
      %v4051 = vrot.slane %v3500, 2
      %v4052 = vsel %vm1193, %v4049, %v4051
      %v4053 = vrot.slane %v4017, 2
      %v4054 = vrot.slane %v3502, 2
      %v4055 = vsel %vm1193, %v4053, %v4054
      %v4056 = vrot.slane %v3503, 2
      %v4057 = vsel %vm1193, %v4054, %v4056
      %v4058 = vrot.slane %v4018, 2
      %v4059 = vrot.slane %v3505, 2
      %v4060 = vsel %vm1193, %v4058, %v4059
      %v4061 = vrot.slane %v3506, 2
      %v4062 = vsel %vm1193, %v4059, %v4061
      %v4063 = vrot.slane %v4019, 2
      %v4064 = vrot.slane %v3508, 2
      %v4065 = vsel %vm1193, %v4063, %v4064
      %v4066 = vrot.slane %v3509, 2
      %v4067 = vsel %vm1193, %v4064, %v4066
      %v4068 = vrot.slane %v4020, 2
      %v4069 = vrot.slane %v3511, 2
      %v4070 = vsel %vm1193, %v4068, %v4069
      %v4071 = vrot.slane %v3512, 2
      %v4072 = vsel %vm1193, %v4069, %v4071
      %v4073 = vrot.slane %v4021, 2
      %v4074 = vrot.slane %v3514, 2
      %v4075 = vsel %vm1193, %v4073, %v4074
      %v4076 = vrot.slane %v3515, 2
      %v4077 = vsel %vm1193, %v4074, %v4076
      %v4078 = vrot.slane %v4022, 2
      %v4079 = vrot.slane %v3517, 2
      %v4080 = vsel %vm1193, %v4078, %v4079
      %v4081 = vrot.slane %v3518, 2
      %v4082 = vsel %vm1193, %v4079, %v4081
      %v4083 = vrot.slane %v4023, 2
      %v4084 = vrot.slane %v3520, 2
      %v4085 = vsel %vm1193, %v4083, %v4084
      %v4086 = vrot.slane %v3521, 2
      %v4087 = vsel %vm1193, %v4084, %v4086
      %v4088 = vrot.slane %v4024, 2
      %v4089 = vrot.slane %v3523, 2
      %v4090 = vsel %vm1193, %v4088, %v4089
      %v4091 = vrot.slane %v3524, 2
      %v4092 = vsel %vm1193, %v4089, %v4091
      %v4093 = vrot.slane %v4025, 2
      %v4094 = vrot.slane %v3526, 2
      %v4095 = vsel %vm1193, %v4093, %v4094
      %v4096 = vrot.slane %v3527, 2
      %v4097 = vsel %vm1193, %v4094, %v4096
      %v4098 = vrot.slane %v4026, 2
      %v4099 = vrot.slane %v3529, 2
      %v4100 = vsel %vm1193, %v4098, %v4099
      %v4101 = vrot.slane %v3530, 2
      %v4102 = vsel %vm1193, %v4099, %v4101
      %v4103 = vrot.slane %v4027, 2
      %v4104 = vrot.slane %v3532, 2
      %v4105 = vsel %vm1193, %v4103, %v4104
      %v4106 = vrot.slane %v3533, 2
      %v4107 = vsel %vm1193, %v4104, %v4106
      %v4108 = vrot.slane %v4028, 2
      %v4109 = vrot.slane %v3535, 2
      %v4110 = vsel %vm1193, %v4108, %v4109
      %v4111 = vrot.slane %v3536, 2
      %v4112 = vsel %vm1193, %v4109, %v4111
      %v4113 = vrot.slane %v4029, 2
      %v4114 = vrot.slane %v3538, 2
      %v4115 = vsel %vm1193, %v4113, %v4114
      %v4116 = vrot.slane %v3539, 2
      %v4117 = vsel %vm1193, %v4114, %v4116
      %v4118 = vrot.slane %v4030, 2
      %v4119 = vrot.slane %v3541, 2
      %v4120 = vsel %vm1193, %v4118, %v4119
      %v4121 = vrot.slane %v3542, 2
      %v4122 = vsel %vm1193, %v4119, %v4121
      %v4123 = vrot.slane %v4031, 2
      %v4124 = vrot.slane %v3544, 2
      %v4125 = vsel %vm1193, %v4123, %v4124
      %v4126 = vrot.slane %v3545, 2
      %v4127 = vsel %vm1193, %v4124, %v4126
      %s4128 = scalar_lea.vmem %s1, 32
      %v4129 = vld [vmem:[%s4128] sm:$0x7]
      %v4130 = vsel %vm559, %v4050, 0
      %v4132 = vsel %vm559, %v4052, 0
      %v4134 = vsel %vm559, %v4055, 0
      %v4136 = vsel %vm559, %v4057, 0
      %v4138 = vsel %vm559, %v4060, 0
      %v4140 = vsel %vm559, %v4062, 0
      %v4142 = vsel %vm559, %v4065, 0
      %v4144 = vsel %vm559, %v4067, 0
      %v4146 = vsel %vm559, %v4070, 0
      %v4148 = vsel %vm559, %v4072, 0
      %v4150 = vsel %vm559, %v4075, 0
      %v4152 = vsel %vm559, %v4077, 0
      %v4154 = vsel %vm559, %v4080, 0
      %v4156 = vsel %vm559, %v4082, 0
      %v4158 = vsel %vm559, %v4085, 0
      %v4160 = vsel %vm559, %v4087, 0
      %v4162 = vsel %vm559, %v4090, 0
      %v4164 = vsel %vm559, %v4092, 0
      %v4166 = vsel %vm559, %v4095, 0
      %v4168 = vsel %vm559, %v4097, 0
      %v4170 = vsel %vm559, %v4100, 0
      %v4172 = vsel %vm559, %v4102, 0
      %v4174 = vsel %vm559, %v4105, 0
      %v4176 = vsel %vm559, %v4107, 0
      %v4178 = vsel %vm559, %v4110, 0
      %v4180 = vsel %vm559, %v4112, 0
      %v4182 = vsel %vm559, %v4115, 0
      %v4184 = vsel %vm559, %v4117, 0
      %v4186 = vsel %vm559, %v4120, 0
      %v4188 = vsel %vm559, %v4122, 0
      %v4190 = vsel %vm559, %v4125, 0
      %v4192 = vsel %vm559, %v4127, 0
      %v4195 = vsel %vm624, %v4129, 0
      %4197 = vmatprep.subr.mxu0 0.0
      %4198 = vmatpush1.msra.mxu0 %v4195
      %4199 = vmatprep.subr.mxu0 0.0
      %4200 = vmatpush1.msra.mxu0 0.0
      %4201 = vmatprep.subr.mxu0 0.0
      %4202 = vmatpush1.msra.mxu0 0.0
      %4203 = vmatprep.subr.mxu0 0.0
      %4204 = vmatpush1.msra.mxu0 0.0
      %4205 = vmatprep.subr.mxu0 0.0
      %4206 = vmatpush1.msra.mxu0 0.0
      %4207 = vmatprep.subr.mxu0 0.0
      %4208 = vmatpush1.msra.mxu0 0.0
      %4209 = vmatprep.subr.mxu0 0.0
      %4210 = vmatpush1.msra.mxu0 0.0
      %4211 = vmatprep.subr.mxu0 0.0
      %4212 = vmatpush1.msra.mxu0 0.0
      %4213 = vmatprep.subr.mxu0 0.0
      %4214 = vmatpush1.msra.mxu0 0.0
      %4215 = vmatprep.subr.mxu0 0.0
      %4216 = vmatpush1.msra.mxu0 0.0
      %4217 = vmatprep.subr.mxu0 0.0
      %4218 = vmatpush1.msra.mxu0 0.0
      %4219 = vmatprep.subr.mxu0 0.0
      %4220 = vmatpush1.msra.mxu0 0.0
      %4221 = vmatprep.subr.mxu0 0.0
      %4222 = vmatpush1.msra.mxu0 0.0
      %4223 = vmatprep.subr.mxu0 0.0
      %4224 = vmatpush1.msra.mxu0 0.0
      %4225 = vmatprep.subr.mxu0 0.0
      %4226 = vmatpush1.msra.mxu0 0.0
      %4227 = vmatprep.subr.mxu0 0.0
      %4228 = vmatpush1.msra.mxu0 0.0
      %4229 = vmatprep.subr.mxu0 0.0
      %4230 = vmatpush1.msra.mxu0 0.0
      %4231 = vmatprep.subr.mxu0 0.0
      %4232 = vmatpush1.msra.mxu0 0.0
      %4233 = vmatprep.subr.mxu0 0.0
      %4234 = vmatpush1.msra.mxu0 0.0
      %4235 = vmatprep.subr.mxu0 0.0
      %4236 = vmatpush1.msra.mxu0 0.0
      %4237 = vmatprep.subr.mxu0 0.0
      %4238 = vmatpush1.msra.mxu0 0.0
      %4239 = vmatprep.subr.mxu0 0.0
      %4240 = vmatpush1.msra.mxu0 0.0
      %4241 = vmatprep.subr.mxu0 0.0
      %4242 = vmatpush1.msra.mxu0 0.0
      %4243 = vmatprep.subr.mxu0 0.0
      %4244 = vmatpush1.msra.mxu0 0.0
      %4245 = vmatprep.subr.mxu0 0.0
      %4246 = vmatpush1.msra.mxu0 0.0
      %4247 = vmatprep.subr.mxu0 0.0
      %4248 = vmatpush1.msra.mxu0 0.0
      %4249 = vmatprep.subr.mxu0 0.0
      %4250 = vmatpush1.msra.mxu0 0.0
      %4251 = vmatprep.subr.mxu0 0.0
      %4252 = vmatpush1.msra.mxu0 0.0
      %4253 = vmatprep.subr.mxu0 0.0
      %4254 = vmatpush1.msra.mxu0 0.0
      %4255 = vmatprep.subr.mxu0 0.0
      %4256 = vmatpush1.msra.mxu0 0.0
      %4257 = vmatprep.subr.mxu0 0.0
      %4258 = vmatpush1.msra.mxu0 0.0
      %4259 = vmatprep.subr.mxu0 0.0
      %4260 = vmatpush1.msra.mxu0 0.0
      %4261 = vmatprep.mubr.f32.mxu0 0.0
      %4262 = vmatmul.mubr.f32.gmra.mrb[0].mxu0 %v4130
      %v4263 = vpop.f32.mrb[0].mxu0
      %v4264 = vadd.f32 0.0, %v4263
      %v4265 = vpop.f32.mrb[0].mxu0
      %4266 = vmatprep.mubr.f32.mxu0 0.0
      %4267 = vmatmul.mubr.f32.gmra.mrb[0].mxu0 %v4132
      %v4268 = vpop.f32.mrb[0].mxu0
      %v4269 = vadd.f32 0.0, %v4268
      %v4270 = vpop.f32.mrb[0].mxu0
      %4271 = vmatprep.mubr.f32.mxu0 0.0
      %4272 = vmatmul.mubr.f32.gmra.mrb[0].mxu0 %v4134
      %v4273 = vpop.f32.mrb[0].mxu0
      %v4274 = vadd.f32 0.0, %v4273
      %v4275 = vpop.f32.mrb[0].mxu0
      %4276 = vmatprep.mubr.f32.mxu0 0.0
      %4277 = vmatmul.mubr.f32.gmra.mrb[0].mxu0 %v4136
      %v4278 = vpop.f32.mrb[0].mxu0
      %v4279 = vadd.f32 0.0, %v4278
      %v4280 = vpop.f32.mrb[0].mxu0
      %4281 = vmatprep.mubr.f32.mxu0 0.0
      %4282 = vmatmul.mubr.f32.gmra.mrb[0].mxu0 %v4138
      %v4283 = vpop.f32.mrb[0].mxu0
      %v4284 = vadd.f32 0.0, %v4283
      %v4285 = vpop.f32.mrb[0].mxu0
      %4286 = vmatprep.mubr.f32.mxu0 0.0
      %4287 = vmatmul.mubr.f32.gmra.mrb[0].mxu0 %v4140
      %v4288 = vpop.f32.mrb[0].mxu0
      %v4289 = vadd.f32 0.0, %v4288
      %v4290 = vpop.f32.mrb[0].mxu0
      %4291 = vmatprep.mubr.f32.mxu0 0.0
      %4292 = vmatmul.mubr.f32.gmra.mrb[0].mxu0 %v4142
      %v4293 = vpop.f32.mrb[0].mxu0
      %v4294 = vadd.f32 0.0, %v4293
      %v4295 = vpop.f32.mrb[0].mxu0
      %4296 = vmatprep.mubr.f32.mxu0 0.0
      %4297 = vmatmul.mubr.f32.gmra.mrb[0].mxu0 %v4144
      %v4298 = vpop.f32.mrb[0].mxu0
      %v4299 = vadd.f32 0.0, %v4298
      %v4300 = vpop.f32.mrb[0].mxu0
      %4301 = vmatprep.mubr.f32.mxu0 0.0
      %4302 = vmatmul.mubr.f32.gmra.mrb[0].mxu0 %v4146
      %v4303 = vpop.f32.mrb[0].mxu0
      %v4304 = vadd.f32 0.0, %v4303
      %v4305 = vpop.f32.mrb[0].mxu0
      %4306 = vmatprep.mubr.f32.mxu0 0.0
      %4307 = vmatmul.mubr.f32.gmra.mrb[0].mxu0 %v4148
      %v4308 = vpop.f32.mrb[0].mxu0
      %v4309 = vadd.f32 0.0, %v4308
      %v4310 = vpop.f32.mrb[0].mxu0
      %4311 = vmatprep.mubr.f32.mxu0 0.0
      %4312 = vmatmul.mubr.f32.gmra.mrb[0].mxu0 %v4150
      %v4313 = vpop.f32.mrb[0].mxu0
      %v4314 = vadd.f32 0.0, %v4313
      %v4315 = vpop.f32.mrb[0].mxu0
      %4316 = vmatprep.mubr.f32.mxu0 0.0
      %4317 = vmatmul.mubr.f32.gmra.mrb[0].mxu0 %v4152
      %v4318 = vpop.f32.mrb[0].mxu0
      %v4319 = vadd.f32 0.0, %v4318
      %v4320 = vpop.f32.mrb[0].mxu0
      %4321 = vmatprep.mubr.f32.mxu0 0.0
      %4322 = vmatmul.mubr.f32.gmra.mrb[0].mxu0 %v4154
      %v4323 = vpop.f32.mrb[0].mxu0
      %v4324 = vadd.f32 0.0, %v4323
      %v4325 = vpop.f32.mrb[0].mxu0
      %4326 = vmatprep.mubr.f32.mxu0 0.0
      %4327 = vmatmul.mubr.f32.gmra.mrb[0].mxu0 %v4156
      %v4328 = vpop.f32.mrb[0].mxu0
      %v4329 = vadd.f32 0.0, %v4328
      %v4330 = vpop.f32.mrb[0].mxu0
      %4331 = vmatprep.mubr.f32.mxu0 0.0
      %4332 = vmatmul.mubr.f32.gmra.mrb[0].mxu0 %v4158
      %v4333 = vpop.f32.mrb[0].mxu0
      %v4334 = vadd.f32 0.0, %v4333
      %v4335 = vpop.f32.mrb[0].mxu0
      %4336 = vmatprep.mubr.f32.mxu0 0.0
      %4337 = vmatmul.mubr.f32.gmra.mrb[0].mxu0 %v4160
      %v4338 = vpop.f32.mrb[0].mxu0
      %v4339 = vadd.f32 0.0, %v4338
      %v4340 = vpop.f32.mrb[0].mxu0
      %4341 = vmatprep.mubr.f32.mxu0 0.0
      %4342 = vmatmul.mubr.f32.gmra.mrb[0].mxu0 %v4162
      %v4343 = vpop.f32.mrb[0].mxu0
      %v4344 = vadd.f32 0.0, %v4343
      %v4345 = vpop.f32.mrb[0].mxu0
      %4346 = vmatprep.mubr.f32.mxu0 0.0
      %4347 = vmatmul.mubr.f32.gmra.mrb[0].mxu0 %v4164
      %v4348 = vpop.f32.mrb[0].mxu0
      %v4349 = vadd.f32 0.0, %v4348
      %v4350 = vpop.f32.mrb[0].mxu0
      %4351 = vmatprep.mubr.f32.mxu0 0.0
      %4352 = vmatmul.mubr.f32.gmra.mrb[0].mxu0 %v4166
      %v4353 = vpop.f32.mrb[0].mxu0
      %v4354 = vadd.f32 0.0, %v4353
      %v4355 = vpop.f32.mrb[0].mxu0
      %4356 = vmatprep.mubr.f32.mxu0 0.0
      %4357 = vmatmul.mubr.f32.gmra.mrb[0].mxu0 %v4168
      %v4358 = vpop.f32.mrb[0].mxu0
      %v4359 = vadd.f32 0.0, %v4358
      %v4360 = vpop.f32.mrb[0].mxu0
      %4361 = vmatprep.mubr.f32.mxu0 0.0
      %4362 = vmatmul.mubr.f32.gmra.mrb[0].mxu0 %v4170
      %v4363 = vpop.f32.mrb[0].mxu0
      %v4364 = vadd.f32 0.0, %v4363
      %v4365 = vpop.f32.mrb[0].mxu0
      %4366 = vmatprep.mubr.f32.mxu0 0.0
      %4367 = vmatmul.mubr.f32.gmra.mrb[0].mxu0 %v4172
      %v4368 = vpop.f32.mrb[0].mxu0
      %v4369 = vadd.f32 0.0, %v4368
      %v4370 = vpop.f32.mrb[0].mxu0
      %4371 = vmatprep.mubr.f32.mxu0 0.0
      %4372 = vmatmul.mubr.f32.gmra.mrb[0].mxu0 %v4174
      %v4373 = vpop.f32.mrb[0].mxu0
      %v4374 = vadd.f32 0.0, %v4373
      %v4375 = vpop.f32.mrb[0].mxu0
      %4376 = vmatprep.mubr.f32.mxu0 0.0
      %4377 = vmatmul.mubr.f32.gmra.mrb[0].mxu0 %v4176
      %v4378 = vpop.f32.mrb[0].mxu0
      %v4379 = vadd.f32 0.0, %v4378
      %v4380 = vpop.f32.mrb[0].mxu0
      %4381 = vmatprep.mubr.f32.mxu0 0.0
      %4382 = vmatmul.mubr.f32.gmra.mrb[0].mxu0 %v4178
      %v4383 = vpop.f32.mrb[0].mxu0
      %v4384 = vadd.f32 0.0, %v4383
      %v4385 = vpop.f32.mrb[0].mxu0
      %4386 = vmatprep.mubr.f32.mxu0 0.0
      %4387 = vmatmul.mubr.f32.gmra.mrb[0].mxu0 %v4180
      %v4388 = vpop.f32.mrb[0].mxu0
      %v4389 = vadd.f32 0.0, %v4388
      %v4390 = vpop.f32.mrb[0].mxu0
      %4391 = vmatprep.mubr.f32.mxu0 0.0
      %4392 = vmatmul.mubr.f32.gmra.mrb[0].mxu0 %v4182
      %v4393 = vpop.f32.mrb[0].mxu0
      %v4394 = vadd.f32 0.0, %v4393
      %v4395 = vpop.f32.mrb[0].mxu0
      %4396 = vmatprep.mubr.f32.mxu0 0.0
      %4397 = vmatmul.mubr.f32.gmra.mrb[0].mxu0 %v4184
      %v4398 = vpop.f32.mrb[0].mxu0
      %v4399 = vadd.f32 0.0, %v4398
      %v4400 = vpop.f32.mrb[0].mxu0
      %4401 = vmatprep.mubr.f32.mxu0 0.0
      %4402 = vmatmul.mubr.f32.gmra.mrb[0].mxu0 %v4186
      %v4403 = vpop.f32.mrb[0].mxu0
      %v4404 = vadd.f32 0.0, %v4403
      %v4405 = vpop.f32.mrb[0].mxu0
      %4406 = vmatprep.mubr.f32.mxu0 0.0
      %4407 = vmatmul.mubr.f32.gmra.mrb[0].mxu0 %v4188
      %v4408 = vpop.f32.mrb[0].mxu0
      %v4409 = vadd.f32 0.0, %v4408
      %v4410 = vpop.f32.mrb[0].mxu0
      %4411 = vmatprep.mubr.f32.mxu0 0.0
      %4412 = vmatmul.mubr.f32.gmra.mrb[0].mxu0 %v4190
      %v4413 = vpop.f32.mrb[0].mxu0
      %v4414 = vadd.f32 0.0, %v4413
      %v4415 = vpop.f32.mrb[0].mxu0
      %4416 = vmatprep.mubr.f32.mxu0 0.0
      %4417 = vmatmul.mubr.f32.gmra.mrb[0].mxu0 %v4192
      %v4418 = vpop.f32.mrb[0].mxu0
      %v4419 = vadd.f32 0.0, %v4418
      %v4420 = vpop.f32.mrb[0].mxu0
      %4421 = vdwg.mxu0
      %v4422 = vadd.f32 %v3968, %v4264
      %v4423 = vadd.f32 %v3969, %v4269
      %v4424 = vadd.f32 %v3970, %v4274
      %v4425 = vadd.f32 %v3971, %v4279
      %v4426 = vadd.f32 %v3972, %v4284
      %v4427 = vadd.f32 %v3973, %v4289
      %v4428 = vadd.f32 %v3974, %v4294
      %v4429 = vadd.f32 %v3975, %v4299
      %v4430 = vadd.f32 %v3976, %v4304
      %v4431 = vadd.f32 %v3977, %v4309
      %v4432 = vadd.f32 %v3978, %v4314
      %v4433 = vadd.f32 %v3979, %v4319
      %v4434 = vadd.f32 %v3980, %v4324
      %v4435 = vadd.f32 %v3981, %v4329
      %v4436 = vadd.f32 %v3982, %v4334
      %v4437 = vadd.f32 %v3983, %v4339
      %v4438 = vadd.f32 %v3984, %v4344
      %v4439 = vadd.f32 %v3985, %v4349
      %v4440 = vadd.f32 %v3986, %v4354
      %v4441 = vadd.f32 %v3987, %v4359
      %v4442 = vadd.f32 %v3988, %v4364
      %v4443 = vadd.f32 %v3989, %v4369
      %v4444 = vadd.f32 %v3990, %v4374
      %v4445 = vadd.f32 %v3991, %v4379
      %v4446 = vadd.f32 %v3992, %v4384
      %v4447 = vadd.f32 %v3993, %v4389
      %v4448 = vadd.f32 %v3994, %v4394
      %v4449 = vadd.f32 %v3995, %v4399
      %v4450 = vadd.f32 %v3996, %v4404
      %v4451 = vadd.f32 %v3997, %v4409
      %v4452 = vadd.f32 %v3998, %v4414
      %v4453 = vadd.f32 %v3999, %v4419
      %v4454 = vld [vmem:[%s2] sm:$0x1]
      %v4456 = vlaneseq
      %v4457 = vshrl.u32 %v4456, 7
      %v4458 = vsub.s32 0, %v4457
      %v4459 = vrot.slane %v4454, %v4458
      %v4461 = vadd.f32 %v4422, %v4459
      %v4462 = vadd.f32 %v4423, %v4459
      %v4463 = vadd.f32 %v4424, %v4459
      %v4464 = vadd.f32 %v4425, %v4459
      %v4465 = vadd.f32 %v4426, %v4459
      %v4466 = vadd.f32 %v4427, %v4459
      %v4467 = vadd.f32 %v4428, %v4459
      %v4468 = vadd.f32 %v4429, %v4459
      %v4469 = vadd.f32 %v4430, %v4459
      %v4470 = vadd.f32 %v4431, %v4459
      %v4471 = vadd.f32 %v4432, %v4459
      %v4472 = vadd.f32 %v4433, %v4459
      %v4473 = vadd.f32 %v4434, %v4459
      %v4474 = vadd.f32 %v4435, %v4459
      %v4475 = vadd.f32 %v4436, %v4459
      %v4476 = vadd.f32 %v4437, %v4459
      %v4477 = vadd.f32 %v4438, %v4459
      %v4478 = vadd.f32 %v4439, %v4459
      %v4479 = vadd.f32 %v4440, %v4459
      %v4480 = vadd.f32 %v4441, %v4459
      %v4481 = vadd.f32 %v4442, %v4459
      %v4482 = vadd.f32 %v4443, %v4459
      %v4483 = vadd.f32 %v4444, %v4459
      %v4484 = vadd.f32 %v4445, %v4459
      %v4485 = vadd.f32 %v4446, %v4459
      %v4486 = vadd.f32 %v4447, %v4459
      %v4487 = vadd.f32 %v4448, %v4459
      %v4488 = vadd.f32 %v4449, %v4459
      %v4489 = vadd.f32 %v4450, %v4459
      %v4490 = vadd.f32 %v4451, %v4459
      %v4491 = vadd.f32 %v4452, %v4459
      %v4492 = vadd.f32 %v4453, %v4459
      %v4493 = vld [vmem:[%s323] sm:$0x1]
      %v4494 = vmul.f32 %v4493, 0.001953125
      %v4495 = vld [vmem:[%s326] sm:$0x1]
      %v4496 = vmul.f32 %v4495, 0.001953125
      %v4497 = vmul.f32 %v4494, %v4494
      %v4498 = vsub.f32 %v4496, %v4497
      %v4499 = vadd.f32 %v4498, 1e-05
      %v4500 = vrsqrt.pop %v4499
      %v4501 = vld [vmem:[%s3] sm:$0x1]
      %v4502 = vmul.f32 %v4500, %v4501
      %v4504 = vlaneseq
      %v4505 = vshrl.u32 %v4504, 7
      %v4506 = vsub.s32 0, %v4505
      %v4507 = vrot.slane %v4494, %v4506
      %v4509 = vsub.f32 %v4461, %v4507
      %v4510 = vsub.f32 %v4462, %v4507
      %v4511 = vsub.f32 %v4463, %v4507
      %v4512 = vsub.f32 %v4464, %v4507
      %v4513 = vsub.f32 %v4465, %v4507
      %v4514 = vsub.f32 %v4466, %v4507
      %v4515 = vsub.f32 %v4467, %v4507
      %v4516 = vsub.f32 %v4468, %v4507
      %v4517 = vsub.f32 %v4469, %v4507
      %v4518 = vsub.f32 %v4470, %v4507
      %v4519 = vsub.f32 %v4471, %v4507
      %v4520 = vsub.f32 %v4472, %v4507
      %v4521 = vsub.f32 %v4473, %v4507
      %v4522 = vsub.f32 %v4474, %v4507
      %v4523 = vsub.f32 %v4475, %v4507
      %v4524 = vsub.f32 %v4476, %v4507
      %v4525 = vsub.f32 %v4477, %v4507
      %v4526 = vsub.f32 %v4478, %v4507
      %v4527 = vsub.f32 %v4479, %v4507
      %v4528 = vsub.f32 %v4480, %v4507
      %v4529 = vsub.f32 %v4481, %v4507
      %v4530 = vsub.f32 %v4482, %v4507
      %v4531 = vsub.f32 %v4483, %v4507
      %v4532 = vsub.f32 %v4484, %v4507
      %v4533 = vsub.f32 %v4485, %v4507
      %v4534 = vsub.f32 %v4486, %v4507
      %v4535 = vsub.f32 %v4487, %v4507
      %v4536 = vsub.f32 %v4488, %v4507
      %v4537 = vsub.f32 %v4489, %v4507
      %v4538 = vsub.f32 %v4490, %v4507
      %v4539 = vsub.f32 %v4491, %v4507
      %v4540 = vsub.f32 %v4492, %v4507
      %v4542 = vlaneseq
      %v4543 = vshrl.u32 %v4542, 7
      %v4544 = vsub.s32 0, %v4543
      %v4545 = vrot.slane %v4502, %v4544
      %v4547 = vmul.f32 %v4509, %v4545
      %v4548 = vmul.f32 %v4510, %v4545
      %v4549 = vmul.f32 %v4511, %v4545
      %v4550 = vmul.f32 %v4512, %v4545
      %v4551 = vmul.f32 %v4513, %v4545
      %v4552 = vmul.f32 %v4514, %v4545
      %v4553 = vmul.f32 %v4515, %v4545
      %v4554 = vmul.f32 %v4516, %v4545
      %v4555 = vmul.f32 %v4517, %v4545
      %v4556 = vmul.f32 %v4518, %v4545
      %v4557 = vmul.f32 %v4519, %v4545
      %v4558 = vmul.f32 %v4520, %v4545
      %v4559 = vmul.f32 %v4521, %v4545
      %v4560 = vmul.f32 %v4522, %v4545
      %v4561 = vmul.f32 %v4523, %v4545
      %v4562 = vmul.f32 %v4524, %v4545
      %v4563 = vmul.f32 %v4525, %v4545
      %v4564 = vmul.f32 %v4526, %v4545
      %v4565 = vmul.f32 %v4527, %v4545
      %v4566 = vmul.f32 %v4528, %v4545
      %v4567 = vmul.f32 %v4529, %v4545
      %v4568 = vmul.f32 %v4530, %v4545
      %v4569 = vmul.f32 %v4531, %v4545
      %v4570 = vmul.f32 %v4532, %v4545
      %v4571 = vmul.f32 %v4533, %v4545
      %v4572 = vmul.f32 %v4534, %v4545
      %v4573 = vmul.f32 %v4535, %v4545
      %v4574 = vmul.f32 %v4536, %v4545
      %v4575 = vmul.f32 %v4537, %v4545
      %v4576 = vmul.f32 %v4538, %v4545
      %v4577 = vmul.f32 %v4539, %v4545
      %v4578 = vmul.f32 %v4540, %v4545
      %v4579 = vld [vmem:[%s4] sm:$0x1]
      %v4581 = vlaneseq
      %v4582 = vshrl.u32 %v4581, 7
      %v4583 = vsub.s32 0, %v4582
      %v4584 = vrot.slane %v4579, %v4583
      %v4586 = vadd.f32 %v4547, %v4584
      %v4587 = vadd.f32 %v4548, %v4584
      %v4588 = vadd.f32 %v4549, %v4584
      %v4589 = vadd.f32 %v4550, %v4584
      %v4590 = vadd.f32 %v4551, %v4584
      %v4591 = vadd.f32 %v4552, %v4584
      %v4592 = vadd.f32 %v4553, %v4584
      %v4593 = vadd.f32 %v4554, %v4584
      %v4594 = vadd.f32 %v4555, %v4584
      %v4595 = vadd.f32 %v4556, %v4584
      %v4596 = vadd.f32 %v4557, %v4584
      %v4597 = vadd.f32 %v4558, %v4584
      %v4598 = vadd.f32 %v4559, %v4584
      %v4599 = vadd.f32 %v4560, %v4584
      %v4600 = vadd.f32 %v4561, %v4584
      %v4601 = vadd.f32 %v4562, %v4584
      %v4602 = vadd.f32 %v4563, %v4584
      %v4603 = vadd.f32 %v4564, %v4584
      %v4604 = vadd.f32 %v4565, %v4584
      %v4605 = vadd.f32 %v4566, %v4584
      %v4606 = vadd.f32 %v4567, %v4584
      %v4607 = vadd.f32 %v4568, %v4584
      %v4608 = vadd.f32 %v4569, %v4584
      %v4609 = vadd.f32 %v4570, %v4584
      %v4610 = vadd.f32 %v4571, %v4584
      %v4611 = vadd.f32 %v4572, %v4584
      %v4612 = vadd.f32 %v4573, %v4584
      %v4613 = vadd.f32 %v4574, %v4584
      %v4614 = vadd.f32 %v4575, %v4584
      %v4615 = vadd.f32 %v4576, %v4584
      %v4616 = vadd.f32 %v4577, %v4584
      %v4617 = vadd.f32 %v4578, %v4584
      %v4618 = vmax.f32 %v4586, 0.0
      %v4619 = vmax.f32 %v4587, 0.0
      %v4620 = vmax.f32 %v4588, 0.0
      %v4621 = vmax.f32 %v4589, 0.0
      %v4622 = vmax.f32 %v4590, 0.0
      %v4623 = vmax.f32 %v4591, 0.0
      %v4624 = vmax.f32 %v4592, 0.0
      %v4625 = vmax.f32 %v4593, 0.0
      %v4626 = vmax.f32 %v4594, 0.0
      %v4627 = vmax.f32 %v4595, 0.0
      %v4628 = vmax.f32 %v4596, 0.0
      %v4629 = vmax.f32 %v4597, 0.0
      %v4630 = vmax.f32 %v4598, 0.0
      %v4631 = vmax.f32 %v4599, 0.0
      %v4632 = vmax.f32 %v4600, 0.0
      %v4633 = vmax.f32 %v4601, 0.0
      %v4634 = vmax.f32 %v4602, 0.0
      %v4635 = vmax.f32 %v4603, 0.0
      %v4636 = vmax.f32 %v4604, 0.0
      %v4637 = vmax.f32 %v4605, 0.0
      %v4638 = vmax.f32 %v4606, 0.0
      %v4639 = vmax.f32 %v4607, 0.0
      %v4640 = vmax.f32 %v4608, 0.0
      %v4641 = vmax.f32 %v4609, 0.0
      %v4642 = vmax.f32 %v4610, 0.0
      %v4643 = vmax.f32 %v4611, 0.0
      %v4644 = vmax.f32 %v4612, 0.0
      %v4645 = vmax.f32 %v4613, 0.0
      %v4646 = vmax.f32 %v4614, 0.0
      %v4647 = vmax.f32 %v4615, 0.0
      %v4648 = vmax.f32 %v4616, 0.0
      %v4649 = vmax.f32 %v4617, 0.0
      %v4650 = vadd.f32 %v4618, %v4619
      %v4651 = vadd.f32 %v4650, %v4620
      %v4652 = vadd.f32 %v4651, %v4621
      %v4653 = vadd.f32 %v4652, %v4622
      %v4654 = vadd.f32 %v4653, %v4623
      %v4655 = vadd.f32 %v4654, %v4624
      %v4656 = vadd.f32 %v4655, %v4625
      %v4657 = vadd.f32 %v4656, %v4626
      %v4658 = vadd.f32 %v4657, %v4627
      %v4659 = vadd.f32 %v4658, %v4628
      %v4660 = vadd.f32 %v4659, %v4629
      %v4661 = vadd.f32 %v4660, %v4630
      %v4662 = vadd.f32 %v4661, %v4631
      %v4663 = vadd.f32 %v4662, %v4632
      %v4664 = vadd.f32 %v4663, %v4633
      %v4665 = vadd.f32 %v4664, %v4634
      %v4666 = vadd.f32 %v4665, %v4635
      %v4667 = vadd.f32 %v4666, %v4636
      %v4668 = vadd.f32 %v4667, %v4637
      %v4669 = vadd.f32 %v4668, %v4638
      %v4670 = vadd.f32 %v4669, %v4639
      %v4671 = vadd.f32 %v4670, %v4640
      %v4672 = vadd.f32 %v4671, %v4641
      %v4673 = vadd.f32 %v4672, %v4642
      %v4674 = vadd.f32 %v4673, %v4643
      %v4675 = vadd.f32 %v4674, %v4644
      %v4676 = vadd.f32 %v4675, %v4645
      %v4677 = vadd.f32 %v4676, %v4646
      %v4678 = vadd.f32 %v4677, %v4647
      %v4679 = vadd.f32 %v4678, %v4648
      %v4680 = vadd.f32 %v4679, %v4649
      %v4681 = vrot.slane %v4680, 4
      %v4682 = vadd.f32 %v4680, %v4681
      %v4683 = vrot.slane %v4682, 2
      %v4684 = vadd.f32 %v4682, %v4683
      %v4685 = vrot.slane %v4684, 1
      %v4686 = vadd.f32 %v4684, %v4685
      %v4687 = vrcp.pop 256.0
      %v4688 = vmul.f32 %v4686, %v4687
      %s4689 = scalar_lea.vmem %s330, %s23
      %4690 = vst [vmem:[%s4689] sm:$0x1] %v4688
      %p4691 = scmp.lt.s32.totalorder %s22, 0
      %s4692 = scalar_select %p4691, %s22, 0
      %s4693 = smul.addr %s4692, 2
      %s4694 = scalar_lea.vmem %s7, %s4693
      // Predicated region
      $region49: #{byol_forward.3} parent=47 // pred_check
        %p4695 = pneg %p212
      $region50: #{byol_forward.3} parent=47 // pred_check_branch
        %4697 = sbr.rel (%p4695) target = $region52
      $region51: #{byol_forward.3} parent=47 // pred_region
        _
      $region52: #{byol_forward.3} parent=47 // pred_fallthru
        _
      // Predicated region
      $region53: #{byol_forward.3} parent=47 // pred_check
        %p4698 = pneg %p212
      $region54: #{byol_forward.3} parent=47 // pred_check_branch
        %4700 = sbr.rel (%p4698) target = $region56
      $region55: #{byol_forward.3} parent=47 // pred_region
        %p4701 = scmp.lt.s32.totalorder %s22, 0
        %s4702 = scalar_select %p4701, %s22, 0
        %s4703 = smul.addr %s4702, 2
        %s4704 = scalar_lea.vmem %s7, %s4703
      $region56: #{byol_forward.3} parent=47 // pred_fallthru
        _
    $region48: #{byol_forward.3} parent=5 // pred_fallthru
      _
    %p4705 = scmp.le.s32.totalorder 2, %s13
    // Predicated region
    $region57: #{byol_forward.3} parent=5 // pred_check
      %p4706 = pneg %p4705
    $region58: #{byol_forward.3} parent=5 // pred_check_branch
      %4708 = sbr.rel (%p4706) target = $region60
    $region59: #{byol_forward.3} parent=5 // pred_region
      %s4709 = ssub.s32 %s13, 2
    $region60: #{byol_forward.3} parent=5 // pred_fallthru
      _
  $region6: #{byol_forward.3} parent=0 // loop_footer
    %s17 = sadd.s32 1, %s13
  $region7: #{byol_forward.3} parent=0 // loop_footer_branch
    %12 = sbr.rel target = $region3
  $region8: #{byol_forward.3} parent=0 // loop_exit
    _

</llo_original>
